<compile_context>
chip_gen: v7x
topology: tpu7x:2x2x1
jax: 0.10.0
libtpu: 0.0.40
codegen_flags: <defaults>
</compile_context>

<pallas_src>
import jax
import jax.numpy as jnp
from jax.experimental import pallas as pl
from jax.experimental.pallas import tpu as pltpu

# TODO(synk): CLASS_LIST is not defined in the spec; 3 classes assumed as previously agreed.
NUM_CLASSES = 3

K_AUG = 8        # 7 input features + 1 constant-one feature that carries b1 / the b2 unit
H_CHUNK = 128    # hidden rows per fused chunk (sublanes of the h sub-tile)
LANE_TILE = 256  # batch lanes per register sub-tile: h sub-tile (128, 256) f32 = 32 vregs


def _round_up(a: int, b: int) -> int:
    return ((a + b - 1) // b) * b


def _cdiv(a: int, b: int) -> int:
    return (a + b - 1) // b


def cell_head_kernel(xT_ref, w1t_ref, w2t_ref, oT_ref):
    # xT_ref : (K_AUG, TB)    f32  transposed input block (batch on lanes); row 7 == 1.0
    # w1t_ref: (H_pad, K_AUG) f32  layer-1 weights, w1t[h, k] = W1[k, h]; col 7 = b1;
    #                              row H is the constant-one unit carrying b2
    # w2t_ref: (K_AUG, H_pad) f32  layer-2 weights transposed/padded; col H = b2
    # oT_ref : (K_AUG, TB)    f32  transposed output block; rows 0..NUM_CLASSES-1 are real
    h_pad = w1t_ref.shape[0]
    tb = xT_ref.shape[1]
    n_h = h_pad // H_CHUNK
    n_t = tb // LANE_TILE

    xT = xT_ref[...]  # (8, TB): a few vregs, stays resident for the whole block

    for t in range(n_t):                                   # static: 256-lane batch sub-tiles
        xt = xT[:, t * LANE_TILE:(t + 1) * LANE_TILE]      # (8, LT)
        acc = jnp.zeros((K_AUG, LANE_TILE), jnp.float32)   # (8, LT) = 2 vregs
        for c in range(n_h):                               # static: fused hidden chunks
            w1c = w1t_ref[c * H_CHUNK:(c + 1) * H_CHUNK, :]    # (CH, 8) constant slice
            # layer 1: K=8 unrolled outer-product FMAs on the VPU; h chunk lives in vregs.
            # (bias b1 is the k=7 term because xt[7, :] == 1 for real batch columns)
            h = w1c[:, 0:1] * xt[0:1, :]
            for k in range(1, K_AUG):
                h = h + w1c[:, k:k + 1] * xt[k:k + 1, :]
            h = jnp.maximum(h, 0.0)                            # relu, (CH, LT)
            # layer 2 partial product on the MXU: (8, CH) @ (CH, LT) -> (8, LT).
            # Default (exact) f32 matmul; do NOT drop operands to plain bf16 (would break
            # the 1e-4 tolerance over the ~1000-long contraction).
            w2c = w2t_ref[:, c * H_CHUNK:(c + 1) * H_CHUNK]    # (8, CH)
            acc = acc + jnp.dot(w2c, h, preferred_element_type=jnp.float32)
        # lane-dense, unmasked 256-lane store of this sub-tile's result
        oT_ref[:, t * LANE_TILE:(t + 1) * LANE_TILE] = acc


def prepare_params(w1, b1, w2, b2):
    """One-time parameter prep (hoisted out of the per-forward path).

    Returns (w1t, w2t):
      w1t: (H_pad, 8)  — W1 transposed; column 7 holds b1; spare hidden unit H outputs 1.
      w2t: (8, H_pad)  — W2 transposed, classes padded to 8 sublanes; column H holds b2.
    """
    K, H = w1.shape
    N = w2.shape[1]
    assert K == K_AUG - 1, f"expected {K_AUG - 1} input features, got {K}"
    assert N <= K_AUG, f"at most {K_AUG} output classes supported, got {N}"
    H_pad = _round_up(H + 1, H_CHUNK)  # +1 reserves the constant-one unit carrying b2
    f32 = jnp.float32

    w1t = jnp.zeros((H_pad, K_AUG), f32)
    w1t = w1t.at[:H, :K].set(jnp.asarray(w1, f32).T)
    w1t = w1t.at[:H, K].set(jnp.asarray(b1, f32).reshape(H))
    w1t = w1t.at[H, K].set(1.0)               # unit H: relu(1*1) == 1  -> carries b2

    w2t = jnp.zeros((K_AUG, H_pad), f32)
    w2t = w2t.at[:N, :H].set(jnp.asarray(w2, f32).T)
    w2t = w2t.at[:N, H].set(jnp.asarray(b2, f32).reshape(N))
    return w1t, w2t


def _choose_tb(B: int, tb_max: int) -> int:
    """Batch tile in lanes: multiple of LANE_TILE, capped at tb_max, and picked so the
    'parallel' grid axis has >= 2 (even) steps for small/moderate batches so v7x's two
    TensorCores split it evenly. For very large batches the grid is long and imbalance
    from an odd step count is negligible."""
    n_lt = _cdiv(max(B, 1), LANE_TILE)
    max_lt = max(tb_max // LANE_TILE, 1)
    if n_lt <= 1:
        return LANE_TILE
    tiles = min(max_lt, (n_lt + 1) // 2)      # guarantees at least 2 grid steps
    return tiles * LANE_TILE


def cell_net_forward(x, w1t, w2t, *, n_out: int = NUM_CLASSES, tb: int = 1024):
    """out = relu(x @ W1 + b1) @ W2 + b2 using prepared (w1t, w2t); returns (B, n_out)."""
    B, K = x.shape
    assert K == K_AUG - 1
    H_pad = w1t.shape[0]
    assert H_pad % H_CHUNK == 0

    TB = _choose_tb(B, tb)
    B_pad = _round_up(B, TB)
    f32 = jnp.float32

    # Transposed, padded input: (8, B_pad) with the constant-one bias feature in row 7.
    xT = jnp.zeros((K_AUG, B_pad), f32)
    xT = xT.at[:K, :B].set(jnp.asarray(x, f32).T)
    xT = xT.at[K, :B].set(1.0)

    grid = (B_pad // TB,)
    oT = pl.pallas_call(
        cell_head_kernel,
        out_shape=jax.ShapeDtypeStruct((K_AUG, B_pad), f32),
        grid_spec=pltpu.PrefetchScalarGridSpec(
            num_scalar_prefetch=0,
            grid=grid,
            in_specs=[
                pl.BlockSpec((K_AUG, TB), lambda i: (0, i)),     # xT: tiled over batch lanes
                pl.BlockSpec((H_pad, K_AUG), lambda i: (0, 0)),  # w1t: resident constant
                pl.BlockSpec((K_AUG, H_pad), lambda i: (0, 0)),  # w2t: resident constant
            ],
            out_specs=pl.BlockSpec((K_AUG, TB), lambda i: (0, i)),
        ),
        compiler_params=pltpu.CompilerParams(
            dimension_semantics=("parallel",)),                  # independent batch tiles
    )(xT, w1t, w2t)

    # Tiny (n_out, B) slice + transpose back to (B, n_out): ~16x less readback than the
    # previous (B_pad, 128) post-kernel slice.
    return oT[:n_out, :B].T


def init_params(key):
    # nn.Linear-style shapes: l1 = Linear(7, 1000), l2 = Linear(1000, NUM_CLASSES).
    k1, k2, k3, k4 = jax.random.split(key, 4)
    lim1 = 1.0 / jnp.sqrt(7.0)
    lim2 = 1.0 / jnp.sqrt(1000.0)
    w1 = jax.random.uniform(k1, (7, 1000), jnp.float32, -lim1, lim1)
    b1 = jax.random.uniform(k2, (1, 1000), jnp.float32, -lim1, lim1)
    w2 = jax.random.uniform(k3, (1000, NUM_CLASSES), jnp.float32, -lim2, lim2)
    b2 = jax.random.uniform(k4, (1, NUM_CLASSES), jnp.float32, -lim2, lim2)
    return w1, b1, w2, b2


if __name__ == "__main__":
    key = jax.random.PRNGKey(0)
    kx, kp = jax.random.split(key)

    # B=300 exercises a 2-step (even) grid, batch padding (300 -> 512), the folded-bias
    # paths, and the hidden-chunk / lane-sub-tile loops.
    B = 300
    x = jax.random.normal(kx, (B, 7), jnp.float32)
    w1, b1, w2, b2 = init_params(kp)

    # One-time parameter prep (hoisted out of the per-call path).
    w1t, w2t = prepare_params(w1, b1, w2, b2)

    fwd = jax.jit(cell_net_forward, static_argnames=("n_out", "tb"))
    out = fwd(x, w1t, w2t)
    out = jax.block_until_ready(out)

    # Reference in plain JAX (same math as the PyTorch head).
    ref = jnp.maximum(x @ w1 + b1, 0.0) @ w2 + b2
    assert out.shape == (B, NUM_CLASSES)
    assert jnp.allclose(out, ref, atol=1e-4, rtol=1e-4)

    print("KERNEL_OK")
</pallas_src>

<mosaic_0001>
module attributes {stable_mosaic.version = 11 : i64} {
  func.func @cell_head_kernel(%arg0: i32, %arg1: memref<8x256xf32, #tpu.memory_space<vmem>>, %arg2: memref<1024x8xf32, #tpu.memory_space<vmem>>, %arg3: memref<8x1024xf32, #tpu.memory_space<vmem>>, %arg4: memref<8x256xf32, #tpu.memory_space<vmem>>) attributes {dimension_semantics = [#tpu.dimension_semantics<parallel>], iteration_bounds = array<i64: 2>, scalar_prefetch = 0 : i64, scratch_operands = 0 : i64, tpu.core_type = #tpu.core_type<tc>, window_params = [{transform_indices = @transform_0, window_bounds = array<i64: 8, 256>}, {pipeline_mode = #tpu.pipeline_mode<synchronous>, transform_indices = @transform_1, window_bounds = array<i64: 1024, 8>}, {pipeline_mode = #tpu.pipeline_mode<synchronous>, transform_indices = @transform_2, window_bounds = array<i64: 8, 1024>}, {transform_indices = @transform_3, window_bounds = array<i64: 8, 256>}]} {
    %c0 = arith.constant 0 : index
    %c0_0 = arith.constant 0 : index
    %0 = vector.load %arg1[%c0, %c0_0] : memref<8x256xf32, #tpu.memory_space<vmem>>, vector<8x256xf32>
    %cst = arith.constant 0.000000e+00 : f32
    %1 = vector.broadcast %cst : f32 to vector<8x256xf32>
    %c0_1 = arith.constant 0 : index
    %c0_2 = arith.constant 0 : index
    %2 = vector.load %arg2[%c0_1, %c0_2] : memref<1024x8xf32, #tpu.memory_space<vmem>>, vector<128x8xf32>
    %3 = vector.extract_strided_slice %2 {offsets = [0, 0], sizes = [128, 1], strides = [1, 1]} : vector<128x8xf32> to vector<128x1xf32>
    %4 = vector.extract_strided_slice %0 {offsets = [0, 0], sizes = [1, 256], strides = [1, 1]} : vector<8x256xf32> to vector<1x256xf32>
    %5 = vector.broadcast %3 : vector<128x1xf32> to vector<128x256xf32>
    %6 = vector.broadcast %4 : vector<1x256xf32> to vector<128x256xf32>
    %7 = arith.mulf %5, %6 : vector<128x256xf32>
    %8 = vector.extract_strided_slice %2 {offsets = [0, 1], sizes = [128, 1], strides = [1, 1]} : vector<128x8xf32> to vector<128x1xf32>
    %9 = vector.extract_strided_slice %0 {offsets = [1, 0], sizes = [1, 256], strides = [1, 1]} : vector<8x256xf32> to vector<1x256xf32>
    %10 = vector.broadcast %8 : vector<128x1xf32> to vector<128x256xf32>
    %11 = vector.broadcast %9 : vector<1x256xf32> to vector<128x256xf32>
    %12 = arith.mulf %10, %11 : vector<128x256xf32>
    %13 = arith.addf %7, %12 : vector<128x256xf32>
    %14 = vector.extract_strided_slice %2 {offsets = [0, 2], sizes = [128, 1], strides = [1, 1]} : vector<128x8xf32> to vector<128x1xf32>
    %15 = vector.extract_strided_slice %0 {offsets = [2, 0], sizes = [1, 256], strides = [1, 1]} : vector<8x256xf32> to vector<1x256xf32>
    %16 = vector.broadcast %14 : vector<128x1xf32> to vector<128x256xf32>
    %17 = vector.broadcast %15 : vector<1x256xf32> to vector<128x256xf32>
    %18 = arith.mulf %16, %17 : vector<128x256xf32>
    %19 = arith.addf %13, %18 : vector<128x256xf32>
    %20 = vector.extract_strided_slice %2 {offsets = [0, 3], sizes = [128, 1], strides = [1, 1]} : vector<128x8xf32> to vector<128x1xf32>
    %21 = vector.extract_strided_slice %0 {offsets = [3, 0], sizes = [1, 256], strides = [1, 1]} : vector<8x256xf32> to vector<1x256xf32>
    %22 = vector.broadcast %20 : vector<128x1xf32> to vector<128x256xf32>
    %23 = vector.broadcast %21 : vector<1x256xf32> to vector<128x256xf32>
    %24 = arith.mulf %22, %23 : vector<128x256xf32>
    %25 = arith.addf %19, %24 : vector<128x256xf32>
    %26 = vector.extract_strided_slice %2 {offsets = [0, 4], sizes = [128, 1], strides = [1, 1]} : vector<128x8xf32> to vector<128x1xf32>
    %27 = vector.extract_strided_slice %0 {offsets = [4, 0], sizes = [1, 256], strides = [1, 1]} : vector<8x256xf32> to vector<1x256xf32>
    %28 = vector.broadcast %26 : vector<128x1xf32> to vector<128x256xf32>
    %29 = vector.broadcast %27 : vector<1x256xf32> to vector<128x256xf32>
    %30 = arith.mulf %28, %29 : vector<128x256xf32>
    %31 = arith.addf %25, %30 : vector<128x256xf32>
    %32 = vector.extract_strided_slice %2 {offsets = [0, 5], sizes = [128, 1], strides = [1, 1]} : vector<128x8xf32> to vector<128x1xf32>
    %33 = vector.extract_strided_slice %0 {offsets = [5, 0], sizes = [1, 256], strides = [1, 1]} : vector<8x256xf32> to vector<1x256xf32>
    %34 = vector.broadcast %32 : vector<128x1xf32> to vector<128x256xf32>
    %35 = vector.broadcast %33 : vector<1x256xf32> to vector<128x256xf32>
    %36 = arith.mulf %34, %35 : vector<128x256xf32>
    %37 = arith.addf %31, %36 : vector<128x256xf32>
    %38 = vector.extract_strided_slice %2 {offsets = [0, 6], sizes = [128, 1], strides = [1, 1]} : vector<128x8xf32> to vector<128x1xf32>
    %39 = vector.extract_strided_slice %0 {offsets = [6, 0], sizes = [1, 256], strides = [1, 1]} : vector<8x256xf32> to vector<1x256xf32>
    %40 = vector.broadcast %38 : vector<128x1xf32> to vector<128x256xf32>
    %41 = vector.broadcast %39 : vector<1x256xf32> to vector<128x256xf32>
    %42 = arith.mulf %40, %41 : vector<128x256xf32>
    %43 = arith.addf %37, %42 : vector<128x256xf32>
    %44 = vector.extract_strided_slice %2 {offsets = [0, 7], sizes = [128, 1], strides = [1, 1]} : vector<128x8xf32> to vector<128x1xf32>
    %45 = vector.extract_strided_slice %0 {offsets = [7, 0], sizes = [1, 256], strides = [1, 1]} : vector<8x256xf32> to vector<1x256xf32>
    %46 = vector.broadcast %44 : vector<128x1xf32> to vector<128x256xf32>
    %47 = vector.broadcast %45 : vector<1x256xf32> to vector<128x256xf32>
    %48 = arith.mulf %46, %47 : vector<128x256xf32>
    %49 = arith.addf %43, %48 : vector<128x256xf32>
    %cst_3 = arith.constant 0.000000e+00 : f32
    %50 = vector.broadcast %cst_3 : f32 to vector<128x256xf32>
    %51 = arith.maximumf %49, %50 : vector<128x256xf32>
    %c0_4 = arith.constant 0 : index
    %c0_5 = arith.constant 0 : index
    %52 = vector.load %arg3[%c0_4, %c0_5] : memref<8x1024xf32, #tpu.memory_space<vmem>>, vector<8x128xf32>
    %cst_6 = arith.constant dense<0.000000e+00> : vector<8x256xf32>
    %53 = tpu.matmul %52, %51, %cst_6 {dimension_numbers = #tpu.dot_dimension_numbers<[1], [0], [0], [1], [0, 0, 1, 1], [], []>} : vector<8x128xf32>, vector<128x256xf32>, vector<8x256xf32> -> vector<8x256xf32>
    %54 = arith.addf %1, %53 : vector<8x256xf32>
    %c128 = arith.constant 128 : index
    %c0_7 = arith.constant 0 : index
    %55 = vector.load %arg2[%c128, %c0_7] : memref<1024x8xf32, #tpu.memory_space<vmem>>, vector<128x8xf32>
    %56 = vector.extract_strided_slice %55 {offsets = [0, 0], sizes = [128, 1], strides = [1, 1]} : vector<128x8xf32> to vector<128x1xf32>
    %57 = vector.extract_strided_slice %0 {offsets = [0, 0], sizes = [1, 256], strides = [1, 1]} : vector<8x256xf32> to vector<1x256xf32>
    %58 = vector.broadcast %56 : vector<128x1xf32> to vector<128x256xf32>
    %59 = vector.broadcast %57 : vector<1x256xf32> to vector<128x256xf32>
    %60 = arith.mulf %58, %59 : vector<128x256xf32>
    %61 = vector.extract_strided_slice %55 {offsets = [0, 1], sizes = [128, 1], strides = [1, 1]} : vector<128x8xf32> to vector<128x1xf32>
    %62 = vector.extract_strided_slice %0 {offsets = [1, 0], sizes = [1, 256], strides = [1, 1]} : vector<8x256xf32> to vector<1x256xf32>
    %63 = vector.broadcast %61 : vector<128x1xf32> to vector<128x256xf32>
    %64 = vector.broadcast %62 : vector<1x256xf32> to vector<128x256xf32>
    %65 = arith.mulf %63, %64 : vector<128x256xf32>
    %66 = arith.addf %60, %65 : vector<128x256xf32>
    %67 = vector.extract_strided_slice %55 {offsets = [0, 2], sizes = [128, 1], strides = [1, 1]} : vector<128x8xf32> to vector<128x1xf32>
    %68 = vector.extract_strided_slice %0 {offsets = [2, 0], sizes = [1, 256], strides = [1, 1]} : vector<8x256xf32> to vector<1x256xf32>
    %69 = vector.broadcast %67 : vector<128x1xf32> to vector<128x256xf32>
    %70 = vector.broadcast %68 : vector<1x256xf32> to vector<128x256xf32>
    %71 = arith.mulf %69, %70 : vector<128x256xf32>
    %72 = arith.addf %66, %71 : vector<128x256xf32>
    %73 = vector.extract_strided_slice %55 {offsets = [0, 3], sizes = [128, 1], strides = [1, 1]} : vector<128x8xf32> to vector<128x1xf32>
    %74 = vector.extract_strided_slice %0 {offsets = [3, 0], sizes = [1, 256], strides = [1, 1]} : vector<8x256xf32> to vector<1x256xf32>
    %75 = vector.broadcast %73 : vector<128x1xf32> to vector<128x256xf32>
    %76 = vector.broadcast %74 : vector<1x256xf32> to vector<128x256xf32>
    %77 = arith.mulf %75, %76 : vector<128x256xf32>
    %78 = arith.addf %72, %77 : vector<128x256xf32>
    %79 = vector.extract_strided_slice %55 {offsets = [0, 4], sizes = [128, 1], strides = [1, 1]} : vector<128x8xf32> to vector<128x1xf32>
    %80 = vector.extract_strided_slice %0 {offsets = [4, 0], sizes = [1, 256], strides = [1, 1]} : vector<8x256xf32> to vector<1x256xf32>
    %81 = vector.broadcast %79 : vector<128x1xf32> to vector<128x256xf32>
    %82 = vector.broadcast %80 : vector<1x256xf32> to vector<128x256xf32>
    %83 = arith.mulf %81, %82 : vector<128x256xf32>
    %84 = arith.addf %78, %83 : vector<128x256xf32>
    %85 = vector.extract_strided_slice %55 {offsets = [0, 5], sizes = [128, 1], strides = [1, 1]} : vector<128x8xf32> to vector<128x1xf32>
    %86 = vector.extract_strided_slice %0 {offsets = [5, 0], sizes = [1, 256], strides = [1, 1]} : vector<8x256xf32> to vector<1x256xf32>
    %87 = vector.broadcast %85 : vector<128x1xf32> to vector<128x256xf32>
    %88 = vector.broadcast %86 : vector<1x256xf32> to vector<128x256xf32>
    %89 = arith.mulf %87, %88 : vector<128x256xf32>
    %90 = arith.addf %84, %89 : vector<128x256xf32>
    %91 = vector.extract_strided_slice %55 {offsets = [0, 6], sizes = [128, 1], strides = [1, 1]} : vector<128x8xf32> to vector<128x1xf32>
    %92 = vector.extract_strided_slice %0 {offsets = [6, 0], sizes = [1, 256], strides = [1, 1]} : vector<8x256xf32> to vector<1x256xf32>
    %93 = vector.broadcast %91 : vector<128x1xf32> to vector<128x256xf32>
    %94 = vector.broadcast %92 : vector<1x256xf32> to vector<128x256xf32>
    %95 = arith.mulf %93, %94 : vector<128x256xf32>
    %96 = arith.addf %90, %95 : vector<128x256xf32>
    %97 = vector.extract_strided_slice %55 {offsets = [0, 7], sizes = [128, 1], strides = [1, 1]} : vector<128x8xf32> to vector<128x1xf32>
    %98 = vector.extract_strided_slice %0 {offsets = [7, 0], sizes = [1, 256], strides = [1, 1]} : vector<8x256xf32> to vector<1x256xf32>
    %99 = vector.broadcast %97 : vector<128x1xf32> to vector<128x256xf32>
    %100 = vector.broadcast %98 : vector<1x256xf32> to vector<128x256xf32>
    %101 = arith.mulf %99, %100 : vector<128x256xf32>
    %102 = arith.addf %96, %101 : vector<128x256xf32>
    %cst_8 = arith.constant 0.000000e+00 : f32
    %103 = vector.broadcast %cst_8 : f32 to vector<128x256xf32>
    %104 = arith.maximumf %102, %103 : vector<128x256xf32>
    %c0_9 = arith.constant 0 : index
    %c128_10 = arith.constant 128 : index
    %105 = vector.load %arg3[%c0_9, %c128_10] : memref<8x1024xf32, #tpu.memory_space<vmem>>, vector<8x128xf32>
    %cst_11 = arith.constant dense<0.000000e+00> : vector<8x256xf32>
    %106 = tpu.matmul %105, %104, %cst_11 {dimension_numbers = #tpu.dot_dimension_numbers<[1], [0], [0], [1], [0, 0, 1, 1], [], []>} : vector<8x128xf32>, vector<128x256xf32>, vector<8x256xf32> -> vector<8x256xf32>
    %107 = arith.addf %54, %106 : vector<8x256xf32>
    %c256 = arith.constant 256 : index
    %c0_12 = arith.constant 0 : index
    %108 = vector.load %arg2[%c256, %c0_12] : memref<1024x8xf32, #tpu.memory_space<vmem>>, vector<128x8xf32>
    %109 = vector.extract_strided_slice %108 {offsets = [0, 0], sizes = [128, 1], strides = [1, 1]} : vector<128x8xf32> to vector<128x1xf32>
    %110 = vector.extract_strided_slice %0 {offsets = [0, 0], sizes = [1, 256], strides = [1, 1]} : vector<8x256xf32> to vector<1x256xf32>
    %111 = vector.broadcast %109 : vector<128x1xf32> to vector<128x256xf32>
    %112 = vector.broadcast %110 : vector<1x256xf32> to vector<128x256xf32>
    %113 = arith.mulf %111, %112 : vector<128x256xf32>
    %114 = vector.extract_strided_slice %108 {offsets = [0, 1], sizes = [128, 1], strides = [1, 1]} : vector<128x8xf32> to vector<128x1xf32>
    %115 = vector.extract_strided_slice %0 {offsets = [1, 0], sizes = [1, 256], strides = [1, 1]} : vector<8x256xf32> to vector<1x256xf32>
    %116 = vector.broadcast %114 : vector<128x1xf32> to vector<128x256xf32>
    %117 = vector.broadcast %115 : vector<1x256xf32> to vector<128x256xf32>
    %118 = arith.mulf %116, %117 : vector<128x256xf32>
    %119 = arith.addf %113, %118 : vector<128x256xf32>
    %120 = vector.extract_strided_slice %108 {offsets = [0, 2], sizes = [128, 1], strides = [1, 1]} : vector<128x8xf32> to vector<128x1xf32>
    %121 = vector.extract_strided_slice %0 {offsets = [2, 0], sizes = [1, 256], strides = [1, 1]} : vector<8x256xf32> to vector<1x256xf32>
    %122 = vector.broadcast %120 : vector<128x1xf32> to vector<128x256xf32>
    %123 = vector.broadcast %121 : vector<1x256xf32> to vector<128x256xf32>
    %124 = arith.mulf %122, %123 : vector<128x256xf32>
    %125 = arith.addf %119, %124 : vector<128x256xf32>
    %126 = vector.extract_strided_slice %108 {offsets = [0, 3], sizes = [128, 1], strides = [1, 1]} : vector<128x8xf32> to vector<128x1xf32>
    %127 = vector.extract_strided_slice %0 {offsets = [3, 0], sizes = [1, 256], strides = [1, 1]} : vector<8x256xf32> to vector<1x256xf32>
    %128 = vector.broadcast %126 : vector<128x1xf32> to vector<128x256xf32>
    %129 = vector.broadcast %127 : vector<1x256xf32> to vector<128x256xf32>
    %130 = arith.mulf %128, %129 : vector<128x256xf32>
    %131 = arith.addf %125, %130 : vector<128x256xf32>
    %132 = vector.extract_strided_slice %108 {offsets = [0, 4], sizes = [128, 1], strides = [1, 1]} : vector<128x8xf32> to vector<128x1xf32>
    %133 = vector.extract_strided_slice %0 {offsets = [4, 0], sizes = [1, 256], strides = [1, 1]} : vector<8x256xf32> to vector<1x256xf32>
    %134 = vector.broadcast %132 : vector<128x1xf32> to vector<128x256xf32>
    %135 = vector.broadcast %133 : vector<1x256xf32> to vector<128x256xf32>
    %136 = arith.mulf %134, %135 : vector<128x256xf32>
    %137 = arith.addf %131, %136 : vector<128x256xf32>
    %138 = vector.extract_strided_slice %108 {offsets = [0, 5], sizes = [128, 1], strides = [1, 1]} : vector<128x8xf32> to vector<128x1xf32>
    %139 = vector.extract_strided_slice %0 {offsets = [5, 0], sizes = [1, 256], strides = [1, 1]} : vector<8x256xf32> to vector<1x256xf32>
    %140 = vector.broadcast %138 : vector<128x1xf32> to vector<128x256xf32>
    %141 = vector.broadcast %139 : vector<1x256xf32> to vector<128x256xf32>
    %142 = arith.mulf %140, %141 : vector<128x256xf32>
    %143 = arith.addf %137, %142 : vector<128x256xf32>
    %144 = vector.extract_strided_slice %108 {offsets = [0, 6], sizes = [128, 1], strides = [1, 1]} : vector<128x8xf32> to vector<128x1xf32>
    %145 = vector.extract_strided_slice %0 {offsets = [6, 0], sizes = [1, 256], strides = [1, 1]} : vector<8x256xf32> to vector<1x256xf32>
    %146 = vector.broadcast %144 : vector<128x1xf32> to vector<128x256xf32>
    %147 = vector.broadcast %145 : vector<1x256xf32> to vector<128x256xf32>
    %148 = arith.mulf %146, %147 : vector<128x256xf32>
    %149 = arith.addf %143, %148 : vector<128x256xf32>
    %150 = vector.extract_strided_slice %108 {offsets = [0, 7], sizes = [128, 1], strides = [1, 1]} : vector<128x8xf32> to vector<128x1xf32>
    %151 = vector.extract_strided_slice %0 {offsets = [7, 0], sizes = [1, 256], strides = [1, 1]} : vector<8x256xf32> to vector<1x256xf32>
    %152 = vector.broadcast %150 : vector<128x1xf32> to vector<128x256xf32>
    %153 = vector.broadcast %151 : vector<1x256xf32> to vector<128x256xf32>
    %154 = arith.mulf %152, %153 : vector<128x256xf32>
    %155 = arith.addf %149, %154 : vector<128x256xf32>
    %cst_13 = arith.constant 0.000000e+00 : f32
    %156 = vector.broadcast %cst_13 : f32 to vector<128x256xf32>
    %157 = arith.maximumf %155, %156 : vector<128x256xf32>
    %c0_14 = arith.constant 0 : index
    %c256_15 = arith.constant 256 : index
    %158 = vector.load %arg3[%c0_14, %c256_15] : memref<8x1024xf32, #tpu.memory_space<vmem>>, vector<8x128xf32>
    %cst_16 = arith.constant dense<0.000000e+00> : vector<8x256xf32>
    %159 = tpu.matmul %158, %157, %cst_16 {dimension_numbers = #tpu.dot_dimension_numbers<[1], [0], [0], [1], [0, 0, 1, 1], [], []>} : vector<8x128xf32>, vector<128x256xf32>, vector<8x256xf32> -> vector<8x256xf32>
    %160 = arith.addf %107, %159 : vector<8x256xf32>
    %c384 = arith.constant 384 : index
    %c0_17 = arith.constant 0 : index
    %161 = vector.load %arg2[%c384, %c0_17] : memref<1024x8xf32, #tpu.memory_space<vmem>>, vector<128x8xf32>
    %162 = vector.extract_strided_slice %161 {offsets = [0, 0], sizes = [128, 1], strides = [1, 1]} : vector<128x8xf32> to vector<128x1xf32>
    %163 = vector.extract_strided_slice %0 {offsets = [0, 0], sizes = [1, 256], strides = [1, 1]} : vector<8x256xf32> to vector<1x256xf32>
    %164 = vector.broadcast %162 : vector<128x1xf32> to vector<128x256xf32>
    %165 = vector.broadcast %163 : vector<1x256xf32> to vector<128x256xf32>
    %166 = arith.mulf %164, %165 : vector<128x256xf32>
    %167 = vector.extract_strided_slice %161 {offsets = [0, 1], sizes = [128, 1], strides = [1, 1]} : vector<128x8xf32> to vector<128x1xf32>
    %168 = vector.extract_strided_slice %0 {offsets = [1, 0], sizes = [1, 256], strides = [1, 1]} : vector<8x256xf32> to vector<1x256xf32>
    %169 = vector.broadcast %167 : vector<128x1xf32> to vector<128x256xf32>
    %170 = vector.broadcast %168 : vector<1x256xf32> to vector<128x256xf32>
    %171 = arith.mulf %169, %170 : vector<128x256xf32>
    %172 = arith.addf %166, %171 : vector<128x256xf32>
    %173 = vector.extract_strided_slice %161 {offsets = [0, 2], sizes = [128, 1], strides = [1, 1]} : vector<128x8xf32> to vector<128x1xf32>
    %174 = vector.extract_strided_slice %0 {offsets = [2, 0], sizes = [1, 256], strides = [1, 1]} : vector<8x256xf32> to vector<1x256xf32>
    %175 = vector.broadcast %173 : vector<128x1xf32> to vector<128x256xf32>
    %176 = vector.broadcast %174 : vector<1x256xf32> to vector<128x256xf32>
    %177 = arith.mulf %175, %176 : vector<128x256xf32>
    %178 = arith.addf %172, %177 : vector<128x256xf32>
    %179 = vector.extract_strided_slice %161 {offsets = [0, 3], sizes = [128, 1], strides = [1, 1]} : vector<128x8xf32> to vector<128x1xf32>
    %180 = vector.extract_strided_slice %0 {offsets = [3, 0], sizes = [1, 256], strides = [1, 1]} : vector<8x256xf32> to vector<1x256xf32>
    %181 = vector.broadcast %179 : vector<128x1xf32> to vector<128x256xf32>
    %182 = vector.broadcast %180 : vector<1x256xf32> to vector<128x256xf32>
    %183 = arith.mulf %181, %182 : vector<128x256xf32>
    %184 = arith.addf %178, %183 : vector<128x256xf32>
    %185 = vector.extract_strided_slice %161 {offsets = [0, 4], sizes = [128, 1], strides = [1, 1]} : vector<128x8xf32> to vector<128x1xf32>
    %186 = vector.extract_strided_slice %0 {offsets = [4, 0], sizes = [1, 256], strides = [1, 1]} : vector<8x256xf32> to vector<1x256xf32>
    %187 = vector.broadcast %185 : vector<128x1xf32> to vector<128x256xf32>
    %188 = vector.broadcast %186 : vector<1x256xf32> to vector<128x256xf32>
    %189 = arith.mulf %187, %188 : vector<128x256xf32>
    %190 = arith.addf %184, %189 : vector<128x256xf32>
    %191 = vector.extract_strided_slice %161 {offsets = [0, 5], sizes = [128, 1], strides = [1, 1]} : vector<128x8xf32> to vector<128x1xf32>
    %192 = vector.extract_strided_slice %0 {offsets = [5, 0], sizes = [1, 256], strides = [1, 1]} : vector<8x256xf32> to vector<1x256xf32>
    %193 = vector.broadcast %191 : vector<128x1xf32> to vector<128x256xf32>
    %194 = vector.broadcast %192 : vector<1x256xf32> to vector<128x256xf32>
    %195 = arith.mulf %193, %194 : vector<128x256xf32>
    %196 = arith.addf %190, %195 : vector<128x256xf32>
    %197 = vector.extract_strided_slice %161 {offsets = [0, 6], sizes = [128, 1], strides = [1, 1]} : vector<128x8xf32> to vector<128x1xf32>
    %198 = vector.extract_strided_slice %0 {offsets = [6, 0], sizes = [1, 256], strides = [1, 1]} : vector<8x256xf32> to vector<1x256xf32>
    %199 = vector.broadcast %197 : vector<128x1xf32> to vector<128x256xf32>
    %200 = vector.broadcast %198 : vector<1x256xf32> to vector<128x256xf32>
    %201 = arith.mulf %199, %200 : vector<128x256xf32>
    %202 = arith.addf %196, %201 : vector<128x256xf32>
    %203 = vector.extract_strided_slice %161 {offsets = [0, 7], sizes = [128, 1], strides = [1, 1]} : vector<128x8xf32> to vector<128x1xf32>
    %204 = vector.extract_strided_slice %0 {offsets = [7, 0], sizes = [1, 256], strides = [1, 1]} : vector<8x256xf32> to vector<1x256xf32>
    %205 = vector.broadcast %203 : vector<128x1xf32> to vector<128x256xf32>
    %206 = vector.broadcast %204 : vector<1x256xf32> to vector<128x256xf32>
    %207 = arith.mulf %205, %206 : vector<128x256xf32>
    %208 = arith.addf %202, %207 : vector<128x256xf32>
    %cst_18 = arith.constant 0.000000e+00 : f32
    %209 = vector.broadcast %cst_18 : f32 to vector<128x256xf32>
    %210 = arith.maximumf %208, %209 : vector<128x256xf32>
    %c0_19 = arith.constant 0 : index
    %c384_20 = arith.constant 384 : index
    %211 = vector.load %arg3[%c0_19, %c384_20] : memref<8x1024xf32, #tpu.memory_space<vmem>>, vector<8x128xf32>
    %cst_21 = arith.constant dense<0.000000e+00> : vector<8x256xf32>
    %212 = tpu.matmul %211, %210, %cst_21 {dimension_numbers = #tpu.dot_dimension_numbers<[1], [0], [0], [1], [0, 0, 1, 1], [], []>} : vector<8x128xf32>, vector<128x256xf32>, vector<8x256xf32> -> vector<8x256xf32>
    %213 = arith.addf %160, %212 : vector<8x256xf32>
    %c512 = arith.constant 512 : index
    %c0_22 = arith.constant 0 : index
    %214 = vector.load %arg2[%c512, %c0_22] : memref<1024x8xf32, #tpu.memory_space<vmem>>, vector<128x8xf32>
    %215 = vector.extract_strided_slice %214 {offsets = [0, 0], sizes = [128, 1], strides = [1, 1]} : vector<128x8xf32> to vector<128x1xf32>
    %216 = vector.extract_strided_slice %0 {offsets = [0, 0], sizes = [1, 256], strides = [1, 1]} : vector<8x256xf32> to vector<1x256xf32>
    %217 = vector.broadcast %215 : vector<128x1xf32> to vector<128x256xf32>
    %218 = vector.broadcast %216 : vector<1x256xf32> to vector<128x256xf32>
    %219 = arith.mulf %217, %218 : vector<128x256xf32>
    %220 = vector.extract_strided_slice %214 {offsets = [0, 1], sizes = [128, 1], strides = [1, 1]} : vector<128x8xf32> to vector<128x1xf32>
    %221 = vector.extract_strided_slice %0 {offsets = [1, 0], sizes = [1, 256], strides = [1, 1]} : vector<8x256xf32> to vector<1x256xf32>
    %222 = vector.broadcast %220 : vector<128x1xf32> to vector<128x256xf32>
    %223 = vector.broadcast %221 : vector<1x256xf32> to vector<128x256xf32>
    %224 = arith.mulf %222, %223 : vector<128x256xf32>
    %225 = arith.addf %219, %224 : vector<128x256xf32>
    %226 = vector.extract_strided_slice %214 {offsets = [0, 2], sizes = [128, 1], strides = [1, 1]} : vector<128x8xf32> to vector<128x1xf32>
    %227 = vector.extract_strided_slice %0 {offsets = [2, 0], sizes = [1, 256], strides = [1, 1]} : vector<8x256xf32> to vector<1x256xf32>
    %228 = vector.broadcast %226 : vector<128x1xf32> to vector<128x256xf32>
    %229 = vector.broadcast %227 : vector<1x256xf32> to vector<128x256xf32>
    %230 = arith.mulf %228, %229 : vector<128x256xf32>
    %231 = arith.addf %225, %230 : vector<128x256xf32>
    %232 = vector.extract_strided_slice %214 {offsets = [0, 3], sizes = [128, 1], strides = [1, 1]} : vector<128x8xf32> to vector<128x1xf32>
    %233 = vector.extract_strided_slice %0 {offsets = [3, 0], sizes = [1, 256], strides = [1, 1]} : vector<8x256xf32> to vector<1x256xf32>
    %234 = vector.broadcast %232 : vector<128x1xf32> to vector<128x256xf32>
    %235 = vector.broadcast %233 : vector<1x256xf32> to vector<128x256xf32>
    %236 = arith.mulf %234, %235 : vector<128x256xf32>
    %237 = arith.addf %231, %236 : vector<128x256xf32>
    %238 = vector.extract_strided_slice %214 {offsets = [0, 4], sizes = [128, 1], strides = [1, 1]} : vector<128x8xf32> to vector<128x1xf32>
    %239 = vector.extract_strided_slice %0 {offsets = [4, 0], sizes = [1, 256], strides = [1, 1]} : vector<8x256xf32> to vector<1x256xf32>
    %240 = vector.broadcast %238 : vector<128x1xf32> to vector<128x256xf32>
    %241 = vector.broadcast %239 : vector<1x256xf32> to vector<128x256xf32>
    %242 = arith.mulf %240, %241 : vector<128x256xf32>
    %243 = arith.addf %237, %242 : vector<128x256xf32>
    %244 = vector.extract_strided_slice %214 {offsets = [0, 5], sizes = [128, 1], strides = [1, 1]} : vector<128x8xf32> to vector<128x1xf32>
    %245 = vector.extract_strided_slice %0 {offsets = [5, 0], sizes = [1, 256], strides = [1, 1]} : vector<8x256xf32> to vector<1x256xf32>
    %246 = vector.broadcast %244 : vector<128x1xf32> to vector<128x256xf32>
    %247 = vector.broadcast %245 : vector<1x256xf32> to vector<128x256xf32>
    %248 = arith.mulf %246, %247 : vector<128x256xf32>
    %249 = arith.addf %243, %248 : vector<128x256xf32>
    %250 = vector.extract_strided_slice %214 {offsets = [0, 6], sizes = [128, 1], strides = [1, 1]} : vector<128x8xf32> to vector<128x1xf32>
    %251 = vector.extract_strided_slice %0 {offsets = [6, 0], sizes = [1, 256], strides = [1, 1]} : vector<8x256xf32> to vector<1x256xf32>
    %252 = vector.broadcast %250 : vector<128x1xf32> to vector<128x256xf32>
    %253 = vector.broadcast %251 : vector<1x256xf32> to vector<128x256xf32>
    %254 = arith.mulf %252, %253 : vector<128x256xf32>
    %255 = arith.addf %249, %254 : vector<128x256xf32>
    %256 = vector.extract_strided_slice %214 {offsets = [0, 7], sizes = [128, 1], strides = [1, 1]} : vector<128x8xf32> to vector<128x1xf32>
    %257 = vector.extract_strided_slice %0 {offsets = [7, 0], sizes = [1, 256], strides = [1, 1]} : vector<8x256xf32> to vector<1x256xf32>
    %258 = vector.broadcast %256 : vector<128x1xf32> to vector<128x256xf32>
    %259 = vector.broadcast %257 : vector<1x256xf32> to vector<128x256xf32>
    %260 = arith.mulf %258, %259 : vector<128x256xf32>
    %261 = arith.addf %255, %260 : vector<128x256xf32>
    %cst_23 = arith.constant 0.000000e+00 : f32
    %262 = vector.broadcast %cst_23 : f32 to vector<128x256xf32>
    %263 = arith.maximumf %261, %262 : vector<128x256xf32>
    %c0_24 = arith.constant 0 : index
    %c512_25 = arith.constant 512 : index
    %264 = vector.load %arg3[%c0_24, %c512_25] : memref<8x1024xf32, #tpu.memory_space<vmem>>, vector<8x128xf32>
    %cst_26 = arith.constant dense<0.000000e+00> : vector<8x256xf32>
    %265 = tpu.matmul %264, %263, %cst_26 {dimension_numbers = #tpu.dot_dimension_numbers<[1], [0], [0], [1], [0, 0, 1, 1], [], []>} : vector<8x128xf32>, vector<128x256xf32>, vector<8x256xf32> -> vector<8x256xf32>
    %266 = arith.addf %213, %265 : vector<8x256xf32>
    %c640 = arith.constant 640 : index
    %c0_27 = arith.constant 0 : index
    %267 = vector.load %arg2[%c640, %c0_27] : memref<1024x8xf32, #tpu.memory_space<vmem>>, vector<128x8xf32>
    %268 = vector.extract_strided_slice %267 {offsets = [0, 0], sizes = [128, 1], strides = [1, 1]} : vector<128x8xf32> to vector<128x1xf32>
    %269 = vector.extract_strided_slice %0 {offsets = [0, 0], sizes = [1, 256], strides = [1, 1]} : vector<8x256xf32> to vector<1x256xf32>
    %270 = vector.broadcast %268 : vector<128x1xf32> to vector<128x256xf32>
    %271 = vector.broadcast %269 : vector<1x256xf32> to vector<128x256xf32>
    %272 = arith.mulf %270, %271 : vector<128x256xf32>
    %273 = vector.extract_strided_slice %267 {offsets = [0, 1], sizes = [128, 1], strides = [1, 1]} : vector<128x8xf32> to vector<128x1xf32>
    %274 = vector.extract_strided_slice %0 {offsets = [1, 0], sizes = [1, 256], strides = [1, 1]} : vector<8x256xf32> to vector<1x256xf32>
    %275 = vector.broadcast %273 : vector<128x1xf32> to vector<128x256xf32>
    %276 = vector.broadcast %274 : vector<1x256xf32> to vector<128x256xf32>
    %277 = arith.mulf %275, %276 : vector<128x256xf32>
    %278 = arith.addf %272, %277 : vector<128x256xf32>
    %279 = vector.extract_strided_slice %267 {offsets = [0, 2], sizes = [128, 1], strides = [1, 1]} : vector<128x8xf32> to vector<128x1xf32>
    %280 = vector.extract_strided_slice %0 {offsets = [2, 0], sizes = [1, 256], strides = [1, 1]} : vector<8x256xf32> to vector<1x256xf32>
    %281 = vector.broadcast %279 : vector<128x1xf32> to vector<128x256xf32>
    %282 = vector.broadcast %280 : vector<1x256xf32> to vector<128x256xf32>
    %283 = arith.mulf %281, %282 : vector<128x256xf32>
    %284 = arith.addf %278, %283 : vector<128x256xf32>
    %285 = vector.extract_strided_slice %267 {offsets = [0, 3], sizes = [128, 1], strides = [1, 1]} : vector<128x8xf32> to vector<128x1xf32>
    %286 = vector.extract_strided_slice %0 {offsets = [3, 0], sizes = [1, 256], strides = [1, 1]} : vector<8x256xf32> to vector<1x256xf32>
    %287 = vector.broadcast %285 : vector<128x1xf32> to vector<128x256xf32>
    %288 = vector.broadcast %286 : vector<1x256xf32> to vector<128x256xf32>
    %289 = arith.mulf %287, %288 : vector<128x256xf32>
    %290 = arith.addf %284, %289 : vector<128x256xf32>
    %291 = vector.extract_strided_slice %267 {offsets = [0, 4], sizes = [128, 1], strides = [1, 1]} : vector<128x8xf32> to vector<128x1xf32>
    %292 = vector.extract_strided_slice %0 {offsets = [4, 0], sizes = [1, 256], strides = [1, 1]} : vector<8x256xf32> to vector<1x256xf32>
    %293 = vector.broadcast %291 : vector<128x1xf32> to vector<128x256xf32>
    %294 = vector.broadcast %292 : vector<1x256xf32> to vector<128x256xf32>
    %295 = arith.mulf %293, %294 : vector<128x256xf32>
    %296 = arith.addf %290, %295 : vector<128x256xf32>
    %297 = vector.extract_strided_slice %267 {offsets = [0, 5], sizes = [128, 1], strides = [1, 1]} : vector<128x8xf32> to vector<128x1xf32>
    %298 = vector.extract_strided_slice %0 {offsets = [5, 0], sizes = [1, 256], strides = [1, 1]} : vector<8x256xf32> to vector<1x256xf32>
    %299 = vector.broadcast %297 : vector<128x1xf32> to vector<128x256xf32>
    %300 = vector.broadcast %298 : vector<1x256xf32> to vector<128x256xf32>
    %301 = arith.mulf %299, %300 : vector<128x256xf32>
    %302 = arith.addf %296, %301 : vector<128x256xf32>
    %303 = vector.extract_strided_slice %267 {offsets = [0, 6], sizes = [128, 1], strides = [1, 1]} : vector<128x8xf32> to vector<128x1xf32>
    %304 = vector.extract_strided_slice %0 {offsets = [6, 0], sizes = [1, 256], strides = [1, 1]} : vector<8x256xf32> to vector<1x256xf32>
    %305 = vector.broadcast %303 : vector<128x1xf32> to vector<128x256xf32>
    %306 = vector.broadcast %304 : vector<1x256xf32> to vector<128x256xf32>
    %307 = arith.mulf %305, %306 : vector<128x256xf32>
    %308 = arith.addf %302, %307 : vector<128x256xf32>
    %309 = vector.extract_strided_slice %267 {offsets = [0, 7], sizes = [128, 1], strides = [1, 1]} : vector<128x8xf32> to vector<128x1xf32>
    %310 = vector.extract_strided_slice %0 {offsets = [7, 0], sizes = [1, 256], strides = [1, 1]} : vector<8x256xf32> to vector<1x256xf32>
    %311 = vector.broadcast %309 : vector<128x1xf32> to vector<128x256xf32>
    %312 = vector.broadcast %310 : vector<1x256xf32> to vector<128x256xf32>
    %313 = arith.mulf %311, %312 : vector<128x256xf32>
    %314 = arith.addf %308, %313 : vector<128x256xf32>
    %cst_28 = arith.constant 0.000000e+00 : f32
    %315 = vector.broadcast %cst_28 : f32 to vector<128x256xf32>
    %316 = arith.maximumf %314, %315 : vector<128x256xf32>
    %c0_29 = arith.constant 0 : index
    %c640_30 = arith.constant 640 : index
    %317 = vector.load %arg3[%c0_29, %c640_30] : memref<8x1024xf32, #tpu.memory_space<vmem>>, vector<8x128xf32>
    %cst_31 = arith.constant dense<0.000000e+00> : vector<8x256xf32>
    %318 = tpu.matmul %317, %316, %cst_31 {dimension_numbers = #tpu.dot_dimension_numbers<[1], [0], [0], [1], [0, 0, 1, 1], [], []>} : vector<8x128xf32>, vector<128x256xf32>, vector<8x256xf32> -> vector<8x256xf32>
    %319 = arith.addf %266, %318 : vector<8x256xf32>
    %c768 = arith.constant 768 : index
    %c0_32 = arith.constant 0 : index
    %320 = vector.load %arg2[%c768, %c0_32] : memref<1024x8xf32, #tpu.memory_space<vmem>>, vector<128x8xf32>
    %321 = vector.extract_strided_slice %320 {offsets = [0, 0], sizes = [128, 1], strides = [1, 1]} : vector<128x8xf32> to vector<128x1xf32>
    %322 = vector.extract_strided_slice %0 {offsets = [0, 0], sizes = [1, 256], strides = [1, 1]} : vector<8x256xf32> to vector<1x256xf32>
    %323 = vector.broadcast %321 : vector<128x1xf32> to vector<128x256xf32>
    %324 = vector.broadcast %322 : vector<1x256xf32> to vector<128x256xf32>
    %325 = arith.mulf %323, %324 : vector<128x256xf32>
    %326 = vector.extract_strided_slice %320 {offsets = [0, 1], sizes = [128, 1], strides = [1, 1]} : vector<128x8xf32> to vector<128x1xf32>
    %327 = vector.extract_strided_slice %0 {offsets = [1, 0], sizes = [1, 256], strides = [1, 1]} : vector<8x256xf32> to vector<1x256xf32>
    %328 = vector.broadcast %326 : vector<128x1xf32> to vector<128x256xf32>
    %329 = vector.broadcast %327 : vector<1x256xf32> to vector<128x256xf32>
    %330 = arith.mulf %328, %329 : vector<128x256xf32>
    %331 = arith.addf %325, %330 : vector<128x256xf32>
    %332 = vector.extract_strided_slice %320 {offsets = [0, 2], sizes = [128, 1], strides = [1, 1]} : vector<128x8xf32> to vector<128x1xf32>
    %333 = vector.extract_strided_slice %0 {offsets = [2, 0], sizes = [1, 256], strides = [1, 1]} : vector<8x256xf32> to vector<1x256xf32>
    %334 = vector.broadcast %332 : vector<128x1xf32> to vector<128x256xf32>
    %335 = vector.broadcast %333 : vector<1x256xf32> to vector<128x256xf32>
    %336 = arith.mulf %334, %335 : vector<128x256xf32>
    %337 = arith.addf %331, %336 : vector<128x256xf32>
    %338 = vector.extract_strided_slice %320 {offsets = [0, 3], sizes = [128, 1], strides = [1, 1]} : vector<128x8xf32> to vector<128x1xf32>
    %339 = vector.extract_strided_slice %0 {offsets = [3, 0], sizes = [1, 256], strides = [1, 1]} : vector<8x256xf32> to vector<1x256xf32>
    %340 = vector.broadcast %338 : vector<128x1xf32> to vector<128x256xf32>
    %341 = vector.broadcast %339 : vector<1x256xf32> to vector<128x256xf32>
    %342 = arith.mulf %340, %341 : vector<128x256xf32>
    %343 = arith.addf %337, %342 : vector<128x256xf32>
    %344 = vector.extract_strided_slice %320 {offsets = [0, 4], sizes = [128, 1], strides = [1, 1]} : vector<128x8xf32> to vector<128x1xf32>
    %345 = vector.extract_strided_slice %0 {offsets = [4, 0], sizes = [1, 256], strides = [1, 1]} : vector<8x256xf32> to vector<1x256xf32>
    %346 = vector.broadcast %344 : vector<128x1xf32> to vector<128x256xf32>
    %347 = vector.broadcast %345 : vector<1x256xf32> to vector<128x256xf32>
    %348 = arith.mulf %346, %347 : vector<128x256xf32>
    %349 = arith.addf %343, %348 : vector<128x256xf32>
    %350 = vector.extract_strided_slice %320 {offsets = [0, 5], sizes = [128, 1], strides = [1, 1]} : vector<128x8xf32> to vector<128x1xf32>
    %351 = vector.extract_strided_slice %0 {offsets = [5, 0], sizes = [1, 256], strides = [1, 1]} : vector<8x256xf32> to vector<1x256xf32>
    %352 = vector.broadcast %350 : vector<128x1xf32> to vector<128x256xf32>
    %353 = vector.broadcast %351 : vector<1x256xf32> to vector<128x256xf32>
    %354 = arith.mulf %352, %353 : vector<128x256xf32>
    %355 = arith.addf %349, %354 : vector<128x256xf32>
    %356 = vector.extract_strided_slice %320 {offsets = [0, 6], sizes = [128, 1], strides = [1, 1]} : vector<128x8xf32> to vector<128x1xf32>
    %357 = vector.extract_strided_slice %0 {offsets = [6, 0], sizes = [1, 256], strides = [1, 1]} : vector<8x256xf32> to vector<1x256xf32>
    %358 = vector.broadcast %356 : vector<128x1xf32> to vector<128x256xf32>
    %359 = vector.broadcast %357 : vector<1x256xf32> to vector<128x256xf32>
    %360 = arith.mulf %358, %359 : vector<128x256xf32>
    %361 = arith.addf %355, %360 : vector<128x256xf32>
    %362 = vector.extract_strided_slice %320 {offsets = [0, 7], sizes = [128, 1], strides = [1, 1]} : vector<128x8xf32> to vector<128x1xf32>
    %363 = vector.extract_strided_slice %0 {offsets = [7, 0], sizes = [1, 256], strides = [1, 1]} : vector<8x256xf32> to vector<1x256xf32>
    %364 = vector.broadcast %362 : vector<128x1xf32> to vector<128x256xf32>
    %365 = vector.broadcast %363 : vector<1x256xf32> to vector<128x256xf32>
    %366 = arith.mulf %364, %365 : vector<128x256xf32>
    %367 = arith.addf %361, %366 : vector<128x256xf32>
    %cst_33 = arith.constant 0.000000e+00 : f32
    %368 = vector.broadcast %cst_33 : f32 to vector<128x256xf32>
    %369 = arith.maximumf %367, %368 : vector<128x256xf32>
    %c0_34 = arith.constant 0 : index
    %c768_35 = arith.constant 768 : index
    %370 = vector.load %arg3[%c0_34, %c768_35] : memref<8x1024xf32, #tpu.memory_space<vmem>>, vector<8x128xf32>
    %cst_36 = arith.constant dense<0.000000e+00> : vector<8x256xf32>
    %371 = tpu.matmul %370, %369, %cst_36 {dimension_numbers = #tpu.dot_dimension_numbers<[1], [0], [0], [1], [0, 0, 1, 1], [], []>} : vector<8x128xf32>, vector<128x256xf32>, vector<8x256xf32> -> vector<8x256xf32>
    %372 = arith.addf %319, %371 : vector<8x256xf32>
    %c896 = arith.constant 896 : index
    %c0_37 = arith.constant 0 : index
    %373 = vector.load %arg2[%c896, %c0_37] : memref<1024x8xf32, #tpu.memory_space<vmem>>, vector<128x8xf32>
    %374 = vector.extract_strided_slice %373 {offsets = [0, 0], sizes = [128, 1], strides = [1, 1]} : vector<128x8xf32> to vector<128x1xf32>
    %375 = vector.extract_strided_slice %0 {offsets = [0, 0], sizes = [1, 256], strides = [1, 1]} : vector<8x256xf32> to vector<1x256xf32>
    %376 = vector.broadcast %374 : vector<128x1xf32> to vector<128x256xf32>
    %377 = vector.broadcast %375 : vector<1x256xf32> to vector<128x256xf32>
    %378 = arith.mulf %376, %377 : vector<128x256xf32>
    %379 = vector.extract_strided_slice %373 {offsets = [0, 1], sizes = [128, 1], strides = [1, 1]} : vector<128x8xf32> to vector<128x1xf32>
    %380 = vector.extract_strided_slice %0 {offsets = [1, 0], sizes = [1, 256], strides = [1, 1]} : vector<8x256xf32> to vector<1x256xf32>
    %381 = vector.broadcast %379 : vector<128x1xf32> to vector<128x256xf32>
    %382 = vector.broadcast %380 : vector<1x256xf32> to vector<128x256xf32>
    %383 = arith.mulf %381, %382 : vector<128x256xf32>
    %384 = arith.addf %378, %383 : vector<128x256xf32>
    %385 = vector.extract_strided_slice %373 {offsets = [0, 2], sizes = [128, 1], strides = [1, 1]} : vector<128x8xf32> to vector<128x1xf32>
    %386 = vector.extract_strided_slice %0 {offsets = [2, 0], sizes = [1, 256], strides = [1, 1]} : vector<8x256xf32> to vector<1x256xf32>
    %387 = vector.broadcast %385 : vector<128x1xf32> to vector<128x256xf32>
    %388 = vector.broadcast %386 : vector<1x256xf32> to vector<128x256xf32>
    %389 = arith.mulf %387, %388 : vector<128x256xf32>
    %390 = arith.addf %384, %389 : vector<128x256xf32>
    %391 = vector.extract_strided_slice %373 {offsets = [0, 3], sizes = [128, 1], strides = [1, 1]} : vector<128x8xf32> to vector<128x1xf32>
    %392 = vector.extract_strided_slice %0 {offsets = [3, 0], sizes = [1, 256], strides = [1, 1]} : vector<8x256xf32> to vector<1x256xf32>
    %393 = vector.broadcast %391 : vector<128x1xf32> to vector<128x256xf32>
    %394 = vector.broadcast %392 : vector<1x256xf32> to vector<128x256xf32>
    %395 = arith.mulf %393, %394 : vector<128x256xf32>
    %396 = arith.addf %390, %395 : vector<128x256xf32>
    %397 = vector.extract_strided_slice %373 {offsets = [0, 4], sizes = [128, 1], strides = [1, 1]} : vector<128x8xf32> to vector<128x1xf32>
    %398 = vector.extract_strided_slice %0 {offsets = [4, 0], sizes = [1, 256], strides = [1, 1]} : vector<8x256xf32> to vector<1x256xf32>
    %399 = vector.broadcast %397 : vector<128x1xf32> to vector<128x256xf32>
    %400 = vector.broadcast %398 : vector<1x256xf32> to vector<128x256xf32>
    %401 = arith.mulf %399, %400 : vector<128x256xf32>
    %402 = arith.addf %396, %401 : vector<128x256xf32>
    %403 = vector.extract_strided_slice %373 {offsets = [0, 5], sizes = [128, 1], strides = [1, 1]} : vector<128x8xf32> to vector<128x1xf32>
    %404 = vector.extract_strided_slice %0 {offsets = [5, 0], sizes = [1, 256], strides = [1, 1]} : vector<8x256xf32> to vector<1x256xf32>
    %405 = vector.broadcast %403 : vector<128x1xf32> to vector<128x256xf32>
    %406 = vector.broadcast %404 : vector<1x256xf32> to vector<128x256xf32>
    %407 = arith.mulf %405, %406 : vector<128x256xf32>
    %408 = arith.addf %402, %407 : vector<128x256xf32>
    %409 = vector.extract_strided_slice %373 {offsets = [0, 6], sizes = [128, 1], strides = [1, 1]} : vector<128x8xf32> to vector<128x1xf32>
    %410 = vector.extract_strided_slice %0 {offsets = [6, 0], sizes = [1, 256], strides = [1, 1]} : vector<8x256xf32> to vector<1x256xf32>
    %411 = vector.broadcast %409 : vector<128x1xf32> to vector<128x256xf32>
    %412 = vector.broadcast %410 : vector<1x256xf32> to vector<128x256xf32>
    %413 = arith.mulf %411, %412 : vector<128x256xf32>
    %414 = arith.addf %408, %413 : vector<128x256xf32>
    %415 = vector.extract_strided_slice %373 {offsets = [0, 7], sizes = [128, 1], strides = [1, 1]} : vector<128x8xf32> to vector<128x1xf32>
    %416 = vector.extract_strided_slice %0 {offsets = [7, 0], sizes = [1, 256], strides = [1, 1]} : vector<8x256xf32> to vector<1x256xf32>
    %417 = vector.broadcast %415 : vector<128x1xf32> to vector<128x256xf32>
    %418 = vector.broadcast %416 : vector<1x256xf32> to vector<128x256xf32>
    %419 = arith.mulf %417, %418 : vector<128x256xf32>
    %420 = arith.addf %414, %419 : vector<128x256xf32>
    %cst_38 = arith.constant 0.000000e+00 : f32
    %421 = vector.broadcast %cst_38 : f32 to vector<128x256xf32>
    %422 = arith.maximumf %420, %421 : vector<128x256xf32>
    %c0_39 = arith.constant 0 : index
    %c896_40 = arith.constant 896 : index
    %423 = vector.load %arg3[%c0_39, %c896_40] : memref<8x1024xf32, #tpu.memory_space<vmem>>, vector<8x128xf32>
    %cst_41 = arith.constant dense<0.000000e+00> : vector<8x256xf32>
    %424 = tpu.matmul %423, %422, %cst_41 {dimension_numbers = #tpu.dot_dimension_numbers<[1], [0], [0], [1], [0, 0, 1, 1], [], []>} : vector<8x128xf32>, vector<128x256xf32>, vector<8x256xf32> -> vector<8x256xf32>
    %425 = arith.addf %372, %424 : vector<8x256xf32>
    %c0_42 = arith.constant 0 : index
    %c0_43 = arith.constant 0 : index
    %426 = vector.load %arg4[%c0_42, %c0_43] : memref<8x256xf32, #tpu.memory_space<vmem>>, vector<8x256xf32>
    tpu.vector_store %arg4[%c0_42, %c0_43], %425 {strides = array<i32>} : memref<8x256xf32, #tpu.memory_space<vmem>>, vector<8x256xf32>,
    return
  }
  func.func @transform_0(%arg0: i32) -> (i32, i32) {
    %c0_i32 = arith.constant 0 : i32
    %c0_i32_0 = arith.constant 0 : i32
    return %c0_i32, %arg0 : i32, i32
  }
  func.func @transform_1(%arg0: i32) -> (i32, i32) {
    %c0_i32 = arith.constant 0 : i32
    %c0_i32_0 = arith.constant 0 : i32
    %c0_i32_1 = arith.constant 0 : i32
    return %c0_i32, %c0_i32_0 : i32, i32
  }
  func.func @transform_2(%arg0: i32) -> (i32, i32) {
    %c0_i32 = arith.constant 0 : i32
    %c0_i32_0 = arith.constant 0 : i32
    %c0_i32_1 = arith.constant 0 : i32
    return %c0_i32, %c0_i32_0 : i32, i32
  }
  func.func @transform_3(%arg0: i32) -> (i32, i32) {
    %c0_i32 = arith.constant 0 : i32
    %c0_i32_0 = arith.constant 0 : i32
    return %c0_i32, %arg0 : i32, i32
  }
}

</mosaic_0001>

<llo_original>
// kernel: cell_net_forward.1
$region0: #{cell_net_forward.1}
  #allocation0 [shape = 'u32[]', space=smem, size = 0x4, offset = 0x4, fixed_abs, tag = 'smem constant byte address 0x4 - core index']
  #allocation1 [shape = 'u32[144,128]{1,0:T(1,128)}', space=vmem, size = 0x12000, scoped, tag = 'internal scratch']
  %s0 = inlined_call_operand.vmem [shape: f32[8,512], index: 0, kind: input, shape index: {}]
  %s1 = inlined_call_operand.vmem [shape: f32[1024,8], index: 1, kind: input, shape index: {}]
  %s2 = inlined_call_operand.vmem [shape: f32[8,1024], index: 2, kind: input, shape index: {}]
  %s3 = inlined_call_operand.vmem [shape: f32[8,512], index: 3, kind: output, shape index: {}]
  %s4 = sld [smem:[#allocation0]]
  $region45: #{cell_net_forward.1} parent=0
    _
  %s6 = ssub.s32 1, %s4
  %s7 = scalar_select 0, %s6, %s4
  loop: start=0, step=1, limit=4
  $region2: #{cell_net_forward.1} parent=0 // loop_pre_header
    _
  $region3: #{cell_net_forward.1} parent=0 // loop_header
    %s9 = sphi 0, %s13
    %p10 = scmp.ge.s32.totalorder %s9, 4
    %s19 = sphi 0, %s21
    %s22 = sphi 0, %s19
    %s23 = sphi 0, %s22
    %s39 = sphi 0, %s23
    %s43 = sphi 0, %s43
    %s45 = sphi 0, %s43
    %s46 = sphi 0, %s45
    %s60 = sphi 0, %s46
    %s64 = sphi 0, %s64
    %s66 = sphi 0, %s64
    %s67 = sphi 0, %s66
    %s81 = sphi 0, %s67
    %s87 = sphi 0, %s89
    %s90 = sphi 0, %s87
    %s91 = sphi 0, %s90
    %s107 = sphi 0, %s91
  $region4: #{cell_net_forward.1} parent=0 // loop_header_branch
    %12 = sbr.rel (%p10) target = $region8
  $region5: #{cell_net_forward.1} parent=0 // loop_body
    %s14 = ssub.s32 %s9, 1
    %s15 = ssub.s32 %s9, 2
    %s16 = sadd.s32 %s9, 1
    %s17 = ssub.s32 %s9, %s16
    %p18 = scmp.eq.s32.totalorder %s17, 0
    %s20 = sadd.s32 %s19, 1
    %s21 = scalar_select %p18, %s19, %s20
    %p24 = pneg %p18
    %p25 = scmp.eq.s32.totalorder %s9, 1
    %p26 = por %p24, %p25
    %p27 = scmp.ne.s32.totalorder %s19, %s22
    %p28 = scmp.eq.s32.totalorder %s9, 0
    %p29 = por %p27, %p28
    %p30 = scmp.ne.s32.totalorder %s19, %s22
    %p31 = scmp.eq.s32.totalorder %s14, 1
    %p32 = por %p30, %p31
    %p33 = scmp.ne.s32.totalorder %s22, %s23
    %p34 = scmp.eq.s32.totalorder %s14, 0
    %p35 = por %p33, %p34
    %p36 = scmp.ne.s32.totalorder %s22, %s23
    %p37 = scmp.eq.s32.totalorder %s15, 1
    %p38 = por %p36, %p37
    %p40 = scmp.ne.s32.totalorder %s23, %s39
    %p41 = scmp.eq.s32.totalorder %s15, 0
    %p42 = por %p40, %p41
    %s44 = sadd.s32 %s43, 1
    %p47 = scmp.eq.s32.totalorder %s9, 1
    %p48 = scmp.ne.s32.totalorder %s43, %s45
    %p49 = scmp.eq.s32.totalorder %s9, 0
    %p50 = por %p48, %p49
    %p51 = scmp.ne.s32.totalorder %s43, %s45
    %p52 = scmp.eq.s32.totalorder %s14, 1
    %p53 = por %p51, %p52
    %p54 = scmp.ne.s32.totalorder %s45, %s46
    %p55 = scmp.eq.s32.totalorder %s14, 0
    %p56 = por %p54, %p55
    %p57 = scmp.ne.s32.totalorder %s45, %s46
    %p58 = scmp.eq.s32.totalorder %s15, 1
    %p59 = por %p57, %p58
    %p61 = scmp.ne.s32.totalorder %s46, %s60
    %p62 = scmp.eq.s32.totalorder %s15, 0
    %p63 = por %p61, %p62
    %s65 = sadd.s32 %s64, 1
    %p68 = scmp.eq.s32.totalorder %s9, 1
    %p69 = scmp.ne.s32.totalorder %s64, %s66
    %p70 = scmp.eq.s32.totalorder %s9, 0
    %p71 = por %p69, %p70
    %p72 = scmp.ne.s32.totalorder %s64, %s66
    %p73 = scmp.eq.s32.totalorder %s14, 1
    %p74 = por %p72, %p73
    %p75 = scmp.ne.s32.totalorder %s66, %s67
    %p76 = scmp.eq.s32.totalorder %s14, 0
    %p77 = por %p75, %p76
    %p78 = scmp.ne.s32.totalorder %s66, %s67
    %p79 = scmp.eq.s32.totalorder %s15, 1
    %p80 = por %p78, %p79
    %p82 = scmp.ne.s32.totalorder %s67, %s81
    %p83 = scmp.eq.s32.totalorder %s15, 0
    %p84 = por %p82, %p83
    %s85 = ssub.s32 %s9, %s16
    %p86 = scmp.eq.s32.totalorder %s85, 0
    %s88 = sadd.s32 %s87, 1
    %s89 = scalar_select %p86, %s87, %s88
    %p92 = pneg %p86
    %p93 = scmp.eq.s32.totalorder %s9, 1
    %p94 = por %p92, %p93
    %p95 = scmp.ne.s32.totalorder %s87, %s90
    %p96 = scmp.eq.s32.totalorder %s9, 0
    %p97 = por %p95, %p96
    %p98 = scmp.ne.s32.totalorder %s87, %s90
    %p99 = scmp.eq.s32.totalorder %s14, 1
    %p100 = por %p98, %p99
    %p101 = scmp.ne.s32.totalorder %s90, %s91
    %p102 = scmp.eq.s32.totalorder %s14, 0
    %p103 = por %p101, %p102
    %p104 = scmp.ne.s32.totalorder %s90, %s91
    %p105 = scmp.eq.s32.totalorder %s15, 1
    %p106 = por %p104, %p105
    %p108 = scmp.ne.s32.totalorder %s91, %s107
    %p109 = scmp.eq.s32.totalorder %s15, 0
    %p110 = por %p108, %p109
    %p111 = scmp.le.s32.totalorder 1, %s9
    %p112 = scmp.lt.s32.totalorder %s9, 3
    %p113 = pnand %p111, %p112
    %p114 = pneg %p113
    // Predicated region
    $region9: #{cell_net_forward.1} parent=5 // pred_check
      _
    $region10: #{cell_net_forward.1} parent=5 // pred_check_branch
      %116 = sbr.rel (%p113) target = $region12
    $region11: #{cell_net_forward.1} parent=5 // pred_region
      %s117 = ssub.s32 %s9, 1
      // Predicated region
      $region13: #{cell_net_forward.1} parent=11 // pred_check
        %p118 = pneg %p56
      $region14: #{cell_net_forward.1} parent=11 // pred_check_branch
        %120 = sbr.rel (%p118) target = $region16
      $region15: #{cell_net_forward.1} parent=11 // pred_region
        _
      $region16: #{cell_net_forward.1} parent=11 // pred_fallthru
        _
      // Predicated region
      $region17: #{cell_net_forward.1} parent=11 // pred_check
        %p121 = pneg %p77
      $region18: #{cell_net_forward.1} parent=11 // pred_check_branch
        %123 = sbr.rel (%p121) target = $region20
      $region19: #{cell_net_forward.1} parent=11 // pred_region
        _
      $region20: #{cell_net_forward.1} parent=11 // pred_fallthru
        _
    $region12: #{cell_net_forward.1} parent=5 // pred_fallthru
      _
    %p124 = scmp.lt.s32.totalorder %s9, 2
    // Predicated region
    $region21: #{cell_net_forward.1} parent=5 // pred_check
      %p125 = pneg %p124
    $region22: #{cell_net_forward.1} parent=5 // pred_check_branch
      %127 = sbr.rel (%p125) target = $region24
    $region23: #{cell_net_forward.1} parent=5 // pred_region
      // Predicated region
      $region25: #{cell_net_forward.1} parent=23 // pred_check
        %p128 = pneg %p29
      $region26: #{cell_net_forward.1} parent=23 // pred_check_branch
        %130 = sbr.rel (%p128) target = $region28
      $region27: #{cell_net_forward.1} parent=23 // pred_region
        %s131 = smul.u32 2, %s9
        %p132 = scmp.lt.s32.totalorder %s131, 3
        %s133 = scalar_select %p132, %s131, 3
        %s134 = smul.addr %s133, 8
        %s135 = scalar_lea.vmem %s0, %s134
        %s136 = smul.u32 2, %s9
      $region28: #{cell_net_forward.1} parent=23 // pred_fallthru
        _
    $region24: #{cell_net_forward.1} parent=5 // pred_fallthru
      _
    %p137 = scmp.le.s32.totalorder 1, %s9
    %p138 = scmp.lt.s32.totalorder %s9, 3
    %p139 = pnand %p137, %p138
    %p140 = pneg %p139
    // Predicated region
    $region29: #{cell_net_forward.1} parent=5 // pred_check
      _
    $region30: #{cell_net_forward.1} parent=5 // pred_check_branch
      %142 = sbr.rel (%p139) target = $region32
    $region31: #{cell_net_forward.1} parent=5 // pred_region
      %s143 = ssub.s32 %s9, 1
      %s144 = smul.u32 2, %s14
      %p145 = scmp.lt.s32.totalorder %s144, 3
      %s146 = scalar_select %p145, %s144, 3
      %s147 = smul.addr %s146, 8
      %s148 = scalar_lea.vmem %s0, %s147
      %p149 = pneg %p35
      %p150 = pneg %p32
      %p151 = pneg %p56
      %p152 = pneg %p53
      %p153 = pneg %p77
      %p154 = pneg %p74
      %p155 = pneg %p103
      %p156 = pneg %p100
      %s157 = smul.u32 2, %s14
      %p158 = scmp.lt.s32.totalorder %s157, 3
      %s159 = scalar_select %p158, %s157, 3
      %s160 = smul.addr %s159, 8
      %s161 = scalar_lea.vmem %s3, %s160
      %s162 = smul.u32 2, %s14
      %p163 = scmp.lt.s32.totalorder %s162, 3
      %s164 = scalar_select %p163, %s162, 3
      %s165 = smul.addr %s164, 8
      %s166 = scalar_lea.vmem %s0, %s165
      %s167 = smul.u32 2, %s14
      %s168 = smul.u32 2, %s14
      %p169 = scmp.lt.s32.totalorder %s168, 3
      %s170 = scalar_select %p169, %s168, 3
      %s171 = smul.addr %s170, 8
      %s172 = scalar_lea.vmem %s3, %s171
      %s173 = smul.u32 2, %s14
      %v174 = vld [vmem:[%s166] sm:$0xff]
      %v175 = vld [vmem:[%s166 + $0x8] sm:$0xff]
      %v176 = vld [vmem:[%s1] sm:$0xff]
      %v177 = vld [vmem:[%s1 + $0x8] sm:$0xff]
      %v178 = vld [vmem:[%s1 + $0x10] sm:$0xff]
      %v179 = vld [vmem:[%s1 + $0x18] sm:$0xff]
      %v180 = vld [vmem:[%s1 + $0x20] sm:$0xff]
      %v181 = vld [vmem:[%s1 + $0x28] sm:$0xff]
      %v182 = vld [vmem:[%s1 + $0x30] sm:$0xff]
      %v183 = vld [vmem:[%s1 + $0x38] sm:$0xff]
      %v184 = vld [vmem:[%s1 + $0x40] sm:$0xff]
      %v185 = vld [vmem:[%s1 + $0x48] sm:$0xff]
      %v186 = vld [vmem:[%s1 + $0x50] sm:$0xff]
      %v187 = vld [vmem:[%s1 + $0x58] sm:$0xff]
      %v188 = vld [vmem:[%s1 + $0x60] sm:$0xff]
      %v189 = vld [vmem:[%s1 + $0x68] sm:$0xff]
      %v190 = vld [vmem:[%s1 + $0x70] sm:$0xff]
      %v191 = vld [vmem:[%s1 + $0x78] sm:$0xff]
      %193 = vset.pattern.permute.xlu0 0
      %194 = vperm.xlu0 %193, %v176
      %v195 = vpop.permute.xlu0 %194
      %198 = vset.pattern.permute.xlu0 0
      %199 = vperm.xlu0 %198, %v177
      %v200 = vpop.permute.xlu0 %199
      %203 = vset.pattern.permute.xlu0 0
      %204 = vperm.xlu0 %203, %v178
      %v205 = vpop.permute.xlu0 %204
      %208 = vset.pattern.permute.xlu0 0
      %209 = vperm.xlu0 %208, %v179
      %v210 = vpop.permute.xlu0 %209
      %213 = vset.pattern.permute.xlu0 0
      %214 = vperm.xlu0 %213, %v180
      %v215 = vpop.permute.xlu0 %214
      %218 = vset.pattern.permute.xlu0 0
      %219 = vperm.xlu0 %218, %v181
      %v220 = vpop.permute.xlu0 %219
      %223 = vset.pattern.permute.xlu0 0
      %224 = vperm.xlu0 %223, %v182
      %v225 = vpop.permute.xlu0 %224
      %228 = vset.pattern.permute.xlu0 0
      %229 = vperm.xlu0 %228, %v183
      %v230 = vpop.permute.xlu0 %229
      %233 = vset.pattern.permute.xlu0 0
      %234 = vperm.xlu0 %233, %v184
      %v235 = vpop.permute.xlu0 %234
      %238 = vset.pattern.permute.xlu0 0
      %239 = vperm.xlu0 %238, %v185
      %v240 = vpop.permute.xlu0 %239
      %243 = vset.pattern.permute.xlu0 0
      %244 = vperm.xlu0 %243, %v186
      %v245 = vpop.permute.xlu0 %244
      %248 = vset.pattern.permute.xlu0 0
      %249 = vperm.xlu0 %248, %v187
      %v250 = vpop.permute.xlu0 %249
      %253 = vset.pattern.permute.xlu0 0
      %254 = vperm.xlu0 %253, %v188
      %v255 = vpop.permute.xlu0 %254
      %258 = vset.pattern.permute.xlu0 0
      %259 = vperm.xlu0 %258, %v189
      %v260 = vpop.permute.xlu0 %259
      %263 = vset.pattern.permute.xlu0 0
      %264 = vperm.xlu0 %263, %v190
      %v265 = vpop.permute.xlu0 %264
      %268 = vset.pattern.permute.xlu0 0
      %269 = vperm.xlu0 %268, %v191
      %v270 = vpop.permute.xlu0 %269
      %v272 = vlaneseq
      %v273 = vshrl.u32 %v272, 7
      %v274 = vsub.s32 0, %v273
      %v275 = vrot.slane %v174, %v274
      %v276 = vlaneseq
      %v277 = vshrl.u32 %v276, 7
      %v278 = vsub.s32 0, %v277
      %v279 = vrot.slane %v175, %v278
      %v280 = vmul.f32 %v195, %v275
      %v281 = vmul.f32 %v195, %v279
      %v282 = vmul.f32 %v200, %v275
      %v283 = vmul.f32 %v200, %v279
      %v284 = vmul.f32 %v205, %v275
      %v285 = vmul.f32 %v205, %v279
      %v286 = vmul.f32 %v210, %v275
      %v287 = vmul.f32 %v210, %v279
      %v288 = vmul.f32 %v215, %v275
      %v289 = vmul.f32 %v215, %v279
      %v290 = vmul.f32 %v220, %v275
      %v291 = vmul.f32 %v220, %v279
      %v292 = vmul.f32 %v225, %v275
      %v293 = vmul.f32 %v225, %v279
      %v294 = vmul.f32 %v230, %v275
      %v295 = vmul.f32 %v230, %v279
      %v296 = vmul.f32 %v235, %v275
      %v297 = vmul.f32 %v235, %v279
      %v298 = vmul.f32 %v240, %v275
      %v299 = vmul.f32 %v240, %v279
      %v300 = vmul.f32 %v245, %v275
      %v301 = vmul.f32 %v245, %v279
      %v302 = vmul.f32 %v250, %v275
      %v303 = vmul.f32 %v250, %v279
      %v304 = vmul.f32 %v255, %v275
      %v305 = vmul.f32 %v255, %v279
      %v306 = vmul.f32 %v260, %v275
      %v307 = vmul.f32 %v260, %v279
      %v308 = vmul.f32 %v265, %v275
      %v309 = vmul.f32 %v265, %v279
      %v310 = vmul.f32 %v270, %v275
      %v311 = vmul.f32 %v270, %v279
      %312 = vset.pattern.permute.xlu0 1
      %313 = vperm.xlu0 %312, %v176
      %v314 = vpop.permute.xlu0 %313
      %316 = vset.pattern.permute.xlu0 1
      %317 = vperm.xlu0 %316, %v177
      %v318 = vpop.permute.xlu0 %317
      %320 = vset.pattern.permute.xlu0 1
      %321 = vperm.xlu0 %320, %v178
      %v322 = vpop.permute.xlu0 %321
      %324 = vset.pattern.permute.xlu0 1
      %325 = vperm.xlu0 %324, %v179
      %v326 = vpop.permute.xlu0 %325
      %328 = vset.pattern.permute.xlu0 1
      %329 = vperm.xlu0 %328, %v180
      %v330 = vpop.permute.xlu0 %329
      %332 = vset.pattern.permute.xlu0 1
      %333 = vperm.xlu0 %332, %v181
      %v334 = vpop.permute.xlu0 %333
      %336 = vset.pattern.permute.xlu0 1
      %337 = vperm.xlu0 %336, %v182
      %v338 = vpop.permute.xlu0 %337
      %340 = vset.pattern.permute.xlu0 1
      %341 = vperm.xlu0 %340, %v183
      %v342 = vpop.permute.xlu0 %341
      %344 = vset.pattern.permute.xlu0 1
      %345 = vperm.xlu0 %344, %v184
      %v346 = vpop.permute.xlu0 %345
      %348 = vset.pattern.permute.xlu0 1
      %349 = vperm.xlu0 %348, %v185
      %v350 = vpop.permute.xlu0 %349
      %352 = vset.pattern.permute.xlu0 1
      %353 = vperm.xlu0 %352, %v186
      %v354 = vpop.permute.xlu0 %353
      %356 = vset.pattern.permute.xlu0 1
      %357 = vperm.xlu0 %356, %v187
      %v358 = vpop.permute.xlu0 %357
      %360 = vset.pattern.permute.xlu0 1
      %361 = vperm.xlu0 %360, %v188
      %v362 = vpop.permute.xlu0 %361
      %364 = vset.pattern.permute.xlu0 1
      %365 = vperm.xlu0 %364, %v189
      %v366 = vpop.permute.xlu0 %365
      %368 = vset.pattern.permute.xlu0 1
      %369 = vperm.xlu0 %368, %v190
      %v370 = vpop.permute.xlu0 %369
      %372 = vset.pattern.permute.xlu0 1
      %373 = vperm.xlu0 %372, %v191
      %v374 = vpop.permute.xlu0 %373
      %v376 = vlaneseq
      %v377 = vshrl.u32 %v376, 7
      %v378 = vsub.s32 1, %v377
      %v379 = vrot.slane %v174, %v378
      %v380 = vlaneseq
      %v381 = vshrl.u32 %v380, 7
      %v382 = vsub.s32 1, %v381
      %v383 = vrot.slane %v175, %v382
      %v384 = vmul.f32 %v314, %v379
      %v385 = vmul.f32 %v314, %v383
      %v386 = vmul.f32 %v318, %v379
      %v387 = vmul.f32 %v318, %v383
      %v388 = vmul.f32 %v322, %v379
      %v389 = vmul.f32 %v322, %v383
      %v390 = vmul.f32 %v326, %v379
      %v391 = vmul.f32 %v326, %v383
      %v392 = vmul.f32 %v330, %v379
      %v393 = vmul.f32 %v330, %v383
      %v394 = vmul.f32 %v334, %v379
      %v395 = vmul.f32 %v334, %v383
      %v396 = vmul.f32 %v338, %v379
      %v397 = vmul.f32 %v338, %v383
      %v398 = vmul.f32 %v342, %v379
      %v399 = vmul.f32 %v342, %v383
      %v400 = vmul.f32 %v346, %v379
      %v401 = vmul.f32 %v346, %v383
      %v402 = vmul.f32 %v350, %v379
      %v403 = vmul.f32 %v350, %v383
      %v404 = vmul.f32 %v354, %v379
      %v405 = vmul.f32 %v354, %v383
      %v406 = vmul.f32 %v358, %v379
      %v407 = vmul.f32 %v358, %v383
      %v408 = vmul.f32 %v362, %v379
      %v409 = vmul.f32 %v362, %v383
      %v410 = vmul.f32 %v366, %v379
      %v411 = vmul.f32 %v366, %v383
      %v412 = vmul.f32 %v370, %v379
      %v413 = vmul.f32 %v370, %v383
      %v414 = vmul.f32 %v374, %v379
      %v415 = vmul.f32 %v374, %v383
      %v416 = vadd.f32 %v280, %v384
      %v417 = vadd.f32 %v281, %v385
      %v418 = vadd.f32 %v282, %v386
      %v419 = vadd.f32 %v283, %v387
      %v420 = vadd.f32 %v284, %v388
      %v421 = vadd.f32 %v285, %v389
      %v422 = vadd.f32 %v286, %v390
      %v423 = vadd.f32 %v287, %v391
      %v424 = vadd.f32 %v288, %v392
      %v425 = vadd.f32 %v289, %v393
      %v426 = vadd.f32 %v290, %v394
      %v427 = vadd.f32 %v291, %v395
      %v428 = vadd.f32 %v292, %v396
      %v429 = vadd.f32 %v293, %v397
      %v430 = vadd.f32 %v294, %v398
      %v431 = vadd.f32 %v295, %v399
      %v432 = vadd.f32 %v296, %v400
      %v433 = vadd.f32 %v297, %v401
      %v434 = vadd.f32 %v298, %v402
      %v435 = vadd.f32 %v299, %v403
      %v436 = vadd.f32 %v300, %v404
      %v437 = vadd.f32 %v301, %v405
      %v438 = vadd.f32 %v302, %v406
      %v439 = vadd.f32 %v303, %v407
      %v440 = vadd.f32 %v304, %v408
      %v441 = vadd.f32 %v305, %v409
      %v442 = vadd.f32 %v306, %v410
      %v443 = vadd.f32 %v307, %v411
      %v444 = vadd.f32 %v308, %v412
      %v445 = vadd.f32 %v309, %v413
      %v446 = vadd.f32 %v310, %v414
      %v447 = vadd.f32 %v311, %v415
      %448 = vset.pattern.permute.xlu0 2
      %449 = vperm.xlu0 %448, %v176
      %v450 = vpop.permute.xlu0 %449
      %452 = vset.pattern.permute.xlu0 2
      %453 = vperm.xlu0 %452, %v177
      %v454 = vpop.permute.xlu0 %453
      %456 = vset.pattern.permute.xlu0 2
      %457 = vperm.xlu0 %456, %v178
      %v458 = vpop.permute.xlu0 %457
      %460 = vset.pattern.permute.xlu0 2
      %461 = vperm.xlu0 %460, %v179
      %v462 = vpop.permute.xlu0 %461
      %464 = vset.pattern.permute.xlu0 2
      %465 = vperm.xlu0 %464, %v180
      %v466 = vpop.permute.xlu0 %465
      %468 = vset.pattern.permute.xlu0 2
      %469 = vperm.xlu0 %468, %v181
      %v470 = vpop.permute.xlu0 %469
      %472 = vset.pattern.permute.xlu0 2
      %473 = vperm.xlu0 %472, %v182
      %v474 = vpop.permute.xlu0 %473
      %476 = vset.pattern.permute.xlu0 2
      %477 = vperm.xlu0 %476, %v183
      %v478 = vpop.permute.xlu0 %477
      %480 = vset.pattern.permute.xlu0 2
      %481 = vperm.xlu0 %480, %v184
      %v482 = vpop.permute.xlu0 %481
      %484 = vset.pattern.permute.xlu0 2
      %485 = vperm.xlu0 %484, %v185
      %v486 = vpop.permute.xlu0 %485
      %488 = vset.pattern.permute.xlu0 2
      %489 = vperm.xlu0 %488, %v186
      %v490 = vpop.permute.xlu0 %489
      %492 = vset.pattern.permute.xlu0 2
      %493 = vperm.xlu0 %492, %v187
      %v494 = vpop.permute.xlu0 %493
      %496 = vset.pattern.permute.xlu0 2
      %497 = vperm.xlu0 %496, %v188
      %v498 = vpop.permute.xlu0 %497
      %500 = vset.pattern.permute.xlu0 2
      %501 = vperm.xlu0 %500, %v189
      %v502 = vpop.permute.xlu0 %501
      %504 = vset.pattern.permute.xlu0 2
      %505 = vperm.xlu0 %504, %v190
      %v506 = vpop.permute.xlu0 %505
      %508 = vset.pattern.permute.xlu0 2
      %509 = vperm.xlu0 %508, %v191
      %v510 = vpop.permute.xlu0 %509
      %v512 = vlaneseq
      %v513 = vshrl.u32 %v512, 7
      %v514 = vsub.s32 2, %v513
      %v515 = vrot.slane %v174, %v514
      %v516 = vlaneseq
      %v517 = vshrl.u32 %v516, 7
      %v518 = vsub.s32 2, %v517
      %v519 = vrot.slane %v175, %v518
      %v520 = vmul.f32 %v450, %v515
      %v521 = vmul.f32 %v450, %v519
      %v522 = vmul.f32 %v454, %v515
      %v523 = vmul.f32 %v454, %v519
      %v524 = vmul.f32 %v458, %v515
      %v525 = vmul.f32 %v458, %v519
      %v526 = vmul.f32 %v462, %v515
      %v527 = vmul.f32 %v462, %v519
      %v528 = vmul.f32 %v466, %v515
      %v529 = vmul.f32 %v466, %v519
      %v530 = vmul.f32 %v470, %v515
      %v531 = vmul.f32 %v470, %v519
      %v532 = vmul.f32 %v474, %v515
      %v533 = vmul.f32 %v474, %v519
      %v534 = vmul.f32 %v478, %v515
      %v535 = vmul.f32 %v478, %v519
      %v536 = vmul.f32 %v482, %v515
      %v537 = vmul.f32 %v482, %v519
      %v538 = vmul.f32 %v486, %v515
      %v539 = vmul.f32 %v486, %v519
      %v540 = vmul.f32 %v490, %v515
      %v541 = vmul.f32 %v490, %v519
      %v542 = vmul.f32 %v494, %v515
      %v543 = vmul.f32 %v494, %v519
      %v544 = vmul.f32 %v498, %v515
      %v545 = vmul.f32 %v498, %v519
      %v546 = vmul.f32 %v502, %v515
      %v547 = vmul.f32 %v502, %v519
      %v548 = vmul.f32 %v506, %v515
      %v549 = vmul.f32 %v506, %v519
      %v550 = vmul.f32 %v510, %v515
      %v551 = vmul.f32 %v510, %v519
      %v552 = vadd.f32 %v416, %v520
      %v553 = vadd.f32 %v417, %v521
      %v554 = vadd.f32 %v418, %v522
      %v555 = vadd.f32 %v419, %v523
      %v556 = vadd.f32 %v420, %v524
      %v557 = vadd.f32 %v421, %v525
      %v558 = vadd.f32 %v422, %v526
      %v559 = vadd.f32 %v423, %v527
      %v560 = vadd.f32 %v424, %v528
      %v561 = vadd.f32 %v425, %v529
      %v562 = vadd.f32 %v426, %v530
      %v563 = vadd.f32 %v427, %v531
      %v564 = vadd.f32 %v428, %v532
      %v565 = vadd.f32 %v429, %v533
      %v566 = vadd.f32 %v430, %v534
      %v567 = vadd.f32 %v431, %v535
      %v568 = vadd.f32 %v432, %v536
      %v569 = vadd.f32 %v433, %v537
      %v570 = vadd.f32 %v434, %v538
      %v571 = vadd.f32 %v435, %v539
      %v572 = vadd.f32 %v436, %v540
      %v573 = vadd.f32 %v437, %v541
      %v574 = vadd.f32 %v438, %v542
      %v575 = vadd.f32 %v439, %v543
      %v576 = vadd.f32 %v440, %v544
      %v577 = vadd.f32 %v441, %v545
      %v578 = vadd.f32 %v442, %v546
      %v579 = vadd.f32 %v443, %v547
      %v580 = vadd.f32 %v444, %v548
      %v581 = vadd.f32 %v445, %v549
      %v582 = vadd.f32 %v446, %v550
      %v583 = vadd.f32 %v447, %v551
      %584 = vset.pattern.permute.xlu0 3
      %585 = vperm.xlu0 %584, %v176
      %v586 = vpop.permute.xlu0 %585
      %588 = vset.pattern.permute.xlu0 3
      %589 = vperm.xlu0 %588, %v177
      %v590 = vpop.permute.xlu0 %589
      %592 = vset.pattern.permute.xlu0 3
      %593 = vperm.xlu0 %592, %v178
      %v594 = vpop.permute.xlu0 %593
      %596 = vset.pattern.permute.xlu0 3
      %597 = vperm.xlu0 %596, %v179
      %v598 = vpop.permute.xlu0 %597
      %600 = vset.pattern.permute.xlu0 3
      %601 = vperm.xlu0 %600, %v180
      %v602 = vpop.permute.xlu0 %601
      %604 = vset.pattern.permute.xlu0 3
      %605 = vperm.xlu0 %604, %v181
      %v606 = vpop.permute.xlu0 %605
      %608 = vset.pattern.permute.xlu0 3
      %609 = vperm.xlu0 %608, %v182
      %v610 = vpop.permute.xlu0 %609
      %612 = vset.pattern.permute.xlu0 3
      %613 = vperm.xlu0 %612, %v183
      %v614 = vpop.permute.xlu0 %613
      %616 = vset.pattern.permute.xlu0 3
      %617 = vperm.xlu0 %616, %v184
      %v618 = vpop.permute.xlu0 %617
      %620 = vset.pattern.permute.xlu0 3
      %621 = vperm.xlu0 %620, %v185
      %v622 = vpop.permute.xlu0 %621
      %624 = vset.pattern.permute.xlu0 3
      %625 = vperm.xlu0 %624, %v186
      %v626 = vpop.permute.xlu0 %625
      %628 = vset.pattern.permute.xlu0 3
      %629 = vperm.xlu0 %628, %v187
      %v630 = vpop.permute.xlu0 %629
      %632 = vset.pattern.permute.xlu0 3
      %633 = vperm.xlu0 %632, %v188
      %v634 = vpop.permute.xlu0 %633
      %636 = vset.pattern.permute.xlu0 3
      %637 = vperm.xlu0 %636, %v189
      %v638 = vpop.permute.xlu0 %637
      %640 = vset.pattern.permute.xlu0 3
      %641 = vperm.xlu0 %640, %v190
      %v642 = vpop.permute.xlu0 %641
      %644 = vset.pattern.permute.xlu0 3
      %645 = vperm.xlu0 %644, %v191
      %v646 = vpop.permute.xlu0 %645
      %v648 = vlaneseq
      %v649 = vshrl.u32 %v648, 7
      %v650 = vsub.s32 3, %v649
      %v651 = vrot.slane %v174, %v650
      %v652 = vlaneseq
      %v653 = vshrl.u32 %v652, 7
      %v654 = vsub.s32 3, %v653
      %v655 = vrot.slane %v175, %v654
      %v656 = vmul.f32 %v586, %v651
      %v657 = vmul.f32 %v586, %v655
      %v658 = vmul.f32 %v590, %v651
      %v659 = vmul.f32 %v590, %v655
      %v660 = vmul.f32 %v594, %v651
      %v661 = vmul.f32 %v594, %v655
      %v662 = vmul.f32 %v598, %v651
      %v663 = vmul.f32 %v598, %v655
      %v664 = vmul.f32 %v602, %v651
      %v665 = vmul.f32 %v602, %v655
      %v666 = vmul.f32 %v606, %v651
      %v667 = vmul.f32 %v606, %v655
      %v668 = vmul.f32 %v610, %v651
      %v669 = vmul.f32 %v610, %v655
      %v670 = vmul.f32 %v614, %v651
      %v671 = vmul.f32 %v614, %v655
      %v672 = vmul.f32 %v618, %v651
      %v673 = vmul.f32 %v618, %v655
      %v674 = vmul.f32 %v622, %v651
      %v675 = vmul.f32 %v622, %v655
      %v676 = vmul.f32 %v626, %v651
      %v677 = vmul.f32 %v626, %v655
      %v678 = vmul.f32 %v630, %v651
      %v679 = vmul.f32 %v630, %v655
      %v680 = vmul.f32 %v634, %v651
      %v681 = vmul.f32 %v634, %v655
      %v682 = vmul.f32 %v638, %v651
      %v683 = vmul.f32 %v638, %v655
      %v684 = vmul.f32 %v642, %v651
      %v685 = vmul.f32 %v642, %v655
      %v686 = vmul.f32 %v646, %v651
      %v687 = vmul.f32 %v646, %v655
      %v688 = vadd.f32 %v552, %v656
      %v689 = vadd.f32 %v553, %v657
      %v690 = vadd.f32 %v554, %v658
      %v691 = vadd.f32 %v555, %v659
      %v692 = vadd.f32 %v556, %v660
      %v693 = vadd.f32 %v557, %v661
      %v694 = vadd.f32 %v558, %v662
      %v695 = vadd.f32 %v559, %v663
      %v696 = vadd.f32 %v560, %v664
      %v697 = vadd.f32 %v561, %v665
      %v698 = vadd.f32 %v562, %v666
      %v699 = vadd.f32 %v563, %v667
      %v700 = vadd.f32 %v564, %v668
      %v701 = vadd.f32 %v565, %v669
      %v702 = vadd.f32 %v566, %v670
      %v703 = vadd.f32 %v567, %v671
      %v704 = vadd.f32 %v568, %v672
      %v705 = vadd.f32 %v569, %v673
      %v706 = vadd.f32 %v570, %v674
      %v707 = vadd.f32 %v571, %v675
      %v708 = vadd.f32 %v572, %v676
      %v709 = vadd.f32 %v573, %v677
      %v710 = vadd.f32 %v574, %v678
      %v711 = vadd.f32 %v575, %v679
      %v712 = vadd.f32 %v576, %v680
      %v713 = vadd.f32 %v577, %v681
      %v714 = vadd.f32 %v578, %v682
      %v715 = vadd.f32 %v579, %v683
      %v716 = vadd.f32 %v580, %v684
      %v717 = vadd.f32 %v581, %v685
      %v718 = vadd.f32 %v582, %v686
      %v719 = vadd.f32 %v583, %v687
      %720 = vset.pattern.permute.xlu0 4
      %721 = vperm.xlu0 %720, %v176
      %v722 = vpop.permute.xlu0 %721
      %724 = vset.pattern.permute.xlu0 4
      %725 = vperm.xlu0 %724, %v177
      %v726 = vpop.permute.xlu0 %725
      %728 = vset.pattern.permute.xlu0 4
      %729 = vperm.xlu0 %728, %v178
      %v730 = vpop.permute.xlu0 %729
      %732 = vset.pattern.permute.xlu0 4
      %733 = vperm.xlu0 %732, %v179
      %v734 = vpop.permute.xlu0 %733
      %736 = vset.pattern.permute.xlu0 4
      %737 = vperm.xlu0 %736, %v180
      %v738 = vpop.permute.xlu0 %737
      %740 = vset.pattern.permute.xlu0 4
      %741 = vperm.xlu0 %740, %v181
      %v742 = vpop.permute.xlu0 %741
      %744 = vset.pattern.permute.xlu0 4
      %745 = vperm.xlu0 %744, %v182
      %v746 = vpop.permute.xlu0 %745
      %748 = vset.pattern.permute.xlu0 4
      %749 = vperm.xlu0 %748, %v183
      %v750 = vpop.permute.xlu0 %749
      %752 = vset.pattern.permute.xlu0 4
      %753 = vperm.xlu0 %752, %v184
      %v754 = vpop.permute.xlu0 %753
      %756 = vset.pattern.permute.xlu0 4
      %757 = vperm.xlu0 %756, %v185
      %v758 = vpop.permute.xlu0 %757
      %760 = vset.pattern.permute.xlu0 4
      %761 = vperm.xlu0 %760, %v186
      %v762 = vpop.permute.xlu0 %761
      %764 = vset.pattern.permute.xlu0 4
      %765 = vperm.xlu0 %764, %v187
      %v766 = vpop.permute.xlu0 %765
      %768 = vset.pattern.permute.xlu0 4
      %769 = vperm.xlu0 %768, %v188
      %v770 = vpop.permute.xlu0 %769
      %772 = vset.pattern.permute.xlu0 4
      %773 = vperm.xlu0 %772, %v189
      %v774 = vpop.permute.xlu0 %773
      %776 = vset.pattern.permute.xlu0 4
      %777 = vperm.xlu0 %776, %v190
      %v778 = vpop.permute.xlu0 %777
      %780 = vset.pattern.permute.xlu0 4
      %781 = vperm.xlu0 %780, %v191
      %v782 = vpop.permute.xlu0 %781
      %v784 = vlaneseq
      %v785 = vshrl.u32 %v784, 7
      %v786 = vsub.s32 4, %v785
      %v787 = vrot.slane %v174, %v786
      %v788 = vlaneseq
      %v789 = vshrl.u32 %v788, 7
      %v790 = vsub.s32 4, %v789
      %v791 = vrot.slane %v175, %v790
      %v792 = vmul.f32 %v722, %v787
      %v793 = vmul.f32 %v722, %v791
      %v794 = vmul.f32 %v726, %v787
      %v795 = vmul.f32 %v726, %v791
      %v796 = vmul.f32 %v730, %v787
      %v797 = vmul.f32 %v730, %v791
      %v798 = vmul.f32 %v734, %v787
      %v799 = vmul.f32 %v734, %v791
      %v800 = vmul.f32 %v738, %v787
      %v801 = vmul.f32 %v738, %v791
      %v802 = vmul.f32 %v742, %v787
      %v803 = vmul.f32 %v742, %v791
      %v804 = vmul.f32 %v746, %v787
      %v805 = vmul.f32 %v746, %v791
      %v806 = vmul.f32 %v750, %v787
      %v807 = vmul.f32 %v750, %v791
      %v808 = vmul.f32 %v754, %v787
      %v809 = vmul.f32 %v754, %v791
      %v810 = vmul.f32 %v758, %v787
      %v811 = vmul.f32 %v758, %v791
      %v812 = vmul.f32 %v762, %v787
      %v813 = vmul.f32 %v762, %v791
      %v814 = vmul.f32 %v766, %v787
      %v815 = vmul.f32 %v766, %v791
      %v816 = vmul.f32 %v770, %v787
      %v817 = vmul.f32 %v770, %v791
      %v818 = vmul.f32 %v774, %v787
      %v819 = vmul.f32 %v774, %v791
      %v820 = vmul.f32 %v778, %v787
      %v821 = vmul.f32 %v778, %v791
      %v822 = vmul.f32 %v782, %v787
      %v823 = vmul.f32 %v782, %v791
      %v824 = vadd.f32 %v688, %v792
      %v825 = vadd.f32 %v689, %v793
      %v826 = vadd.f32 %v690, %v794
      %v827 = vadd.f32 %v691, %v795
      %v828 = vadd.f32 %v692, %v796
      %v829 = vadd.f32 %v693, %v797
      %v830 = vadd.f32 %v694, %v798
      %v831 = vadd.f32 %v695, %v799
      %v832 = vadd.f32 %v696, %v800
      %v833 = vadd.f32 %v697, %v801
      %v834 = vadd.f32 %v698, %v802
      %v835 = vadd.f32 %v699, %v803
      %v836 = vadd.f32 %v700, %v804
      %v837 = vadd.f32 %v701, %v805
      %v838 = vadd.f32 %v702, %v806
      %v839 = vadd.f32 %v703, %v807
      %v840 = vadd.f32 %v704, %v808
      %v841 = vadd.f32 %v705, %v809
      %v842 = vadd.f32 %v706, %v810
      %v843 = vadd.f32 %v707, %v811
      %v844 = vadd.f32 %v708, %v812
      %v845 = vadd.f32 %v709, %v813
      %v846 = vadd.f32 %v710, %v814
      %v847 = vadd.f32 %v711, %v815
      %v848 = vadd.f32 %v712, %v816
      %v849 = vadd.f32 %v713, %v817
      %v850 = vadd.f32 %v714, %v818
      %v851 = vadd.f32 %v715, %v819
      %v852 = vadd.f32 %v716, %v820
      %v853 = vadd.f32 %v717, %v821
      %v854 = vadd.f32 %v718, %v822
      %v855 = vadd.f32 %v719, %v823
      %856 = vset.pattern.permute.xlu0 5
      %857 = vperm.xlu0 %856, %v176
      %v858 = vpop.permute.xlu0 %857
      %860 = vset.pattern.permute.xlu0 5
      %861 = vperm.xlu0 %860, %v177
      %v862 = vpop.permute.xlu0 %861
      %864 = vset.pattern.permute.xlu0 5
      %865 = vperm.xlu0 %864, %v178
      %v866 = vpop.permute.xlu0 %865
      %868 = vset.pattern.permute.xlu0 5
      %869 = vperm.xlu0 %868, %v179
      %v870 = vpop.permute.xlu0 %869
      %872 = vset.pattern.permute.xlu0 5
      %873 = vperm.xlu0 %872, %v180
      %v874 = vpop.permute.xlu0 %873
      %876 = vset.pattern.permute.xlu0 5
      %877 = vperm.xlu0 %876, %v181
      %v878 = vpop.permute.xlu0 %877
      %880 = vset.pattern.permute.xlu0 5
      %881 = vperm.xlu0 %880, %v182
      %v882 = vpop.permute.xlu0 %881
      %884 = vset.pattern.permute.xlu0 5
      %885 = vperm.xlu0 %884, %v183
      %v886 = vpop.permute.xlu0 %885
      %888 = vset.pattern.permute.xlu0 5
      %889 = vperm.xlu0 %888, %v184
      %v890 = vpop.permute.xlu0 %889
      %892 = vset.pattern.permute.xlu0 5
      %893 = vperm.xlu0 %892, %v185
      %v894 = vpop.permute.xlu0 %893
      %896 = vset.pattern.permute.xlu0 5
      %897 = vperm.xlu0 %896, %v186
      %v898 = vpop.permute.xlu0 %897
      %900 = vset.pattern.permute.xlu0 5
      %901 = vperm.xlu0 %900, %v187
      %v902 = vpop.permute.xlu0 %901
      %904 = vset.pattern.permute.xlu0 5
      %905 = vperm.xlu0 %904, %v188
      %v906 = vpop.permute.xlu0 %905
      %908 = vset.pattern.permute.xlu0 5
      %909 = vperm.xlu0 %908, %v189
      %v910 = vpop.permute.xlu0 %909
      %912 = vset.pattern.permute.xlu0 5
      %913 = vperm.xlu0 %912, %v190
      %v914 = vpop.permute.xlu0 %913
      %916 = vset.pattern.permute.xlu0 5
      %917 = vperm.xlu0 %916, %v191
      %v918 = vpop.permute.xlu0 %917
      %v920 = vlaneseq
      %v921 = vshrl.u32 %v920, 7
      %v922 = vsub.s32 5, %v921
      %v923 = vrot.slane %v174, %v922
      %v924 = vlaneseq
      %v925 = vshrl.u32 %v924, 7
      %v926 = vsub.s32 5, %v925
      %v927 = vrot.slane %v175, %v926
      %v928 = vmul.f32 %v858, %v923
      %v929 = vmul.f32 %v858, %v927
      %v930 = vmul.f32 %v862, %v923
      %v931 = vmul.f32 %v862, %v927
      %v932 = vmul.f32 %v866, %v923
      %v933 = vmul.f32 %v866, %v927
      %v934 = vmul.f32 %v870, %v923
      %v935 = vmul.f32 %v870, %v927
      %v936 = vmul.f32 %v874, %v923
      %v937 = vmul.f32 %v874, %v927
      %v938 = vmul.f32 %v878, %v923
      %v939 = vmul.f32 %v878, %v927
      %v940 = vmul.f32 %v882, %v923
      %v941 = vmul.f32 %v882, %v927
      %v942 = vmul.f32 %v886, %v923
      %v943 = vmul.f32 %v886, %v927
      %v944 = vmul.f32 %v890, %v923
      %v945 = vmul.f32 %v890, %v927
      %v946 = vmul.f32 %v894, %v923
      %v947 = vmul.f32 %v894, %v927
      %v948 = vmul.f32 %v898, %v923
      %v949 = vmul.f32 %v898, %v927
      %v950 = vmul.f32 %v902, %v923
      %v951 = vmul.f32 %v902, %v927
      %v952 = vmul.f32 %v906, %v923
      %v953 = vmul.f32 %v906, %v927
      %v954 = vmul.f32 %v910, %v923
      %v955 = vmul.f32 %v910, %v927
      %v956 = vmul.f32 %v914, %v923
      %v957 = vmul.f32 %v914, %v927
      %v958 = vmul.f32 %v918, %v923
      %v959 = vmul.f32 %v918, %v927
      %v960 = vadd.f32 %v824, %v928
      %v961 = vadd.f32 %v825, %v929
      %v962 = vadd.f32 %v826, %v930
      %v963 = vadd.f32 %v827, %v931
      %v964 = vadd.f32 %v828, %v932
      %v965 = vadd.f32 %v829, %v933
      %v966 = vadd.f32 %v830, %v934
      %v967 = vadd.f32 %v831, %v935
      %v968 = vadd.f32 %v832, %v936
      %v969 = vadd.f32 %v833, %v937
      %v970 = vadd.f32 %v834, %v938
      %v971 = vadd.f32 %v835, %v939
      %v972 = vadd.f32 %v836, %v940
      %v973 = vadd.f32 %v837, %v941
      %v974 = vadd.f32 %v838, %v942
      %v975 = vadd.f32 %v839, %v943
      %v976 = vadd.f32 %v840, %v944
      %v977 = vadd.f32 %v841, %v945
      %v978 = vadd.f32 %v842, %v946
      %v979 = vadd.f32 %v843, %v947
      %v980 = vadd.f32 %v844, %v948
      %v981 = vadd.f32 %v845, %v949
      %v982 = vadd.f32 %v846, %v950
      %v983 = vadd.f32 %v847, %v951
      %v984 = vadd.f32 %v848, %v952
      %v985 = vadd.f32 %v849, %v953
      %v986 = vadd.f32 %v850, %v954
      %v987 = vadd.f32 %v851, %v955
      %v988 = vadd.f32 %v852, %v956
      %v989 = vadd.f32 %v853, %v957
      %v990 = vadd.f32 %v854, %v958
      %v991 = vadd.f32 %v855, %v959
      %992 = vset.pattern.permute.xlu0 6
      %993 = vperm.xlu0 %992, %v176
      %v994 = vpop.permute.xlu0 %993
      %996 = vset.pattern.permute.xlu0 6
      %997 = vperm.xlu0 %996, %v177
      %v998 = vpop.permute.xlu0 %997
      %1000 = vset.pattern.permute.xlu0 6
      %1001 = vperm.xlu0 %1000, %v178
      %v1002 = vpop.permute.xlu0 %1001
      %1004 = vset.pattern.permute.xlu0 6
      %1005 = vperm.xlu0 %1004, %v179
      %v1006 = vpop.permute.xlu0 %1005
      %1008 = vset.pattern.permute.xlu0 6
      %1009 = vperm.xlu0 %1008, %v180
      %v1010 = vpop.permute.xlu0 %1009
      %1012 = vset.pattern.permute.xlu0 6
      %1013 = vperm.xlu0 %1012, %v181
      %v1014 = vpop.permute.xlu0 %1013
      %1016 = vset.pattern.permute.xlu0 6
      %1017 = vperm.xlu0 %1016, %v182
      %v1018 = vpop.permute.xlu0 %1017
      %1020 = vset.pattern.permute.xlu0 6
      %1021 = vperm.xlu0 %1020, %v183
      %v1022 = vpop.permute.xlu0 %1021
      %1024 = vset.pattern.permute.xlu0 6
      %1025 = vperm.xlu0 %1024, %v184
      %v1026 = vpop.permute.xlu0 %1025
      %1028 = vset.pattern.permute.xlu0 6
      %1029 = vperm.xlu0 %1028, %v185
      %v1030 = vpop.permute.xlu0 %1029
      %1032 = vset.pattern.permute.xlu0 6
      %1033 = vperm.xlu0 %1032, %v186
      %v1034 = vpop.permute.xlu0 %1033
      %1036 = vset.pattern.permute.xlu0 6
      %1037 = vperm.xlu0 %1036, %v187
      %v1038 = vpop.permute.xlu0 %1037
      %1040 = vset.pattern.permute.xlu0 6
      %1041 = vperm.xlu0 %1040, %v188
      %v1042 = vpop.permute.xlu0 %1041
      %1044 = vset.pattern.permute.xlu0 6
      %1045 = vperm.xlu0 %1044, %v189
      %v1046 = vpop.permute.xlu0 %1045
      %1048 = vset.pattern.permute.xlu0 6
      %1049 = vperm.xlu0 %1048, %v190
      %v1050 = vpop.permute.xlu0 %1049
      %1052 = vset.pattern.permute.xlu0 6
      %1053 = vperm.xlu0 %1052, %v191
      %v1054 = vpop.permute.xlu0 %1053
      %v1056 = vlaneseq
      %v1057 = vshrl.u32 %v1056, 7
      %v1058 = vsub.s32 6, %v1057
      %v1059 = vrot.slane %v174, %v1058
      %v1060 = vlaneseq
      %v1061 = vshrl.u32 %v1060, 7
      %v1062 = vsub.s32 6, %v1061
      %v1063 = vrot.slane %v175, %v1062
      %v1064 = vmul.f32 %v994, %v1059
      %v1065 = vmul.f32 %v994, %v1063
      %v1066 = vmul.f32 %v998, %v1059
      %v1067 = vmul.f32 %v998, %v1063
      %v1068 = vmul.f32 %v1002, %v1059
      %v1069 = vmul.f32 %v1002, %v1063
      %v1070 = vmul.f32 %v1006, %v1059
      %v1071 = vmul.f32 %v1006, %v1063
      %v1072 = vmul.f32 %v1010, %v1059
      %v1073 = vmul.f32 %v1010, %v1063
      %v1074 = vmul.f32 %v1014, %v1059
      %v1075 = vmul.f32 %v1014, %v1063
      %v1076 = vmul.f32 %v1018, %v1059
      %v1077 = vmul.f32 %v1018, %v1063
      %v1078 = vmul.f32 %v1022, %v1059
      %v1079 = vmul.f32 %v1022, %v1063
      %v1080 = vmul.f32 %v1026, %v1059
      %v1081 = vmul.f32 %v1026, %v1063
      %v1082 = vmul.f32 %v1030, %v1059
      %v1083 = vmul.f32 %v1030, %v1063
      %v1084 = vmul.f32 %v1034, %v1059
      %v1085 = vmul.f32 %v1034, %v1063
      %v1086 = vmul.f32 %v1038, %v1059
      %v1087 = vmul.f32 %v1038, %v1063
      %v1088 = vmul.f32 %v1042, %v1059
      %v1089 = vmul.f32 %v1042, %v1063
      %v1090 = vmul.f32 %v1046, %v1059
      %v1091 = vmul.f32 %v1046, %v1063
      %v1092 = vmul.f32 %v1050, %v1059
      %v1093 = vmul.f32 %v1050, %v1063
      %v1094 = vmul.f32 %v1054, %v1059
      %v1095 = vmul.f32 %v1054, %v1063
      %v1096 = vadd.f32 %v960, %v1064
      %v1097 = vadd.f32 %v961, %v1065
      %v1098 = vadd.f32 %v962, %v1066
      %v1099 = vadd.f32 %v963, %v1067
      %v1100 = vadd.f32 %v964, %v1068
      %v1101 = vadd.f32 %v965, %v1069
      %v1102 = vadd.f32 %v966, %v1070
      %v1103 = vadd.f32 %v967, %v1071
      %v1104 = vadd.f32 %v968, %v1072
      %v1105 = vadd.f32 %v969, %v1073
      %v1106 = vadd.f32 %v970, %v1074
      %v1107 = vadd.f32 %v971, %v1075
      %v1108 = vadd.f32 %v972, %v1076
      %v1109 = vadd.f32 %v973, %v1077
      %v1110 = vadd.f32 %v974, %v1078
      %v1111 = vadd.f32 %v975, %v1079
      %v1112 = vadd.f32 %v976, %v1080
      %v1113 = vadd.f32 %v977, %v1081
      %v1114 = vadd.f32 %v978, %v1082
      %v1115 = vadd.f32 %v979, %v1083
      %v1116 = vadd.f32 %v980, %v1084
      %v1117 = vadd.f32 %v981, %v1085
      %v1118 = vadd.f32 %v982, %v1086
      %v1119 = vadd.f32 %v983, %v1087
      %v1120 = vadd.f32 %v984, %v1088
      %v1121 = vadd.f32 %v985, %v1089
      %v1122 = vadd.f32 %v986, %v1090
      %v1123 = vadd.f32 %v987, %v1091
      %v1124 = vadd.f32 %v988, %v1092
      %v1125 = vadd.f32 %v989, %v1093
      %v1126 = vadd.f32 %v990, %v1094
      %v1127 = vadd.f32 %v991, %v1095
      %1128 = vset.pattern.permute.xlu0 7
      %1129 = vperm.xlu0 %1128, %v176
      %v1130 = vpop.permute.xlu0 %1129
      %1132 = vset.pattern.permute.xlu0 7
      %1133 = vperm.xlu0 %1132, %v177
      %v1134 = vpop.permute.xlu0 %1133
      %1136 = vset.pattern.permute.xlu0 7
      %1137 = vperm.xlu0 %1136, %v178
      %v1138 = vpop.permute.xlu0 %1137
      %1140 = vset.pattern.permute.xlu0 7
      %1141 = vperm.xlu0 %1140, %v179
      %v1142 = vpop.permute.xlu0 %1141
      %1144 = vset.pattern.permute.xlu0 7
      %1145 = vperm.xlu0 %1144, %v180
      %v1146 = vpop.permute.xlu0 %1145
      %1148 = vset.pattern.permute.xlu0 7
      %1149 = vperm.xlu0 %1148, %v181
      %v1150 = vpop.permute.xlu0 %1149
      %1152 = vset.pattern.permute.xlu0 7
      %1153 = vperm.xlu0 %1152, %v182
      %v1154 = vpop.permute.xlu0 %1153
      %1156 = vset.pattern.permute.xlu0 7
      %1157 = vperm.xlu0 %1156, %v183
      %v1158 = vpop.permute.xlu0 %1157
      %1160 = vset.pattern.permute.xlu0 7
      %1161 = vperm.xlu0 %1160, %v184
      %v1162 = vpop.permute.xlu0 %1161
      %1164 = vset.pattern.permute.xlu0 7
      %1165 = vperm.xlu0 %1164, %v185
      %v1166 = vpop.permute.xlu0 %1165
      %1168 = vset.pattern.permute.xlu0 7
      %1169 = vperm.xlu0 %1168, %v186
      %v1170 = vpop.permute.xlu0 %1169
      %1172 = vset.pattern.permute.xlu0 7
      %1173 = vperm.xlu0 %1172, %v187
      %v1174 = vpop.permute.xlu0 %1173
      %1176 = vset.pattern.permute.xlu0 7
      %1177 = vperm.xlu0 %1176, %v188
      %v1178 = vpop.permute.xlu0 %1177
      %1180 = vset.pattern.permute.xlu0 7
      %1181 = vperm.xlu0 %1180, %v189
      %v1182 = vpop.permute.xlu0 %1181
      %1184 = vset.pattern.permute.xlu0 7
      %1185 = vperm.xlu0 %1184, %v190
      %v1186 = vpop.permute.xlu0 %1185
      %1188 = vset.pattern.permute.xlu0 7
      %1189 = vperm.xlu0 %1188, %v191
      %v1190 = vpop.permute.xlu0 %1189
      %v1192 = vlaneseq
      %v1193 = vshrl.u32 %v1192, 7
      %v1194 = vsub.s32 7, %v1193
      %v1195 = vrot.slane %v174, %v1194
      %v1196 = vlaneseq
      %v1197 = vshrl.u32 %v1196, 7
      %v1198 = vsub.s32 7, %v1197
      %v1199 = vrot.slane %v175, %v1198
      %v1200 = vmul.f32 %v1130, %v1195
      %v1201 = vmul.f32 %v1130, %v1199
      %v1202 = vmul.f32 %v1134, %v1195
      %v1203 = vmul.f32 %v1134, %v1199
      %v1204 = vmul.f32 %v1138, %v1195
      %v1205 = vmul.f32 %v1138, %v1199
      %v1206 = vmul.f32 %v1142, %v1195
      %v1207 = vmul.f32 %v1142, %v1199
      %v1208 = vmul.f32 %v1146, %v1195
      %v1209 = vmul.f32 %v1146, %v1199
      %v1210 = vmul.f32 %v1150, %v1195
      %v1211 = vmul.f32 %v1150, %v1199
      %v1212 = vmul.f32 %v1154, %v1195
      %v1213 = vmul.f32 %v1154, %v1199
      %v1214 = vmul.f32 %v1158, %v1195
      %v1215 = vmul.f32 %v1158, %v1199
      %v1216 = vmul.f32 %v1162, %v1195
      %v1217 = vmul.f32 %v1162, %v1199
      %v1218 = vmul.f32 %v1166, %v1195
      %v1219 = vmul.f32 %v1166, %v1199
      %v1220 = vmul.f32 %v1170, %v1195
      %v1221 = vmul.f32 %v1170, %v1199
      %v1222 = vmul.f32 %v1174, %v1195
      %v1223 = vmul.f32 %v1174, %v1199
      %v1224 = vmul.f32 %v1178, %v1195
      %v1225 = vmul.f32 %v1178, %v1199
      %v1226 = vmul.f32 %v1182, %v1195
      %v1227 = vmul.f32 %v1182, %v1199
      %v1228 = vmul.f32 %v1186, %v1195
      %v1229 = vmul.f32 %v1186, %v1199
      %v1230 = vmul.f32 %v1190, %v1195
      %v1231 = vmul.f32 %v1190, %v1199
      %v1232 = vadd.f32 %v1096, %v1200
      %v1233 = vadd.f32 %v1097, %v1201
      %v1234 = vadd.f32 %v1098, %v1202
      %v1235 = vadd.f32 %v1099, %v1203
      %v1236 = vadd.f32 %v1100, %v1204
      %v1237 = vadd.f32 %v1101, %v1205
      %v1238 = vadd.f32 %v1102, %v1206
      %v1239 = vadd.f32 %v1103, %v1207
      %v1240 = vadd.f32 %v1104, %v1208
      %v1241 = vadd.f32 %v1105, %v1209
      %v1242 = vadd.f32 %v1106, %v1210
      %v1243 = vadd.f32 %v1107, %v1211
      %v1244 = vadd.f32 %v1108, %v1212
      %v1245 = vadd.f32 %v1109, %v1213
      %v1246 = vadd.f32 %v1110, %v1214
      %v1247 = vadd.f32 %v1111, %v1215
      %v1248 = vadd.f32 %v1112, %v1216
      %v1249 = vadd.f32 %v1113, %v1217
      %v1250 = vadd.f32 %v1114, %v1218
      %v1251 = vadd.f32 %v1115, %v1219
      %v1252 = vadd.f32 %v1116, %v1220
      %v1253 = vadd.f32 %v1117, %v1221
      %v1254 = vadd.f32 %v1118, %v1222
      %v1255 = vadd.f32 %v1119, %v1223
      %v1256 = vadd.f32 %v1120, %v1224
      %v1257 = vadd.f32 %v1121, %v1225
      %v1258 = vadd.f32 %v1122, %v1226
      %v1259 = vadd.f32 %v1123, %v1227
      %v1260 = vadd.f32 %v1124, %v1228
      %v1261 = vadd.f32 %v1125, %v1229
      %v1262 = vadd.f32 %v1126, %v1230
      %v1263 = vadd.f32 %v1127, %v1231
      %v1264 = vmax.f32 %v1232, 0.0
      %v1265 = vmax.f32 %v1233, 0.0
      %v1266 = vmax.f32 %v1234, 0.0
      %v1267 = vmax.f32 %v1235, 0.0
      %v1268 = vmax.f32 %v1236, 0.0
      %v1269 = vmax.f32 %v1237, 0.0
      %v1270 = vmax.f32 %v1238, 0.0
      %v1271 = vmax.f32 %v1239, 0.0
      %v1272 = vmax.f32 %v1240, 0.0
      %v1273 = vmax.f32 %v1241, 0.0
      %v1274 = vmax.f32 %v1242, 0.0
      %v1275 = vmax.f32 %v1243, 0.0
      %v1276 = vmax.f32 %v1244, 0.0
      %v1277 = vmax.f32 %v1245, 0.0
      %v1278 = vmax.f32 %v1246, 0.0
      %v1279 = vmax.f32 %v1247, 0.0
      %v1280 = vmax.f32 %v1248, 0.0
      %v1281 = vmax.f32 %v1249, 0.0
      %v1282 = vmax.f32 %v1250, 0.0
      %v1283 = vmax.f32 %v1251, 0.0
      %v1284 = vmax.f32 %v1252, 0.0
      %v1285 = vmax.f32 %v1253, 0.0
      %v1286 = vmax.f32 %v1254, 0.0
      %v1287 = vmax.f32 %v1255, 0.0
      %v1288 = vmax.f32 %v1256, 0.0
      %v1289 = vmax.f32 %v1257, 0.0
      %v1290 = vmax.f32 %v1258, 0.0
      %v1291 = vmax.f32 %v1259, 0.0
      %v1292 = vmax.f32 %v1260, 0.0
      %v1293 = vmax.f32 %v1261, 0.0
      %v1294 = vmax.f32 %v1262, 0.0
      %v1295 = vmax.f32 %v1263, 0.0
      %v1296 = vld [vmem:[%s2] sm:$0xff]
      %v1297 = vld [vmem:[%s1 + $0x80] sm:$0xff]
      %v1298 = vld [vmem:[%s1 + $0x88] sm:$0xff]
      %v1299 = vld [vmem:[%s1 + $0x90] sm:$0xff]
      %v1300 = vld [vmem:[%s1 + $0x98] sm:$0xff]
      %v1301 = vld [vmem:[%s1 + $0xa0] sm:$0xff]
      %v1302 = vld [vmem:[%s1 + $0xa8] sm:$0xff]
      %v1303 = vld [vmem:[%s1 + $0xb0] sm:$0xff]
      %v1304 = vld [vmem:[%s1 + $0xb8] sm:$0xff]
      %v1305 = vld [vmem:[%s1 + $0xc0] sm:$0xff]
      %v1306 = vld [vmem:[%s1 + $0xc8] sm:$0xff]
      %v1307 = vld [vmem:[%s1 + $0xd0] sm:$0xff]
      %v1308 = vld [vmem:[%s1 + $0xd8] sm:$0xff]
      %v1309 = vld [vmem:[%s1 + $0xe0] sm:$0xff]
      %v1310 = vld [vmem:[%s1 + $0xe8] sm:$0xff]
      %v1311 = vld [vmem:[%s1 + $0xf0] sm:$0xff]
      %v1312 = vld [vmem:[%s1 + $0xf8] sm:$0xff]
      %1314 = vset.pattern.permute.xlu0 0
      %1315 = vperm.xlu0 %1314, %v1297
      %v1316 = vpop.permute.xlu0 %1315
      %1319 = vset.pattern.permute.xlu0 0
      %1320 = vperm.xlu0 %1319, %v1298
      %v1321 = vpop.permute.xlu0 %1320
      %1324 = vset.pattern.permute.xlu0 0
      %1325 = vperm.xlu0 %1324, %v1299
      %v1326 = vpop.permute.xlu0 %1325
      %1329 = vset.pattern.permute.xlu0 0
      %1330 = vperm.xlu0 %1329, %v1300
      %v1331 = vpop.permute.xlu0 %1330
      %1334 = vset.pattern.permute.xlu0 0
      %1335 = vperm.xlu0 %1334, %v1301
      %v1336 = vpop.permute.xlu0 %1335
      %1339 = vset.pattern.permute.xlu0 0
      %1340 = vperm.xlu0 %1339, %v1302
      %v1341 = vpop.permute.xlu0 %1340
      %1344 = vset.pattern.permute.xlu0 0
      %1345 = vperm.xlu0 %1344, %v1303
      %v1346 = vpop.permute.xlu0 %1345
      %1349 = vset.pattern.permute.xlu0 0
      %1350 = vperm.xlu0 %1349, %v1304
      %v1351 = vpop.permute.xlu0 %1350
      %1354 = vset.pattern.permute.xlu0 0
      %1355 = vperm.xlu0 %1354, %v1305
      %v1356 = vpop.permute.xlu0 %1355
      %1359 = vset.pattern.permute.xlu0 0
      %1360 = vperm.xlu0 %1359, %v1306
      %v1361 = vpop.permute.xlu0 %1360
      %1364 = vset.pattern.permute.xlu0 0
      %1365 = vperm.xlu0 %1364, %v1307
      %v1366 = vpop.permute.xlu0 %1365
      %1369 = vset.pattern.permute.xlu0 0
      %1370 = vperm.xlu0 %1369, %v1308
      %v1371 = vpop.permute.xlu0 %1370
      %1374 = vset.pattern.permute.xlu0 0
      %1375 = vperm.xlu0 %1374, %v1309
      %v1376 = vpop.permute.xlu0 %1375
      %1379 = vset.pattern.permute.xlu0 0
      %1380 = vperm.xlu0 %1379, %v1310
      %v1381 = vpop.permute.xlu0 %1380
      %1384 = vset.pattern.permute.xlu0 0
      %1385 = vperm.xlu0 %1384, %v1311
      %v1386 = vpop.permute.xlu0 %1385
      %1389 = vset.pattern.permute.xlu0 0
      %1390 = vperm.xlu0 %1389, %v1312
      %v1391 = vpop.permute.xlu0 %1390
      %v1393 = vmul.f32 %v1316, %v275
      %v1394 = vmul.f32 %v1316, %v279
      %v1395 = vmul.f32 %v1321, %v275
      %v1396 = vmul.f32 %v1321, %v279
      %v1397 = vmul.f32 %v1326, %v275
      %v1398 = vmul.f32 %v1326, %v279
      %v1399 = vmul.f32 %v1331, %v275
      %v1400 = vmul.f32 %v1331, %v279
      %v1401 = vmul.f32 %v1336, %v275
      %v1402 = vmul.f32 %v1336, %v279
      %v1403 = vmul.f32 %v1341, %v275
      %v1404 = vmul.f32 %v1341, %v279
      %v1405 = vmul.f32 %v1346, %v275
      %v1406 = vmul.f32 %v1346, %v279
      %v1407 = vmul.f32 %v1351, %v275
      %v1408 = vmul.f32 %v1351, %v279
      %v1409 = vmul.f32 %v1356, %v275
      %v1410 = vmul.f32 %v1356, %v279
      %v1411 = vmul.f32 %v1361, %v275
      %v1412 = vmul.f32 %v1361, %v279
      %v1413 = vmul.f32 %v1366, %v275
      %v1414 = vmul.f32 %v1366, %v279
      %v1415 = vmul.f32 %v1371, %v275
      %v1416 = vmul.f32 %v1371, %v279
      %v1417 = vmul.f32 %v1376, %v275
      %v1418 = vmul.f32 %v1376, %v279
      %v1419 = vmul.f32 %v1381, %v275
      %v1420 = vmul.f32 %v1381, %v279
      %v1421 = vmul.f32 %v1386, %v275
      %v1422 = vmul.f32 %v1386, %v279
      %v1423 = vmul.f32 %v1391, %v275
      %v1424 = vmul.f32 %v1391, %v279
      %1425 = vset.pattern.permute.xlu0 1
      %1426 = vperm.xlu0 %1425, %v1297
      %v1427 = vpop.permute.xlu0 %1426
      %1429 = vset.pattern.permute.xlu0 1
      %1430 = vperm.xlu0 %1429, %v1298
      %v1431 = vpop.permute.xlu0 %1430
      %1433 = vset.pattern.permute.xlu0 1
      %1434 = vperm.xlu0 %1433, %v1299
      %v1435 = vpop.permute.xlu0 %1434
      %1437 = vset.pattern.permute.xlu0 1
      %1438 = vperm.xlu0 %1437, %v1300
      %v1439 = vpop.permute.xlu0 %1438
      %1441 = vset.pattern.permute.xlu0 1
      %1442 = vperm.xlu0 %1441, %v1301
      %v1443 = vpop.permute.xlu0 %1442
      %1445 = vset.pattern.permute.xlu0 1
      %1446 = vperm.xlu0 %1445, %v1302
      %v1447 = vpop.permute.xlu0 %1446
      %1449 = vset.pattern.permute.xlu0 1
      %1450 = vperm.xlu0 %1449, %v1303
      %v1451 = vpop.permute.xlu0 %1450
      %1453 = vset.pattern.permute.xlu0 1
      %1454 = vperm.xlu0 %1453, %v1304
      %v1455 = vpop.permute.xlu0 %1454
      %1457 = vset.pattern.permute.xlu0 1
      %1458 = vperm.xlu0 %1457, %v1305
      %v1459 = vpop.permute.xlu0 %1458
      %1461 = vset.pattern.permute.xlu0 1
      %1462 = vperm.xlu0 %1461, %v1306
      %v1463 = vpop.permute.xlu0 %1462
      %1465 = vset.pattern.permute.xlu0 1
      %1466 = vperm.xlu0 %1465, %v1307
      %v1467 = vpop.permute.xlu0 %1466
      %1469 = vset.pattern.permute.xlu0 1
      %1470 = vperm.xlu0 %1469, %v1308
      %v1471 = vpop.permute.xlu0 %1470
      %1473 = vset.pattern.permute.xlu0 1
      %1474 = vperm.xlu0 %1473, %v1309
      %v1475 = vpop.permute.xlu0 %1474
      %1477 = vset.pattern.permute.xlu0 1
      %1478 = vperm.xlu0 %1477, %v1310
      %v1479 = vpop.permute.xlu0 %1478
      %1481 = vset.pattern.permute.xlu0 1
      %1482 = vperm.xlu0 %1481, %v1311
      %v1483 = vpop.permute.xlu0 %1482
      %1485 = vset.pattern.permute.xlu0 1
      %1486 = vperm.xlu0 %1485, %v1312
      %v1487 = vpop.permute.xlu0 %1486
      %v1489 = vmul.f32 %v1427, %v379
      %v1490 = vmul.f32 %v1427, %v383
      %v1491 = vmul.f32 %v1431, %v379
      %v1492 = vmul.f32 %v1431, %v383
      %v1493 = vmul.f32 %v1435, %v379
      %v1494 = vmul.f32 %v1435, %v383
      %v1495 = vmul.f32 %v1439, %v379
      %v1496 = vmul.f32 %v1439, %v383
      %v1497 = vmul.f32 %v1443, %v379
      %v1498 = vmul.f32 %v1443, %v383
      %v1499 = vmul.f32 %v1447, %v379
      %v1500 = vmul.f32 %v1447, %v383
      %v1501 = vmul.f32 %v1451, %v379
      %v1502 = vmul.f32 %v1451, %v383
      %v1503 = vmul.f32 %v1455, %v379
      %v1504 = vmul.f32 %v1455, %v383
      %v1505 = vmul.f32 %v1459, %v379
      %v1506 = vmul.f32 %v1459, %v383
      %v1507 = vmul.f32 %v1463, %v379
      %v1508 = vmul.f32 %v1463, %v383
      %v1509 = vmul.f32 %v1467, %v379
      %v1510 = vmul.f32 %v1467, %v383
      %v1511 = vmul.f32 %v1471, %v379
      %v1512 = vmul.f32 %v1471, %v383
      %v1513 = vmul.f32 %v1475, %v379
      %v1514 = vmul.f32 %v1475, %v383
      %v1515 = vmul.f32 %v1479, %v379
      %v1516 = vmul.f32 %v1479, %v383
      %v1517 = vmul.f32 %v1483, %v379
      %v1518 = vmul.f32 %v1483, %v383
      %v1519 = vmul.f32 %v1487, %v379
      %v1520 = vmul.f32 %v1487, %v383
      %v1521 = vadd.f32 %v1393, %v1489
      %v1522 = vadd.f32 %v1394, %v1490
      %v1523 = vadd.f32 %v1395, %v1491
      %v1524 = vadd.f32 %v1396, %v1492
      %v1525 = vadd.f32 %v1397, %v1493
      %v1526 = vadd.f32 %v1398, %v1494
      %v1527 = vadd.f32 %v1399, %v1495
      %v1528 = vadd.f32 %v1400, %v1496
      %v1529 = vadd.f32 %v1401, %v1497
      %v1530 = vadd.f32 %v1402, %v1498
      %v1531 = vadd.f32 %v1403, %v1499
      %v1532 = vadd.f32 %v1404, %v1500
      %v1533 = vadd.f32 %v1405, %v1501
      %v1534 = vadd.f32 %v1406, %v1502
      %v1535 = vadd.f32 %v1407, %v1503
      %v1536 = vadd.f32 %v1408, %v1504
      %v1537 = vadd.f32 %v1409, %v1505
      %v1538 = vadd.f32 %v1410, %v1506
      %v1539 = vadd.f32 %v1411, %v1507
      %v1540 = vadd.f32 %v1412, %v1508
      %v1541 = vadd.f32 %v1413, %v1509
      %v1542 = vadd.f32 %v1414, %v1510
      %v1543 = vadd.f32 %v1415, %v1511
      %v1544 = vadd.f32 %v1416, %v1512
      %v1545 = vadd.f32 %v1417, %v1513
      %v1546 = vadd.f32 %v1418, %v1514
      %v1547 = vadd.f32 %v1419, %v1515
      %v1548 = vadd.f32 %v1420, %v1516
      %v1549 = vadd.f32 %v1421, %v1517
      %v1550 = vadd.f32 %v1422, %v1518
      %v1551 = vadd.f32 %v1423, %v1519
      %v1552 = vadd.f32 %v1424, %v1520
      %1553 = vset.pattern.permute.xlu0 2
      %1554 = vperm.xlu0 %1553, %v1297
      %v1555 = vpop.permute.xlu0 %1554
      %1557 = vset.pattern.permute.xlu0 2
      %1558 = vperm.xlu0 %1557, %v1298
      %v1559 = vpop.permute.xlu0 %1558
      %1561 = vset.pattern.permute.xlu0 2
      %1562 = vperm.xlu0 %1561, %v1299
      %v1563 = vpop.permute.xlu0 %1562
      %1565 = vset.pattern.permute.xlu0 2
      %1566 = vperm.xlu0 %1565, %v1300
      %v1567 = vpop.permute.xlu0 %1566
      %1569 = vset.pattern.permute.xlu0 2
      %1570 = vperm.xlu0 %1569, %v1301
      %v1571 = vpop.permute.xlu0 %1570
      %1573 = vset.pattern.permute.xlu0 2
      %1574 = vperm.xlu0 %1573, %v1302
      %v1575 = vpop.permute.xlu0 %1574
      %1577 = vset.pattern.permute.xlu0 2
      %1578 = vperm.xlu0 %1577, %v1303
      %v1579 = vpop.permute.xlu0 %1578
      %1581 = vset.pattern.permute.xlu0 2
      %1582 = vperm.xlu0 %1581, %v1304
      %v1583 = vpop.permute.xlu0 %1582
      %1585 = vset.pattern.permute.xlu0 2
      %1586 = vperm.xlu0 %1585, %v1305
      %v1587 = vpop.permute.xlu0 %1586
      %1589 = vset.pattern.permute.xlu0 2
      %1590 = vperm.xlu0 %1589, %v1306
      %v1591 = vpop.permute.xlu0 %1590
      %1593 = vset.pattern.permute.xlu0 2
      %1594 = vperm.xlu0 %1593, %v1307
      %v1595 = vpop.permute.xlu0 %1594
      %1597 = vset.pattern.permute.xlu0 2
      %1598 = vperm.xlu0 %1597, %v1308
      %v1599 = vpop.permute.xlu0 %1598
      %1601 = vset.pattern.permute.xlu0 2
      %1602 = vperm.xlu0 %1601, %v1309
      %v1603 = vpop.permute.xlu0 %1602
      %1605 = vset.pattern.permute.xlu0 2
      %1606 = vperm.xlu0 %1605, %v1310
      %v1607 = vpop.permute.xlu0 %1606
      %1609 = vset.pattern.permute.xlu0 2
      %1610 = vperm.xlu0 %1609, %v1311
      %v1611 = vpop.permute.xlu0 %1610
      %1613 = vset.pattern.permute.xlu0 2
      %1614 = vperm.xlu0 %1613, %v1312
      %v1615 = vpop.permute.xlu0 %1614
      %v1617 = vmul.f32 %v1555, %v515
      %v1618 = vmul.f32 %v1555, %v519
      %v1619 = vmul.f32 %v1559, %v515
      %v1620 = vmul.f32 %v1559, %v519
      %v1621 = vmul.f32 %v1563, %v515
      %v1622 = vmul.f32 %v1563, %v519
      %v1623 = vmul.f32 %v1567, %v515
      %v1624 = vmul.f32 %v1567, %v519
      %v1625 = vmul.f32 %v1571, %v515
      %v1626 = vmul.f32 %v1571, %v519
      %v1627 = vmul.f32 %v1575, %v515
      %v1628 = vmul.f32 %v1575, %v519
      %v1629 = vmul.f32 %v1579, %v515
      %v1630 = vmul.f32 %v1579, %v519
      %v1631 = vmul.f32 %v1583, %v515
      %v1632 = vmul.f32 %v1583, %v519
      %v1633 = vmul.f32 %v1587, %v515
      %v1634 = vmul.f32 %v1587, %v519
      %v1635 = vmul.f32 %v1591, %v515
      %v1636 = vmul.f32 %v1591, %v519
      %v1637 = vmul.f32 %v1595, %v515
      %v1638 = vmul.f32 %v1595, %v519
      %v1639 = vmul.f32 %v1599, %v515
      %v1640 = vmul.f32 %v1599, %v519
      %v1641 = vmul.f32 %v1603, %v515
      %v1642 = vmul.f32 %v1603, %v519
      %v1643 = vmul.f32 %v1607, %v515
      %v1644 = vmul.f32 %v1607, %v519
      %v1645 = vmul.f32 %v1611, %v515
      %v1646 = vmul.f32 %v1611, %v519
      %v1647 = vmul.f32 %v1615, %v515
      %v1648 = vmul.f32 %v1615, %v519
      %v1649 = vadd.f32 %v1521, %v1617
      %v1650 = vadd.f32 %v1522, %v1618
      %v1651 = vadd.f32 %v1523, %v1619
      %v1652 = vadd.f32 %v1524, %v1620
      %v1653 = vadd.f32 %v1525, %v1621
      %v1654 = vadd.f32 %v1526, %v1622
      %v1655 = vadd.f32 %v1527, %v1623
      %v1656 = vadd.f32 %v1528, %v1624
      %v1657 = vadd.f32 %v1529, %v1625
      %v1658 = vadd.f32 %v1530, %v1626
      %v1659 = vadd.f32 %v1531, %v1627
      %v1660 = vadd.f32 %v1532, %v1628
      %v1661 = vadd.f32 %v1533, %v1629
      %v1662 = vadd.f32 %v1534, %v1630
      %v1663 = vadd.f32 %v1535, %v1631
      %v1664 = vadd.f32 %v1536, %v1632
      %v1665 = vadd.f32 %v1537, %v1633
      %v1666 = vadd.f32 %v1538, %v1634
      %v1667 = vadd.f32 %v1539, %v1635
      %v1668 = vadd.f32 %v1540, %v1636
      %v1669 = vadd.f32 %v1541, %v1637
      %v1670 = vadd.f32 %v1542, %v1638
      %v1671 = vadd.f32 %v1543, %v1639
      %v1672 = vadd.f32 %v1544, %v1640
      %v1673 = vadd.f32 %v1545, %v1641
      %v1674 = vadd.f32 %v1546, %v1642
      %v1675 = vadd.f32 %v1547, %v1643
      %v1676 = vadd.f32 %v1548, %v1644
      %v1677 = vadd.f32 %v1549, %v1645
      %v1678 = vadd.f32 %v1550, %v1646
      %v1679 = vadd.f32 %v1551, %v1647
      %v1680 = vadd.f32 %v1552, %v1648
      %1681 = vset.pattern.permute.xlu0 3
      %1682 = vperm.xlu0 %1681, %v1297
      %v1683 = vpop.permute.xlu0 %1682
      %1685 = vset.pattern.permute.xlu0 3
      %1686 = vperm.xlu0 %1685, %v1298
      %v1687 = vpop.permute.xlu0 %1686
      %1689 = vset.pattern.permute.xlu0 3
      %1690 = vperm.xlu0 %1689, %v1299
      %v1691 = vpop.permute.xlu0 %1690
      %1693 = vset.pattern.permute.xlu0 3
      %1694 = vperm.xlu0 %1693, %v1300
      %v1695 = vpop.permute.xlu0 %1694
      %1697 = vset.pattern.permute.xlu0 3
      %1698 = vperm.xlu0 %1697, %v1301
      %v1699 = vpop.permute.xlu0 %1698
      %1701 = vset.pattern.permute.xlu0 3
      %1702 = vperm.xlu0 %1701, %v1302
      %v1703 = vpop.permute.xlu0 %1702
      %1705 = vset.pattern.permute.xlu0 3
      %1706 = vperm.xlu0 %1705, %v1303
      %v1707 = vpop.permute.xlu0 %1706
      %1709 = vset.pattern.permute.xlu0 3
      %1710 = vperm.xlu0 %1709, %v1304
      %v1711 = vpop.permute.xlu0 %1710
      %1713 = vset.pattern.permute.xlu0 3
      %1714 = vperm.xlu0 %1713, %v1305
      %v1715 = vpop.permute.xlu0 %1714
      %1717 = vset.pattern.permute.xlu0 3
      %1718 = vperm.xlu0 %1717, %v1306
      %v1719 = vpop.permute.xlu0 %1718
      %1721 = vset.pattern.permute.xlu0 3
      %1722 = vperm.xlu0 %1721, %v1307
      %v1723 = vpop.permute.xlu0 %1722
      %1725 = vset.pattern.permute.xlu0 3
      %1726 = vperm.xlu0 %1725, %v1308
      %v1727 = vpop.permute.xlu0 %1726
      %1729 = vset.pattern.permute.xlu0 3
      %1730 = vperm.xlu0 %1729, %v1309
      %v1731 = vpop.permute.xlu0 %1730
      %1733 = vset.pattern.permute.xlu0 3
      %1734 = vperm.xlu0 %1733, %v1310
      %v1735 = vpop.permute.xlu0 %1734
      %1737 = vset.pattern.permute.xlu0 3
      %1738 = vperm.xlu0 %1737, %v1311
      %v1739 = vpop.permute.xlu0 %1738
      %1741 = vset.pattern.permute.xlu0 3
      %1742 = vperm.xlu0 %1741, %v1312
      %v1743 = vpop.permute.xlu0 %1742
      %v1745 = vmul.f32 %v1683, %v651
      %v1746 = vmul.f32 %v1683, %v655
      %v1747 = vmul.f32 %v1687, %v651
      %v1748 = vmul.f32 %v1687, %v655
      %v1749 = vmul.f32 %v1691, %v651
      %v1750 = vmul.f32 %v1691, %v655
      %v1751 = vmul.f32 %v1695, %v651
      %v1752 = vmul.f32 %v1695, %v655
      %v1753 = vmul.f32 %v1699, %v651
      %v1754 = vmul.f32 %v1699, %v655
      %v1755 = vmul.f32 %v1703, %v651
      %v1756 = vmul.f32 %v1703, %v655
      %v1757 = vmul.f32 %v1707, %v651
      %v1758 = vmul.f32 %v1707, %v655
      %v1759 = vmul.f32 %v1711, %v651
      %v1760 = vmul.f32 %v1711, %v655
      %v1761 = vmul.f32 %v1715, %v651
      %v1762 = vmul.f32 %v1715, %v655
      %v1763 = vmul.f32 %v1719, %v651
      %v1764 = vmul.f32 %v1719, %v655
      %v1765 = vmul.f32 %v1723, %v651
      %v1766 = vmul.f32 %v1723, %v655
      %v1767 = vmul.f32 %v1727, %v651
      %v1768 = vmul.f32 %v1727, %v655
      %v1769 = vmul.f32 %v1731, %v651
      %v1770 = vmul.f32 %v1731, %v655
      %v1771 = vmul.f32 %v1735, %v651
      %v1772 = vmul.f32 %v1735, %v655
      %v1773 = vmul.f32 %v1739, %v651
      %v1774 = vmul.f32 %v1739, %v655
      %v1775 = vmul.f32 %v1743, %v651
      %v1776 = vmul.f32 %v1743, %v655
      %v1777 = vadd.f32 %v1649, %v1745
      %v1778 = vadd.f32 %v1650, %v1746
      %v1779 = vadd.f32 %v1651, %v1747
      %v1780 = vadd.f32 %v1652, %v1748
      %v1781 = vadd.f32 %v1653, %v1749
      %v1782 = vadd.f32 %v1654, %v1750
      %v1783 = vadd.f32 %v1655, %v1751
      %v1784 = vadd.f32 %v1656, %v1752
      %v1785 = vadd.f32 %v1657, %v1753
      %v1786 = vadd.f32 %v1658, %v1754
      %v1787 = vadd.f32 %v1659, %v1755
      %v1788 = vadd.f32 %v1660, %v1756
      %v1789 = vadd.f32 %v1661, %v1757
      %v1790 = vadd.f32 %v1662, %v1758
      %v1791 = vadd.f32 %v1663, %v1759
      %v1792 = vadd.f32 %v1664, %v1760
      %v1793 = vadd.f32 %v1665, %v1761
      %v1794 = vadd.f32 %v1666, %v1762
      %v1795 = vadd.f32 %v1667, %v1763
      %v1796 = vadd.f32 %v1668, %v1764
      %v1797 = vadd.f32 %v1669, %v1765
      %v1798 = vadd.f32 %v1670, %v1766
      %v1799 = vadd.f32 %v1671, %v1767
      %v1800 = vadd.f32 %v1672, %v1768
      %v1801 = vadd.f32 %v1673, %v1769
      %v1802 = vadd.f32 %v1674, %v1770
      %v1803 = vadd.f32 %v1675, %v1771
      %v1804 = vadd.f32 %v1676, %v1772
      %v1805 = vadd.f32 %v1677, %v1773
      %v1806 = vadd.f32 %v1678, %v1774
      %v1807 = vadd.f32 %v1679, %v1775
      %v1808 = vadd.f32 %v1680, %v1776
      %1809 = vset.pattern.permute.xlu0 4
      %1810 = vperm.xlu0 %1809, %v1297
      %v1811 = vpop.permute.xlu0 %1810
      %1813 = vset.pattern.permute.xlu0 4
      %1814 = vperm.xlu0 %1813, %v1298
      %v1815 = vpop.permute.xlu0 %1814
      %1817 = vset.pattern.permute.xlu0 4
      %1818 = vperm.xlu0 %1817, %v1299
      %v1819 = vpop.permute.xlu0 %1818
      %1821 = vset.pattern.permute.xlu0 4
      %1822 = vperm.xlu0 %1821, %v1300
      %v1823 = vpop.permute.xlu0 %1822
      %1825 = vset.pattern.permute.xlu0 4
      %1826 = vperm.xlu0 %1825, %v1301
      %v1827 = vpop.permute.xlu0 %1826
      %1829 = vset.pattern.permute.xlu0 4
      %1830 = vperm.xlu0 %1829, %v1302
      %v1831 = vpop.permute.xlu0 %1830
      %1833 = vset.pattern.permute.xlu0 4
      %1834 = vperm.xlu0 %1833, %v1303
      %v1835 = vpop.permute.xlu0 %1834
      %1837 = vset.pattern.permute.xlu0 4
      %1838 = vperm.xlu0 %1837, %v1304
      %v1839 = vpop.permute.xlu0 %1838
      %1841 = vset.pattern.permute.xlu0 4
      %1842 = vperm.xlu0 %1841, %v1305
      %v1843 = vpop.permute.xlu0 %1842
      %1845 = vset.pattern.permute.xlu0 4
      %1846 = vperm.xlu0 %1845, %v1306
      %v1847 = vpop.permute.xlu0 %1846
      %1849 = vset.pattern.permute.xlu0 4
      %1850 = vperm.xlu0 %1849, %v1307
      %v1851 = vpop.permute.xlu0 %1850
      %1853 = vset.pattern.permute.xlu0 4
      %1854 = vperm.xlu0 %1853, %v1308
      %v1855 = vpop.permute.xlu0 %1854
      %1857 = vset.pattern.permute.xlu0 4
      %1858 = vperm.xlu0 %1857, %v1309
      %v1859 = vpop.permute.xlu0 %1858
      %1861 = vset.pattern.permute.xlu0 4
      %1862 = vperm.xlu0 %1861, %v1310
      %v1863 = vpop.permute.xlu0 %1862
      %1865 = vset.pattern.permute.xlu0 4
      %1866 = vperm.xlu0 %1865, %v1311
      %v1867 = vpop.permute.xlu0 %1866
      %1869 = vset.pattern.permute.xlu0 4
      %1870 = vperm.xlu0 %1869, %v1312
      %v1871 = vpop.permute.xlu0 %1870
      %v1873 = vmul.f32 %v1811, %v787
      %v1874 = vmul.f32 %v1811, %v791
      %v1875 = vmul.f32 %v1815, %v787
      %v1876 = vmul.f32 %v1815, %v791
      %v1877 = vmul.f32 %v1819, %v787
      %v1878 = vmul.f32 %v1819, %v791
      %v1879 = vmul.f32 %v1823, %v787
      %v1880 = vmul.f32 %v1823, %v791
      %v1881 = vmul.f32 %v1827, %v787
      %v1882 = vmul.f32 %v1827, %v791
      %v1883 = vmul.f32 %v1831, %v787
      %v1884 = vmul.f32 %v1831, %v791
      %v1885 = vmul.f32 %v1835, %v787
      %v1886 = vmul.f32 %v1835, %v791
      %v1887 = vmul.f32 %v1839, %v787
      %v1888 = vmul.f32 %v1839, %v791
      %v1889 = vmul.f32 %v1843, %v787
      %v1890 = vmul.f32 %v1843, %v791
      %v1891 = vmul.f32 %v1847, %v787
      %v1892 = vmul.f32 %v1847, %v791
      %v1893 = vmul.f32 %v1851, %v787
      %v1894 = vmul.f32 %v1851, %v791
      %v1895 = vmul.f32 %v1855, %v787
      %v1896 = vmul.f32 %v1855, %v791
      %v1897 = vmul.f32 %v1859, %v787
      %v1898 = vmul.f32 %v1859, %v791
      %v1899 = vmul.f32 %v1863, %v787
      %v1900 = vmul.f32 %v1863, %v791
      %v1901 = vmul.f32 %v1867, %v787
      %v1902 = vmul.f32 %v1867, %v791
      %v1903 = vmul.f32 %v1871, %v787
      %v1904 = vmul.f32 %v1871, %v791
      %v1905 = vadd.f32 %v1777, %v1873
      %v1906 = vadd.f32 %v1778, %v1874
      %v1907 = vadd.f32 %v1779, %v1875
      %v1908 = vadd.f32 %v1780, %v1876
      %v1909 = vadd.f32 %v1781, %v1877
      %v1910 = vadd.f32 %v1782, %v1878
      %v1911 = vadd.f32 %v1783, %v1879
      %v1912 = vadd.f32 %v1784, %v1880
      %v1913 = vadd.f32 %v1785, %v1881
      %v1914 = vadd.f32 %v1786, %v1882
      %v1915 = vadd.f32 %v1787, %v1883
      %v1916 = vadd.f32 %v1788, %v1884
      %v1917 = vadd.f32 %v1789, %v1885
      %v1918 = vadd.f32 %v1790, %v1886
      %v1919 = vadd.f32 %v1791, %v1887
      %v1920 = vadd.f32 %v1792, %v1888
      %v1921 = vadd.f32 %v1793, %v1889
      %v1922 = vadd.f32 %v1794, %v1890
      %v1923 = vadd.f32 %v1795, %v1891
      %v1924 = vadd.f32 %v1796, %v1892
      %v1925 = vadd.f32 %v1797, %v1893
      %v1926 = vadd.f32 %v1798, %v1894
      %v1927 = vadd.f32 %v1799, %v1895
      %v1928 = vadd.f32 %v1800, %v1896
      %v1929 = vadd.f32 %v1801, %v1897
      %v1930 = vadd.f32 %v1802, %v1898
      %v1931 = vadd.f32 %v1803, %v1899
      %v1932 = vadd.f32 %v1804, %v1900
      %v1933 = vadd.f32 %v1805, %v1901
      %v1934 = vadd.f32 %v1806, %v1902
      %v1935 = vadd.f32 %v1807, %v1903
      %v1936 = vadd.f32 %v1808, %v1904
      %1937 = vset.pattern.permute.xlu0 5
      %1938 = vperm.xlu0 %1937, %v1297
      %v1939 = vpop.permute.xlu0 %1938
      %1941 = vset.pattern.permute.xlu0 5
      %1942 = vperm.xlu0 %1941, %v1298
      %v1943 = vpop.permute.xlu0 %1942
      %1945 = vset.pattern.permute.xlu0 5
      %1946 = vperm.xlu0 %1945, %v1299
      %v1947 = vpop.permute.xlu0 %1946
      %1949 = vset.pattern.permute.xlu0 5
      %1950 = vperm.xlu0 %1949, %v1300
      %v1951 = vpop.permute.xlu0 %1950
      %1953 = vset.pattern.permute.xlu0 5
      %1954 = vperm.xlu0 %1953, %v1301
      %v1955 = vpop.permute.xlu0 %1954
      %1957 = vset.pattern.permute.xlu0 5
      %1958 = vperm.xlu0 %1957, %v1302
      %v1959 = vpop.permute.xlu0 %1958
      %1961 = vset.pattern.permute.xlu0 5
      %1962 = vperm.xlu0 %1961, %v1303
      %v1963 = vpop.permute.xlu0 %1962
      %1965 = vset.pattern.permute.xlu0 5
      %1966 = vperm.xlu0 %1965, %v1304
      %v1967 = vpop.permute.xlu0 %1966
      %1969 = vset.pattern.permute.xlu0 5
      %1970 = vperm.xlu0 %1969, %v1305
      %v1971 = vpop.permute.xlu0 %1970
      %1973 = vset.pattern.permute.xlu0 5
      %1974 = vperm.xlu0 %1973, %v1306
      %v1975 = vpop.permute.xlu0 %1974
      %1977 = vset.pattern.permute.xlu0 5
      %1978 = vperm.xlu0 %1977, %v1307
      %v1979 = vpop.permute.xlu0 %1978
      %1981 = vset.pattern.permute.xlu0 5
      %1982 = vperm.xlu0 %1981, %v1308
      %v1983 = vpop.permute.xlu0 %1982
      %1985 = vset.pattern.permute.xlu0 5
      %1986 = vperm.xlu0 %1985, %v1309
      %v1987 = vpop.permute.xlu0 %1986
      %1989 = vset.pattern.permute.xlu0 5
      %1990 = vperm.xlu0 %1989, %v1310
      %v1991 = vpop.permute.xlu0 %1990
      %1993 = vset.pattern.permute.xlu0 5
      %1994 = vperm.xlu0 %1993, %v1311
      %v1995 = vpop.permute.xlu0 %1994
      %1997 = vset.pattern.permute.xlu0 5
      %1998 = vperm.xlu0 %1997, %v1312
      %v1999 = vpop.permute.xlu0 %1998
      %v2001 = vmul.f32 %v1939, %v923
      %v2002 = vmul.f32 %v1939, %v927
      %v2003 = vmul.f32 %v1943, %v923
      %v2004 = vmul.f32 %v1943, %v927
      %v2005 = vmul.f32 %v1947, %v923
      %v2006 = vmul.f32 %v1947, %v927
      %v2007 = vmul.f32 %v1951, %v923
      %v2008 = vmul.f32 %v1951, %v927
      %v2009 = vmul.f32 %v1955, %v923
      %v2010 = vmul.f32 %v1955, %v927
      %v2011 = vmul.f32 %v1959, %v923
      %v2012 = vmul.f32 %v1959, %v927
      %v2013 = vmul.f32 %v1963, %v923
      %v2014 = vmul.f32 %v1963, %v927
      %v2015 = vmul.f32 %v1967, %v923
      %v2016 = vmul.f32 %v1967, %v927
      %v2017 = vmul.f32 %v1971, %v923
      %v2018 = vmul.f32 %v1971, %v927
      %v2019 = vmul.f32 %v1975, %v923
      %v2020 = vmul.f32 %v1975, %v927
      %v2021 = vmul.f32 %v1979, %v923
      %v2022 = vmul.f32 %v1979, %v927
      %v2023 = vmul.f32 %v1983, %v923
      %v2024 = vmul.f32 %v1983, %v927
      %v2025 = vmul.f32 %v1987, %v923
      %v2026 = vmul.f32 %v1987, %v927
      %v2027 = vmul.f32 %v1991, %v923
      %v2028 = vmul.f32 %v1991, %v927
      %v2029 = vmul.f32 %v1995, %v923
      %v2030 = vmul.f32 %v1995, %v927
      %v2031 = vmul.f32 %v1999, %v923
      %v2032 = vmul.f32 %v1999, %v927
      %v2033 = vadd.f32 %v1905, %v2001
      %v2034 = vadd.f32 %v1906, %v2002
      %v2035 = vadd.f32 %v1907, %v2003
      %v2036 = vadd.f32 %v1908, %v2004
      %v2037 = vadd.f32 %v1909, %v2005
      %v2038 = vadd.f32 %v1910, %v2006
      %v2039 = vadd.f32 %v1911, %v2007
      %v2040 = vadd.f32 %v1912, %v2008
      %v2041 = vadd.f32 %v1913, %v2009
      %v2042 = vadd.f32 %v1914, %v2010
      %v2043 = vadd.f32 %v1915, %v2011
      %v2044 = vadd.f32 %v1916, %v2012
      %v2045 = vadd.f32 %v1917, %v2013
      %v2046 = vadd.f32 %v1918, %v2014
      %v2047 = vadd.f32 %v1919, %v2015
      %v2048 = vadd.f32 %v1920, %v2016
      %v2049 = vadd.f32 %v1921, %v2017
      %v2050 = vadd.f32 %v1922, %v2018
      %v2051 = vadd.f32 %v1923, %v2019
      %v2052 = vadd.f32 %v1924, %v2020
      %v2053 = vadd.f32 %v1925, %v2021
      %v2054 = vadd.f32 %v1926, %v2022
      %v2055 = vadd.f32 %v1927, %v2023
      %v2056 = vadd.f32 %v1928, %v2024
      %v2057 = vadd.f32 %v1929, %v2025
      %v2058 = vadd.f32 %v1930, %v2026
      %v2059 = vadd.f32 %v1931, %v2027
      %v2060 = vadd.f32 %v1932, %v2028
      %v2061 = vadd.f32 %v1933, %v2029
      %v2062 = vadd.f32 %v1934, %v2030
      %v2063 = vadd.f32 %v1935, %v2031
      %v2064 = vadd.f32 %v1936, %v2032
      %2065 = vset.pattern.permute.xlu0 6
      %2066 = vperm.xlu0 %2065, %v1297
      %v2067 = vpop.permute.xlu0 %2066
      %2069 = vset.pattern.permute.xlu0 6
      %2070 = vperm.xlu0 %2069, %v1298
      %v2071 = vpop.permute.xlu0 %2070
      %2073 = vset.pattern.permute.xlu0 6
      %2074 = vperm.xlu0 %2073, %v1299
      %v2075 = vpop.permute.xlu0 %2074
      %2077 = vset.pattern.permute.xlu0 6
      %2078 = vperm.xlu0 %2077, %v1300
      %v2079 = vpop.permute.xlu0 %2078
      %2081 = vset.pattern.permute.xlu0 6
      %2082 = vperm.xlu0 %2081, %v1301
      %v2083 = vpop.permute.xlu0 %2082
      %2085 = vset.pattern.permute.xlu0 6
      %2086 = vperm.xlu0 %2085, %v1302
      %v2087 = vpop.permute.xlu0 %2086
      %2089 = vset.pattern.permute.xlu0 6
      %2090 = vperm.xlu0 %2089, %v1303
      %v2091 = vpop.permute.xlu0 %2090
      %2093 = vset.pattern.permute.xlu0 6
      %2094 = vperm.xlu0 %2093, %v1304
      %v2095 = vpop.permute.xlu0 %2094
      %2097 = vset.pattern.permute.xlu0 6
      %2098 = vperm.xlu0 %2097, %v1305
      %v2099 = vpop.permute.xlu0 %2098
      %2101 = vset.pattern.permute.xlu0 6
      %2102 = vperm.xlu0 %2101, %v1306
      %v2103 = vpop.permute.xlu0 %2102
      %2105 = vset.pattern.permute.xlu0 6
      %2106 = vperm.xlu0 %2105, %v1307
      %v2107 = vpop.permute.xlu0 %2106
      %2109 = vset.pattern.permute.xlu0 6
      %2110 = vperm.xlu0 %2109, %v1308
      %v2111 = vpop.permute.xlu0 %2110
      %2113 = vset.pattern.permute.xlu0 6
      %2114 = vperm.xlu0 %2113, %v1309
      %v2115 = vpop.permute.xlu0 %2114
      %2117 = vset.pattern.permute.xlu0 6
      %2118 = vperm.xlu0 %2117, %v1310
      %v2119 = vpop.permute.xlu0 %2118
      %2121 = vset.pattern.permute.xlu0 6
      %2122 = vperm.xlu0 %2121, %v1311
      %v2123 = vpop.permute.xlu0 %2122
      %2125 = vset.pattern.permute.xlu0 6
      %2126 = vperm.xlu0 %2125, %v1312
      %v2127 = vpop.permute.xlu0 %2126
      %v2129 = vmul.f32 %v2067, %v1059
      %v2130 = vmul.f32 %v2067, %v1063
      %v2131 = vmul.f32 %v2071, %v1059
      %v2132 = vmul.f32 %v2071, %v1063
      %v2133 = vmul.f32 %v2075, %v1059
      %v2134 = vmul.f32 %v2075, %v1063
      %v2135 = vmul.f32 %v2079, %v1059
      %v2136 = vmul.f32 %v2079, %v1063
      %v2137 = vmul.f32 %v2083, %v1059
      %v2138 = vmul.f32 %v2083, %v1063
      %v2139 = vmul.f32 %v2087, %v1059
      %v2140 = vmul.f32 %v2087, %v1063
      %v2141 = vmul.f32 %v2091, %v1059
      %v2142 = vmul.f32 %v2091, %v1063
      %v2143 = vmul.f32 %v2095, %v1059
      %v2144 = vmul.f32 %v2095, %v1063
      %v2145 = vmul.f32 %v2099, %v1059
      %v2146 = vmul.f32 %v2099, %v1063
      %v2147 = vmul.f32 %v2103, %v1059
      %v2148 = vmul.f32 %v2103, %v1063
      %v2149 = vmul.f32 %v2107, %v1059
      %v2150 = vmul.f32 %v2107, %v1063
      %v2151 = vmul.f32 %v2111, %v1059
      %v2152 = vmul.f32 %v2111, %v1063
      %v2153 = vmul.f32 %v2115, %v1059
      %v2154 = vmul.f32 %v2115, %v1063
      %v2155 = vmul.f32 %v2119, %v1059
      %v2156 = vmul.f32 %v2119, %v1063
      %v2157 = vmul.f32 %v2123, %v1059
      %v2158 = vmul.f32 %v2123, %v1063
      %v2159 = vmul.f32 %v2127, %v1059
      %v2160 = vmul.f32 %v2127, %v1063
      %v2161 = vadd.f32 %v2033, %v2129
      %v2162 = vadd.f32 %v2034, %v2130
      %v2163 = vadd.f32 %v2035, %v2131
      %v2164 = vadd.f32 %v2036, %v2132
      %v2165 = vadd.f32 %v2037, %v2133
      %v2166 = vadd.f32 %v2038, %v2134
      %v2167 = vadd.f32 %v2039, %v2135
      %v2168 = vadd.f32 %v2040, %v2136
      %v2169 = vadd.f32 %v2041, %v2137
      %v2170 = vadd.f32 %v2042, %v2138
      %v2171 = vadd.f32 %v2043, %v2139
      %v2172 = vadd.f32 %v2044, %v2140
      %v2173 = vadd.f32 %v2045, %v2141
      %v2174 = vadd.f32 %v2046, %v2142
      %v2175 = vadd.f32 %v2047, %v2143
      %v2176 = vadd.f32 %v2048, %v2144
      %v2177 = vadd.f32 %v2049, %v2145
      %v2178 = vadd.f32 %v2050, %v2146
      %v2179 = vadd.f32 %v2051, %v2147
      %v2180 = vadd.f32 %v2052, %v2148
      %v2181 = vadd.f32 %v2053, %v2149
      %v2182 = vadd.f32 %v2054, %v2150
      %v2183 = vadd.f32 %v2055, %v2151
      %v2184 = vadd.f32 %v2056, %v2152
      %v2185 = vadd.f32 %v2057, %v2153
      %v2186 = vadd.f32 %v2058, %v2154
      %v2187 = vadd.f32 %v2059, %v2155
      %v2188 = vadd.f32 %v2060, %v2156
      %v2189 = vadd.f32 %v2061, %v2157
      %v2190 = vadd.f32 %v2062, %v2158
      %v2191 = vadd.f32 %v2063, %v2159
      %v2192 = vadd.f32 %v2064, %v2160
      %2193 = vset.pattern.permute.xlu0 7
      %2194 = vperm.xlu0 %2193, %v1297
      %v2195 = vpop.permute.xlu0 %2194
      %2197 = vset.pattern.permute.xlu0 7
      %2198 = vperm.xlu0 %2197, %v1298
      %v2199 = vpop.permute.xlu0 %2198
      %2201 = vset.pattern.permute.xlu0 7
      %2202 = vperm.xlu0 %2201, %v1299
      %v2203 = vpop.permute.xlu0 %2202
      %2205 = vset.pattern.permute.xlu0 7
      %2206 = vperm.xlu0 %2205, %v1300
      %v2207 = vpop.permute.xlu0 %2206
      %2209 = vset.pattern.permute.xlu0 7
      %2210 = vperm.xlu0 %2209, %v1301
      %v2211 = vpop.permute.xlu0 %2210
      %2213 = vset.pattern.permute.xlu0 7
      %2214 = vperm.xlu0 %2213, %v1302
      %v2215 = vpop.permute.xlu0 %2214
      %2217 = vset.pattern.permute.xlu0 7
      %2218 = vperm.xlu0 %2217, %v1303
      %v2219 = vpop.permute.xlu0 %2218
      %2221 = vset.pattern.permute.xlu0 7
      %2222 = vperm.xlu0 %2221, %v1304
      %v2223 = vpop.permute.xlu0 %2222
      %2225 = vset.pattern.permute.xlu0 7
      %2226 = vperm.xlu0 %2225, %v1305
      %v2227 = vpop.permute.xlu0 %2226
      %2229 = vset.pattern.permute.xlu0 7
      %2230 = vperm.xlu0 %2229, %v1306
      %v2231 = vpop.permute.xlu0 %2230
      %2233 = vset.pattern.permute.xlu0 7
      %2234 = vperm.xlu0 %2233, %v1307
      %v2235 = vpop.permute.xlu0 %2234
      %2237 = vset.pattern.permute.xlu0 7
      %2238 = vperm.xlu0 %2237, %v1308
      %v2239 = vpop.permute.xlu0 %2238
      %2241 = vset.pattern.permute.xlu0 7
      %2242 = vperm.xlu0 %2241, %v1309
      %v2243 = vpop.permute.xlu0 %2242
      %2245 = vset.pattern.permute.xlu0 7
      %2246 = vperm.xlu0 %2245, %v1310
      %v2247 = vpop.permute.xlu0 %2246
      %2249 = vset.pattern.permute.xlu0 7
      %2250 = vperm.xlu0 %2249, %v1311
      %v2251 = vpop.permute.xlu0 %2250
      %2253 = vset.pattern.permute.xlu0 7
      %2254 = vperm.xlu0 %2253, %v1312
      %v2255 = vpop.permute.xlu0 %2254
      %v2257 = vmul.f32 %v2195, %v1195
      %v2258 = vmul.f32 %v2195, %v1199
      %v2259 = vmul.f32 %v2199, %v1195
      %v2260 = vmul.f32 %v2199, %v1199
      %v2261 = vmul.f32 %v2203, %v1195
      %v2262 = vmul.f32 %v2203, %v1199
      %v2263 = vmul.f32 %v2207, %v1195
      %v2264 = vmul.f32 %v2207, %v1199
      %v2265 = vmul.f32 %v2211, %v1195
      %v2266 = vmul.f32 %v2211, %v1199
      %v2267 = vmul.f32 %v2215, %v1195
      %v2268 = vmul.f32 %v2215, %v1199
      %v2269 = vmul.f32 %v2219, %v1195
      %v2270 = vmul.f32 %v2219, %v1199
      %v2271 = vmul.f32 %v2223, %v1195
      %v2272 = vmul.f32 %v2223, %v1199
      %v2273 = vmul.f32 %v2227, %v1195
      %v2274 = vmul.f32 %v2227, %v1199
      %v2275 = vmul.f32 %v2231, %v1195
      %v2276 = vmul.f32 %v2231, %v1199
      %v2277 = vmul.f32 %v2235, %v1195
      %v2278 = vmul.f32 %v2235, %v1199
      %v2279 = vmul.f32 %v2239, %v1195
      %v2280 = vmul.f32 %v2239, %v1199
      %v2281 = vmul.f32 %v2243, %v1195
      %v2282 = vmul.f32 %v2243, %v1199
      %v2283 = vmul.f32 %v2247, %v1195
      %v2284 = vmul.f32 %v2247, %v1199
      %v2285 = vmul.f32 %v2251, %v1195
      %v2286 = vmul.f32 %v2251, %v1199
      %v2287 = vmul.f32 %v2255, %v1195
      %v2288 = vmul.f32 %v2255, %v1199
      %v2289 = vadd.f32 %v2161, %v2257
      %v2290 = vadd.f32 %v2162, %v2258
      %v2291 = vadd.f32 %v2163, %v2259
      %v2292 = vadd.f32 %v2164, %v2260
      %v2293 = vadd.f32 %v2165, %v2261
      %v2294 = vadd.f32 %v2166, %v2262
      %v2295 = vadd.f32 %v2167, %v2263
      %v2296 = vadd.f32 %v2168, %v2264
      %v2297 = vadd.f32 %v2169, %v2265
      %v2298 = vadd.f32 %v2170, %v2266
      %v2299 = vadd.f32 %v2171, %v2267
      %v2300 = vadd.f32 %v2172, %v2268
      %v2301 = vadd.f32 %v2173, %v2269
      %v2302 = vadd.f32 %v2174, %v2270
      %v2303 = vadd.f32 %v2175, %v2271
      %v2304 = vadd.f32 %v2176, %v2272
      %v2305 = vadd.f32 %v2177, %v2273
      %v2306 = vadd.f32 %v2178, %v2274
      %v2307 = vadd.f32 %v2179, %v2275
      %v2308 = vadd.f32 %v2180, %v2276
      %v2309 = vadd.f32 %v2181, %v2277
      %v2310 = vadd.f32 %v2182, %v2278
      %v2311 = vadd.f32 %v2183, %v2279
      %v2312 = vadd.f32 %v2184, %v2280
      %v2313 = vadd.f32 %v2185, %v2281
      %v2314 = vadd.f32 %v2186, %v2282
      %v2315 = vadd.f32 %v2187, %v2283
      %v2316 = vadd.f32 %v2188, %v2284
      %v2317 = vadd.f32 %v2189, %v2285
      %v2318 = vadd.f32 %v2190, %v2286
      %v2319 = vadd.f32 %v2191, %v2287
      %v2320 = vadd.f32 %v2192, %v2288
      %v2321 = vmax.f32 %v2289, 0.0
      %v2322 = vmax.f32 %v2290, 0.0
      %v2323 = vmax.f32 %v2291, 0.0
      %v2324 = vmax.f32 %v2292, 0.0
      %v2325 = vmax.f32 %v2293, 0.0
      %v2326 = vmax.f32 %v2294, 0.0
      %v2327 = vmax.f32 %v2295, 0.0
      %v2328 = vmax.f32 %v2296, 0.0
      %v2329 = vmax.f32 %v2297, 0.0
      %v2330 = vmax.f32 %v2298, 0.0
      %v2331 = vmax.f32 %v2299, 0.0
      %v2332 = vmax.f32 %v2300, 0.0
      %v2333 = vmax.f32 %v2301, 0.0
      %v2334 = vmax.f32 %v2302, 0.0
      %v2335 = vmax.f32 %v2303, 0.0
      %v2336 = vmax.f32 %v2304, 0.0
      %v2337 = vmax.f32 %v2305, 0.0
      %v2338 = vmax.f32 %v2306, 0.0
      %v2339 = vmax.f32 %v2307, 0.0
      %v2340 = vmax.f32 %v2308, 0.0
      %v2341 = vmax.f32 %v2309, 0.0
      %v2342 = vmax.f32 %v2310, 0.0
      %v2343 = vmax.f32 %v2311, 0.0
      %v2344 = vmax.f32 %v2312, 0.0
      %v2345 = vmax.f32 %v2313, 0.0
      %v2346 = vmax.f32 %v2314, 0.0
      %v2347 = vmax.f32 %v2315, 0.0
      %v2348 = vmax.f32 %v2316, 0.0
      %v2349 = vmax.f32 %v2317, 0.0
      %v2350 = vmax.f32 %v2318, 0.0
      %v2351 = vmax.f32 %v2319, 0.0
      %v2352 = vmax.f32 %v2320, 0.0
      %v2353 = vld [vmem:[%s2 + $0x8] sm:$0xff]
      %2354 = vmatprep.subr.mxu0 %v2322
      %2355 = vmatpush1.msra.mxu0 %v2321
      %2356 = vmatprep.subr.mxu0 %v2324
      %2357 = vmatpush1.msra.mxu0 %v2323
      %2358 = vmatprep.subr.mxu0 %v2326
      %2359 = vmatpush1.msra.mxu0 %v2325
      %2360 = vmatprep.subr.mxu0 %v2328
      %2361 = vmatpush1.msra.mxu0 %v2327
      %2362 = vmatprep.subr.mxu0 %v2330
      %2363 = vmatpush1.msra.mxu0 %v2329
      %2364 = vmatprep.subr.mxu0 %v2332
      %2365 = vmatpush1.msra.mxu0 %v2331
      %2366 = vmatprep.subr.mxu0 %v2334
      %2367 = vmatpush1.msra.mxu0 %v2333
      %2368 = vmatprep.subr.mxu0 %v2336
      %2369 = vmatpush1.msra.mxu0 %v2335
      %2370 = vmatprep.subr.mxu0 %v2338
      %2371 = vmatpush1.msra.mxu0 %v2337
      %2372 = vmatprep.subr.mxu0 %v2340
      %2373 = vmatpush1.msra.mxu0 %v2339
      %2374 = vmatprep.subr.mxu0 %v2342
      %2375 = vmatpush1.msra.mxu0 %v2341
      %2376 = vmatprep.subr.mxu0 %v2344
      %2377 = vmatpush1.msra.mxu0 %v2343
      %2378 = vmatprep.subr.mxu0 %v2346
      %2379 = vmatpush1.msra.mxu0 %v2345
      %2380 = vmatprep.subr.mxu0 %v2348
      %2381 = vmatpush1.msra.mxu0 %v2347
      %2382 = vmatprep.subr.mxu0 %v2350
      %2383 = vmatpush1.msra.mxu0 %v2349
      %2384 = vmatprep.subr.mxu0 %v2352
      %2385 = vmatpush1.msra.mxu0 %v2351
      %2386 = vmatprep.subr.mxu0 0.0
      %2387 = vmatpush1.msra.mxu0 0.0
      %2388 = vmatprep.subr.mxu0 0.0
      %2389 = vmatpush1.msra.mxu0 0.0
      %2390 = vmatprep.subr.mxu0 0.0
      %2391 = vmatpush1.msra.mxu0 0.0
      %2392 = vmatprep.subr.mxu0 0.0
      %2393 = vmatpush1.msra.mxu0 0.0
      %2394 = vmatprep.subr.mxu0 0.0
      %2395 = vmatpush1.msra.mxu0 0.0
      %2396 = vmatprep.subr.mxu0 0.0
      %2397 = vmatpush1.msra.mxu0 0.0
      %2398 = vmatprep.subr.mxu0 0.0
      %2399 = vmatpush1.msra.mxu0 0.0
      %2400 = vmatprep.subr.mxu0 0.0
      %2401 = vmatpush1.msra.mxu0 0.0
      %2402 = vmatprep.subr.mxu0 0.0
      %2403 = vmatpush1.msra.mxu0 0.0
      %2404 = vmatprep.subr.mxu0 0.0
      %2405 = vmatpush1.msra.mxu0 0.0
      %2406 = vmatprep.subr.mxu0 0.0
      %2407 = vmatpush1.msra.mxu0 0.0
      %2408 = vmatprep.subr.mxu0 0.0
      %2409 = vmatpush1.msra.mxu0 0.0
      %2410 = vmatprep.subr.mxu0 0.0
      %2411 = vmatpush1.msra.mxu0 0.0
      %2412 = vmatprep.subr.mxu0 0.0
      %2413 = vmatpush1.msra.mxu0 0.0
      %2414 = vmatprep.subr.mxu0 0.0
      %2415 = vmatpush1.msra.mxu0 0.0
      %2416 = vmatprep.subr.mxu0 0.0
      %2417 = vmatpush1.msra.mxu0 0.0
      %2418 = vmatprep.mubr.f32.mxu0 0.0
      %2419 = vmatmul.mubr.f32.gmra.mrb[0].mxu0 %v2353
      %v2420 = vpop.f32.mrb[0].mxu0
      %v2421 = vadd.f32 0.0, %v2420
      %v2422 = vpop.f32.mrb[0].mxu0
      %v2423 = vadd.f32 0.0, %v2422
      %2424 = vdwg.mxu0
      %2425 = vmatprep.subr.mxu0 %v1265
      %2426 = vmatpush1.msra.mxu0 %v1264
      %2427 = vmatprep.subr.mxu0 %v1267
      %2428 = vmatpush1.msra.mxu0 %v1266
      %2429 = vmatprep.subr.mxu0 %v1269
      %2430 = vmatpush1.msra.mxu0 %v1268
      %2431 = vmatprep.subr.mxu0 %v1271
      %2432 = vmatpush1.msra.mxu0 %v1270
      %2433 = vmatprep.subr.mxu0 %v1273
      %2434 = vmatpush1.msra.mxu0 %v1272
      %2435 = vmatprep.subr.mxu0 %v1275
      %2436 = vmatpush1.msra.mxu0 %v1274
      %2437 = vmatprep.subr.mxu0 %v1277
      %2438 = vmatpush1.msra.mxu0 %v1276
      %2439 = vmatprep.subr.mxu0 %v1279
      %2440 = vmatpush1.msra.mxu0 %v1278
      %2441 = vmatprep.subr.mxu0 %v1281
      %2442 = vmatpush1.msra.mxu0 %v1280
      %2443 = vmatprep.subr.mxu0 %v1283
      %2444 = vmatpush1.msra.mxu0 %v1282
      %2445 = vmatprep.subr.mxu0 %v1285
      %2446 = vmatpush1.msra.mxu0 %v1284
      %2447 = vmatprep.subr.mxu0 %v1287
      %2448 = vmatpush1.msra.mxu0 %v1286
      %2449 = vmatprep.subr.mxu0 %v1289
      %2450 = vmatpush1.msra.mxu0 %v1288
      %2451 = vmatprep.subr.mxu0 %v1291
      %2452 = vmatpush1.msra.mxu0 %v1290
      %2453 = vmatprep.subr.mxu0 %v1293
      %2454 = vmatpush1.msra.mxu0 %v1292
      %2455 = vmatprep.subr.mxu0 %v1295
      %2456 = vmatpush1.msra.mxu0 %v1294
      %2457 = vmatprep.subr.mxu0 0.0
      %2458 = vmatpush1.msra.mxu0 0.0
      %2459 = vmatprep.subr.mxu0 0.0
      %2460 = vmatpush1.msra.mxu0 0.0
      %2461 = vmatprep.subr.mxu0 0.0
      %2462 = vmatpush1.msra.mxu0 0.0
      %2463 = vmatprep.subr.mxu0 0.0
      %2464 = vmatpush1.msra.mxu0 0.0
      %2465 = vmatprep.subr.mxu0 0.0
      %2466 = vmatpush1.msra.mxu0 0.0
      %2467 = vmatprep.subr.mxu0 0.0
      %2468 = vmatpush1.msra.mxu0 0.0
      %2469 = vmatprep.subr.mxu0 0.0
      %2470 = vmatpush1.msra.mxu0 0.0
      %2471 = vmatprep.subr.mxu0 0.0
      %2472 = vmatpush1.msra.mxu0 0.0
      %2473 = vmatprep.subr.mxu0 0.0
      %2474 = vmatpush1.msra.mxu0 0.0
      %2475 = vmatprep.subr.mxu0 0.0
      %2476 = vmatpush1.msra.mxu0 0.0
      %2477 = vmatprep.subr.mxu0 0.0
      %2478 = vmatpush1.msra.mxu0 0.0
      %2479 = vmatprep.subr.mxu0 0.0
      %2480 = vmatpush1.msra.mxu0 0.0
      %2481 = vmatprep.subr.mxu0 0.0
      %2482 = vmatpush1.msra.mxu0 0.0
      %2483 = vmatprep.subr.mxu0 0.0
      %2484 = vmatpush1.msra.mxu0 0.0
      %2485 = vmatprep.subr.mxu0 0.0
      %2486 = vmatpush1.msra.mxu0 0.0
      %2487 = vmatprep.subr.mxu0 0.0
      %2488 = vmatpush1.msra.mxu0 0.0
      %2489 = vmatprep.mubr.f32.mxu0 0.0
      %2490 = vmatmul.mubr.f32.gmra.mrb[0].mxu0 %v1296
      %v2491 = vpop.f32.mrb[0].mxu0
      %v2492 = vadd.f32 %v2421, %v2491
      %v2493 = vpop.f32.mrb[0].mxu0
      %v2494 = vadd.f32 %v2423, %v2493
      %2495 = vdwg.mxu0
      %v2496 = vld [vmem:[%s1 + $0x100] sm:$0xff]
      %v2497 = vld [vmem:[%s1 + $0x108] sm:$0xff]
      %v2498 = vld [vmem:[%s1 + $0x110] sm:$0xff]
      %v2499 = vld [vmem:[%s1 + $0x118] sm:$0xff]
      %v2500 = vld [vmem:[%s1 + $0x120] sm:$0xff]
      %v2501 = vld [vmem:[%s1 + $0x128] sm:$0xff]
      %v2502 = vld [vmem:[%s1 + $0x130] sm:$0xff]
      %v2503 = vld [vmem:[%s1 + $0x138] sm:$0xff]
      %v2504 = vld [vmem:[%s1 + $0x140] sm:$0xff]
      %v2505 = vld [vmem:[%s1 + $0x148] sm:$0xff]
      %v2506 = vld [vmem:[%s1 + $0x150] sm:$0xff]
      %v2507 = vld [vmem:[%s1 + $0x158] sm:$0xff]
      %v2508 = vld [vmem:[%s1 + $0x160] sm:$0xff]
      %v2509 = vld [vmem:[%s1 + $0x168] sm:$0xff]
      %v2510 = vld [vmem:[%s1 + $0x170] sm:$0xff]
      %v2511 = vld [vmem:[%s1 + $0x178] sm:$0xff]
      %2513 = vset.pattern.permute.xlu0 0
      %2514 = vperm.xlu0 %2513, %v2496
      %v2515 = vpop.permute.xlu0 %2514
      %2518 = vset.pattern.permute.xlu0 0
      %2519 = vperm.xlu0 %2518, %v2497
      %v2520 = vpop.permute.xlu0 %2519
      %2523 = vset.pattern.permute.xlu0 0
      %2524 = vperm.xlu0 %2523, %v2498
      %v2525 = vpop.permute.xlu0 %2524
      %2528 = vset.pattern.permute.xlu0 0
      %2529 = vperm.xlu0 %2528, %v2499
      %v2530 = vpop.permute.xlu0 %2529
      %2533 = vset.pattern.permute.xlu0 0
      %2534 = vperm.xlu0 %2533, %v2500
      %v2535 = vpop.permute.xlu0 %2534
      %2538 = vset.pattern.permute.xlu0 0
      %2539 = vperm.xlu0 %2538, %v2501
      %v2540 = vpop.permute.xlu0 %2539
      %2543 = vset.pattern.permute.xlu0 0
      %2544 = vperm.xlu0 %2543, %v2502
      %v2545 = vpop.permute.xlu0 %2544
      %2548 = vset.pattern.permute.xlu0 0
      %2549 = vperm.xlu0 %2548, %v2503
      %v2550 = vpop.permute.xlu0 %2549
      %2553 = vset.pattern.permute.xlu0 0
      %2554 = vperm.xlu0 %2553, %v2504
      %v2555 = vpop.permute.xlu0 %2554
      %2558 = vset.pattern.permute.xlu0 0
      %2559 = vperm.xlu0 %2558, %v2505
      %v2560 = vpop.permute.xlu0 %2559
      %2563 = vset.pattern.permute.xlu0 0
      %2564 = vperm.xlu0 %2563, %v2506
      %v2565 = vpop.permute.xlu0 %2564
      %2568 = vset.pattern.permute.xlu0 0
      %2569 = vperm.xlu0 %2568, %v2507
      %v2570 = vpop.permute.xlu0 %2569
      %2573 = vset.pattern.permute.xlu0 0
      %2574 = vperm.xlu0 %2573, %v2508
      %v2575 = vpop.permute.xlu0 %2574
      %2578 = vset.pattern.permute.xlu0 0
      %2579 = vperm.xlu0 %2578, %v2509
      %v2580 = vpop.permute.xlu0 %2579
      %2583 = vset.pattern.permute.xlu0 0
      %2584 = vperm.xlu0 %2583, %v2510
      %v2585 = vpop.permute.xlu0 %2584
      %2588 = vset.pattern.permute.xlu0 0
      %2589 = vperm.xlu0 %2588, %v2511
      %v2590 = vpop.permute.xlu0 %2589
      %v2592 = vmul.f32 %v2515, %v275
      %v2593 = vmul.f32 %v2515, %v279
      %v2594 = vmul.f32 %v2520, %v275
      %v2595 = vmul.f32 %v2520, %v279
      %v2596 = vmul.f32 %v2525, %v275
      %v2597 = vmul.f32 %v2525, %v279
      %v2598 = vmul.f32 %v2530, %v275
      %v2599 = vmul.f32 %v2530, %v279
      %v2600 = vmul.f32 %v2535, %v275
      %v2601 = vmul.f32 %v2535, %v279
      %v2602 = vmul.f32 %v2540, %v275
      %v2603 = vmul.f32 %v2540, %v279
      %v2604 = vmul.f32 %v2545, %v275
      %v2605 = vmul.f32 %v2545, %v279
      %v2606 = vmul.f32 %v2550, %v275
      %v2607 = vmul.f32 %v2550, %v279
      %v2608 = vmul.f32 %v2555, %v275
      %v2609 = vmul.f32 %v2555, %v279
      %v2610 = vmul.f32 %v2560, %v275
      %v2611 = vmul.f32 %v2560, %v279
      %v2612 = vmul.f32 %v2565, %v275
      %v2613 = vmul.f32 %v2565, %v279
      %v2614 = vmul.f32 %v2570, %v275
      %v2615 = vmul.f32 %v2570, %v279
      %v2616 = vmul.f32 %v2575, %v275
      %v2617 = vmul.f32 %v2575, %v279
      %v2618 = vmul.f32 %v2580, %v275
      %v2619 = vmul.f32 %v2580, %v279
      %v2620 = vmul.f32 %v2585, %v275
      %v2621 = vmul.f32 %v2585, %v279
      %v2622 = vmul.f32 %v2590, %v275
      %v2623 = vmul.f32 %v2590, %v279
      %2624 = vset.pattern.permute.xlu0 1
      %2625 = vperm.xlu0 %2624, %v2496
      %v2626 = vpop.permute.xlu0 %2625
      %2628 = vset.pattern.permute.xlu0 1
      %2629 = vperm.xlu0 %2628, %v2497
      %v2630 = vpop.permute.xlu0 %2629
      %2632 = vset.pattern.permute.xlu0 1
      %2633 = vperm.xlu0 %2632, %v2498
      %v2634 = vpop.permute.xlu0 %2633
      %2636 = vset.pattern.permute.xlu0 1
      %2637 = vperm.xlu0 %2636, %v2499
      %v2638 = vpop.permute.xlu0 %2637
      %2640 = vset.pattern.permute.xlu0 1
      %2641 = vperm.xlu0 %2640, %v2500
      %v2642 = vpop.permute.xlu0 %2641
      %2644 = vset.pattern.permute.xlu0 1
      %2645 = vperm.xlu0 %2644, %v2501
      %v2646 = vpop.permute.xlu0 %2645
      %2648 = vset.pattern.permute.xlu0 1
      %2649 = vperm.xlu0 %2648, %v2502
      %v2650 = vpop.permute.xlu0 %2649
      %2652 = vset.pattern.permute.xlu0 1
      %2653 = vperm.xlu0 %2652, %v2503
      %v2654 = vpop.permute.xlu0 %2653
      %2656 = vset.pattern.permute.xlu0 1
      %2657 = vperm.xlu0 %2656, %v2504
      %v2658 = vpop.permute.xlu0 %2657
      %2660 = vset.pattern.permute.xlu0 1
      %2661 = vperm.xlu0 %2660, %v2505
      %v2662 = vpop.permute.xlu0 %2661
      %2664 = vset.pattern.permute.xlu0 1
      %2665 = vperm.xlu0 %2664, %v2506
      %v2666 = vpop.permute.xlu0 %2665
      %2668 = vset.pattern.permute.xlu0 1
      %2669 = vperm.xlu0 %2668, %v2507
      %v2670 = vpop.permute.xlu0 %2669
      %2672 = vset.pattern.permute.xlu0 1
      %2673 = vperm.xlu0 %2672, %v2508
      %v2674 = vpop.permute.xlu0 %2673
      %2676 = vset.pattern.permute.xlu0 1
      %2677 = vperm.xlu0 %2676, %v2509
      %v2678 = vpop.permute.xlu0 %2677
      %2680 = vset.pattern.permute.xlu0 1
      %2681 = vperm.xlu0 %2680, %v2510
      %v2682 = vpop.permute.xlu0 %2681
      %2684 = vset.pattern.permute.xlu0 1
      %2685 = vperm.xlu0 %2684, %v2511
      %v2686 = vpop.permute.xlu0 %2685
      %v2688 = vmul.f32 %v2626, %v379
      %v2689 = vmul.f32 %v2626, %v383
      %v2690 = vmul.f32 %v2630, %v379
      %v2691 = vmul.f32 %v2630, %v383
      %v2692 = vmul.f32 %v2634, %v379
      %v2693 = vmul.f32 %v2634, %v383
      %v2694 = vmul.f32 %v2638, %v379
      %v2695 = vmul.f32 %v2638, %v383
      %v2696 = vmul.f32 %v2642, %v379
      %v2697 = vmul.f32 %v2642, %v383
      %v2698 = vmul.f32 %v2646, %v379
      %v2699 = vmul.f32 %v2646, %v383
      %v2700 = vmul.f32 %v2650, %v379
      %v2701 = vmul.f32 %v2650, %v383
      %v2702 = vmul.f32 %v2654, %v379
      %v2703 = vmul.f32 %v2654, %v383
      %v2704 = vmul.f32 %v2658, %v379
      %v2705 = vmul.f32 %v2658, %v383
      %v2706 = vmul.f32 %v2662, %v379
      %v2707 = vmul.f32 %v2662, %v383
      %v2708 = vmul.f32 %v2666, %v379
      %v2709 = vmul.f32 %v2666, %v383
      %v2710 = vmul.f32 %v2670, %v379
      %v2711 = vmul.f32 %v2670, %v383
      %v2712 = vmul.f32 %v2674, %v379
      %v2713 = vmul.f32 %v2674, %v383
      %v2714 = vmul.f32 %v2678, %v379
      %v2715 = vmul.f32 %v2678, %v383
      %v2716 = vmul.f32 %v2682, %v379
      %v2717 = vmul.f32 %v2682, %v383
      %v2718 = vmul.f32 %v2686, %v379
      %v2719 = vmul.f32 %v2686, %v383
      %v2720 = vadd.f32 %v2592, %v2688
      %v2721 = vadd.f32 %v2593, %v2689
      %v2722 = vadd.f32 %v2594, %v2690
      %v2723 = vadd.f32 %v2595, %v2691
      %v2724 = vadd.f32 %v2596, %v2692
      %v2725 = vadd.f32 %v2597, %v2693
      %v2726 = vadd.f32 %v2598, %v2694
      %v2727 = vadd.f32 %v2599, %v2695
      %v2728 = vadd.f32 %v2600, %v2696
      %v2729 = vadd.f32 %v2601, %v2697
      %v2730 = vadd.f32 %v2602, %v2698
      %v2731 = vadd.f32 %v2603, %v2699
      %v2732 = vadd.f32 %v2604, %v2700
      %v2733 = vadd.f32 %v2605, %v2701
      %v2734 = vadd.f32 %v2606, %v2702
      %v2735 = vadd.f32 %v2607, %v2703
      %v2736 = vadd.f32 %v2608, %v2704
      %v2737 = vadd.f32 %v2609, %v2705
      %v2738 = vadd.f32 %v2610, %v2706
      %v2739 = vadd.f32 %v2611, %v2707
      %v2740 = vadd.f32 %v2612, %v2708
      %v2741 = vadd.f32 %v2613, %v2709
      %v2742 = vadd.f32 %v2614, %v2710
      %v2743 = vadd.f32 %v2615, %v2711
      %v2744 = vadd.f32 %v2616, %v2712
      %v2745 = vadd.f32 %v2617, %v2713
      %v2746 = vadd.f32 %v2618, %v2714
      %v2747 = vadd.f32 %v2619, %v2715
      %v2748 = vadd.f32 %v2620, %v2716
      %v2749 = vadd.f32 %v2621, %v2717
      %v2750 = vadd.f32 %v2622, %v2718
      %v2751 = vadd.f32 %v2623, %v2719
      %2752 = vset.pattern.permute.xlu0 2
      %2753 = vperm.xlu0 %2752, %v2496
      %v2754 = vpop.permute.xlu0 %2753
      %2756 = vset.pattern.permute.xlu0 2
      %2757 = vperm.xlu0 %2756, %v2497
      %v2758 = vpop.permute.xlu0 %2757
      %2760 = vset.pattern.permute.xlu0 2
      %2761 = vperm.xlu0 %2760, %v2498
      %v2762 = vpop.permute.xlu0 %2761
      %2764 = vset.pattern.permute.xlu0 2
      %2765 = vperm.xlu0 %2764, %v2499
      %v2766 = vpop.permute.xlu0 %2765
      %2768 = vset.pattern.permute.xlu0 2
      %2769 = vperm.xlu0 %2768, %v2500
      %v2770 = vpop.permute.xlu0 %2769
      %2772 = vset.pattern.permute.xlu0 2
      %2773 = vperm.xlu0 %2772, %v2501
      %v2774 = vpop.permute.xlu0 %2773
      %2776 = vset.pattern.permute.xlu0 2
      %2777 = vperm.xlu0 %2776, %v2502
      %v2778 = vpop.permute.xlu0 %2777
      %2780 = vset.pattern.permute.xlu0 2
      %2781 = vperm.xlu0 %2780, %v2503
      %v2782 = vpop.permute.xlu0 %2781
      %2784 = vset.pattern.permute.xlu0 2
      %2785 = vperm.xlu0 %2784, %v2504
      %v2786 = vpop.permute.xlu0 %2785
      %2788 = vset.pattern.permute.xlu0 2
      %2789 = vperm.xlu0 %2788, %v2505
      %v2790 = vpop.permute.xlu0 %2789
      %2792 = vset.pattern.permute.xlu0 2
      %2793 = vperm.xlu0 %2792, %v2506
      %v2794 = vpop.permute.xlu0 %2793
      %2796 = vset.pattern.permute.xlu0 2
      %2797 = vperm.xlu0 %2796, %v2507
      %v2798 = vpop.permute.xlu0 %2797
      %2800 = vset.pattern.permute.xlu0 2
      %2801 = vperm.xlu0 %2800, %v2508
      %v2802 = vpop.permute.xlu0 %2801
      %2804 = vset.pattern.permute.xlu0 2
      %2805 = vperm.xlu0 %2804, %v2509
      %v2806 = vpop.permute.xlu0 %2805
      %2808 = vset.pattern.permute.xlu0 2
      %2809 = vperm.xlu0 %2808, %v2510
      %v2810 = vpop.permute.xlu0 %2809
      %2812 = vset.pattern.permute.xlu0 2
      %2813 = vperm.xlu0 %2812, %v2511
      %v2814 = vpop.permute.xlu0 %2813
      %v2816 = vmul.f32 %v2754, %v515
      %v2817 = vmul.f32 %v2754, %v519
      %v2818 = vmul.f32 %v2758, %v515
      %v2819 = vmul.f32 %v2758, %v519
      %v2820 = vmul.f32 %v2762, %v515
      %v2821 = vmul.f32 %v2762, %v519
      %v2822 = vmul.f32 %v2766, %v515
      %v2823 = vmul.f32 %v2766, %v519
      %v2824 = vmul.f32 %v2770, %v515
      %v2825 = vmul.f32 %v2770, %v519
      %v2826 = vmul.f32 %v2774, %v515
      %v2827 = vmul.f32 %v2774, %v519
      %v2828 = vmul.f32 %v2778, %v515
      %v2829 = vmul.f32 %v2778, %v519
      %v2830 = vmul.f32 %v2782, %v515
      %v2831 = vmul.f32 %v2782, %v519
      %v2832 = vmul.f32 %v2786, %v515
      %v2833 = vmul.f32 %v2786, %v519
      %v2834 = vmul.f32 %v2790, %v515
      %v2835 = vmul.f32 %v2790, %v519
      %v2836 = vmul.f32 %v2794, %v515
      %v2837 = vmul.f32 %v2794, %v519
      %v2838 = vmul.f32 %v2798, %v515
      %v2839 = vmul.f32 %v2798, %v519
      %v2840 = vmul.f32 %v2802, %v515
      %v2841 = vmul.f32 %v2802, %v519
      %v2842 = vmul.f32 %v2806, %v515
      %v2843 = vmul.f32 %v2806, %v519
      %v2844 = vmul.f32 %v2810, %v515
      %v2845 = vmul.f32 %v2810, %v519
      %v2846 = vmul.f32 %v2814, %v515
      %v2847 = vmul.f32 %v2814, %v519
      %v2848 = vadd.f32 %v2720, %v2816
      %v2849 = vadd.f32 %v2721, %v2817
      %v2850 = vadd.f32 %v2722, %v2818
      %v2851 = vadd.f32 %v2723, %v2819
      %v2852 = vadd.f32 %v2724, %v2820
      %v2853 = vadd.f32 %v2725, %v2821
      %v2854 = vadd.f32 %v2726, %v2822
      %v2855 = vadd.f32 %v2727, %v2823
      %v2856 = vadd.f32 %v2728, %v2824
      %v2857 = vadd.f32 %v2729, %v2825
      %v2858 = vadd.f32 %v2730, %v2826
      %v2859 = vadd.f32 %v2731, %v2827
      %v2860 = vadd.f32 %v2732, %v2828
      %v2861 = vadd.f32 %v2733, %v2829
      %v2862 = vadd.f32 %v2734, %v2830
      %v2863 = vadd.f32 %v2735, %v2831
      %v2864 = vadd.f32 %v2736, %v2832
      %v2865 = vadd.f32 %v2737, %v2833
      %v2866 = vadd.f32 %v2738, %v2834
      %v2867 = vadd.f32 %v2739, %v2835
      %v2868 = vadd.f32 %v2740, %v2836
      %v2869 = vadd.f32 %v2741, %v2837
      %v2870 = vadd.f32 %v2742, %v2838
      %v2871 = vadd.f32 %v2743, %v2839
      %v2872 = vadd.f32 %v2744, %v2840
      %v2873 = vadd.f32 %v2745, %v2841
      %v2874 = vadd.f32 %v2746, %v2842
      %v2875 = vadd.f32 %v2747, %v2843
      %v2876 = vadd.f32 %v2748, %v2844
      %v2877 = vadd.f32 %v2749, %v2845
      %v2878 = vadd.f32 %v2750, %v2846
      %v2879 = vadd.f32 %v2751, %v2847
      %2880 = vset.pattern.permute.xlu0 3
      %2881 = vperm.xlu0 %2880, %v2496
      %v2882 = vpop.permute.xlu0 %2881
      %2884 = vset.pattern.permute.xlu0 3
      %2885 = vperm.xlu0 %2884, %v2497
      %v2886 = vpop.permute.xlu0 %2885
      %2888 = vset.pattern.permute.xlu0 3
      %2889 = vperm.xlu0 %2888, %v2498
      %v2890 = vpop.permute.xlu0 %2889
      %2892 = vset.pattern.permute.xlu0 3
      %2893 = vperm.xlu0 %2892, %v2499
      %v2894 = vpop.permute.xlu0 %2893
      %2896 = vset.pattern.permute.xlu0 3
      %2897 = vperm.xlu0 %2896, %v2500
      %v2898 = vpop.permute.xlu0 %2897
      %2900 = vset.pattern.permute.xlu0 3
      %2901 = vperm.xlu0 %2900, %v2501
      %v2902 = vpop.permute.xlu0 %2901
      %2904 = vset.pattern.permute.xlu0 3
      %2905 = vperm.xlu0 %2904, %v2502
      %v2906 = vpop.permute.xlu0 %2905
      %2908 = vset.pattern.permute.xlu0 3
      %2909 = vperm.xlu0 %2908, %v2503
      %v2910 = vpop.permute.xlu0 %2909
      %2912 = vset.pattern.permute.xlu0 3
      %2913 = vperm.xlu0 %2912, %v2504
      %v2914 = vpop.permute.xlu0 %2913
      %2916 = vset.pattern.permute.xlu0 3
      %2917 = vperm.xlu0 %2916, %v2505
      %v2918 = vpop.permute.xlu0 %2917
      %2920 = vset.pattern.permute.xlu0 3
      %2921 = vperm.xlu0 %2920, %v2506
      %v2922 = vpop.permute.xlu0 %2921
      %2924 = vset.pattern.permute.xlu0 3
      %2925 = vperm.xlu0 %2924, %v2507
      %v2926 = vpop.permute.xlu0 %2925
      %2928 = vset.pattern.permute.xlu0 3
      %2929 = vperm.xlu0 %2928, %v2508
      %v2930 = vpop.permute.xlu0 %2929
      %2932 = vset.pattern.permute.xlu0 3
      %2933 = vperm.xlu0 %2932, %v2509
      %v2934 = vpop.permute.xlu0 %2933
      %2936 = vset.pattern.permute.xlu0 3
      %2937 = vperm.xlu0 %2936, %v2510
      %v2938 = vpop.permute.xlu0 %2937
      %2940 = vset.pattern.permute.xlu0 3
      %2941 = vperm.xlu0 %2940, %v2511
      %v2942 = vpop.permute.xlu0 %2941
      %v2944 = vmul.f32 %v2882, %v651
      %v2945 = vmul.f32 %v2882, %v655
      %v2946 = vmul.f32 %v2886, %v651
      %v2947 = vmul.f32 %v2886, %v655
      %v2948 = vmul.f32 %v2890, %v651
      %v2949 = vmul.f32 %v2890, %v655
      %v2950 = vmul.f32 %v2894, %v651
      %v2951 = vmul.f32 %v2894, %v655
      %v2952 = vmul.f32 %v2898, %v651
      %v2953 = vmul.f32 %v2898, %v655
      %v2954 = vmul.f32 %v2902, %v651
      %v2955 = vmul.f32 %v2902, %v655
      %v2956 = vmul.f32 %v2906, %v651
      %v2957 = vmul.f32 %v2906, %v655
      %v2958 = vmul.f32 %v2910, %v651
      %v2959 = vmul.f32 %v2910, %v655
      %v2960 = vmul.f32 %v2914, %v651
      %v2961 = vmul.f32 %v2914, %v655
      %v2962 = vmul.f32 %v2918, %v651
      %v2963 = vmul.f32 %v2918, %v655
      %v2964 = vmul.f32 %v2922, %v651
      %v2965 = vmul.f32 %v2922, %v655
      %v2966 = vmul.f32 %v2926, %v651
      %v2967 = vmul.f32 %v2926, %v655
      %v2968 = vmul.f32 %v2930, %v651
      %v2969 = vmul.f32 %v2930, %v655
      %v2970 = vmul.f32 %v2934, %v651
      %v2971 = vmul.f32 %v2934, %v655
      %v2972 = vmul.f32 %v2938, %v651
      %v2973 = vmul.f32 %v2938, %v655
      %v2974 = vmul.f32 %v2942, %v651
      %v2975 = vmul.f32 %v2942, %v655
      %v2976 = vadd.f32 %v2848, %v2944
      %v2977 = vadd.f32 %v2849, %v2945
      %v2978 = vadd.f32 %v2850, %v2946
      %v2979 = vadd.f32 %v2851, %v2947
      %v2980 = vadd.f32 %v2852, %v2948
      %v2981 = vadd.f32 %v2853, %v2949
      %v2982 = vadd.f32 %v2854, %v2950
      %v2983 = vadd.f32 %v2855, %v2951
      %v2984 = vadd.f32 %v2856, %v2952
      %v2985 = vadd.f32 %v2857, %v2953
      %v2986 = vadd.f32 %v2858, %v2954
      %v2987 = vadd.f32 %v2859, %v2955
      %v2988 = vadd.f32 %v2860, %v2956
      %v2989 = vadd.f32 %v2861, %v2957
      %v2990 = vadd.f32 %v2862, %v2958
      %v2991 = vadd.f32 %v2863, %v2959
      %v2992 = vadd.f32 %v2864, %v2960
      %v2993 = vadd.f32 %v2865, %v2961
      %v2994 = vadd.f32 %v2866, %v2962
      %v2995 = vadd.f32 %v2867, %v2963
      %v2996 = vadd.f32 %v2868, %v2964
      %v2997 = vadd.f32 %v2869, %v2965
      %v2998 = vadd.f32 %v2870, %v2966
      %v2999 = vadd.f32 %v2871, %v2967
      %v3000 = vadd.f32 %v2872, %v2968
      %v3001 = vadd.f32 %v2873, %v2969
      %v3002 = vadd.f32 %v2874, %v2970
      %v3003 = vadd.f32 %v2875, %v2971
      %v3004 = vadd.f32 %v2876, %v2972
      %v3005 = vadd.f32 %v2877, %v2973
      %v3006 = vadd.f32 %v2878, %v2974
      %v3007 = vadd.f32 %v2879, %v2975
      %3008 = vset.pattern.permute.xlu0 4
      %3009 = vperm.xlu0 %3008, %v2496
      %v3010 = vpop.permute.xlu0 %3009
      %3012 = vset.pattern.permute.xlu0 4
      %3013 = vperm.xlu0 %3012, %v2497
      %v3014 = vpop.permute.xlu0 %3013
      %3016 = vset.pattern.permute.xlu0 4
      %3017 = vperm.xlu0 %3016, %v2498
      %v3018 = vpop.permute.xlu0 %3017
      %3020 = vset.pattern.permute.xlu0 4
      %3021 = vperm.xlu0 %3020, %v2499
      %v3022 = vpop.permute.xlu0 %3021
      %3024 = vset.pattern.permute.xlu0 4
      %3025 = vperm.xlu0 %3024, %v2500
      %v3026 = vpop.permute.xlu0 %3025
      %3028 = vset.pattern.permute.xlu0 4
      %3029 = vperm.xlu0 %3028, %v2501
      %v3030 = vpop.permute.xlu0 %3029
      %3032 = vset.pattern.permute.xlu0 4
      %3033 = vperm.xlu0 %3032, %v2502
      %v3034 = vpop.permute.xlu0 %3033
      %3036 = vset.pattern.permute.xlu0 4
      %3037 = vperm.xlu0 %3036, %v2503
      %v3038 = vpop.permute.xlu0 %3037
      %3040 = vset.pattern.permute.xlu0 4
      %3041 = vperm.xlu0 %3040, %v2504
      %v3042 = vpop.permute.xlu0 %3041
      %3044 = vset.pattern.permute.xlu0 4
      %3045 = vperm.xlu0 %3044, %v2505
      %v3046 = vpop.permute.xlu0 %3045
      %3048 = vset.pattern.permute.xlu0 4
      %3049 = vperm.xlu0 %3048, %v2506
      %v3050 = vpop.permute.xlu0 %3049
      %3052 = vset.pattern.permute.xlu0 4
      %3053 = vperm.xlu0 %3052, %v2507
      %v3054 = vpop.permute.xlu0 %3053
      %3056 = vset.pattern.permute.xlu0 4
      %3057 = vperm.xlu0 %3056, %v2508
      %v3058 = vpop.permute.xlu0 %3057
      %3060 = vset.pattern.permute.xlu0 4
      %3061 = vperm.xlu0 %3060, %v2509
      %v3062 = vpop.permute.xlu0 %3061
      %3064 = vset.pattern.permute.xlu0 4
      %3065 = vperm.xlu0 %3064, %v2510
      %v3066 = vpop.permute.xlu0 %3065
      %3068 = vset.pattern.permute.xlu0 4
      %3069 = vperm.xlu0 %3068, %v2511
      %v3070 = vpop.permute.xlu0 %3069
      %v3072 = vmul.f32 %v3010, %v787
      %v3073 = vmul.f32 %v3010, %v791
      %v3074 = vmul.f32 %v3014, %v787
      %v3075 = vmul.f32 %v3014, %v791
      %v3076 = vmul.f32 %v3018, %v787
      %v3077 = vmul.f32 %v3018, %v791
      %v3078 = vmul.f32 %v3022, %v787
      %v3079 = vmul.f32 %v3022, %v791
      %v3080 = vmul.f32 %v3026, %v787
      %v3081 = vmul.f32 %v3026, %v791
      %v3082 = vmul.f32 %v3030, %v787
      %v3083 = vmul.f32 %v3030, %v791
      %v3084 = vmul.f32 %v3034, %v787
      %v3085 = vmul.f32 %v3034, %v791
      %v3086 = vmul.f32 %v3038, %v787
      %v3087 = vmul.f32 %v3038, %v791
      %v3088 = vmul.f32 %v3042, %v787
      %v3089 = vmul.f32 %v3042, %v791
      %v3090 = vmul.f32 %v3046, %v787
      %v3091 = vmul.f32 %v3046, %v791
      %v3092 = vmul.f32 %v3050, %v787
      %v3093 = vmul.f32 %v3050, %v791
      %v3094 = vmul.f32 %v3054, %v787
      %v3095 = vmul.f32 %v3054, %v791
      %v3096 = vmul.f32 %v3058, %v787
      %v3097 = vmul.f32 %v3058, %v791
      %v3098 = vmul.f32 %v3062, %v787
      %v3099 = vmul.f32 %v3062, %v791
      %v3100 = vmul.f32 %v3066, %v787
      %v3101 = vmul.f32 %v3066, %v791
      %v3102 = vmul.f32 %v3070, %v787
      %v3103 = vmul.f32 %v3070, %v791
      %v3104 = vadd.f32 %v2976, %v3072
      %v3105 = vadd.f32 %v2977, %v3073
      %v3106 = vadd.f32 %v2978, %v3074
      %v3107 = vadd.f32 %v2979, %v3075
      %v3108 = vadd.f32 %v2980, %v3076
      %v3109 = vadd.f32 %v2981, %v3077
      %v3110 = vadd.f32 %v2982, %v3078
      %v3111 = vadd.f32 %v2983, %v3079
      %v3112 = vadd.f32 %v2984, %v3080
      %v3113 = vadd.f32 %v2985, %v3081
      %v3114 = vadd.f32 %v2986, %v3082
      %v3115 = vadd.f32 %v2987, %v3083
      %v3116 = vadd.f32 %v2988, %v3084
      %v3117 = vadd.f32 %v2989, %v3085
      %v3118 = vadd.f32 %v2990, %v3086
      %v3119 = vadd.f32 %v2991, %v3087
      %v3120 = vadd.f32 %v2992, %v3088
      %v3121 = vadd.f32 %v2993, %v3089
      %v3122 = vadd.f32 %v2994, %v3090
      %v3123 = vadd.f32 %v2995, %v3091
      %v3124 = vadd.f32 %v2996, %v3092
      %v3125 = vadd.f32 %v2997, %v3093
      %v3126 = vadd.f32 %v2998, %v3094
      %v3127 = vadd.f32 %v2999, %v3095
      %v3128 = vadd.f32 %v3000, %v3096
      %v3129 = vadd.f32 %v3001, %v3097
      %v3130 = vadd.f32 %v3002, %v3098
      %v3131 = vadd.f32 %v3003, %v3099
      %v3132 = vadd.f32 %v3004, %v3100
      %v3133 = vadd.f32 %v3005, %v3101
      %v3134 = vadd.f32 %v3006, %v3102
      %v3135 = vadd.f32 %v3007, %v3103
      %3136 = vset.pattern.permute.xlu0 5
      %3137 = vperm.xlu0 %3136, %v2496
      %v3138 = vpop.permute.xlu0 %3137
      %3140 = vset.pattern.permute.xlu0 5
      %3141 = vperm.xlu0 %3140, %v2497
      %v3142 = vpop.permute.xlu0 %3141
      %3144 = vset.pattern.permute.xlu0 5
      %3145 = vperm.xlu0 %3144, %v2498
      %v3146 = vpop.permute.xlu0 %3145
      %3148 = vset.pattern.permute.xlu0 5
      %3149 = vperm.xlu0 %3148, %v2499
      %v3150 = vpop.permute.xlu0 %3149
      %3152 = vset.pattern.permute.xlu0 5
      %3153 = vperm.xlu0 %3152, %v2500
      %v3154 = vpop.permute.xlu0 %3153
      %3156 = vset.pattern.permute.xlu0 5
      %3157 = vperm.xlu0 %3156, %v2501
      %v3158 = vpop.permute.xlu0 %3157
      %3160 = vset.pattern.permute.xlu0 5
      %3161 = vperm.xlu0 %3160, %v2502
      %v3162 = vpop.permute.xlu0 %3161
      %3164 = vset.pattern.permute.xlu0 5
      %3165 = vperm.xlu0 %3164, %v2503
      %v3166 = vpop.permute.xlu0 %3165
      %3168 = vset.pattern.permute.xlu0 5
      %3169 = vperm.xlu0 %3168, %v2504
      %v3170 = vpop.permute.xlu0 %3169
      %3172 = vset.pattern.permute.xlu0 5
      %3173 = vperm.xlu0 %3172, %v2505
      %v3174 = vpop.permute.xlu0 %3173
      %3176 = vset.pattern.permute.xlu0 5
      %3177 = vperm.xlu0 %3176, %v2506
      %v3178 = vpop.permute.xlu0 %3177
      %3180 = vset.pattern.permute.xlu0 5
      %3181 = vperm.xlu0 %3180, %v2507
      %v3182 = vpop.permute.xlu0 %3181
      %3184 = vset.pattern.permute.xlu0 5
      %3185 = vperm.xlu0 %3184, %v2508
      %v3186 = vpop.permute.xlu0 %3185
      %3188 = vset.pattern.permute.xlu0 5
      %3189 = vperm.xlu0 %3188, %v2509
      %v3190 = vpop.permute.xlu0 %3189
      %3192 = vset.pattern.permute.xlu0 5
      %3193 = vperm.xlu0 %3192, %v2510
      %v3194 = vpop.permute.xlu0 %3193
      %3196 = vset.pattern.permute.xlu0 5
      %3197 = vperm.xlu0 %3196, %v2511
      %v3198 = vpop.permute.xlu0 %3197
      %v3200 = vmul.f32 %v3138, %v923
      %v3201 = vmul.f32 %v3138, %v927
      %v3202 = vmul.f32 %v3142, %v923
      %v3203 = vmul.f32 %v3142, %v927
      %v3204 = vmul.f32 %v3146, %v923
      %v3205 = vmul.f32 %v3146, %v927
      %v3206 = vmul.f32 %v3150, %v923
      %v3207 = vmul.f32 %v3150, %v927
      %v3208 = vmul.f32 %v3154, %v923
      %v3209 = vmul.f32 %v3154, %v927
      %v3210 = vmul.f32 %v3158, %v923
      %v3211 = vmul.f32 %v3158, %v927
      %v3212 = vmul.f32 %v3162, %v923
      %v3213 = vmul.f32 %v3162, %v927
      %v3214 = vmul.f32 %v3166, %v923
      %v3215 = vmul.f32 %v3166, %v927
      %v3216 = vmul.f32 %v3170, %v923
      %v3217 = vmul.f32 %v3170, %v927
      %v3218 = vmul.f32 %v3174, %v923
      %v3219 = vmul.f32 %v3174, %v927
      %v3220 = vmul.f32 %v3178, %v923
      %v3221 = vmul.f32 %v3178, %v927
      %v3222 = vmul.f32 %v3182, %v923
      %v3223 = vmul.f32 %v3182, %v927
      %v3224 = vmul.f32 %v3186, %v923
      %v3225 = vmul.f32 %v3186, %v927
      %v3226 = vmul.f32 %v3190, %v923
      %v3227 = vmul.f32 %v3190, %v927
      %v3228 = vmul.f32 %v3194, %v923
      %v3229 = vmul.f32 %v3194, %v927
      %v3230 = vmul.f32 %v3198, %v923
      %v3231 = vmul.f32 %v3198, %v927
      %v3232 = vadd.f32 %v3104, %v3200
      %v3233 = vadd.f32 %v3105, %v3201
      %v3234 = vadd.f32 %v3106, %v3202
      %v3235 = vadd.f32 %v3107, %v3203
      %v3236 = vadd.f32 %v3108, %v3204
      %v3237 = vadd.f32 %v3109, %v3205
      %v3238 = vadd.f32 %v3110, %v3206
      %v3239 = vadd.f32 %v3111, %v3207
      %v3240 = vadd.f32 %v3112, %v3208
      %v3241 = vadd.f32 %v3113, %v3209
      %v3242 = vadd.f32 %v3114, %v3210
      %v3243 = vadd.f32 %v3115, %v3211
      %v3244 = vadd.f32 %v3116, %v3212
      %v3245 = vadd.f32 %v3117, %v3213
      %v3246 = vadd.f32 %v3118, %v3214
      %v3247 = vadd.f32 %v3119, %v3215
      %v3248 = vadd.f32 %v3120, %v3216
      %v3249 = vadd.f32 %v3121, %v3217
      %v3250 = vadd.f32 %v3122, %v3218
      %v3251 = vadd.f32 %v3123, %v3219
      %v3252 = vadd.f32 %v3124, %v3220
      %v3253 = vadd.f32 %v3125, %v3221
      %v3254 = vadd.f32 %v3126, %v3222
      %v3255 = vadd.f32 %v3127, %v3223
      %v3256 = vadd.f32 %v3128, %v3224
      %v3257 = vadd.f32 %v3129, %v3225
      %v3258 = vadd.f32 %v3130, %v3226
      %v3259 = vadd.f32 %v3131, %v3227
      %v3260 = vadd.f32 %v3132, %v3228
      %v3261 = vadd.f32 %v3133, %v3229
      %v3262 = vadd.f32 %v3134, %v3230
      %v3263 = vadd.f32 %v3135, %v3231
      %3264 = vset.pattern.permute.xlu0 6
      %3265 = vperm.xlu0 %3264, %v2496
      %v3266 = vpop.permute.xlu0 %3265
      %3268 = vset.pattern.permute.xlu0 6
      %3269 = vperm.xlu0 %3268, %v2497
      %v3270 = vpop.permute.xlu0 %3269
      %3272 = vset.pattern.permute.xlu0 6
      %3273 = vperm.xlu0 %3272, %v2498
      %v3274 = vpop.permute.xlu0 %3273
      %3276 = vset.pattern.permute.xlu0 6
      %3277 = vperm.xlu0 %3276, %v2499
      %v3278 = vpop.permute.xlu0 %3277
      %3280 = vset.pattern.permute.xlu0 6
      %3281 = vperm.xlu0 %3280, %v2500
      %v3282 = vpop.permute.xlu0 %3281
      %3284 = vset.pattern.permute.xlu0 6
      %3285 = vperm.xlu0 %3284, %v2501
      %v3286 = vpop.permute.xlu0 %3285
      %3288 = vset.pattern.permute.xlu0 6
      %3289 = vperm.xlu0 %3288, %v2502
      %v3290 = vpop.permute.xlu0 %3289
      %3292 = vset.pattern.permute.xlu0 6
      %3293 = vperm.xlu0 %3292, %v2503
      %v3294 = vpop.permute.xlu0 %3293
      %3296 = vset.pattern.permute.xlu0 6
      %3297 = vperm.xlu0 %3296, %v2504
      %v3298 = vpop.permute.xlu0 %3297
      %3300 = vset.pattern.permute.xlu0 6
      %3301 = vperm.xlu0 %3300, %v2505
      %v3302 = vpop.permute.xlu0 %3301
      %3304 = vset.pattern.permute.xlu0 6
      %3305 = vperm.xlu0 %3304, %v2506
      %v3306 = vpop.permute.xlu0 %3305
      %3308 = vset.pattern.permute.xlu0 6
      %3309 = vperm.xlu0 %3308, %v2507
      %v3310 = vpop.permute.xlu0 %3309
      %3312 = vset.pattern.permute.xlu0 6
      %3313 = vperm.xlu0 %3312, %v2508
      %v3314 = vpop.permute.xlu0 %3313
      %3316 = vset.pattern.permute.xlu0 6
      %3317 = vperm.xlu0 %3316, %v2509
      %v3318 = vpop.permute.xlu0 %3317
      %3320 = vset.pattern.permute.xlu0 6
      %3321 = vperm.xlu0 %3320, %v2510
      %v3322 = vpop.permute.xlu0 %3321
      %3324 = vset.pattern.permute.xlu0 6
      %3325 = vperm.xlu0 %3324, %v2511
      %v3326 = vpop.permute.xlu0 %3325
      %v3328 = vmul.f32 %v3266, %v1059
      %v3329 = vmul.f32 %v3266, %v1063
      %v3330 = vmul.f32 %v3270, %v1059
      %v3331 = vmul.f32 %v3270, %v1063
      %v3332 = vmul.f32 %v3274, %v1059
      %v3333 = vmul.f32 %v3274, %v1063
      %v3334 = vmul.f32 %v3278, %v1059
      %v3335 = vmul.f32 %v3278, %v1063
      %v3336 = vmul.f32 %v3282, %v1059
      %v3337 = vmul.f32 %v3282, %v1063
      %v3338 = vmul.f32 %v3286, %v1059
      %v3339 = vmul.f32 %v3286, %v1063
      %v3340 = vmul.f32 %v3290, %v1059
      %v3341 = vmul.f32 %v3290, %v1063
      %v3342 = vmul.f32 %v3294, %v1059
      %v3343 = vmul.f32 %v3294, %v1063
      %v3344 = vmul.f32 %v3298, %v1059
      %v3345 = vmul.f32 %v3298, %v1063
      %v3346 = vmul.f32 %v3302, %v1059
      %v3347 = vmul.f32 %v3302, %v1063
      %v3348 = vmul.f32 %v3306, %v1059
      %v3349 = vmul.f32 %v3306, %v1063
      %v3350 = vmul.f32 %v3310, %v1059
      %v3351 = vmul.f32 %v3310, %v1063
      %v3352 = vmul.f32 %v3314, %v1059
      %v3353 = vmul.f32 %v3314, %v1063
      %v3354 = vmul.f32 %v3318, %v1059
      %v3355 = vmul.f32 %v3318, %v1063
      %v3356 = vmul.f32 %v3322, %v1059
      %v3357 = vmul.f32 %v3322, %v1063
      %v3358 = vmul.f32 %v3326, %v1059
      %v3359 = vmul.f32 %v3326, %v1063
      %v3360 = vadd.f32 %v3232, %v3328
      %v3361 = vadd.f32 %v3233, %v3329
      %v3362 = vadd.f32 %v3234, %v3330
      %v3363 = vadd.f32 %v3235, %v3331
      %v3364 = vadd.f32 %v3236, %v3332
      %v3365 = vadd.f32 %v3237, %v3333
      %v3366 = vadd.f32 %v3238, %v3334
      %v3367 = vadd.f32 %v3239, %v3335
      %v3368 = vadd.f32 %v3240, %v3336
      %v3369 = vadd.f32 %v3241, %v3337
      %v3370 = vadd.f32 %v3242, %v3338
      %v3371 = vadd.f32 %v3243, %v3339
      %v3372 = vadd.f32 %v3244, %v3340
      %v3373 = vadd.f32 %v3245, %v3341
      %v3374 = vadd.f32 %v3246, %v3342
      %v3375 = vadd.f32 %v3247, %v3343
      %v3376 = vadd.f32 %v3248, %v3344
      %v3377 = vadd.f32 %v3249, %v3345
      %v3378 = vadd.f32 %v3250, %v3346
      %v3379 = vadd.f32 %v3251, %v3347
      %v3380 = vadd.f32 %v3252, %v3348
      %v3381 = vadd.f32 %v3253, %v3349
      %v3382 = vadd.f32 %v3254, %v3350
      %v3383 = vadd.f32 %v3255, %v3351
      %v3384 = vadd.f32 %v3256, %v3352
      %v3385 = vadd.f32 %v3257, %v3353
      %v3386 = vadd.f32 %v3258, %v3354
      %v3387 = vadd.f32 %v3259, %v3355
      %v3388 = vadd.f32 %v3260, %v3356
      %v3389 = vadd.f32 %v3261, %v3357
      %v3390 = vadd.f32 %v3262, %v3358
      %v3391 = vadd.f32 %v3263, %v3359
      %3392 = vset.pattern.permute.xlu0 7
      %3393 = vperm.xlu0 %3392, %v2496
      %v3394 = vpop.permute.xlu0 %3393
      %3396 = vset.pattern.permute.xlu0 7
      %3397 = vperm.xlu0 %3396, %v2497
      %v3398 = vpop.permute.xlu0 %3397
      %3400 = vset.pattern.permute.xlu0 7
      %3401 = vperm.xlu0 %3400, %v2498
      %v3402 = vpop.permute.xlu0 %3401
      %3404 = vset.pattern.permute.xlu0 7
      %3405 = vperm.xlu0 %3404, %v2499
      %v3406 = vpop.permute.xlu0 %3405
      %3408 = vset.pattern.permute.xlu0 7
      %3409 = vperm.xlu0 %3408, %v2500
      %v3410 = vpop.permute.xlu0 %3409
      %3412 = vset.pattern.permute.xlu0 7
      %3413 = vperm.xlu0 %3412, %v2501
      %v3414 = vpop.permute.xlu0 %3413
      %3416 = vset.pattern.permute.xlu0 7
      %3417 = vperm.xlu0 %3416, %v2502
      %v3418 = vpop.permute.xlu0 %3417
      %3420 = vset.pattern.permute.xlu0 7
      %3421 = vperm.xlu0 %3420, %v2503
      %v3422 = vpop.permute.xlu0 %3421
      %3424 = vset.pattern.permute.xlu0 7
      %3425 = vperm.xlu0 %3424, %v2504
      %v3426 = vpop.permute.xlu0 %3425
      %3428 = vset.pattern.permute.xlu0 7
      %3429 = vperm.xlu0 %3428, %v2505
      %v3430 = vpop.permute.xlu0 %3429
      %3432 = vset.pattern.permute.xlu0 7
      %3433 = vperm.xlu0 %3432, %v2506
      %v3434 = vpop.permute.xlu0 %3433
      %3436 = vset.pattern.permute.xlu0 7
      %3437 = vperm.xlu0 %3436, %v2507
      %v3438 = vpop.permute.xlu0 %3437
      %3440 = vset.pattern.permute.xlu0 7
      %3441 = vperm.xlu0 %3440, %v2508
      %v3442 = vpop.permute.xlu0 %3441
      %3444 = vset.pattern.permute.xlu0 7
      %3445 = vperm.xlu0 %3444, %v2509
      %v3446 = vpop.permute.xlu0 %3445
      %3448 = vset.pattern.permute.xlu0 7
      %3449 = vperm.xlu0 %3448, %v2510
      %v3450 = vpop.permute.xlu0 %3449
      %3452 = vset.pattern.permute.xlu0 7
      %3453 = vperm.xlu0 %3452, %v2511
      %v3454 = vpop.permute.xlu0 %3453
      %v3456 = vmul.f32 %v3394, %v1195
      %v3457 = vmul.f32 %v3394, %v1199
      %v3458 = vmul.f32 %v3398, %v1195
      %v3459 = vmul.f32 %v3398, %v1199
      %v3460 = vmul.f32 %v3402, %v1195
      %v3461 = vmul.f32 %v3402, %v1199
      %v3462 = vmul.f32 %v3406, %v1195
      %v3463 = vmul.f32 %v3406, %v1199
      %v3464 = vmul.f32 %v3410, %v1195
      %v3465 = vmul.f32 %v3410, %v1199
      %v3466 = vmul.f32 %v3414, %v1195
      %v3467 = vmul.f32 %v3414, %v1199
      %v3468 = vmul.f32 %v3418, %v1195
      %v3469 = vmul.f32 %v3418, %v1199
      %v3470 = vmul.f32 %v3422, %v1195
      %v3471 = vmul.f32 %v3422, %v1199
      %v3472 = vmul.f32 %v3426, %v1195
      %v3473 = vmul.f32 %v3426, %v1199
      %v3474 = vmul.f32 %v3430, %v1195
      %v3475 = vmul.f32 %v3430, %v1199
      %v3476 = vmul.f32 %v3434, %v1195
      %v3477 = vmul.f32 %v3434, %v1199
      %v3478 = vmul.f32 %v3438, %v1195
      %v3479 = vmul.f32 %v3438, %v1199
      %v3480 = vmul.f32 %v3442, %v1195
      %v3481 = vmul.f32 %v3442, %v1199
      %v3482 = vmul.f32 %v3446, %v1195
      %v3483 = vmul.f32 %v3446, %v1199
      %v3484 = vmul.f32 %v3450, %v1195
      %v3485 = vmul.f32 %v3450, %v1199
      %v3486 = vmul.f32 %v3454, %v1195
      %v3487 = vmul.f32 %v3454, %v1199
      %v3488 = vadd.f32 %v3360, %v3456
      %v3489 = vadd.f32 %v3361, %v3457
      %v3490 = vadd.f32 %v3362, %v3458
      %v3491 = vadd.f32 %v3363, %v3459
      %v3492 = vadd.f32 %v3364, %v3460
      %v3493 = vadd.f32 %v3365, %v3461
      %v3494 = vadd.f32 %v3366, %v3462
      %v3495 = vadd.f32 %v3367, %v3463
      %v3496 = vadd.f32 %v3368, %v3464
      %v3497 = vadd.f32 %v3369, %v3465
      %v3498 = vadd.f32 %v3370, %v3466
      %v3499 = vadd.f32 %v3371, %v3467
      %v3500 = vadd.f32 %v3372, %v3468
      %v3501 = vadd.f32 %v3373, %v3469
      %v3502 = vadd.f32 %v3374, %v3470
      %v3503 = vadd.f32 %v3375, %v3471
      %v3504 = vadd.f32 %v3376, %v3472
      %v3505 = vadd.f32 %v3377, %v3473
      %v3506 = vadd.f32 %v3378, %v3474
      %v3507 = vadd.f32 %v3379, %v3475
      %v3508 = vadd.f32 %v3380, %v3476
      %v3509 = vadd.f32 %v3381, %v3477
      %v3510 = vadd.f32 %v3382, %v3478
      %v3511 = vadd.f32 %v3383, %v3479
      %v3512 = vadd.f32 %v3384, %v3480
      %v3513 = vadd.f32 %v3385, %v3481
      %v3514 = vadd.f32 %v3386, %v3482
      %v3515 = vadd.f32 %v3387, %v3483
      %v3516 = vadd.f32 %v3388, %v3484
      %v3517 = vadd.f32 %v3389, %v3485
      %v3518 = vadd.f32 %v3390, %v3486
      %v3519 = vadd.f32 %v3391, %v3487
      %v3520 = vmax.f32 %v3488, 0.0
      %v3521 = vmax.f32 %v3489, 0.0
      %v3522 = vmax.f32 %v3490, 0.0
      %v3523 = vmax.f32 %v3491, 0.0
      %v3524 = vmax.f32 %v3492, 0.0
      %v3525 = vmax.f32 %v3493, 0.0
      %v3526 = vmax.f32 %v3494, 0.0
      %v3527 = vmax.f32 %v3495, 0.0
      %v3528 = vmax.f32 %v3496, 0.0
      %v3529 = vmax.f32 %v3497, 0.0
      %v3530 = vmax.f32 %v3498, 0.0
      %v3531 = vmax.f32 %v3499, 0.0
      %v3532 = vmax.f32 %v3500, 0.0
      %v3533 = vmax.f32 %v3501, 0.0
      %v3534 = vmax.f32 %v3502, 0.0
      %v3535 = vmax.f32 %v3503, 0.0
      %v3536 = vmax.f32 %v3504, 0.0
      %v3537 = vmax.f32 %v3505, 0.0
      %v3538 = vmax.f32 %v3506, 0.0
      %v3539 = vmax.f32 %v3507, 0.0
      %v3540 = vmax.f32 %v3508, 0.0
      %v3541 = vmax.f32 %v3509, 0.0
      %v3542 = vmax.f32 %v3510, 0.0
      %v3543 = vmax.f32 %v3511, 0.0
      %v3544 = vmax.f32 %v3512, 0.0
      %v3545 = vmax.f32 %v3513, 0.0
      %v3546 = vmax.f32 %v3514, 0.0
      %v3547 = vmax.f32 %v3515, 0.0
      %v3548 = vmax.f32 %v3516, 0.0
      %v3549 = vmax.f32 %v3517, 0.0
      %v3550 = vmax.f32 %v3518, 0.0
      %v3551 = vmax.f32 %v3519, 0.0
      %v3552 = vld [vmem:[%s2 + $0x10] sm:$0xff]
      %3553 = vmatprep.subr.mxu0 %v3521
      %3554 = vmatpush1.msra.mxu0 %v3520
      %3555 = vmatprep.subr.mxu0 %v3523
      %3556 = vmatpush1.msra.mxu0 %v3522
      %3557 = vmatprep.subr.mxu0 %v3525
      %3558 = vmatpush1.msra.mxu0 %v3524
      %3559 = vmatprep.subr.mxu0 %v3527
      %3560 = vmatpush1.msra.mxu0 %v3526
      %3561 = vmatprep.subr.mxu0 %v3529
      %3562 = vmatpush1.msra.mxu0 %v3528
      %3563 = vmatprep.subr.mxu0 %v3531
      %3564 = vmatpush1.msra.mxu0 %v3530
      %3565 = vmatprep.subr.mxu0 %v3533
      %3566 = vmatpush1.msra.mxu0 %v3532
      %3567 = vmatprep.subr.mxu0 %v3535
      %3568 = vmatpush1.msra.mxu0 %v3534
      %3569 = vmatprep.subr.mxu0 %v3537
      %3570 = vmatpush1.msra.mxu0 %v3536
      %3571 = vmatprep.subr.mxu0 %v3539
      %3572 = vmatpush1.msra.mxu0 %v3538
      %3573 = vmatprep.subr.mxu0 %v3541
      %3574 = vmatpush1.msra.mxu0 %v3540
      %3575 = vmatprep.subr.mxu0 %v3543
      %3576 = vmatpush1.msra.mxu0 %v3542
      %3577 = vmatprep.subr.mxu0 %v3545
      %3578 = vmatpush1.msra.mxu0 %v3544
      %3579 = vmatprep.subr.mxu0 %v3547
      %3580 = vmatpush1.msra.mxu0 %v3546
      %3581 = vmatprep.subr.mxu0 %v3549
      %3582 = vmatpush1.msra.mxu0 %v3548
      %3583 = vmatprep.subr.mxu0 %v3551
      %3584 = vmatpush1.msra.mxu0 %v3550
      %3585 = vmatprep.subr.mxu0 0.0
      %3586 = vmatpush1.msra.mxu0 0.0
      %3587 = vmatprep.subr.mxu0 0.0
      %3588 = vmatpush1.msra.mxu0 0.0
      %3589 = vmatprep.subr.mxu0 0.0
      %3590 = vmatpush1.msra.mxu0 0.0
      %3591 = vmatprep.subr.mxu0 0.0
      %3592 = vmatpush1.msra.mxu0 0.0
      %3593 = vmatprep.subr.mxu0 0.0
      %3594 = vmatpush1.msra.mxu0 0.0
      %3595 = vmatprep.subr.mxu0 0.0
      %3596 = vmatpush1.msra.mxu0 0.0
      %3597 = vmatprep.subr.mxu0 0.0
      %3598 = vmatpush1.msra.mxu0 0.0
      %3599 = vmatprep.subr.mxu0 0.0
      %3600 = vmatpush1.msra.mxu0 0.0
      %3601 = vmatprep.subr.mxu0 0.0
      %3602 = vmatpush1.msra.mxu0 0.0
      %3603 = vmatprep.subr.mxu0 0.0
      %3604 = vmatpush1.msra.mxu0 0.0
      %3605 = vmatprep.subr.mxu0 0.0
      %3606 = vmatpush1.msra.mxu0 0.0
      %3607 = vmatprep.subr.mxu0 0.0
      %3608 = vmatpush1.msra.mxu0 0.0
      %3609 = vmatprep.subr.mxu0 0.0
      %3610 = vmatpush1.msra.mxu0 0.0
      %3611 = vmatprep.subr.mxu0 0.0
      %3612 = vmatpush1.msra.mxu0 0.0
      %3613 = vmatprep.subr.mxu0 0.0
      %3614 = vmatpush1.msra.mxu0 0.0
      %3615 = vmatprep.subr.mxu0 0.0
      %3616 = vmatpush1.msra.mxu0 0.0
      %3617 = vmatprep.mubr.f32.mxu0 0.0
      %3618 = vmatmul.mubr.f32.gmra.mrb[0].mxu0 %v3552
      %v3619 = vpop.f32.mrb[0].mxu0
      %v3620 = vadd.f32 0.0, %v3619
      %v3621 = vpop.f32.mrb[0].mxu0
      %v3622 = vadd.f32 0.0, %v3621
      %3623 = vdwg.mxu0
      %v3624 = vadd.f32 %v2492, %v3620
      %v3625 = vadd.f32 %v2494, %v3622
      %v3626 = vld [vmem:[%s1 + $0x180] sm:$0xff]
      %v3627 = vld [vmem:[%s1 + $0x188] sm:$0xff]
      %v3628 = vld [vmem:[%s1 + $0x190] sm:$0xff]
      %v3629 = vld [vmem:[%s1 + $0x198] sm:$0xff]
      %v3630 = vld [vmem:[%s1 + $0x1a0] sm:$0xff]
      %v3631 = vld [vmem:[%s1 + $0x1a8] sm:$0xff]
      %v3632 = vld [vmem:[%s1 + $0x1b0] sm:$0xff]
      %v3633 = vld [vmem:[%s1 + $0x1b8] sm:$0xff]
      %v3634 = vld [vmem:[%s1 + $0x1c0] sm:$0xff]
      %v3635 = vld [vmem:[%s1 + $0x1c8] sm:$0xff]
      %v3636 = vld [vmem:[%s1 + $0x1d0] sm:$0xff]
      %v3637 = vld [vmem:[%s1 + $0x1d8] sm:$0xff]
      %v3638 = vld [vmem:[%s1 + $0x1e0] sm:$0xff]
      %v3639 = vld [vmem:[%s1 + $0x1e8] sm:$0xff]
      %v3640 = vld [vmem:[%s1 + $0x1f0] sm:$0xff]
      %v3641 = vld [vmem:[%s1 + $0x1f8] sm:$0xff]
      %3643 = vset.pattern.permute.xlu0 0
      %3644 = vperm.xlu0 %3643, %v3626
      %v3645 = vpop.permute.xlu0 %3644
      %3648 = vset.pattern.permute.xlu0 0
      %3649 = vperm.xlu0 %3648, %v3627
      %v3650 = vpop.permute.xlu0 %3649
      %3653 = vset.pattern.permute.xlu0 0
      %3654 = vperm.xlu0 %3653, %v3628
      %v3655 = vpop.permute.xlu0 %3654
      %3658 = vset.pattern.permute.xlu0 0
      %3659 = vperm.xlu0 %3658, %v3629
      %v3660 = vpop.permute.xlu0 %3659
      %3663 = vset.pattern.permute.xlu0 0
      %3664 = vperm.xlu0 %3663, %v3630
      %v3665 = vpop.permute.xlu0 %3664
      %3668 = vset.pattern.permute.xlu0 0
      %3669 = vperm.xlu0 %3668, %v3631
      %v3670 = vpop.permute.xlu0 %3669
      %3673 = vset.pattern.permute.xlu0 0
      %3674 = vperm.xlu0 %3673, %v3632
      %v3675 = vpop.permute.xlu0 %3674
      %3678 = vset.pattern.permute.xlu0 0
      %3679 = vperm.xlu0 %3678, %v3633
      %v3680 = vpop.permute.xlu0 %3679
      %3683 = vset.pattern.permute.xlu0 0
      %3684 = vperm.xlu0 %3683, %v3634
      %v3685 = vpop.permute.xlu0 %3684
      %3688 = vset.pattern.permute.xlu0 0
      %3689 = vperm.xlu0 %3688, %v3635
      %v3690 = vpop.permute.xlu0 %3689
      %3693 = vset.pattern.permute.xlu0 0
      %3694 = vperm.xlu0 %3693, %v3636
      %v3695 = vpop.permute.xlu0 %3694
      %3698 = vset.pattern.permute.xlu0 0
      %3699 = vperm.xlu0 %3698, %v3637
      %v3700 = vpop.permute.xlu0 %3699
      %3703 = vset.pattern.permute.xlu0 0
      %3704 = vperm.xlu0 %3703, %v3638
      %v3705 = vpop.permute.xlu0 %3704
      %3708 = vset.pattern.permute.xlu0 0
      %3709 = vperm.xlu0 %3708, %v3639
      %v3710 = vpop.permute.xlu0 %3709
      %3713 = vset.pattern.permute.xlu0 0
      %3714 = vperm.xlu0 %3713, %v3640
      %v3715 = vpop.permute.xlu0 %3714
      %3718 = vset.pattern.permute.xlu0 0
      %3719 = vperm.xlu0 %3718, %v3641
      %v3720 = vpop.permute.xlu0 %3719
      %v3722 = vmul.f32 %v3645, %v275
      %v3723 = vmul.f32 %v3645, %v279
      %v3724 = vmul.f32 %v3650, %v275
      %v3725 = vmul.f32 %v3650, %v279
      %v3726 = vmul.f32 %v3655, %v275
      %v3727 = vmul.f32 %v3655, %v279
      %v3728 = vmul.f32 %v3660, %v275
      %v3729 = vmul.f32 %v3660, %v279
      %v3730 = vmul.f32 %v3665, %v275
      %v3731 = vmul.f32 %v3665, %v279
      %v3732 = vmul.f32 %v3670, %v275
      %v3733 = vmul.f32 %v3670, %v279
      %v3734 = vmul.f32 %v3675, %v275
      %v3735 = vmul.f32 %v3675, %v279
      %v3736 = vmul.f32 %v3680, %v275
      %v3737 = vmul.f32 %v3680, %v279
      %v3738 = vmul.f32 %v3685, %v275
      %v3739 = vmul.f32 %v3685, %v279
      %v3740 = vmul.f32 %v3690, %v275
      %v3741 = vmul.f32 %v3690, %v279
      %v3742 = vmul.f32 %v3695, %v275
      %v3743 = vmul.f32 %v3695, %v279
      %v3744 = vmul.f32 %v3700, %v275
      %v3745 = vmul.f32 %v3700, %v279
      %v3746 = vmul.f32 %v3705, %v275
      %v3747 = vmul.f32 %v3705, %v279
      %v3748 = vmul.f32 %v3710, %v275
      %v3749 = vmul.f32 %v3710, %v279
      %v3750 = vmul.f32 %v3715, %v275
      %v3751 = vmul.f32 %v3715, %v279
      %v3752 = vmul.f32 %v3720, %v275
      %v3753 = vmul.f32 %v3720, %v279
      %3754 = vset.pattern.permute.xlu0 1
      %3755 = vperm.xlu0 %3754, %v3626
      %v3756 = vpop.permute.xlu0 %3755
      %3758 = vset.pattern.permute.xlu0 1
      %3759 = vperm.xlu0 %3758, %v3627
      %v3760 = vpop.permute.xlu0 %3759
      %3762 = vset.pattern.permute.xlu0 1
      %3763 = vperm.xlu0 %3762, %v3628
      %v3764 = vpop.permute.xlu0 %3763
      %3766 = vset.pattern.permute.xlu0 1
      %3767 = vperm.xlu0 %3766, %v3629
      %v3768 = vpop.permute.xlu0 %3767
      %3770 = vset.pattern.permute.xlu0 1
      %3771 = vperm.xlu0 %3770, %v3630
      %v3772 = vpop.permute.xlu0 %3771
      %3774 = vset.pattern.permute.xlu0 1
      %3775 = vperm.xlu0 %3774, %v3631
      %v3776 = vpop.permute.xlu0 %3775
      %3778 = vset.pattern.permute.xlu0 1
      %3779 = vperm.xlu0 %3778, %v3632
      %v3780 = vpop.permute.xlu0 %3779
      %3782 = vset.pattern.permute.xlu0 1
      %3783 = vperm.xlu0 %3782, %v3633
      %v3784 = vpop.permute.xlu0 %3783
      %3786 = vset.pattern.permute.xlu0 1
      %3787 = vperm.xlu0 %3786, %v3634
      %v3788 = vpop.permute.xlu0 %3787
      %3790 = vset.pattern.permute.xlu0 1
      %3791 = vperm.xlu0 %3790, %v3635
      %v3792 = vpop.permute.xlu0 %3791
      %3794 = vset.pattern.permute.xlu0 1
      %3795 = vperm.xlu0 %3794, %v3636
      %v3796 = vpop.permute.xlu0 %3795
      %3798 = vset.pattern.permute.xlu0 1
      %3799 = vperm.xlu0 %3798, %v3637
      %v3800 = vpop.permute.xlu0 %3799
      %3802 = vset.pattern.permute.xlu0 1
      %3803 = vperm.xlu0 %3802, %v3638
      %v3804 = vpop.permute.xlu0 %3803
      %3806 = vset.pattern.permute.xlu0 1
      %3807 = vperm.xlu0 %3806, %v3639
      %v3808 = vpop.permute.xlu0 %3807
      %3810 = vset.pattern.permute.xlu0 1
      %3811 = vperm.xlu0 %3810, %v3640
      %v3812 = vpop.permute.xlu0 %3811
      %3814 = vset.pattern.permute.xlu0 1
      %3815 = vperm.xlu0 %3814, %v3641
      %v3816 = vpop.permute.xlu0 %3815
      %v3818 = vmul.f32 %v3756, %v379
      %v3819 = vmul.f32 %v3756, %v383
      %v3820 = vmul.f32 %v3760, %v379
      %v3821 = vmul.f32 %v3760, %v383
      %v3822 = vmul.f32 %v3764, %v379
      %v3823 = vmul.f32 %v3764, %v383
      %v3824 = vmul.f32 %v3768, %v379
      %v3825 = vmul.f32 %v3768, %v383
      %v3826 = vmul.f32 %v3772, %v379
      %v3827 = vmul.f32 %v3772, %v383
      %v3828 = vmul.f32 %v3776, %v379
      %v3829 = vmul.f32 %v3776, %v383
      %v3830 = vmul.f32 %v3780, %v379
      %v3831 = vmul.f32 %v3780, %v383
      %v3832 = vmul.f32 %v3784, %v379
      %v3833 = vmul.f32 %v3784, %v383
      %v3834 = vmul.f32 %v3788, %v379
      %v3835 = vmul.f32 %v3788, %v383
      %v3836 = vmul.f32 %v3792, %v379
      %v3837 = vmul.f32 %v3792, %v383
      %v3838 = vmul.f32 %v3796, %v379
      %v3839 = vmul.f32 %v3796, %v383
      %v3840 = vmul.f32 %v3800, %v379
      %v3841 = vmul.f32 %v3800, %v383
      %v3842 = vmul.f32 %v3804, %v379
      %v3843 = vmul.f32 %v3804, %v383
      %v3844 = vmul.f32 %v3808, %v379
      %v3845 = vmul.f32 %v3808, %v383
      %v3846 = vmul.f32 %v3812, %v379
      %v3847 = vmul.f32 %v3812, %v383
      %v3848 = vmul.f32 %v3816, %v379
      %v3849 = vmul.f32 %v3816, %v383
      %v3850 = vadd.f32 %v3722, %v3818
      %v3851 = vadd.f32 %v3723, %v3819
      %v3852 = vadd.f32 %v3724, %v3820
      %v3853 = vadd.f32 %v3725, %v3821
      %v3854 = vadd.f32 %v3726, %v3822
      %v3855 = vadd.f32 %v3727, %v3823
      %v3856 = vadd.f32 %v3728, %v3824
      %v3857 = vadd.f32 %v3729, %v3825
      %v3858 = vadd.f32 %v3730, %v3826
      %v3859 = vadd.f32 %v3731, %v3827
      %v3860 = vadd.f32 %v3732, %v3828
      %v3861 = vadd.f32 %v3733, %v3829
      %v3862 = vadd.f32 %v3734, %v3830
      %v3863 = vadd.f32 %v3735, %v3831
      %v3864 = vadd.f32 %v3736, %v3832
      %v3865 = vadd.f32 %v3737, %v3833
      %v3866 = vadd.f32 %v3738, %v3834
      %v3867 = vadd.f32 %v3739, %v3835
      %v3868 = vadd.f32 %v3740, %v3836
      %v3869 = vadd.f32 %v3741, %v3837
      %v3870 = vadd.f32 %v3742, %v3838
      %v3871 = vadd.f32 %v3743, %v3839
      %v3872 = vadd.f32 %v3744, %v3840
      %v3873 = vadd.f32 %v3745, %v3841
      %v3874 = vadd.f32 %v3746, %v3842
      %v3875 = vadd.f32 %v3747, %v3843
      %v3876 = vadd.f32 %v3748, %v3844
      %v3877 = vadd.f32 %v3749, %v3845
      %v3878 = vadd.f32 %v3750, %v3846
      %v3879 = vadd.f32 %v3751, %v3847
      %v3880 = vadd.f32 %v3752, %v3848
      %v3881 = vadd.f32 %v3753, %v3849
      %3882 = vset.pattern.permute.xlu0 2
      %3883 = vperm.xlu0 %3882, %v3626
      %v3884 = vpop.permute.xlu0 %3883
      %3886 = vset.pattern.permute.xlu0 2
      %3887 = vperm.xlu0 %3886, %v3627
      %v3888 = vpop.permute.xlu0 %3887
      %3890 = vset.pattern.permute.xlu0 2
      %3891 = vperm.xlu0 %3890, %v3628
      %v3892 = vpop.permute.xlu0 %3891
      %3894 = vset.pattern.permute.xlu0 2
      %3895 = vperm.xlu0 %3894, %v3629
      %v3896 = vpop.permute.xlu0 %3895
      %3898 = vset.pattern.permute.xlu0 2
      %3899 = vperm.xlu0 %3898, %v3630
      %v3900 = vpop.permute.xlu0 %3899
      %3902 = vset.pattern.permute.xlu0 2
      %3903 = vperm.xlu0 %3902, %v3631
      %v3904 = vpop.permute.xlu0 %3903
      %3906 = vset.pattern.permute.xlu0 2
      %3907 = vperm.xlu0 %3906, %v3632
      %v3908 = vpop.permute.xlu0 %3907
      %3910 = vset.pattern.permute.xlu0 2
      %3911 = vperm.xlu0 %3910, %v3633
      %v3912 = vpop.permute.xlu0 %3911
      %3914 = vset.pattern.permute.xlu0 2
      %3915 = vperm.xlu0 %3914, %v3634
      %v3916 = vpop.permute.xlu0 %3915
      %3918 = vset.pattern.permute.xlu0 2
      %3919 = vperm.xlu0 %3918, %v3635
      %v3920 = vpop.permute.xlu0 %3919
      %3922 = vset.pattern.permute.xlu0 2
      %3923 = vperm.xlu0 %3922, %v3636
      %v3924 = vpop.permute.xlu0 %3923
      %3926 = vset.pattern.permute.xlu0 2
      %3927 = vperm.xlu0 %3926, %v3637
      %v3928 = vpop.permute.xlu0 %3927
      %3930 = vset.pattern.permute.xlu0 2
      %3931 = vperm.xlu0 %3930, %v3638
      %v3932 = vpop.permute.xlu0 %3931
      %3934 = vset.pattern.permute.xlu0 2
      %3935 = vperm.xlu0 %3934, %v3639
      %v3936 = vpop.permute.xlu0 %3935
      %3938 = vset.pattern.permute.xlu0 2
      %3939 = vperm.xlu0 %3938, %v3640
      %v3940 = vpop.permute.xlu0 %3939
      %3942 = vset.pattern.permute.xlu0 2
      %3943 = vperm.xlu0 %3942, %v3641
      %v3944 = vpop.permute.xlu0 %3943
      %v3946 = vmul.f32 %v3884, %v515
      %v3947 = vmul.f32 %v3884, %v519
      %v3948 = vmul.f32 %v3888, %v515
      %v3949 = vmul.f32 %v3888, %v519
      %v3950 = vmul.f32 %v3892, %v515
      %v3951 = vmul.f32 %v3892, %v519
      %v3952 = vmul.f32 %v3896, %v515
      %v3953 = vmul.f32 %v3896, %v519
      %v3954 = vmul.f32 %v3900, %v515
      %v3955 = vmul.f32 %v3900, %v519
      %v3956 = vmul.f32 %v3904, %v515
      %v3957 = vmul.f32 %v3904, %v519
      %v3958 = vmul.f32 %v3908, %v515
      %v3959 = vmul.f32 %v3908, %v519
      %v3960 = vmul.f32 %v3912, %v515
      %v3961 = vmul.f32 %v3912, %v519
      %v3962 = vmul.f32 %v3916, %v515
      %v3963 = vmul.f32 %v3916, %v519
      %v3964 = vmul.f32 %v3920, %v515
      %v3965 = vmul.f32 %v3920, %v519
      %v3966 = vmul.f32 %v3924, %v515
      %v3967 = vmul.f32 %v3924, %v519
      %v3968 = vmul.f32 %v3928, %v515
      %v3969 = vmul.f32 %v3928, %v519
      %v3970 = vmul.f32 %v3932, %v515
      %v3971 = vmul.f32 %v3932, %v519
      %v3972 = vmul.f32 %v3936, %v515
      %v3973 = vmul.f32 %v3936, %v519
      %v3974 = vmul.f32 %v3940, %v515
      %v3975 = vmul.f32 %v3940, %v519
      %v3976 = vmul.f32 %v3944, %v515
      %v3977 = vmul.f32 %v3944, %v519
      %v3978 = vadd.f32 %v3850, %v3946
      %v3979 = vadd.f32 %v3851, %v3947
      %v3980 = vadd.f32 %v3852, %v3948
      %v3981 = vadd.f32 %v3853, %v3949
      %v3982 = vadd.f32 %v3854, %v3950
      %v3983 = vadd.f32 %v3855, %v3951
      %v3984 = vadd.f32 %v3856, %v3952
      %v3985 = vadd.f32 %v3857, %v3953
      %v3986 = vadd.f32 %v3858, %v3954
      %v3987 = vadd.f32 %v3859, %v3955
      %v3988 = vadd.f32 %v3860, %v3956
      %v3989 = vadd.f32 %v3861, %v3957
      %v3990 = vadd.f32 %v3862, %v3958
      %v3991 = vadd.f32 %v3863, %v3959
      %v3992 = vadd.f32 %v3864, %v3960
      %v3993 = vadd.f32 %v3865, %v3961
      %v3994 = vadd.f32 %v3866, %v3962
      %v3995 = vadd.f32 %v3867, %v3963
      %v3996 = vadd.f32 %v3868, %v3964
      %v3997 = vadd.f32 %v3869, %v3965
      %v3998 = vadd.f32 %v3870, %v3966
      %v3999 = vadd.f32 %v3871, %v3967
      %v4000 = vadd.f32 %v3872, %v3968
      %v4001 = vadd.f32 %v3873, %v3969
      %v4002 = vadd.f32 %v3874, %v3970
      %v4003 = vadd.f32 %v3875, %v3971
      %v4004 = vadd.f32 %v3876, %v3972
      %v4005 = vadd.f32 %v3877, %v3973
      %v4006 = vadd.f32 %v3878, %v3974
      %v4007 = vadd.f32 %v3879, %v3975
      %v4008 = vadd.f32 %v3880, %v3976
      %v4009 = vadd.f32 %v3881, %v3977
      %4010 = vset.pattern.permute.xlu0 3
      %4011 = vperm.xlu0 %4010, %v3626
      %v4012 = vpop.permute.xlu0 %4011
      %4014 = vset.pattern.permute.xlu0 3
      %4015 = vperm.xlu0 %4014, %v3627
      %v4016 = vpop.permute.xlu0 %4015
      %4018 = vset.pattern.permute.xlu0 3
      %4019 = vperm.xlu0 %4018, %v3628
      %v4020 = vpop.permute.xlu0 %4019
      %4022 = vset.pattern.permute.xlu0 3
      %4023 = vperm.xlu0 %4022, %v3629
      %v4024 = vpop.permute.xlu0 %4023
      %4026 = vset.pattern.permute.xlu0 3
      %4027 = vperm.xlu0 %4026, %v3630
      %v4028 = vpop.permute.xlu0 %4027
      %4030 = vset.pattern.permute.xlu0 3
      %4031 = vperm.xlu0 %4030, %v3631
      %v4032 = vpop.permute.xlu0 %4031
      %4034 = vset.pattern.permute.xlu0 3
      %4035 = vperm.xlu0 %4034, %v3632
      %v4036 = vpop.permute.xlu0 %4035
      %4038 = vset.pattern.permute.xlu0 3
      %4039 = vperm.xlu0 %4038, %v3633
      %v4040 = vpop.permute.xlu0 %4039
      %4042 = vset.pattern.permute.xlu0 3
      %4043 = vperm.xlu0 %4042, %v3634
      %v4044 = vpop.permute.xlu0 %4043
      %4046 = vset.pattern.permute.xlu0 3
      %4047 = vperm.xlu0 %4046, %v3635
      %v4048 = vpop.permute.xlu0 %4047
      %4050 = vset.pattern.permute.xlu0 3
      %4051 = vperm.xlu0 %4050, %v3636
      %v4052 = vpop.permute.xlu0 %4051
      %4054 = vset.pattern.permute.xlu0 3
      %4055 = vperm.xlu0 %4054, %v3637
      %v4056 = vpop.permute.xlu0 %4055
      %4058 = vset.pattern.permute.xlu0 3
      %4059 = vperm.xlu0 %4058, %v3638
      %v4060 = vpop.permute.xlu0 %4059
      %4062 = vset.pattern.permute.xlu0 3
      %4063 = vperm.xlu0 %4062, %v3639
      %v4064 = vpop.permute.xlu0 %4063
      %4066 = vset.pattern.permute.xlu0 3
      %4067 = vperm.xlu0 %4066, %v3640
      %v4068 = vpop.permute.xlu0 %4067
      %4070 = vset.pattern.permute.xlu0 3
      %4071 = vperm.xlu0 %4070, %v3641
      %v4072 = vpop.permute.xlu0 %4071
      %v4074 = vmul.f32 %v4012, %v651
      %v4075 = vmul.f32 %v4012, %v655
      %v4076 = vmul.f32 %v4016, %v651
      %v4077 = vmul.f32 %v4016, %v655
      %v4078 = vmul.f32 %v4020, %v651
      %v4079 = vmul.f32 %v4020, %v655
      %v4080 = vmul.f32 %v4024, %v651
      %v4081 = vmul.f32 %v4024, %v655
      %v4082 = vmul.f32 %v4028, %v651
      %v4083 = vmul.f32 %v4028, %v655
      %v4084 = vmul.f32 %v4032, %v651
      %v4085 = vmul.f32 %v4032, %v655
      %v4086 = vmul.f32 %v4036, %v651
      %v4087 = vmul.f32 %v4036, %v655
      %v4088 = vmul.f32 %v4040, %v651
      %v4089 = vmul.f32 %v4040, %v655
      %v4090 = vmul.f32 %v4044, %v651
      %v4091 = vmul.f32 %v4044, %v655
      %v4092 = vmul.f32 %v4048, %v651
      %v4093 = vmul.f32 %v4048, %v655
      %v4094 = vmul.f32 %v4052, %v651
      %v4095 = vmul.f32 %v4052, %v655
      %v4096 = vmul.f32 %v4056, %v651
      %v4097 = vmul.f32 %v4056, %v655
      %v4098 = vmul.f32 %v4060, %v651
      %v4099 = vmul.f32 %v4060, %v655
      %v4100 = vmul.f32 %v4064, %v651
      %v4101 = vmul.f32 %v4064, %v655
      %v4102 = vmul.f32 %v4068, %v651
      %v4103 = vmul.f32 %v4068, %v655
      %v4104 = vmul.f32 %v4072, %v651
      %v4105 = vmul.f32 %v4072, %v655
      %v4106 = vadd.f32 %v3978, %v4074
      %v4107 = vadd.f32 %v3979, %v4075
      %v4108 = vadd.f32 %v3980, %v4076
      %v4109 = vadd.f32 %v3981, %v4077
      %v4110 = vadd.f32 %v3982, %v4078
      %v4111 = vadd.f32 %v3983, %v4079
      %v4112 = vadd.f32 %v3984, %v4080
      %v4113 = vadd.f32 %v3985, %v4081
      %v4114 = vadd.f32 %v3986, %v4082
      %v4115 = vadd.f32 %v3987, %v4083
      %v4116 = vadd.f32 %v3988, %v4084
      %v4117 = vadd.f32 %v3989, %v4085
      %v4118 = vadd.f32 %v3990, %v4086
      %v4119 = vadd.f32 %v3991, %v4087
      %v4120 = vadd.f32 %v3992, %v4088
      %v4121 = vadd.f32 %v3993, %v4089
      %v4122 = vadd.f32 %v3994, %v4090
      %v4123 = vadd.f32 %v3995, %v4091
      %v4124 = vadd.f32 %v3996, %v4092
      %v4125 = vadd.f32 %v3997, %v4093
      %v4126 = vadd.f32 %v3998, %v4094
      %v4127 = vadd.f32 %v3999, %v4095
      %v4128 = vadd.f32 %v4000, %v4096
      %v4129 = vadd.f32 %v4001, %v4097
      %v4130 = vadd.f32 %v4002, %v4098
      %v4131 = vadd.f32 %v4003, %v4099
      %v4132 = vadd.f32 %v4004, %v4100
      %v4133 = vadd.f32 %v4005, %v4101
      %v4134 = vadd.f32 %v4006, %v4102
      %v4135 = vadd.f32 %v4007, %v4103
      %v4136 = vadd.f32 %v4008, %v4104
      %v4137 = vadd.f32 %v4009, %v4105
      %4138 = vset.pattern.permute.xlu0 4
      %4139 = vperm.xlu0 %4138, %v3626
      %v4140 = vpop.permute.xlu0 %4139
      %4142 = vset.pattern.permute.xlu0 4
      %4143 = vperm.xlu0 %4142, %v3627
      %v4144 = vpop.permute.xlu0 %4143
      %4146 = vset.pattern.permute.xlu0 4
      %4147 = vperm.xlu0 %4146, %v3628
      %v4148 = vpop.permute.xlu0 %4147
      %4150 = vset.pattern.permute.xlu0 4
      %4151 = vperm.xlu0 %4150, %v3629
      %v4152 = vpop.permute.xlu0 %4151
      %4154 = vset.pattern.permute.xlu0 4
      %4155 = vperm.xlu0 %4154, %v3630
      %v4156 = vpop.permute.xlu0 %4155
      %4158 = vset.pattern.permute.xlu0 4
      %4159 = vperm.xlu0 %4158, %v3631
      %v4160 = vpop.permute.xlu0 %4159
      %4162 = vset.pattern.permute.xlu0 4
      %4163 = vperm.xlu0 %4162, %v3632
      %v4164 = vpop.permute.xlu0 %4163
      %4166 = vset.pattern.permute.xlu0 4
      %4167 = vperm.xlu0 %4166, %v3633
      %v4168 = vpop.permute.xlu0 %4167
      %4170 = vset.pattern.permute.xlu0 4
      %4171 = vperm.xlu0 %4170, %v3634
      %v4172 = vpop.permute.xlu0 %4171
      %4174 = vset.pattern.permute.xlu0 4
      %4175 = vperm.xlu0 %4174, %v3635
      %v4176 = vpop.permute.xlu0 %4175
      %4178 = vset.pattern.permute.xlu0 4
      %4179 = vperm.xlu0 %4178, %v3636
      %v4180 = vpop.permute.xlu0 %4179
      %4182 = vset.pattern.permute.xlu0 4
      %4183 = vperm.xlu0 %4182, %v3637
      %v4184 = vpop.permute.xlu0 %4183
      %4186 = vset.pattern.permute.xlu0 4
      %4187 = vperm.xlu0 %4186, %v3638
      %v4188 = vpop.permute.xlu0 %4187
      %4190 = vset.pattern.permute.xlu0 4
      %4191 = vperm.xlu0 %4190, %v3639
      %v4192 = vpop.permute.xlu0 %4191
      %4194 = vset.pattern.permute.xlu0 4
      %4195 = vperm.xlu0 %4194, %v3640
      %v4196 = vpop.permute.xlu0 %4195
      %4198 = vset.pattern.permute.xlu0 4
      %4199 = vperm.xlu0 %4198, %v3641
      %v4200 = vpop.permute.xlu0 %4199
      %v4202 = vmul.f32 %v4140, %v787
      %v4203 = vmul.f32 %v4140, %v791
      %v4204 = vmul.f32 %v4144, %v787
      %v4205 = vmul.f32 %v4144, %v791
      %v4206 = vmul.f32 %v4148, %v787
      %v4207 = vmul.f32 %v4148, %v791
      %v4208 = vmul.f32 %v4152, %v787
      %v4209 = vmul.f32 %v4152, %v791
      %v4210 = vmul.f32 %v4156, %v787
      %v4211 = vmul.f32 %v4156, %v791
      %v4212 = vmul.f32 %v4160, %v787
      %v4213 = vmul.f32 %v4160, %v791
      %v4214 = vmul.f32 %v4164, %v787
      %v4215 = vmul.f32 %v4164, %v791
      %v4216 = vmul.f32 %v4168, %v787
      %v4217 = vmul.f32 %v4168, %v791
      %v4218 = vmul.f32 %v4172, %v787
      %v4219 = vmul.f32 %v4172, %v791
      %v4220 = vmul.f32 %v4176, %v787
      %v4221 = vmul.f32 %v4176, %v791
      %v4222 = vmul.f32 %v4180, %v787
      %v4223 = vmul.f32 %v4180, %v791
      %v4224 = vmul.f32 %v4184, %v787
      %v4225 = vmul.f32 %v4184, %v791
      %v4226 = vmul.f32 %v4188, %v787
      %v4227 = vmul.f32 %v4188, %v791
      %v4228 = vmul.f32 %v4192, %v787
      %v4229 = vmul.f32 %v4192, %v791
      %v4230 = vmul.f32 %v4196, %v787
      %v4231 = vmul.f32 %v4196, %v791
      %v4232 = vmul.f32 %v4200, %v787
      %v4233 = vmul.f32 %v4200, %v791
      %v4234 = vadd.f32 %v4106, %v4202
      %v4235 = vadd.f32 %v4107, %v4203
      %v4236 = vadd.f32 %v4108, %v4204
      %v4237 = vadd.f32 %v4109, %v4205
      %v4238 = vadd.f32 %v4110, %v4206
      %v4239 = vadd.f32 %v4111, %v4207
      %v4240 = vadd.f32 %v4112, %v4208
      %v4241 = vadd.f32 %v4113, %v4209
      %v4242 = vadd.f32 %v4114, %v4210
      %v4243 = vadd.f32 %v4115, %v4211
      %v4244 = vadd.f32 %v4116, %v4212
      %v4245 = vadd.f32 %v4117, %v4213
      %v4246 = vadd.f32 %v4118, %v4214
      %v4247 = vadd.f32 %v4119, %v4215
      %v4248 = vadd.f32 %v4120, %v4216
      %v4249 = vadd.f32 %v4121, %v4217
      %v4250 = vadd.f32 %v4122, %v4218
      %v4251 = vadd.f32 %v4123, %v4219
      %v4252 = vadd.f32 %v4124, %v4220
      %v4253 = vadd.f32 %v4125, %v4221
      %v4254 = vadd.f32 %v4126, %v4222
      %v4255 = vadd.f32 %v4127, %v4223
      %v4256 = vadd.f32 %v4128, %v4224
      %v4257 = vadd.f32 %v4129, %v4225
      %v4258 = vadd.f32 %v4130, %v4226
      %v4259 = vadd.f32 %v4131, %v4227
      %v4260 = vadd.f32 %v4132, %v4228
      %v4261 = vadd.f32 %v4133, %v4229
      %v4262 = vadd.f32 %v4134, %v4230
      %v4263 = vadd.f32 %v4135, %v4231
      %v4264 = vadd.f32 %v4136, %v4232
      %v4265 = vadd.f32 %v4137, %v4233
      %4266 = vset.pattern.permute.xlu0 5
      %4267 = vperm.xlu0 %4266, %v3626
      %v4268 = vpop.permute.xlu0 %4267
      %4270 = vset.pattern.permute.xlu0 5
      %4271 = vperm.xlu0 %4270, %v3627
      %v4272 = vpop.permute.xlu0 %4271
      %4274 = vset.pattern.permute.xlu0 5
      %4275 = vperm.xlu0 %4274, %v3628
      %v4276 = vpop.permute.xlu0 %4275
      %4278 = vset.pattern.permute.xlu0 5
      %4279 = vperm.xlu0 %4278, %v3629
      %v4280 = vpop.permute.xlu0 %4279
      %4282 = vset.pattern.permute.xlu0 5
      %4283 = vperm.xlu0 %4282, %v3630
      %v4284 = vpop.permute.xlu0 %4283
      %4286 = vset.pattern.permute.xlu0 5
      %4287 = vperm.xlu0 %4286, %v3631
      %v4288 = vpop.permute.xlu0 %4287
      %4290 = vset.pattern.permute.xlu0 5
      %4291 = vperm.xlu0 %4290, %v3632
      %v4292 = vpop.permute.xlu0 %4291
      %4294 = vset.pattern.permute.xlu0 5
      %4295 = vperm.xlu0 %4294, %v3633
      %v4296 = vpop.permute.xlu0 %4295
      %4298 = vset.pattern.permute.xlu0 5
      %4299 = vperm.xlu0 %4298, %v3634
      %v4300 = vpop.permute.xlu0 %4299
      %4302 = vset.pattern.permute.xlu0 5
      %4303 = vperm.xlu0 %4302, %v3635
      %v4304 = vpop.permute.xlu0 %4303
      %4306 = vset.pattern.permute.xlu0 5
      %4307 = vperm.xlu0 %4306, %v3636
      %v4308 = vpop.permute.xlu0 %4307
      %4310 = vset.pattern.permute.xlu0 5
      %4311 = vperm.xlu0 %4310, %v3637
      %v4312 = vpop.permute.xlu0 %4311
      %4314 = vset.pattern.permute.xlu0 5
      %4315 = vperm.xlu0 %4314, %v3638
      %v4316 = vpop.permute.xlu0 %4315
      %4318 = vset.pattern.permute.xlu0 5
      %4319 = vperm.xlu0 %4318, %v3639
      %v4320 = vpop.permute.xlu0 %4319
      %4322 = vset.pattern.permute.xlu0 5
      %4323 = vperm.xlu0 %4322, %v3640
      %v4324 = vpop.permute.xlu0 %4323
      %4326 = vset.pattern.permute.xlu0 5
      %4327 = vperm.xlu0 %4326, %v3641
      %v4328 = vpop.permute.xlu0 %4327
      %v4330 = vmul.f32 %v4268, %v923
      %v4331 = vmul.f32 %v4268, %v927
      %v4332 = vmul.f32 %v4272, %v923
      %v4333 = vmul.f32 %v4272, %v927
      %v4334 = vmul.f32 %v4276, %v923
      %v4335 = vmul.f32 %v4276, %v927
      %v4336 = vmul.f32 %v4280, %v923
      %v4337 = vmul.f32 %v4280, %v927
      %v4338 = vmul.f32 %v4284, %v923
      %v4339 = vmul.f32 %v4284, %v927
      %v4340 = vmul.f32 %v4288, %v923
      %v4341 = vmul.f32 %v4288, %v927
      %v4342 = vmul.f32 %v4292, %v923
      %v4343 = vmul.f32 %v4292, %v927
      %v4344 = vmul.f32 %v4296, %v923
      %v4345 = vmul.f32 %v4296, %v927
      %v4346 = vmul.f32 %v4300, %v923
      %v4347 = vmul.f32 %v4300, %v927
      %v4348 = vmul.f32 %v4304, %v923
      %v4349 = vmul.f32 %v4304, %v927
      %v4350 = vmul.f32 %v4308, %v923
      %v4351 = vmul.f32 %v4308, %v927
      %v4352 = vmul.f32 %v4312, %v923
      %v4353 = vmul.f32 %v4312, %v927
      %v4354 = vmul.f32 %v4316, %v923
      %v4355 = vmul.f32 %v4316, %v927
      %v4356 = vmul.f32 %v4320, %v923
      %v4357 = vmul.f32 %v4320, %v927
      %v4358 = vmul.f32 %v4324, %v923
      %v4359 = vmul.f32 %v4324, %v927
      %v4360 = vmul.f32 %v4328, %v923
      %v4361 = vmul.f32 %v4328, %v927
      %v4362 = vadd.f32 %v4234, %v4330
      %v4363 = vadd.f32 %v4235, %v4331
      %v4364 = vadd.f32 %v4236, %v4332
      %v4365 = vadd.f32 %v4237, %v4333
      %v4366 = vadd.f32 %v4238, %v4334
      %v4367 = vadd.f32 %v4239, %v4335
      %v4368 = vadd.f32 %v4240, %v4336
      %v4369 = vadd.f32 %v4241, %v4337
      %v4370 = vadd.f32 %v4242, %v4338
      %v4371 = vadd.f32 %v4243, %v4339
      %v4372 = vadd.f32 %v4244, %v4340
      %v4373 = vadd.f32 %v4245, %v4341
      %v4374 = vadd.f32 %v4246, %v4342
      %v4375 = vadd.f32 %v4247, %v4343
      %v4376 = vadd.f32 %v4248, %v4344
      %v4377 = vadd.f32 %v4249, %v4345
      %v4378 = vadd.f32 %v4250, %v4346
      %v4379 = vadd.f32 %v4251, %v4347
      %v4380 = vadd.f32 %v4252, %v4348
      %v4381 = vadd.f32 %v4253, %v4349
      %v4382 = vadd.f32 %v4254, %v4350
      %v4383 = vadd.f32 %v4255, %v4351
      %v4384 = vadd.f32 %v4256, %v4352
      %v4385 = vadd.f32 %v4257, %v4353
      %v4386 = vadd.f32 %v4258, %v4354
      %v4387 = vadd.f32 %v4259, %v4355
      %v4388 = vadd.f32 %v4260, %v4356
      %v4389 = vadd.f32 %v4261, %v4357
      %v4390 = vadd.f32 %v4262, %v4358
      %v4391 = vadd.f32 %v4263, %v4359
      %v4392 = vadd.f32 %v4264, %v4360
      %v4393 = vadd.f32 %v4265, %v4361
      %4394 = vset.pattern.permute.xlu0 6
      %4395 = vperm.xlu0 %4394, %v3626
      %v4396 = vpop.permute.xlu0 %4395
      %4398 = vset.pattern.permute.xlu0 6
      %4399 = vperm.xlu0 %4398, %v3627
      %v4400 = vpop.permute.xlu0 %4399
      %4402 = vset.pattern.permute.xlu0 6
      %4403 = vperm.xlu0 %4402, %v3628
      %v4404 = vpop.permute.xlu0 %4403
      %4406 = vset.pattern.permute.xlu0 6
      %4407 = vperm.xlu0 %4406, %v3629
      %v4408 = vpop.permute.xlu0 %4407
      %4410 = vset.pattern.permute.xlu0 6
      %4411 = vperm.xlu0 %4410, %v3630
      %v4412 = vpop.permute.xlu0 %4411
      %4414 = vset.pattern.permute.xlu0 6
      %4415 = vperm.xlu0 %4414, %v3631
      %v4416 = vpop.permute.xlu0 %4415
      %4418 = vset.pattern.permute.xlu0 6
      %4419 = vperm.xlu0 %4418, %v3632
      %v4420 = vpop.permute.xlu0 %4419
      %4422 = vset.pattern.permute.xlu0 6
      %4423 = vperm.xlu0 %4422, %v3633
      %v4424 = vpop.permute.xlu0 %4423
      %4426 = vset.pattern.permute.xlu0 6
      %4427 = vperm.xlu0 %4426, %v3634
      %v4428 = vpop.permute.xlu0 %4427
      %4430 = vset.pattern.permute.xlu0 6
      %4431 = vperm.xlu0 %4430, %v3635
      %v4432 = vpop.permute.xlu0 %4431
      %4434 = vset.pattern.permute.xlu0 6
      %4435 = vperm.xlu0 %4434, %v3636
      %v4436 = vpop.permute.xlu0 %4435
      %4438 = vset.pattern.permute.xlu0 6
      %4439 = vperm.xlu0 %4438, %v3637
      %v4440 = vpop.permute.xlu0 %4439
      %4442 = vset.pattern.permute.xlu0 6
      %4443 = vperm.xlu0 %4442, %v3638
      %v4444 = vpop.permute.xlu0 %4443
      %4446 = vset.pattern.permute.xlu0 6
      %4447 = vperm.xlu0 %4446, %v3639
      %v4448 = vpop.permute.xlu0 %4447
      %4450 = vset.pattern.permute.xlu0 6
      %4451 = vperm.xlu0 %4450, %v3640
      %v4452 = vpop.permute.xlu0 %4451
      %4454 = vset.pattern.permute.xlu0 6
      %4455 = vperm.xlu0 %4454, %v3641
      %v4456 = vpop.permute.xlu0 %4455
      %v4458 = vmul.f32 %v4396, %v1059
      %v4459 = vmul.f32 %v4396, %v1063
      %v4460 = vmul.f32 %v4400, %v1059
      %v4461 = vmul.f32 %v4400, %v1063
      %v4462 = vmul.f32 %v4404, %v1059
      %v4463 = vmul.f32 %v4404, %v1063
      %v4464 = vmul.f32 %v4408, %v1059
      %v4465 = vmul.f32 %v4408, %v1063
      %v4466 = vmul.f32 %v4412, %v1059
      %v4467 = vmul.f32 %v4412, %v1063
      %v4468 = vmul.f32 %v4416, %v1059
      %v4469 = vmul.f32 %v4416, %v1063
      %v4470 = vmul.f32 %v4420, %v1059
      %v4471 = vmul.f32 %v4420, %v1063
      %v4472 = vmul.f32 %v4424, %v1059
      %v4473 = vmul.f32 %v4424, %v1063
      %v4474 = vmul.f32 %v4428, %v1059
      %v4475 = vmul.f32 %v4428, %v1063
      %v4476 = vmul.f32 %v4432, %v1059
      %v4477 = vmul.f32 %v4432, %v1063
      %v4478 = vmul.f32 %v4436, %v1059
      %v4479 = vmul.f32 %v4436, %v1063
      %v4480 = vmul.f32 %v4440, %v1059
      %v4481 = vmul.f32 %v4440, %v1063
      %v4482 = vmul.f32 %v4444, %v1059
      %v4483 = vmul.f32 %v4444, %v1063
      %v4484 = vmul.f32 %v4448, %v1059
      %v4485 = vmul.f32 %v4448, %v1063
      %v4486 = vmul.f32 %v4452, %v1059
      %v4487 = vmul.f32 %v4452, %v1063
      %v4488 = vmul.f32 %v4456, %v1059
      %v4489 = vmul.f32 %v4456, %v1063
      %v4490 = vadd.f32 %v4362, %v4458
      %v4491 = vadd.f32 %v4363, %v4459
      %v4492 = vadd.f32 %v4364, %v4460
      %v4493 = vadd.f32 %v4365, %v4461
      %v4494 = vadd.f32 %v4366, %v4462
      %v4495 = vadd.f32 %v4367, %v4463
      %v4496 = vadd.f32 %v4368, %v4464
      %v4497 = vadd.f32 %v4369, %v4465
      %v4498 = vadd.f32 %v4370, %v4466
      %v4499 = vadd.f32 %v4371, %v4467
      %v4500 = vadd.f32 %v4372, %v4468
      %v4501 = vadd.f32 %v4373, %v4469
      %v4502 = vadd.f32 %v4374, %v4470
      %v4503 = vadd.f32 %v4375, %v4471
      %v4504 = vadd.f32 %v4376, %v4472
      %v4505 = vadd.f32 %v4377, %v4473
      %v4506 = vadd.f32 %v4378, %v4474
      %v4507 = vadd.f32 %v4379, %v4475
      %v4508 = vadd.f32 %v4380, %v4476
      %v4509 = vadd.f32 %v4381, %v4477
      %v4510 = vadd.f32 %v4382, %v4478
      %v4511 = vadd.f32 %v4383, %v4479
      %v4512 = vadd.f32 %v4384, %v4480
      %v4513 = vadd.f32 %v4385, %v4481
      %v4514 = vadd.f32 %v4386, %v4482
      %v4515 = vadd.f32 %v4387, %v4483
      %v4516 = vadd.f32 %v4388, %v4484
      %v4517 = vadd.f32 %v4389, %v4485
      %v4518 = vadd.f32 %v4390, %v4486
      %v4519 = vadd.f32 %v4391, %v4487
      %v4520 = vadd.f32 %v4392, %v4488
      %v4521 = vadd.f32 %v4393, %v4489
      %4522 = vset.pattern.permute.xlu0 7
      %4523 = vperm.xlu0 %4522, %v3626
      %v4524 = vpop.permute.xlu0 %4523
      %4526 = vset.pattern.permute.xlu0 7
      %4527 = vperm.xlu0 %4526, %v3627
      %v4528 = vpop.permute.xlu0 %4527
      %4530 = vset.pattern.permute.xlu0 7
      %4531 = vperm.xlu0 %4530, %v3628
      %v4532 = vpop.permute.xlu0 %4531
      %4534 = vset.pattern.permute.xlu0 7
      %4535 = vperm.xlu0 %4534, %v3629
      %v4536 = vpop.permute.xlu0 %4535
      %4538 = vset.pattern.permute.xlu0 7
      %4539 = vperm.xlu0 %4538, %v3630
      %v4540 = vpop.permute.xlu0 %4539
      %4542 = vset.pattern.permute.xlu0 7
      %4543 = vperm.xlu0 %4542, %v3631
      %v4544 = vpop.permute.xlu0 %4543
      %4546 = vset.pattern.permute.xlu0 7
      %4547 = vperm.xlu0 %4546, %v3632
      %v4548 = vpop.permute.xlu0 %4547
      %4550 = vset.pattern.permute.xlu0 7
      %4551 = vperm.xlu0 %4550, %v3633
      %v4552 = vpop.permute.xlu0 %4551
      %4554 = vset.pattern.permute.xlu0 7
      %4555 = vperm.xlu0 %4554, %v3634
      %v4556 = vpop.permute.xlu0 %4555
      %4558 = vset.pattern.permute.xlu0 7
      %4559 = vperm.xlu0 %4558, %v3635
      %v4560 = vpop.permute.xlu0 %4559
      %4562 = vset.pattern.permute.xlu0 7
      %4563 = vperm.xlu0 %4562, %v3636
      %v4564 = vpop.permute.xlu0 %4563
      %4566 = vset.pattern.permute.xlu0 7
      %4567 = vperm.xlu0 %4566, %v3637
      %v4568 = vpop.permute.xlu0 %4567
      %4570 = vset.pattern.permute.xlu0 7
      %4571 = vperm.xlu0 %4570, %v3638
      %v4572 = vpop.permute.xlu0 %4571
      %4574 = vset.pattern.permute.xlu0 7
      %4575 = vperm.xlu0 %4574, %v3639
      %v4576 = vpop.permute.xlu0 %4575
      %4578 = vset.pattern.permute.xlu0 7
      %4579 = vperm.xlu0 %4578, %v3640
      %v4580 = vpop.permute.xlu0 %4579
      %4582 = vset.pattern.permute.xlu0 7
      %4583 = vperm.xlu0 %4582, %v3641
      %v4584 = vpop.permute.xlu0 %4583
      %v4586 = vmul.f32 %v4524, %v1195
      %v4587 = vmul.f32 %v4524, %v1199
      %v4588 = vmul.f32 %v4528, %v1195
      %v4589 = vmul.f32 %v4528, %v1199
      %v4590 = vmul.f32 %v4532, %v1195
      %v4591 = vmul.f32 %v4532, %v1199
      %v4592 = vmul.f32 %v4536, %v1195
      %v4593 = vmul.f32 %v4536, %v1199
      %v4594 = vmul.f32 %v4540, %v1195
      %v4595 = vmul.f32 %v4540, %v1199
      %v4596 = vmul.f32 %v4544, %v1195
      %v4597 = vmul.f32 %v4544, %v1199
      %v4598 = vmul.f32 %v4548, %v1195
      %v4599 = vmul.f32 %v4548, %v1199
      %v4600 = vmul.f32 %v4552, %v1195
      %v4601 = vmul.f32 %v4552, %v1199
      %v4602 = vmul.f32 %v4556, %v1195
      %v4603 = vmul.f32 %v4556, %v1199
      %v4604 = vmul.f32 %v4560, %v1195
      %v4605 = vmul.f32 %v4560, %v1199
      %v4606 = vmul.f32 %v4564, %v1195
      %v4607 = vmul.f32 %v4564, %v1199
      %v4608 = vmul.f32 %v4568, %v1195
      %v4609 = vmul.f32 %v4568, %v1199
      %v4610 = vmul.f32 %v4572, %v1195
      %v4611 = vmul.f32 %v4572, %v1199
      %v4612 = vmul.f32 %v4576, %v1195
      %v4613 = vmul.f32 %v4576, %v1199
      %v4614 = vmul.f32 %v4580, %v1195
      %v4615 = vmul.f32 %v4580, %v1199
      %v4616 = vmul.f32 %v4584, %v1195
      %v4617 = vmul.f32 %v4584, %v1199
      %v4618 = vadd.f32 %v4490, %v4586
      %v4619 = vadd.f32 %v4491, %v4587
      %v4620 = vadd.f32 %v4492, %v4588
      %v4621 = vadd.f32 %v4493, %v4589
      %v4622 = vadd.f32 %v4494, %v4590
      %v4623 = vadd.f32 %v4495, %v4591
      %v4624 = vadd.f32 %v4496, %v4592
      %v4625 = vadd.f32 %v4497, %v4593
      %v4626 = vadd.f32 %v4498, %v4594
      %v4627 = vadd.f32 %v4499, %v4595
      %v4628 = vadd.f32 %v4500, %v4596
      %v4629 = vadd.f32 %v4501, %v4597
      %v4630 = vadd.f32 %v4502, %v4598
      %v4631 = vadd.f32 %v4503, %v4599
      %v4632 = vadd.f32 %v4504, %v4600
      %v4633 = vadd.f32 %v4505, %v4601
      %v4634 = vadd.f32 %v4506, %v4602
      %v4635 = vadd.f32 %v4507, %v4603
      %v4636 = vadd.f32 %v4508, %v4604
      %v4637 = vadd.f32 %v4509, %v4605
      %v4638 = vadd.f32 %v4510, %v4606
      %v4639 = vadd.f32 %v4511, %v4607
      %v4640 = vadd.f32 %v4512, %v4608
      %v4641 = vadd.f32 %v4513, %v4609
      %v4642 = vadd.f32 %v4514, %v4610
      %v4643 = vadd.f32 %v4515, %v4611
      %v4644 = vadd.f32 %v4516, %v4612
      %v4645 = vadd.f32 %v4517, %v4613
      %v4646 = vadd.f32 %v4518, %v4614
      %v4647 = vadd.f32 %v4519, %v4615
      %v4648 = vadd.f32 %v4520, %v4616
      %v4649 = vadd.f32 %v4521, %v4617
      %v4650 = vmax.f32 %v4618, 0.0
      %v4651 = vmax.f32 %v4619, 0.0
      %v4652 = vmax.f32 %v4620, 0.0
      %v4653 = vmax.f32 %v4621, 0.0
      %v4654 = vmax.f32 %v4622, 0.0
      %v4655 = vmax.f32 %v4623, 0.0
      %v4656 = vmax.f32 %v4624, 0.0
      %v4657 = vmax.f32 %v4625, 0.0
      %v4658 = vmax.f32 %v4626, 0.0
      %v4659 = vmax.f32 %v4627, 0.0
      %v4660 = vmax.f32 %v4628, 0.0
      %v4661 = vmax.f32 %v4629, 0.0
      %v4662 = vmax.f32 %v4630, 0.0
      %v4663 = vmax.f32 %v4631, 0.0
      %v4664 = vmax.f32 %v4632, 0.0
      %v4665 = vmax.f32 %v4633, 0.0
      %v4666 = vmax.f32 %v4634, 0.0
      %v4667 = vmax.f32 %v4635, 0.0
      %v4668 = vmax.f32 %v4636, 0.0
      %v4669 = vmax.f32 %v4637, 0.0
      %v4670 = vmax.f32 %v4638, 0.0
      %v4671 = vmax.f32 %v4639, 0.0
      %v4672 = vmax.f32 %v4640, 0.0
      %v4673 = vmax.f32 %v4641, 0.0
      %v4674 = vmax.f32 %v4642, 0.0
      %v4675 = vmax.f32 %v4643, 0.0
      %v4676 = vmax.f32 %v4644, 0.0
      %v4677 = vmax.f32 %v4645, 0.0
      %v4678 = vmax.f32 %v4646, 0.0
      %v4679 = vmax.f32 %v4647, 0.0
      %v4680 = vmax.f32 %v4648, 0.0
      %v4681 = vmax.f32 %v4649, 0.0
      %v4682 = vld [vmem:[%s2 + $0x18] sm:$0xff]
      %4683 = vmatprep.subr.mxu0 %v4651
      %4684 = vmatpush1.msra.mxu0 %v4650
      %4685 = vmatprep.subr.mxu0 %v4653
      %4686 = vmatpush1.msra.mxu0 %v4652
      %4687 = vmatprep.subr.mxu0 %v4655
      %4688 = vmatpush1.msra.mxu0 %v4654
      %4689 = vmatprep.subr.mxu0 %v4657
      %4690 = vmatpush1.msra.mxu0 %v4656
      %4691 = vmatprep.subr.mxu0 %v4659
      %4692 = vmatpush1.msra.mxu0 %v4658
      %4693 = vmatprep.subr.mxu0 %v4661
      %4694 = vmatpush1.msra.mxu0 %v4660
      %4695 = vmatprep.subr.mxu0 %v4663
      %4696 = vmatpush1.msra.mxu0 %v4662
      %4697 = vmatprep.subr.mxu0 %v4665
      %4698 = vmatpush1.msra.mxu0 %v4664
      %4699 = vmatprep.subr.mxu0 %v4667
      %4700 = vmatpush1.msra.mxu0 %v4666
      %4701 = vmatprep.subr.mxu0 %v4669
      %4702 = vmatpush1.msra.mxu0 %v4668
      %4703 = vmatprep.subr.mxu0 %v4671
      %4704 = vmatpush1.msra.mxu0 %v4670
      %4705 = vmatprep.subr.mxu0 %v4673
      %4706 = vmatpush1.msra.mxu0 %v4672
      %4707 = vmatprep.subr.mxu0 %v4675
      %4708 = vmatpush1.msra.mxu0 %v4674
      %4709 = vmatprep.subr.mxu0 %v4677
      %4710 = vmatpush1.msra.mxu0 %v4676
      %4711 = vmatprep.subr.mxu0 %v4679
      %4712 = vmatpush1.msra.mxu0 %v4678
      %4713 = vmatprep.subr.mxu0 %v4681
      %4714 = vmatpush1.msra.mxu0 %v4680
      %4715 = vmatprep.subr.mxu0 0.0
      %4716 = vmatpush1.msra.mxu0 0.0
      %4717 = vmatprep.subr.mxu0 0.0
      %4718 = vmatpush1.msra.mxu0 0.0
      %4719 = vmatprep.subr.mxu0 0.0
      %4720 = vmatpush1.msra.mxu0 0.0
      %4721 = vmatprep.subr.mxu0 0.0
      %4722 = vmatpush1.msra.mxu0 0.0
      %4723 = vmatprep.subr.mxu0 0.0
      %4724 = vmatpush1.msra.mxu0 0.0
      %4725 = vmatprep.subr.mxu0 0.0
      %4726 = vmatpush1.msra.mxu0 0.0
      %4727 = vmatprep.subr.mxu0 0.0
      %4728 = vmatpush1.msra.mxu0 0.0
      %4729 = vmatprep.subr.mxu0 0.0
      %4730 = vmatpush1.msra.mxu0 0.0
      %4731 = vmatprep.subr.mxu0 0.0
      %4732 = vmatpush1.msra.mxu0 0.0
      %4733 = vmatprep.subr.mxu0 0.0
      %4734 = vmatpush1.msra.mxu0 0.0
      %4735 = vmatprep.subr.mxu0 0.0
      %4736 = vmatpush1.msra.mxu0 0.0
      %4737 = vmatprep.subr.mxu0 0.0
      %4738 = vmatpush1.msra.mxu0 0.0
      %4739 = vmatprep.subr.mxu0 0.0
      %4740 = vmatpush1.msra.mxu0 0.0
      %4741 = vmatprep.subr.mxu0 0.0
      %4742 = vmatpush1.msra.mxu0 0.0
      %4743 = vmatprep.subr.mxu0 0.0
      %4744 = vmatpush1.msra.mxu0 0.0
      %4745 = vmatprep.subr.mxu0 0.0
      %4746 = vmatpush1.msra.mxu0 0.0
      %4747 = vmatprep.mubr.f32.mxu0 0.0
      %4748 = vmatmul.mubr.f32.gmra.mrb[0].mxu0 %v4682
      %v4749 = vpop.f32.mrb[0].mxu0
      %v4750 = vadd.f32 0.0, %v4749
      %v4751 = vpop.f32.mrb[0].mxu0
      %v4752 = vadd.f32 0.0, %v4751
      %4753 = vdwg.mxu0
      %v4754 = vadd.f32 %v3624, %v4750
      %v4755 = vadd.f32 %v3625, %v4752
      %v4756 = vld [vmem:[%s1 + $0x200] sm:$0xff]
      %v4757 = vld [vmem:[%s1 + $0x208] sm:$0xff]
      %v4758 = vld [vmem:[%s1 + $0x210] sm:$0xff]
      %v4759 = vld [vmem:[%s1 + $0x218] sm:$0xff]
      %v4760 = vld [vmem:[%s1 + $0x220] sm:$0xff]
      %v4761 = vld [vmem:[%s1 + $0x228] sm:$0xff]
      %v4762 = vld [vmem:[%s1 + $0x230] sm:$0xff]
      %v4763 = vld [vmem:[%s1 + $0x238] sm:$0xff]
      %v4764 = vld [vmem:[%s1 + $0x240] sm:$0xff]
      %v4765 = vld [vmem:[%s1 + $0x248] sm:$0xff]
      %v4766 = vld [vmem:[%s1 + $0x250] sm:$0xff]
      %v4767 = vld [vmem:[%s1 + $0x258] sm:$0xff]
      %v4768 = vld [vmem:[%s1 + $0x260] sm:$0xff]
      %v4769 = vld [vmem:[%s1 + $0x268] sm:$0xff]
      %v4770 = vld [vmem:[%s1 + $0x270] sm:$0xff]
      %v4771 = vld [vmem:[%s1 + $0x278] sm:$0xff]
      %4773 = vset.pattern.permute.xlu0 0
      %4774 = vperm.xlu0 %4773, %v4756
      %v4775 = vpop.permute.xlu0 %4774
      %4778 = vset.pattern.permute.xlu0 0
      %4779 = vperm.xlu0 %4778, %v4757
      %v4780 = vpop.permute.xlu0 %4779
      %4783 = vset.pattern.permute.xlu0 0
      %4784 = vperm.xlu0 %4783, %v4758
      %v4785 = vpop.permute.xlu0 %4784
      %4788 = vset.pattern.permute.xlu0 0
      %4789 = vperm.xlu0 %4788, %v4759
      %v4790 = vpop.permute.xlu0 %4789
      %4793 = vset.pattern.permute.xlu0 0
      %4794 = vperm.xlu0 %4793, %v4760
      %v4795 = vpop.permute.xlu0 %4794
      %4798 = vset.pattern.permute.xlu0 0
      %4799 = vperm.xlu0 %4798, %v4761
      %v4800 = vpop.permute.xlu0 %4799
      %4803 = vset.pattern.permute.xlu0 0
      %4804 = vperm.xlu0 %4803, %v4762
      %v4805 = vpop.permute.xlu0 %4804
      %4808 = vset.pattern.permute.xlu0 0
      %4809 = vperm.xlu0 %4808, %v4763
      %v4810 = vpop.permute.xlu0 %4809
      %4813 = vset.pattern.permute.xlu0 0
      %4814 = vperm.xlu0 %4813, %v4764
      %v4815 = vpop.permute.xlu0 %4814
      %4818 = vset.pattern.permute.xlu0 0
      %4819 = vperm.xlu0 %4818, %v4765
      %v4820 = vpop.permute.xlu0 %4819
      %4823 = vset.pattern.permute.xlu0 0
      %4824 = vperm.xlu0 %4823, %v4766
      %v4825 = vpop.permute.xlu0 %4824
      %4828 = vset.pattern.permute.xlu0 0
      %4829 = vperm.xlu0 %4828, %v4767
      %v4830 = vpop.permute.xlu0 %4829
      %4833 = vset.pattern.permute.xlu0 0
      %4834 = vperm.xlu0 %4833, %v4768
      %v4835 = vpop.permute.xlu0 %4834
      %4838 = vset.pattern.permute.xlu0 0
      %4839 = vperm.xlu0 %4838, %v4769
      %v4840 = vpop.permute.xlu0 %4839
      %4843 = vset.pattern.permute.xlu0 0
      %4844 = vperm.xlu0 %4843, %v4770
      %v4845 = vpop.permute.xlu0 %4844
      %4848 = vset.pattern.permute.xlu0 0
      %4849 = vperm.xlu0 %4848, %v4771
      %v4850 = vpop.permute.xlu0 %4849
      %v4852 = vmul.f32 %v4775, %v275
      %v4853 = vmul.f32 %v4775, %v279
      %v4854 = vmul.f32 %v4780, %v275
      %v4855 = vmul.f32 %v4780, %v279
      %v4856 = vmul.f32 %v4785, %v275
      %v4857 = vmul.f32 %v4785, %v279
      %v4858 = vmul.f32 %v4790, %v275
      %v4859 = vmul.f32 %v4790, %v279
      %v4860 = vmul.f32 %v4795, %v275
      %v4861 = vmul.f32 %v4795, %v279
      %v4862 = vmul.f32 %v4800, %v275
      %v4863 = vmul.f32 %v4800, %v279
      %v4864 = vmul.f32 %v4805, %v275
      %v4865 = vmul.f32 %v4805, %v279
      %v4866 = vmul.f32 %v4810, %v275
      %v4867 = vmul.f32 %v4810, %v279
      %v4868 = vmul.f32 %v4815, %v275
      %v4869 = vmul.f32 %v4815, %v279
      %v4870 = vmul.f32 %v4820, %v275
      %v4871 = vmul.f32 %v4820, %v279
      %v4872 = vmul.f32 %v4825, %v275
      %v4873 = vmul.f32 %v4825, %v279
      %v4874 = vmul.f32 %v4830, %v275
      %v4875 = vmul.f32 %v4830, %v279
      %v4876 = vmul.f32 %v4835, %v275
      %v4877 = vmul.f32 %v4835, %v279
      %v4878 = vmul.f32 %v4840, %v275
      %v4879 = vmul.f32 %v4840, %v279
      %v4880 = vmul.f32 %v4845, %v275
      %v4881 = vmul.f32 %v4845, %v279
      %v4882 = vmul.f32 %v4850, %v275
      %v4883 = vmul.f32 %v4850, %v279
      %4884 = vset.pattern.permute.xlu0 1
      %4885 = vperm.xlu0 %4884, %v4756
      %v4886 = vpop.permute.xlu0 %4885
      %4888 = vset.pattern.permute.xlu0 1
      %4889 = vperm.xlu0 %4888, %v4757
      %v4890 = vpop.permute.xlu0 %4889
      %4892 = vset.pattern.permute.xlu0 1
      %4893 = vperm.xlu0 %4892, %v4758
      %v4894 = vpop.permute.xlu0 %4893
      %4896 = vset.pattern.permute.xlu0 1
      %4897 = vperm.xlu0 %4896, %v4759
      %v4898 = vpop.permute.xlu0 %4897
      %4900 = vset.pattern.permute.xlu0 1
      %4901 = vperm.xlu0 %4900, %v4760
      %v4902 = vpop.permute.xlu0 %4901
      %4904 = vset.pattern.permute.xlu0 1
      %4905 = vperm.xlu0 %4904, %v4761
      %v4906 = vpop.permute.xlu0 %4905
      %4908 = vset.pattern.permute.xlu0 1
      %4909 = vperm.xlu0 %4908, %v4762
      %v4910 = vpop.permute.xlu0 %4909
      %4912 = vset.pattern.permute.xlu0 1
      %4913 = vperm.xlu0 %4912, %v4763
      %v4914 = vpop.permute.xlu0 %4913
      %4916 = vset.pattern.permute.xlu0 1
      %4917 = vperm.xlu0 %4916, %v4764
      %v4918 = vpop.permute.xlu0 %4917
      %4920 = vset.pattern.permute.xlu0 1
      %4921 = vperm.xlu0 %4920, %v4765
      %v4922 = vpop.permute.xlu0 %4921
      %4924 = vset.pattern.permute.xlu0 1
      %4925 = vperm.xlu0 %4924, %v4766
      %v4926 = vpop.permute.xlu0 %4925
      %4928 = vset.pattern.permute.xlu0 1
      %4929 = vperm.xlu0 %4928, %v4767
      %v4930 = vpop.permute.xlu0 %4929
      %4932 = vset.pattern.permute.xlu0 1
      %4933 = vperm.xlu0 %4932, %v4768
      %v4934 = vpop.permute.xlu0 %4933
      %4936 = vset.pattern.permute.xlu0 1
      %4937 = vperm.xlu0 %4936, %v4769
      %v4938 = vpop.permute.xlu0 %4937
      %4940 = vset.pattern.permute.xlu0 1
      %4941 = vperm.xlu0 %4940, %v4770
      %v4942 = vpop.permute.xlu0 %4941
      %4944 = vset.pattern.permute.xlu0 1
      %4945 = vperm.xlu0 %4944, %v4771
      %v4946 = vpop.permute.xlu0 %4945
      %v4948 = vmul.f32 %v4886, %v379
      %v4949 = vmul.f32 %v4886, %v383
      %v4950 = vmul.f32 %v4890, %v379
      %v4951 = vmul.f32 %v4890, %v383
      %v4952 = vmul.f32 %v4894, %v379
      %v4953 = vmul.f32 %v4894, %v383
      %v4954 = vmul.f32 %v4898, %v379
      %v4955 = vmul.f32 %v4898, %v383
      %v4956 = vmul.f32 %v4902, %v379
      %v4957 = vmul.f32 %v4902, %v383
      %v4958 = vmul.f32 %v4906, %v379
      %v4959 = vmul.f32 %v4906, %v383
      %v4960 = vmul.f32 %v4910, %v379
      %v4961 = vmul.f32 %v4910, %v383
      %v4962 = vmul.f32 %v4914, %v379
      %v4963 = vmul.f32 %v4914, %v383
      %v4964 = vmul.f32 %v4918, %v379
      %v4965 = vmul.f32 %v4918, %v383
      %v4966 = vmul.f32 %v4922, %v379
      %v4967 = vmul.f32 %v4922, %v383
      %v4968 = vmul.f32 %v4926, %v379
      %v4969 = vmul.f32 %v4926, %v383
      %v4970 = vmul.f32 %v4930, %v379
      %v4971 = vmul.f32 %v4930, %v383
      %v4972 = vmul.f32 %v4934, %v379
      %v4973 = vmul.f32 %v4934, %v383
      %v4974 = vmul.f32 %v4938, %v379
      %v4975 = vmul.f32 %v4938, %v383
      %v4976 = vmul.f32 %v4942, %v379
      %v4977 = vmul.f32 %v4942, %v383
      %v4978 = vmul.f32 %v4946, %v379
      %v4979 = vmul.f32 %v4946, %v383
      %v4980 = vadd.f32 %v4852, %v4948
      %v4981 = vadd.f32 %v4853, %v4949
      %v4982 = vadd.f32 %v4854, %v4950
      %v4983 = vadd.f32 %v4855, %v4951
      %v4984 = vadd.f32 %v4856, %v4952
      %v4985 = vadd.f32 %v4857, %v4953
      %v4986 = vadd.f32 %v4858, %v4954
      %v4987 = vadd.f32 %v4859, %v4955
      %v4988 = vadd.f32 %v4860, %v4956
      %v4989 = vadd.f32 %v4861, %v4957
      %v4990 = vadd.f32 %v4862, %v4958
      %v4991 = vadd.f32 %v4863, %v4959
      %v4992 = vadd.f32 %v4864, %v4960
      %v4993 = vadd.f32 %v4865, %v4961
      %v4994 = vadd.f32 %v4866, %v4962
      %v4995 = vadd.f32 %v4867, %v4963
      %v4996 = vadd.f32 %v4868, %v4964
      %v4997 = vadd.f32 %v4869, %v4965
      %v4998 = vadd.f32 %v4870, %v4966
      %v4999 = vadd.f32 %v4871, %v4967
      %v5000 = vadd.f32 %v4872, %v4968
      %v5001 = vadd.f32 %v4873, %v4969
      %v5002 = vadd.f32 %v4874, %v4970
      %v5003 = vadd.f32 %v4875, %v4971
      %v5004 = vadd.f32 %v4876, %v4972
      %v5005 = vadd.f32 %v4877, %v4973
      %v5006 = vadd.f32 %v4878, %v4974
      %v5007 = vadd.f32 %v4879, %v4975
      %v5008 = vadd.f32 %v4880, %v4976
      %v5009 = vadd.f32 %v4881, %v4977
      %v5010 = vadd.f32 %v4882, %v4978
      %v5011 = vadd.f32 %v4883, %v4979
      %5012 = vset.pattern.permute.xlu0 2
      %5013 = vperm.xlu0 %5012, %v4756
      %v5014 = vpop.permute.xlu0 %5013
      %5016 = vset.pattern.permute.xlu0 2
      %5017 = vperm.xlu0 %5016, %v4757
      %v5018 = vpop.permute.xlu0 %5017
      %5020 = vset.pattern.permute.xlu0 2
      %5021 = vperm.xlu0 %5020, %v4758
      %v5022 = vpop.permute.xlu0 %5021
      %5024 = vset.pattern.permute.xlu0 2
      %5025 = vperm.xlu0 %5024, %v4759
      %v5026 = vpop.permute.xlu0 %5025
      %5028 = vset.pattern.permute.xlu0 2
      %5029 = vperm.xlu0 %5028, %v4760
      %v5030 = vpop.permute.xlu0 %5029
      %5032 = vset.pattern.permute.xlu0 2
      %5033 = vperm.xlu0 %5032, %v4761
      %v5034 = vpop.permute.xlu0 %5033
      %5036 = vset.pattern.permute.xlu0 2
      %5037 = vperm.xlu0 %5036, %v4762
      %v5038 = vpop.permute.xlu0 %5037
      %5040 = vset.pattern.permute.xlu0 2
      %5041 = vperm.xlu0 %5040, %v4763
      %v5042 = vpop.permute.xlu0 %5041
      %5044 = vset.pattern.permute.xlu0 2
      %5045 = vperm.xlu0 %5044, %v4764
      %v5046 = vpop.permute.xlu0 %5045
      %5048 = vset.pattern.permute.xlu0 2
      %5049 = vperm.xlu0 %5048, %v4765
      %v5050 = vpop.permute.xlu0 %5049
      %5052 = vset.pattern.permute.xlu0 2
      %5053 = vperm.xlu0 %5052, %v4766
      %v5054 = vpop.permute.xlu0 %5053
      %5056 = vset.pattern.permute.xlu0 2
      %5057 = vperm.xlu0 %5056, %v4767
      %v5058 = vpop.permute.xlu0 %5057
      %5060 = vset.pattern.permute.xlu0 2
      %5061 = vperm.xlu0 %5060, %v4768
      %v5062 = vpop.permute.xlu0 %5061
      %5064 = vset.pattern.permute.xlu0 2
      %5065 = vperm.xlu0 %5064, %v4769
      %v5066 = vpop.permute.xlu0 %5065
      %5068 = vset.pattern.permute.xlu0 2
      %5069 = vperm.xlu0 %5068, %v4770
      %v5070 = vpop.permute.xlu0 %5069
      %5072 = vset.pattern.permute.xlu0 2
      %5073 = vperm.xlu0 %5072, %v4771
      %v5074 = vpop.permute.xlu0 %5073
      %v5076 = vmul.f32 %v5014, %v515
      %v5077 = vmul.f32 %v5014, %v519
      %v5078 = vmul.f32 %v5018, %v515
      %v5079 = vmul.f32 %v5018, %v519
      %v5080 = vmul.f32 %v5022, %v515
      %v5081 = vmul.f32 %v5022, %v519
      %v5082 = vmul.f32 %v5026, %v515
      %v5083 = vmul.f32 %v5026, %v519
      %v5084 = vmul.f32 %v5030, %v515
      %v5085 = vmul.f32 %v5030, %v519
      %v5086 = vmul.f32 %v5034, %v515
      %v5087 = vmul.f32 %v5034, %v519
      %v5088 = vmul.f32 %v5038, %v515
      %v5089 = vmul.f32 %v5038, %v519
      %v5090 = vmul.f32 %v5042, %v515
      %v5091 = vmul.f32 %v5042, %v519
      %v5092 = vmul.f32 %v5046, %v515
      %v5093 = vmul.f32 %v5046, %v519
      %v5094 = vmul.f32 %v5050, %v515
      %v5095 = vmul.f32 %v5050, %v519
      %v5096 = vmul.f32 %v5054, %v515
      %v5097 = vmul.f32 %v5054, %v519
      %v5098 = vmul.f32 %v5058, %v515
      %v5099 = vmul.f32 %v5058, %v519
      %v5100 = vmul.f32 %v5062, %v515
      %v5101 = vmul.f32 %v5062, %v519
      %v5102 = vmul.f32 %v5066, %v515
      %v5103 = vmul.f32 %v5066, %v519
      %v5104 = vmul.f32 %v5070, %v515
      %v5105 = vmul.f32 %v5070, %v519
      %v5106 = vmul.f32 %v5074, %v515
      %v5107 = vmul.f32 %v5074, %v519
      %v5108 = vadd.f32 %v4980, %v5076
      %v5109 = vadd.f32 %v4981, %v5077
      %v5110 = vadd.f32 %v4982, %v5078
      %v5111 = vadd.f32 %v4983, %v5079
      %v5112 = vadd.f32 %v4984, %v5080
      %v5113 = vadd.f32 %v4985, %v5081
      %v5114 = vadd.f32 %v4986, %v5082
      %v5115 = vadd.f32 %v4987, %v5083
      %v5116 = vadd.f32 %v4988, %v5084
      %v5117 = vadd.f32 %v4989, %v5085
      %v5118 = vadd.f32 %v4990, %v5086
      %v5119 = vadd.f32 %v4991, %v5087
      %v5120 = vadd.f32 %v4992, %v5088
      %v5121 = vadd.f32 %v4993, %v5089
      %v5122 = vadd.f32 %v4994, %v5090
      %v5123 = vadd.f32 %v4995, %v5091
      %v5124 = vadd.f32 %v4996, %v5092
      %v5125 = vadd.f32 %v4997, %v5093
      %v5126 = vadd.f32 %v4998, %v5094
      %v5127 = vadd.f32 %v4999, %v5095
      %v5128 = vadd.f32 %v5000, %v5096
      %v5129 = vadd.f32 %v5001, %v5097
      %v5130 = vadd.f32 %v5002, %v5098
      %v5131 = vadd.f32 %v5003, %v5099
      %v5132 = vadd.f32 %v5004, %v5100
      %v5133 = vadd.f32 %v5005, %v5101
      %v5134 = vadd.f32 %v5006, %v5102
      %v5135 = vadd.f32 %v5007, %v5103
      %v5136 = vadd.f32 %v5008, %v5104
      %v5137 = vadd.f32 %v5009, %v5105
      %v5138 = vadd.f32 %v5010, %v5106
      %v5139 = vadd.f32 %v5011, %v5107
      %5140 = vset.pattern.permute.xlu0 3
      %5141 = vperm.xlu0 %5140, %v4756
      %v5142 = vpop.permute.xlu0 %5141
      %5144 = vset.pattern.permute.xlu0 3
      %5145 = vperm.xlu0 %5144, %v4757
      %v5146 = vpop.permute.xlu0 %5145
      %5148 = vset.pattern.permute.xlu0 3
      %5149 = vperm.xlu0 %5148, %v4758
      %v5150 = vpop.permute.xlu0 %5149
      %5152 = vset.pattern.permute.xlu0 3
      %5153 = vperm.xlu0 %5152, %v4759
      %v5154 = vpop.permute.xlu0 %5153
      %5156 = vset.pattern.permute.xlu0 3
      %5157 = vperm.xlu0 %5156, %v4760
      %v5158 = vpop.permute.xlu0 %5157
      %5160 = vset.pattern.permute.xlu0 3
      %5161 = vperm.xlu0 %5160, %v4761
      %v5162 = vpop.permute.xlu0 %5161
      %5164 = vset.pattern.permute.xlu0 3
      %5165 = vperm.xlu0 %5164, %v4762
      %v5166 = vpop.permute.xlu0 %5165
      %5168 = vset.pattern.permute.xlu0 3
      %5169 = vperm.xlu0 %5168, %v4763
      %v5170 = vpop.permute.xlu0 %5169
      %5172 = vset.pattern.permute.xlu0 3
      %5173 = vperm.xlu0 %5172, %v4764
      %v5174 = vpop.permute.xlu0 %5173
      %5176 = vset.pattern.permute.xlu0 3
      %5177 = vperm.xlu0 %5176, %v4765
      %v5178 = vpop.permute.xlu0 %5177
      %5180 = vset.pattern.permute.xlu0 3
      %5181 = vperm.xlu0 %5180, %v4766
      %v5182 = vpop.permute.xlu0 %5181
      %5184 = vset.pattern.permute.xlu0 3
      %5185 = vperm.xlu0 %5184, %v4767
      %v5186 = vpop.permute.xlu0 %5185
      %5188 = vset.pattern.permute.xlu0 3
      %5189 = vperm.xlu0 %5188, %v4768
      %v5190 = vpop.permute.xlu0 %5189
      %5192 = vset.pattern.permute.xlu0 3
      %5193 = vperm.xlu0 %5192, %v4769
      %v5194 = vpop.permute.xlu0 %5193
      %5196 = vset.pattern.permute.xlu0 3
      %5197 = vperm.xlu0 %5196, %v4770
      %v5198 = vpop.permute.xlu0 %5197
      %5200 = vset.pattern.permute.xlu0 3
      %5201 = vperm.xlu0 %5200, %v4771
      %v5202 = vpop.permute.xlu0 %5201
      %v5204 = vmul.f32 %v5142, %v651
      %v5205 = vmul.f32 %v5142, %v655
      %v5206 = vmul.f32 %v5146, %v651
      %v5207 = vmul.f32 %v5146, %v655
      %v5208 = vmul.f32 %v5150, %v651
      %v5209 = vmul.f32 %v5150, %v655
      %v5210 = vmul.f32 %v5154, %v651
      %v5211 = vmul.f32 %v5154, %v655
      %v5212 = vmul.f32 %v5158, %v651
      %v5213 = vmul.f32 %v5158, %v655
      %v5214 = vmul.f32 %v5162, %v651
      %v5215 = vmul.f32 %v5162, %v655
      %v5216 = vmul.f32 %v5166, %v651
      %v5217 = vmul.f32 %v5166, %v655
      %v5218 = vmul.f32 %v5170, %v651
      %v5219 = vmul.f32 %v5170, %v655
      %v5220 = vmul.f32 %v5174, %v651
      %v5221 = vmul.f32 %v5174, %v655
      %v5222 = vmul.f32 %v5178, %v651
      %v5223 = vmul.f32 %v5178, %v655
      %v5224 = vmul.f32 %v5182, %v651
      %v5225 = vmul.f32 %v5182, %v655
      %v5226 = vmul.f32 %v5186, %v651
      %v5227 = vmul.f32 %v5186, %v655
      %v5228 = vmul.f32 %v5190, %v651
      %v5229 = vmul.f32 %v5190, %v655
      %v5230 = vmul.f32 %v5194, %v651
      %v5231 = vmul.f32 %v5194, %v655
      %v5232 = vmul.f32 %v5198, %v651
      %v5233 = vmul.f32 %v5198, %v655
      %v5234 = vmul.f32 %v5202, %v651
      %v5235 = vmul.f32 %v5202, %v655
      %v5236 = vadd.f32 %v5108, %v5204
      %v5237 = vadd.f32 %v5109, %v5205
      %v5238 = vadd.f32 %v5110, %v5206
      %v5239 = vadd.f32 %v5111, %v5207
      %v5240 = vadd.f32 %v5112, %v5208
      %v5241 = vadd.f32 %v5113, %v5209
      %v5242 = vadd.f32 %v5114, %v5210
      %v5243 = vadd.f32 %v5115, %v5211
      %v5244 = vadd.f32 %v5116, %v5212
      %v5245 = vadd.f32 %v5117, %v5213
      %v5246 = vadd.f32 %v5118, %v5214
      %v5247 = vadd.f32 %v5119, %v5215
      %v5248 = vadd.f32 %v5120, %v5216
      %v5249 = vadd.f32 %v5121, %v5217
      %v5250 = vadd.f32 %v5122, %v5218
      %v5251 = vadd.f32 %v5123, %v5219
      %v5252 = vadd.f32 %v5124, %v5220
      %v5253 = vadd.f32 %v5125, %v5221
      %v5254 = vadd.f32 %v5126, %v5222
      %v5255 = vadd.f32 %v5127, %v5223
      %v5256 = vadd.f32 %v5128, %v5224
      %v5257 = vadd.f32 %v5129, %v5225
      %v5258 = vadd.f32 %v5130, %v5226
      %v5259 = vadd.f32 %v5131, %v5227
      %v5260 = vadd.f32 %v5132, %v5228
      %v5261 = vadd.f32 %v5133, %v5229
      %v5262 = vadd.f32 %v5134, %v5230
      %v5263 = vadd.f32 %v5135, %v5231
      %v5264 = vadd.f32 %v5136, %v5232
      %v5265 = vadd.f32 %v5137, %v5233
      %v5266 = vadd.f32 %v5138, %v5234
      %v5267 = vadd.f32 %v5139, %v5235
      %5268 = vset.pattern.permute.xlu0 4
      %5269 = vperm.xlu0 %5268, %v4756
      %v5270 = vpop.permute.xlu0 %5269
      %5272 = vset.pattern.permute.xlu0 4
      %5273 = vperm.xlu0 %5272, %v4757
      %v5274 = vpop.permute.xlu0 %5273
      %5276 = vset.pattern.permute.xlu0 4
      %5277 = vperm.xlu0 %5276, %v4758
      %v5278 = vpop.permute.xlu0 %5277
      %5280 = vset.pattern.permute.xlu0 4
      %5281 = vperm.xlu0 %5280, %v4759
      %v5282 = vpop.permute.xlu0 %5281
      %5284 = vset.pattern.permute.xlu0 4
      %5285 = vperm.xlu0 %5284, %v4760
      %v5286 = vpop.permute.xlu0 %5285
      %5288 = vset.pattern.permute.xlu0 4
      %5289 = vperm.xlu0 %5288, %v4761
      %v5290 = vpop.permute.xlu0 %5289
      %5292 = vset.pattern.permute.xlu0 4
      %5293 = vperm.xlu0 %5292, %v4762
      %v5294 = vpop.permute.xlu0 %5293
      %5296 = vset.pattern.permute.xlu0 4
      %5297 = vperm.xlu0 %5296, %v4763
      %v5298 = vpop.permute.xlu0 %5297
      %5300 = vset.pattern.permute.xlu0 4
      %5301 = vperm.xlu0 %5300, %v4764
      %v5302 = vpop.permute.xlu0 %5301
      %5304 = vset.pattern.permute.xlu0 4
      %5305 = vperm.xlu0 %5304, %v4765
      %v5306 = vpop.permute.xlu0 %5305
      %5308 = vset.pattern.permute.xlu0 4
      %5309 = vperm.xlu0 %5308, %v4766
      %v5310 = vpop.permute.xlu0 %5309
      %5312 = vset.pattern.permute.xlu0 4
      %5313 = vperm.xlu0 %5312, %v4767
      %v5314 = vpop.permute.xlu0 %5313
      %5316 = vset.pattern.permute.xlu0 4
      %5317 = vperm.xlu0 %5316, %v4768
      %v5318 = vpop.permute.xlu0 %5317
      %5320 = vset.pattern.permute.xlu0 4
      %5321 = vperm.xlu0 %5320, %v4769
      %v5322 = vpop.permute.xlu0 %5321
      %5324 = vset.pattern.permute.xlu0 4
      %5325 = vperm.xlu0 %5324, %v4770
      %v5326 = vpop.permute.xlu0 %5325
      %5328 = vset.pattern.permute.xlu0 4
      %5329 = vperm.xlu0 %5328, %v4771
      %v5330 = vpop.permute.xlu0 %5329
      %v5332 = vmul.f32 %v5270, %v787
      %v5333 = vmul.f32 %v5270, %v791
      %v5334 = vmul.f32 %v5274, %v787
      %v5335 = vmul.f32 %v5274, %v791
      %v5336 = vmul.f32 %v5278, %v787
      %v5337 = vmul.f32 %v5278, %v791
      %v5338 = vmul.f32 %v5282, %v787
      %v5339 = vmul.f32 %v5282, %v791
      %v5340 = vmul.f32 %v5286, %v787
      %v5341 = vmul.f32 %v5286, %v791
      %v5342 = vmul.f32 %v5290, %v787
      %v5343 = vmul.f32 %v5290, %v791
      %v5344 = vmul.f32 %v5294, %v787
      %v5345 = vmul.f32 %v5294, %v791
      %v5346 = vmul.f32 %v5298, %v787
      %v5347 = vmul.f32 %v5298, %v791
      %v5348 = vmul.f32 %v5302, %v787
      %v5349 = vmul.f32 %v5302, %v791
      %v5350 = vmul.f32 %v5306, %v787
      %v5351 = vmul.f32 %v5306, %v791
      %v5352 = vmul.f32 %v5310, %v787
      %v5353 = vmul.f32 %v5310, %v791
      %v5354 = vmul.f32 %v5314, %v787
      %v5355 = vmul.f32 %v5314, %v791
      %v5356 = vmul.f32 %v5318, %v787
      %v5357 = vmul.f32 %v5318, %v791
      %v5358 = vmul.f32 %v5322, %v787
      %v5359 = vmul.f32 %v5322, %v791
      %v5360 = vmul.f32 %v5326, %v787
      %v5361 = vmul.f32 %v5326, %v791
      %v5362 = vmul.f32 %v5330, %v787
      %v5363 = vmul.f32 %v5330, %v791
      %v5364 = vadd.f32 %v5236, %v5332
      %v5365 = vadd.f32 %v5237, %v5333
      %v5366 = vadd.f32 %v5238, %v5334
      %v5367 = vadd.f32 %v5239, %v5335
      %v5368 = vadd.f32 %v5240, %v5336
      %v5369 = vadd.f32 %v5241, %v5337
      %v5370 = vadd.f32 %v5242, %v5338
      %v5371 = vadd.f32 %v5243, %v5339
      %v5372 = vadd.f32 %v5244, %v5340
      %v5373 = vadd.f32 %v5245, %v5341
      %v5374 = vadd.f32 %v5246, %v5342
      %v5375 = vadd.f32 %v5247, %v5343
      %v5376 = vadd.f32 %v5248, %v5344
      %v5377 = vadd.f32 %v5249, %v5345
      %v5378 = vadd.f32 %v5250, %v5346
      %v5379 = vadd.f32 %v5251, %v5347
      %v5380 = vadd.f32 %v5252, %v5348
      %v5381 = vadd.f32 %v5253, %v5349
      %v5382 = vadd.f32 %v5254, %v5350
      %v5383 = vadd.f32 %v5255, %v5351
      %v5384 = vadd.f32 %v5256, %v5352
      %v5385 = vadd.f32 %v5257, %v5353
      %v5386 = vadd.f32 %v5258, %v5354
      %v5387 = vadd.f32 %v5259, %v5355
      %v5388 = vadd.f32 %v5260, %v5356
      %v5389 = vadd.f32 %v5261, %v5357
      %v5390 = vadd.f32 %v5262, %v5358
      %v5391 = vadd.f32 %v5263, %v5359
      %v5392 = vadd.f32 %v5264, %v5360
      %v5393 = vadd.f32 %v5265, %v5361
      %v5394 = vadd.f32 %v5266, %v5362
      %v5395 = vadd.f32 %v5267, %v5363
      %5396 = vset.pattern.permute.xlu0 5
      %5397 = vperm.xlu0 %5396, %v4756
      %v5398 = vpop.permute.xlu0 %5397
      %5400 = vset.pattern.permute.xlu0 5
      %5401 = vperm.xlu0 %5400, %v4757
      %v5402 = vpop.permute.xlu0 %5401
      %5404 = vset.pattern.permute.xlu0 5
      %5405 = vperm.xlu0 %5404, %v4758
      %v5406 = vpop.permute.xlu0 %5405
      %5408 = vset.pattern.permute.xlu0 5
      %5409 = vperm.xlu0 %5408, %v4759
      %v5410 = vpop.permute.xlu0 %5409
      %5412 = vset.pattern.permute.xlu0 5
      %5413 = vperm.xlu0 %5412, %v4760
      %v5414 = vpop.permute.xlu0 %5413
      %5416 = vset.pattern.permute.xlu0 5
      %5417 = vperm.xlu0 %5416, %v4761
      %v5418 = vpop.permute.xlu0 %5417
      %5420 = vset.pattern.permute.xlu0 5
      %5421 = vperm.xlu0 %5420, %v4762
      %v5422 = vpop.permute.xlu0 %5421
      %5424 = vset.pattern.permute.xlu0 5
      %5425 = vperm.xlu0 %5424, %v4763
      %v5426 = vpop.permute.xlu0 %5425
      %5428 = vset.pattern.permute.xlu0 5
      %5429 = vperm.xlu0 %5428, %v4764
      %v5430 = vpop.permute.xlu0 %5429
      %5432 = vset.pattern.permute.xlu0 5
      %5433 = vperm.xlu0 %5432, %v4765
      %v5434 = vpop.permute.xlu0 %5433
      %5436 = vset.pattern.permute.xlu0 5
      %5437 = vperm.xlu0 %5436, %v4766
      %v5438 = vpop.permute.xlu0 %5437
      %5440 = vset.pattern.permute.xlu0 5
      %5441 = vperm.xlu0 %5440, %v4767
      %v5442 = vpop.permute.xlu0 %5441
      %5444 = vset.pattern.permute.xlu0 5
      %5445 = vperm.xlu0 %5444, %v4768
      %v5446 = vpop.permute.xlu0 %5445
      %5448 = vset.pattern.permute.xlu0 5
      %5449 = vperm.xlu0 %5448, %v4769
      %v5450 = vpop.permute.xlu0 %5449
      %5452 = vset.pattern.permute.xlu0 5
      %5453 = vperm.xlu0 %5452, %v4770
      %v5454 = vpop.permute.xlu0 %5453
      %5456 = vset.pattern.permute.xlu0 5
      %5457 = vperm.xlu0 %5456, %v4771
      %v5458 = vpop.permute.xlu0 %5457
      %v5460 = vmul.f32 %v5398, %v923
      %v5461 = vmul.f32 %v5398, %v927
      %v5462 = vmul.f32 %v5402, %v923
      %v5463 = vmul.f32 %v5402, %v927
      %v5464 = vmul.f32 %v5406, %v923
      %v5465 = vmul.f32 %v5406, %v927
      %v5466 = vmul.f32 %v5410, %v923
      %v5467 = vmul.f32 %v5410, %v927
      %v5468 = vmul.f32 %v5414, %v923
      %v5469 = vmul.f32 %v5414, %v927
      %v5470 = vmul.f32 %v5418, %v923
      %v5471 = vmul.f32 %v5418, %v927
      %v5472 = vmul.f32 %v5422, %v923
      %v5473 = vmul.f32 %v5422, %v927
      %v5474 = vmul.f32 %v5426, %v923
      %v5475 = vmul.f32 %v5426, %v927
      %v5476 = vmul.f32 %v5430, %v923
      %v5477 = vmul.f32 %v5430, %v927
      %v5478 = vmul.f32 %v5434, %v923
      %v5479 = vmul.f32 %v5434, %v927
      %v5480 = vmul.f32 %v5438, %v923
      %v5481 = vmul.f32 %v5438, %v927
      %v5482 = vmul.f32 %v5442, %v923
      %v5483 = vmul.f32 %v5442, %v927
      %v5484 = vmul.f32 %v5446, %v923
      %v5485 = vmul.f32 %v5446, %v927
      %v5486 = vmul.f32 %v5450, %v923
      %v5487 = vmul.f32 %v5450, %v927
      %v5488 = vmul.f32 %v5454, %v923
      %v5489 = vmul.f32 %v5454, %v927
      %v5490 = vmul.f32 %v5458, %v923
      %v5491 = vmul.f32 %v5458, %v927
      %v5492 = vadd.f32 %v5364, %v5460
      %v5493 = vadd.f32 %v5365, %v5461
      %v5494 = vadd.f32 %v5366, %v5462
      %v5495 = vadd.f32 %v5367, %v5463
      %v5496 = vadd.f32 %v5368, %v5464
      %v5497 = vadd.f32 %v5369, %v5465
      %v5498 = vadd.f32 %v5370, %v5466
      %v5499 = vadd.f32 %v5371, %v5467
      %v5500 = vadd.f32 %v5372, %v5468
      %v5501 = vadd.f32 %v5373, %v5469
      %v5502 = vadd.f32 %v5374, %v5470
      %v5503 = vadd.f32 %v5375, %v5471
      %v5504 = vadd.f32 %v5376, %v5472
      %v5505 = vadd.f32 %v5377, %v5473
      %v5506 = vadd.f32 %v5378, %v5474
      %v5507 = vadd.f32 %v5379, %v5475
      %v5508 = vadd.f32 %v5380, %v5476
      %v5509 = vadd.f32 %v5381, %v5477
      %v5510 = vadd.f32 %v5382, %v5478
      %v5511 = vadd.f32 %v5383, %v5479
      %v5512 = vadd.f32 %v5384, %v5480
      %v5513 = vadd.f32 %v5385, %v5481
      %v5514 = vadd.f32 %v5386, %v5482
      %v5515 = vadd.f32 %v5387, %v5483
      %v5516 = vadd.f32 %v5388, %v5484
      %v5517 = vadd.f32 %v5389, %v5485
      %v5518 = vadd.f32 %v5390, %v5486
      %v5519 = vadd.f32 %v5391, %v5487
      %v5520 = vadd.f32 %v5392, %v5488
      %v5521 = vadd.f32 %v5393, %v5489
      %v5522 = vadd.f32 %v5394, %v5490
      %v5523 = vadd.f32 %v5395, %v5491
      %5524 = vset.pattern.permute.xlu0 6
      %5525 = vperm.xlu0 %5524, %v4756
      %v5526 = vpop.permute.xlu0 %5525
      %5528 = vset.pattern.permute.xlu0 6
      %5529 = vperm.xlu0 %5528, %v4757
      %v5530 = vpop.permute.xlu0 %5529
      %5532 = vset.pattern.permute.xlu0 6
      %5533 = vperm.xlu0 %5532, %v4758
      %v5534 = vpop.permute.xlu0 %5533
      %5536 = vset.pattern.permute.xlu0 6
      %5537 = vperm.xlu0 %5536, %v4759
      %v5538 = vpop.permute.xlu0 %5537
      %5540 = vset.pattern.permute.xlu0 6
      %5541 = vperm.xlu0 %5540, %v4760
      %v5542 = vpop.permute.xlu0 %5541
      %5544 = vset.pattern.permute.xlu0 6
      %5545 = vperm.xlu0 %5544, %v4761
      %v5546 = vpop.permute.xlu0 %5545
      %5548 = vset.pattern.permute.xlu0 6
      %5549 = vperm.xlu0 %5548, %v4762
      %v5550 = vpop.permute.xlu0 %5549
      %5552 = vset.pattern.permute.xlu0 6
      %5553 = vperm.xlu0 %5552, %v4763
      %v5554 = vpop.permute.xlu0 %5553
      %5556 = vset.pattern.permute.xlu0 6
      %5557 = vperm.xlu0 %5556, %v4764
      %v5558 = vpop.permute.xlu0 %5557
      %5560 = vset.pattern.permute.xlu0 6
      %5561 = vperm.xlu0 %5560, %v4765
      %v5562 = vpop.permute.xlu0 %5561
      %5564 = vset.pattern.permute.xlu0 6
      %5565 = vperm.xlu0 %5564, %v4766
      %v5566 = vpop.permute.xlu0 %5565
      %5568 = vset.pattern.permute.xlu0 6
      %5569 = vperm.xlu0 %5568, %v4767
      %v5570 = vpop.permute.xlu0 %5569
      %5572 = vset.pattern.permute.xlu0 6
      %5573 = vperm.xlu0 %5572, %v4768
      %v5574 = vpop.permute.xlu0 %5573
      %5576 = vset.pattern.permute.xlu0 6
      %5577 = vperm.xlu0 %5576, %v4769
      %v5578 = vpop.permute.xlu0 %5577
      %5580 = vset.pattern.permute.xlu0 6
      %5581 = vperm.xlu0 %5580, %v4770
      %v5582 = vpop.permute.xlu0 %5581
      %5584 = vset.pattern.permute.xlu0 6
      %5585 = vperm.xlu0 %5584, %v4771
      %v5586 = vpop.permute.xlu0 %5585
      %v5588 = vmul.f32 %v5526, %v1059
      %v5589 = vmul.f32 %v5526, %v1063
      %v5590 = vmul.f32 %v5530, %v1059
      %v5591 = vmul.f32 %v5530, %v1063
      %v5592 = vmul.f32 %v5534, %v1059
      %v5593 = vmul.f32 %v5534, %v1063
      %v5594 = vmul.f32 %v5538, %v1059
      %v5595 = vmul.f32 %v5538, %v1063
      %v5596 = vmul.f32 %v5542, %v1059
      %v5597 = vmul.f32 %v5542, %v1063
      %v5598 = vmul.f32 %v5546, %v1059
      %v5599 = vmul.f32 %v5546, %v1063
      %v5600 = vmul.f32 %v5550, %v1059
      %v5601 = vmul.f32 %v5550, %v1063
      %v5602 = vmul.f32 %v5554, %v1059
      %v5603 = vmul.f32 %v5554, %v1063
      %v5604 = vmul.f32 %v5558, %v1059
      %v5605 = vmul.f32 %v5558, %v1063
      %v5606 = vmul.f32 %v5562, %v1059
      %v5607 = vmul.f32 %v5562, %v1063
      %v5608 = vmul.f32 %v5566, %v1059
      %v5609 = vmul.f32 %v5566, %v1063
      %v5610 = vmul.f32 %v5570, %v1059
      %v5611 = vmul.f32 %v5570, %v1063
      %v5612 = vmul.f32 %v5574, %v1059
      %v5613 = vmul.f32 %v5574, %v1063
      %v5614 = vmul.f32 %v5578, %v1059
      %v5615 = vmul.f32 %v5578, %v1063
      %v5616 = vmul.f32 %v5582, %v1059
      %v5617 = vmul.f32 %v5582, %v1063
      %v5618 = vmul.f32 %v5586, %v1059
      %v5619 = vmul.f32 %v5586, %v1063
      %v5620 = vadd.f32 %v5492, %v5588
      %v5621 = vadd.f32 %v5493, %v5589
      %v5622 = vadd.f32 %v5494, %v5590
      %v5623 = vadd.f32 %v5495, %v5591
      %v5624 = vadd.f32 %v5496, %v5592
      %v5625 = vadd.f32 %v5497, %v5593
      %v5626 = vadd.f32 %v5498, %v5594
      %v5627 = vadd.f32 %v5499, %v5595
      %v5628 = vadd.f32 %v5500, %v5596
      %v5629 = vadd.f32 %v5501, %v5597
      %v5630 = vadd.f32 %v5502, %v5598
      %v5631 = vadd.f32 %v5503, %v5599
      %v5632 = vadd.f32 %v5504, %v5600
      %v5633 = vadd.f32 %v5505, %v5601
      %v5634 = vadd.f32 %v5506, %v5602
      %v5635 = vadd.f32 %v5507, %v5603
      %v5636 = vadd.f32 %v5508, %v5604
      %v5637 = vadd.f32 %v5509, %v5605
      %v5638 = vadd.f32 %v5510, %v5606
      %v5639 = vadd.f32 %v5511, %v5607
      %v5640 = vadd.f32 %v5512, %v5608
      %v5641 = vadd.f32 %v5513, %v5609
      %v5642 = vadd.f32 %v5514, %v5610
      %v5643 = vadd.f32 %v5515, %v5611
      %v5644 = vadd.f32 %v5516, %v5612
      %v5645 = vadd.f32 %v5517, %v5613
      %v5646 = vadd.f32 %v5518, %v5614
      %v5647 = vadd.f32 %v5519, %v5615
      %v5648 = vadd.f32 %v5520, %v5616
      %v5649 = vadd.f32 %v5521, %v5617
      %v5650 = vadd.f32 %v5522, %v5618
      %v5651 = vadd.f32 %v5523, %v5619
      %5652 = vset.pattern.permute.xlu0 7
      %5653 = vperm.xlu0 %5652, %v4756
      %v5654 = vpop.permute.xlu0 %5653
      %5656 = vset.pattern.permute.xlu0 7
      %5657 = vperm.xlu0 %5656, %v4757
      %v5658 = vpop.permute.xlu0 %5657
      %5660 = vset.pattern.permute.xlu0 7
      %5661 = vperm.xlu0 %5660, %v4758
      %v5662 = vpop.permute.xlu0 %5661
      %5664 = vset.pattern.permute.xlu0 7
      %5665 = vperm.xlu0 %5664, %v4759
      %v5666 = vpop.permute.xlu0 %5665
      %5668 = vset.pattern.permute.xlu0 7
      %5669 = vperm.xlu0 %5668, %v4760
      %v5670 = vpop.permute.xlu0 %5669
      %5672 = vset.pattern.permute.xlu0 7
      %5673 = vperm.xlu0 %5672, %v4761
      %v5674 = vpop.permute.xlu0 %5673
      %5676 = vset.pattern.permute.xlu0 7
      %5677 = vperm.xlu0 %5676, %v4762
      %v5678 = vpop.permute.xlu0 %5677
      %5680 = vset.pattern.permute.xlu0 7
      %5681 = vperm.xlu0 %5680, %v4763
      %v5682 = vpop.permute.xlu0 %5681
      %5684 = vset.pattern.permute.xlu0 7
      %5685 = vperm.xlu0 %5684, %v4764
      %v5686 = vpop.permute.xlu0 %5685
      %5688 = vset.pattern.permute.xlu0 7
      %5689 = vperm.xlu0 %5688, %v4765
      %v5690 = vpop.permute.xlu0 %5689
      %5692 = vset.pattern.permute.xlu0 7
      %5693 = vperm.xlu0 %5692, %v4766
      %v5694 = vpop.permute.xlu0 %5693
      %5696 = vset.pattern.permute.xlu0 7
      %5697 = vperm.xlu0 %5696, %v4767
      %v5698 = vpop.permute.xlu0 %5697
      %5700 = vset.pattern.permute.xlu0 7
      %5701 = vperm.xlu0 %5700, %v4768
      %v5702 = vpop.permute.xlu0 %5701
      %5704 = vset.pattern.permute.xlu0 7
      %5705 = vperm.xlu0 %5704, %v4769
      %v5706 = vpop.permute.xlu0 %5705
      %5708 = vset.pattern.permute.xlu0 7
      %5709 = vperm.xlu0 %5708, %v4770
      %v5710 = vpop.permute.xlu0 %5709
      %5712 = vset.pattern.permute.xlu0 7
      %5713 = vperm.xlu0 %5712, %v4771
      %v5714 = vpop.permute.xlu0 %5713
      %v5716 = vmul.f32 %v5654, %v1195
      %v5717 = vmul.f32 %v5654, %v1199
      %v5718 = vmul.f32 %v5658, %v1195
      %v5719 = vmul.f32 %v5658, %v1199
      %v5720 = vmul.f32 %v5662, %v1195
      %v5721 = vmul.f32 %v5662, %v1199
      %v5722 = vmul.f32 %v5666, %v1195
      %v5723 = vmul.f32 %v5666, %v1199
      %v5724 = vmul.f32 %v5670, %v1195
      %v5725 = vmul.f32 %v5670, %v1199
      %v5726 = vmul.f32 %v5674, %v1195
      %v5727 = vmul.f32 %v5674, %v1199
      %v5728 = vmul.f32 %v5678, %v1195
      %v5729 = vmul.f32 %v5678, %v1199
      %v5730 = vmul.f32 %v5682, %v1195
      %v5731 = vmul.f32 %v5682, %v1199
      %v5732 = vmul.f32 %v5686, %v1195
      %v5733 = vmul.f32 %v5686, %v1199
      %v5734 = vmul.f32 %v5690, %v1195
      %v5735 = vmul.f32 %v5690, %v1199
      %v5736 = vmul.f32 %v5694, %v1195
      %v5737 = vmul.f32 %v5694, %v1199
      %v5738 = vmul.f32 %v5698, %v1195
      %v5739 = vmul.f32 %v5698, %v1199
      %v5740 = vmul.f32 %v5702, %v1195
      %v5741 = vmul.f32 %v5702, %v1199
      %v5742 = vmul.f32 %v5706, %v1195
      %v5743 = vmul.f32 %v5706, %v1199
      %v5744 = vmul.f32 %v5710, %v1195
      %v5745 = vmul.f32 %v5710, %v1199
      %v5746 = vmul.f32 %v5714, %v1195
      %v5747 = vmul.f32 %v5714, %v1199
      %v5748 = vadd.f32 %v5620, %v5716
      %v5749 = vadd.f32 %v5621, %v5717
      %v5750 = vadd.f32 %v5622, %v5718
      %v5751 = vadd.f32 %v5623, %v5719
      %v5752 = vadd.f32 %v5624, %v5720
      %v5753 = vadd.f32 %v5625, %v5721
      %v5754 = vadd.f32 %v5626, %v5722
      %v5755 = vadd.f32 %v5627, %v5723
      %v5756 = vadd.f32 %v5628, %v5724
      %v5757 = vadd.f32 %v5629, %v5725
      %v5758 = vadd.f32 %v5630, %v5726
      %v5759 = vadd.f32 %v5631, %v5727
      %v5760 = vadd.f32 %v5632, %v5728
      %v5761 = vadd.f32 %v5633, %v5729
      %v5762 = vadd.f32 %v5634, %v5730
      %v5763 = vadd.f32 %v5635, %v5731
      %v5764 = vadd.f32 %v5636, %v5732
      %v5765 = vadd.f32 %v5637, %v5733
      %v5766 = vadd.f32 %v5638, %v5734
      %v5767 = vadd.f32 %v5639, %v5735
      %v5768 = vadd.f32 %v5640, %v5736
      %v5769 = vadd.f32 %v5641, %v5737
      %v5770 = vadd.f32 %v5642, %v5738
      %v5771 = vadd.f32 %v5643, %v5739
      %v5772 = vadd.f32 %v5644, %v5740
      %v5773 = vadd.f32 %v5645, %v5741
      %v5774 = vadd.f32 %v5646, %v5742
      %v5775 = vadd.f32 %v5647, %v5743
      %v5776 = vadd.f32 %v5648, %v5744
      %v5777 = vadd.f32 %v5649, %v5745
      %v5778 = vadd.f32 %v5650, %v5746
      %v5779 = vadd.f32 %v5651, %v5747
      %v5780 = vmax.f32 %v5748, 0.0
      %v5781 = vmax.f32 %v5749, 0.0
      %v5782 = vmax.f32 %v5750, 0.0
      %v5783 = vmax.f32 %v5751, 0.0
      %v5784 = vmax.f32 %v5752, 0.0
      %v5785 = vmax.f32 %v5753, 0.0
      %v5786 = vmax.f32 %v5754, 0.0
      %v5787 = vmax.f32 %v5755, 0.0
      %v5788 = vmax.f32 %v5756, 0.0
      %v5789 = vmax.f32 %v5757, 0.0
      %v5790 = vmax.f32 %v5758, 0.0
      %v5791 = vmax.f32 %v5759, 0.0
      %v5792 = vmax.f32 %v5760, 0.0
      %v5793 = vmax.f32 %v5761, 0.0
      %v5794 = vmax.f32 %v5762, 0.0
      %v5795 = vmax.f32 %v5763, 0.0
      %v5796 = vmax.f32 %v5764, 0.0
      %v5797 = vmax.f32 %v5765, 0.0
      %v5798 = vmax.f32 %v5766, 0.0
      %v5799 = vmax.f32 %v5767, 0.0
      %v5800 = vmax.f32 %v5768, 0.0
      %v5801 = vmax.f32 %v5769, 0.0
      %v5802 = vmax.f32 %v5770, 0.0
      %v5803 = vmax.f32 %v5771, 0.0
      %v5804 = vmax.f32 %v5772, 0.0
      %v5805 = vmax.f32 %v5773, 0.0
      %v5806 = vmax.f32 %v5774, 0.0
      %v5807 = vmax.f32 %v5775, 0.0
      %v5808 = vmax.f32 %v5776, 0.0
      %v5809 = vmax.f32 %v5777, 0.0
      %v5810 = vmax.f32 %v5778, 0.0
      %v5811 = vmax.f32 %v5779, 0.0
      %v5812 = vld [vmem:[%s2 + $0x20] sm:$0xff]
      %5813 = vmatprep.subr.mxu0 %v5781
      %5814 = vmatpush1.msra.mxu0 %v5780
      %5815 = vmatprep.subr.mxu0 %v5783
      %5816 = vmatpush1.msra.mxu0 %v5782
      %5817 = vmatprep.subr.mxu0 %v5785
      %5818 = vmatpush1.msra.mxu0 %v5784
      %5819 = vmatprep.subr.mxu0 %v5787
      %5820 = vmatpush1.msra.mxu0 %v5786
      %5821 = vmatprep.subr.mxu0 %v5789
      %5822 = vmatpush1.msra.mxu0 %v5788
      %5823 = vmatprep.subr.mxu0 %v5791
      %5824 = vmatpush1.msra.mxu0 %v5790
      %5825 = vmatprep.subr.mxu0 %v5793
      %5826 = vmatpush1.msra.mxu0 %v5792
      %5827 = vmatprep.subr.mxu0 %v5795
      %5828 = vmatpush1.msra.mxu0 %v5794
      %5829 = vmatprep.subr.mxu0 %v5797
      %5830 = vmatpush1.msra.mxu0 %v5796
      %5831 = vmatprep.subr.mxu0 %v5799
      %5832 = vmatpush1.msra.mxu0 %v5798
      %5833 = vmatprep.subr.mxu0 %v5801
      %5834 = vmatpush1.msra.mxu0 %v5800
      %5835 = vmatprep.subr.mxu0 %v5803
      %5836 = vmatpush1.msra.mxu0 %v5802
      %5837 = vmatprep.subr.mxu0 %v5805
      %5838 = vmatpush1.msra.mxu0 %v5804
      %5839 = vmatprep.subr.mxu0 %v5807
      %5840 = vmatpush1.msra.mxu0 %v5806
      %5841 = vmatprep.subr.mxu0 %v5809
      %5842 = vmatpush1.msra.mxu0 %v5808
      %5843 = vmatprep.subr.mxu0 %v5811
      %5844 = vmatpush1.msra.mxu0 %v5810
      %5845 = vmatprep.subr.mxu0 0.0
      %5846 = vmatpush1.msra.mxu0 0.0
      %5847 = vmatprep.subr.mxu0 0.0
      %5848 = vmatpush1.msra.mxu0 0.0
      %5849 = vmatprep.subr.mxu0 0.0
      %5850 = vmatpush1.msra.mxu0 0.0
      %5851 = vmatprep.subr.mxu0 0.0
      %5852 = vmatpush1.msra.mxu0 0.0
      %5853 = vmatprep.subr.mxu0 0.0
      %5854 = vmatpush1.msra.mxu0 0.0
      %5855 = vmatprep.subr.mxu0 0.0
      %5856 = vmatpush1.msra.mxu0 0.0
      %5857 = vmatprep.subr.mxu0 0.0
      %5858 = vmatpush1.msra.mxu0 0.0
      %5859 = vmatprep.subr.mxu0 0.0
      %5860 = vmatpush1.msra.mxu0 0.0
      %5861 = vmatprep.subr.mxu0 0.0
      %5862 = vmatpush1.msra.mxu0 0.0
      %5863 = vmatprep.subr.mxu0 0.0
      %5864 = vmatpush1.msra.mxu0 0.0
      %5865 = vmatprep.subr.mxu0 0.0
      %5866 = vmatpush1.msra.mxu0 0.0
      %5867 = vmatprep.subr.mxu0 0.0
      %5868 = vmatpush1.msra.mxu0 0.0
      %5869 = vmatprep.subr.mxu0 0.0
      %5870 = vmatpush1.msra.mxu0 0.0
      %5871 = vmatprep.subr.mxu0 0.0
      %5872 = vmatpush1.msra.mxu0 0.0
      %5873 = vmatprep.subr.mxu0 0.0
      %5874 = vmatpush1.msra.mxu0 0.0
      %5875 = vmatprep.subr.mxu0 0.0
      %5876 = vmatpush1.msra.mxu0 0.0
      %5877 = vmatprep.mubr.f32.mxu0 0.0
      %5878 = vmatmul.mubr.f32.gmra.mrb[0].mxu0 %v5812
      %v5879 = vpop.f32.mrb[0].mxu0
      %v5880 = vadd.f32 0.0, %v5879
      %v5881 = vpop.f32.mrb[0].mxu0
      %v5882 = vadd.f32 0.0, %v5881
      %5883 = vdwg.mxu0
      %v5884 = vadd.f32 %v4754, %v5880
      %v5885 = vadd.f32 %v4755, %v5882
      %v5886 = vld [vmem:[%s1 + $0x280] sm:$0xff]
      %v5887 = vld [vmem:[%s1 + $0x288] sm:$0xff]
      %v5888 = vld [vmem:[%s1 + $0x290] sm:$0xff]
      %v5889 = vld [vmem:[%s1 + $0x298] sm:$0xff]
      %v5890 = vld [vmem:[%s1 + $0x2a0] sm:$0xff]
      %v5891 = vld [vmem:[%s1 + $0x2a8] sm:$0xff]
      %v5892 = vld [vmem:[%s1 + $0x2b0] sm:$0xff]
      %v5893 = vld [vmem:[%s1 + $0x2b8] sm:$0xff]
      %v5894 = vld [vmem:[%s1 + $0x2c0] sm:$0xff]
      %v5895 = vld [vmem:[%s1 + $0x2c8] sm:$0xff]
      %v5896 = vld [vmem:[%s1 + $0x2d0] sm:$0xff]
      %v5897 = vld [vmem:[%s1 + $0x2d8] sm:$0xff]
      %v5898 = vld [vmem:[%s1 + $0x2e0] sm:$0xff]
      %v5899 = vld [vmem:[%s1 + $0x2e8] sm:$0xff]
      %v5900 = vld [vmem:[%s1 + $0x2f0] sm:$0xff]
      %v5901 = vld [vmem:[%s1 + $0x2f8] sm:$0xff]
      %5903 = vset.pattern.permute.xlu0 0
      %5904 = vperm.xlu0 %5903, %v5886
      %v5905 = vpop.permute.xlu0 %5904
      %5908 = vset.pattern.permute.xlu0 0
      %5909 = vperm.xlu0 %5908, %v5887
      %v5910 = vpop.permute.xlu0 %5909
      %5913 = vset.pattern.permute.xlu0 0
      %5914 = vperm.xlu0 %5913, %v5888
      %v5915 = vpop.permute.xlu0 %5914
      %5918 = vset.pattern.permute.xlu0 0
      %5919 = vperm.xlu0 %5918, %v5889
      %v5920 = vpop.permute.xlu0 %5919
      %5923 = vset.pattern.permute.xlu0 0
      %5924 = vperm.xlu0 %5923, %v5890
      %v5925 = vpop.permute.xlu0 %5924
      %5928 = vset.pattern.permute.xlu0 0
      %5929 = vperm.xlu0 %5928, %v5891
      %v5930 = vpop.permute.xlu0 %5929
      %5933 = vset.pattern.permute.xlu0 0
      %5934 = vperm.xlu0 %5933, %v5892
      %v5935 = vpop.permute.xlu0 %5934
      %5938 = vset.pattern.permute.xlu0 0
      %5939 = vperm.xlu0 %5938, %v5893
      %v5940 = vpop.permute.xlu0 %5939
      %5943 = vset.pattern.permute.xlu0 0
      %5944 = vperm.xlu0 %5943, %v5894
      %v5945 = vpop.permute.xlu0 %5944
      %5948 = vset.pattern.permute.xlu0 0
      %5949 = vperm.xlu0 %5948, %v5895
      %v5950 = vpop.permute.xlu0 %5949
      %5953 = vset.pattern.permute.xlu0 0
      %5954 = vperm.xlu0 %5953, %v5896
      %v5955 = vpop.permute.xlu0 %5954
      %5958 = vset.pattern.permute.xlu0 0
      %5959 = vperm.xlu0 %5958, %v5897
      %v5960 = vpop.permute.xlu0 %5959
      %5963 = vset.pattern.permute.xlu0 0
      %5964 = vperm.xlu0 %5963, %v5898
      %v5965 = vpop.permute.xlu0 %5964
      %5968 = vset.pattern.permute.xlu0 0
      %5969 = vperm.xlu0 %5968, %v5899
      %v5970 = vpop.permute.xlu0 %5969
      %5973 = vset.pattern.permute.xlu0 0
      %5974 = vperm.xlu0 %5973, %v5900
      %v5975 = vpop.permute.xlu0 %5974
      %5978 = vset.pattern.permute.xlu0 0
      %5979 = vperm.xlu0 %5978, %v5901
      %v5980 = vpop.permute.xlu0 %5979
      %v5982 = vmul.f32 %v5905, %v275
      %v5983 = vmul.f32 %v5905, %v279
      %v5984 = vmul.f32 %v5910, %v275
      %v5985 = vmul.f32 %v5910, %v279
      %v5986 = vmul.f32 %v5915, %v275
      %v5987 = vmul.f32 %v5915, %v279
      %v5988 = vmul.f32 %v5920, %v275
      %v5989 = vmul.f32 %v5920, %v279
      %v5990 = vmul.f32 %v5925, %v275
      %v5991 = vmul.f32 %v5925, %v279
      %v5992 = vmul.f32 %v5930, %v275
      %v5993 = vmul.f32 %v5930, %v279
      %v5994 = vmul.f32 %v5935, %v275
      %v5995 = vmul.f32 %v5935, %v279
      %v5996 = vmul.f32 %v5940, %v275
      %v5997 = vmul.f32 %v5940, %v279
      %v5998 = vmul.f32 %v5945, %v275
      %v5999 = vmul.f32 %v5945, %v279
      %v6000 = vmul.f32 %v5950, %v275
      %v6001 = vmul.f32 %v5950, %v279
      %v6002 = vmul.f32 %v5955, %v275
      %v6003 = vmul.f32 %v5955, %v279
      %v6004 = vmul.f32 %v5960, %v275
      %v6005 = vmul.f32 %v5960, %v279
      %v6006 = vmul.f32 %v5965, %v275
      %v6007 = vmul.f32 %v5965, %v279
      %v6008 = vmul.f32 %v5970, %v275
      %v6009 = vmul.f32 %v5970, %v279
      %v6010 = vmul.f32 %v5975, %v275
      %v6011 = vmul.f32 %v5975, %v279
      %v6012 = vmul.f32 %v5980, %v275
      %v6013 = vmul.f32 %v5980, %v279
      %6014 = vset.pattern.permute.xlu0 1
      %6015 = vperm.xlu0 %6014, %v5886
      %v6016 = vpop.permute.xlu0 %6015
      %6018 = vset.pattern.permute.xlu0 1
      %6019 = vperm.xlu0 %6018, %v5887
      %v6020 = vpop.permute.xlu0 %6019
      %6022 = vset.pattern.permute.xlu0 1
      %6023 = vperm.xlu0 %6022, %v5888
      %v6024 = vpop.permute.xlu0 %6023
      %6026 = vset.pattern.permute.xlu0 1
      %6027 = vperm.xlu0 %6026, %v5889
      %v6028 = vpop.permute.xlu0 %6027
      %6030 = vset.pattern.permute.xlu0 1
      %6031 = vperm.xlu0 %6030, %v5890
      %v6032 = vpop.permute.xlu0 %6031
      %6034 = vset.pattern.permute.xlu0 1
      %6035 = vperm.xlu0 %6034, %v5891
      %v6036 = vpop.permute.xlu0 %6035
      %6038 = vset.pattern.permute.xlu0 1
      %6039 = vperm.xlu0 %6038, %v5892
      %v6040 = vpop.permute.xlu0 %6039
      %6042 = vset.pattern.permute.xlu0 1
      %6043 = vperm.xlu0 %6042, %v5893
      %v6044 = vpop.permute.xlu0 %6043
      %6046 = vset.pattern.permute.xlu0 1
      %6047 = vperm.xlu0 %6046, %v5894
      %v6048 = vpop.permute.xlu0 %6047
      %6050 = vset.pattern.permute.xlu0 1
      %6051 = vperm.xlu0 %6050, %v5895
      %v6052 = vpop.permute.xlu0 %6051
      %6054 = vset.pattern.permute.xlu0 1
      %6055 = vperm.xlu0 %6054, %v5896
      %v6056 = vpop.permute.xlu0 %6055
      %6058 = vset.pattern.permute.xlu0 1
      %6059 = vperm.xlu0 %6058, %v5897
      %v6060 = vpop.permute.xlu0 %6059
      %6062 = vset.pattern.permute.xlu0 1
      %6063 = vperm.xlu0 %6062, %v5898
      %v6064 = vpop.permute.xlu0 %6063
      %6066 = vset.pattern.permute.xlu0 1
      %6067 = vperm.xlu0 %6066, %v5899
      %v6068 = vpop.permute.xlu0 %6067
      %6070 = vset.pattern.permute.xlu0 1
      %6071 = vperm.xlu0 %6070, %v5900
      %v6072 = vpop.permute.xlu0 %6071
      %6074 = vset.pattern.permute.xlu0 1
      %6075 = vperm.xlu0 %6074, %v5901
      %v6076 = vpop.permute.xlu0 %6075
      %v6078 = vmul.f32 %v6016, %v379
      %v6079 = vmul.f32 %v6016, %v383
      %v6080 = vmul.f32 %v6020, %v379
      %v6081 = vmul.f32 %v6020, %v383
      %v6082 = vmul.f32 %v6024, %v379
      %v6083 = vmul.f32 %v6024, %v383
      %v6084 = vmul.f32 %v6028, %v379
      %v6085 = vmul.f32 %v6028, %v383
      %v6086 = vmul.f32 %v6032, %v379
      %v6087 = vmul.f32 %v6032, %v383
      %v6088 = vmul.f32 %v6036, %v379
      %v6089 = vmul.f32 %v6036, %v383
      %v6090 = vmul.f32 %v6040, %v379
      %v6091 = vmul.f32 %v6040, %v383
      %v6092 = vmul.f32 %v6044, %v379
      %v6093 = vmul.f32 %v6044, %v383
      %v6094 = vmul.f32 %v6048, %v379
      %v6095 = vmul.f32 %v6048, %v383
      %v6096 = vmul.f32 %v6052, %v379
      %v6097 = vmul.f32 %v6052, %v383
      %v6098 = vmul.f32 %v6056, %v379
      %v6099 = vmul.f32 %v6056, %v383
      %v6100 = vmul.f32 %v6060, %v379
      %v6101 = vmul.f32 %v6060, %v383
      %v6102 = vmul.f32 %v6064, %v379
      %v6103 = vmul.f32 %v6064, %v383
      %v6104 = vmul.f32 %v6068, %v379
      %v6105 = vmul.f32 %v6068, %v383
      %v6106 = vmul.f32 %v6072, %v379
      %v6107 = vmul.f32 %v6072, %v383
      %v6108 = vmul.f32 %v6076, %v379
      %v6109 = vmul.f32 %v6076, %v383
      %v6110 = vadd.f32 %v5982, %v6078
      %v6111 = vadd.f32 %v5983, %v6079
      %v6112 = vadd.f32 %v5984, %v6080
      %v6113 = vadd.f32 %v5985, %v6081
      %v6114 = vadd.f32 %v5986, %v6082
      %v6115 = vadd.f32 %v5987, %v6083
      %v6116 = vadd.f32 %v5988, %v6084
      %v6117 = vadd.f32 %v5989, %v6085
      %v6118 = vadd.f32 %v5990, %v6086
      %v6119 = vadd.f32 %v5991, %v6087
      %v6120 = vadd.f32 %v5992, %v6088
      %v6121 = vadd.f32 %v5993, %v6089
      %v6122 = vadd.f32 %v5994, %v6090
      %v6123 = vadd.f32 %v5995, %v6091
      %v6124 = vadd.f32 %v5996, %v6092
      %v6125 = vadd.f32 %v5997, %v6093
      %v6126 = vadd.f32 %v5998, %v6094
      %v6127 = vadd.f32 %v5999, %v6095
      %v6128 = vadd.f32 %v6000, %v6096
      %v6129 = vadd.f32 %v6001, %v6097
      %v6130 = vadd.f32 %v6002, %v6098
      %v6131 = vadd.f32 %v6003, %v6099
      %v6132 = vadd.f32 %v6004, %v6100
      %v6133 = vadd.f32 %v6005, %v6101
      %v6134 = vadd.f32 %v6006, %v6102
      %v6135 = vadd.f32 %v6007, %v6103
      %v6136 = vadd.f32 %v6008, %v6104
      %v6137 = vadd.f32 %v6009, %v6105
      %v6138 = vadd.f32 %v6010, %v6106
      %v6139 = vadd.f32 %v6011, %v6107
      %v6140 = vadd.f32 %v6012, %v6108
      %v6141 = vadd.f32 %v6013, %v6109
      %6142 = vset.pattern.permute.xlu0 2
      %6143 = vperm.xlu0 %6142, %v5886
      %v6144 = vpop.permute.xlu0 %6143
      %6146 = vset.pattern.permute.xlu0 2
      %6147 = vperm.xlu0 %6146, %v5887
      %v6148 = vpop.permute.xlu0 %6147
      %6150 = vset.pattern.permute.xlu0 2
      %6151 = vperm.xlu0 %6150, %v5888
      %v6152 = vpop.permute.xlu0 %6151
      %6154 = vset.pattern.permute.xlu0 2
      %6155 = vperm.xlu0 %6154, %v5889
      %v6156 = vpop.permute.xlu0 %6155
      %6158 = vset.pattern.permute.xlu0 2
      %6159 = vperm.xlu0 %6158, %v5890
      %v6160 = vpop.permute.xlu0 %6159
      %6162 = vset.pattern.permute.xlu0 2
      %6163 = vperm.xlu0 %6162, %v5891
      %v6164 = vpop.permute.xlu0 %6163
      %6166 = vset.pattern.permute.xlu0 2
      %6167 = vperm.xlu0 %6166, %v5892
      %v6168 = vpop.permute.xlu0 %6167
      %6170 = vset.pattern.permute.xlu0 2
      %6171 = vperm.xlu0 %6170, %v5893
      %v6172 = vpop.permute.xlu0 %6171
      %6174 = vset.pattern.permute.xlu0 2
      %6175 = vperm.xlu0 %6174, %v5894
      %v6176 = vpop.permute.xlu0 %6175
      %6178 = vset.pattern.permute.xlu0 2
      %6179 = vperm.xlu0 %6178, %v5895
      %v6180 = vpop.permute.xlu0 %6179
      %6182 = vset.pattern.permute.xlu0 2
      %6183 = vperm.xlu0 %6182, %v5896
      %v6184 = vpop.permute.xlu0 %6183
      %6186 = vset.pattern.permute.xlu0 2
      %6187 = vperm.xlu0 %6186, %v5897
      %v6188 = vpop.permute.xlu0 %6187
      %6190 = vset.pattern.permute.xlu0 2
      %6191 = vperm.xlu0 %6190, %v5898
      %v6192 = vpop.permute.xlu0 %6191
      %6194 = vset.pattern.permute.xlu0 2
      %6195 = vperm.xlu0 %6194, %v5899
      %v6196 = vpop.permute.xlu0 %6195
      %6198 = vset.pattern.permute.xlu0 2
      %6199 = vperm.xlu0 %6198, %v5900
      %v6200 = vpop.permute.xlu0 %6199
      %6202 = vset.pattern.permute.xlu0 2
      %6203 = vperm.xlu0 %6202, %v5901
      %v6204 = vpop.permute.xlu0 %6203
      %v6206 = vmul.f32 %v6144, %v515
      %v6207 = vmul.f32 %v6144, %v519
      %v6208 = vmul.f32 %v6148, %v515
      %v6209 = vmul.f32 %v6148, %v519
      %v6210 = vmul.f32 %v6152, %v515
      %v6211 = vmul.f32 %v6152, %v519
      %v6212 = vmul.f32 %v6156, %v515
      %v6213 = vmul.f32 %v6156, %v519
      %v6214 = vmul.f32 %v6160, %v515
      %v6215 = vmul.f32 %v6160, %v519
      %v6216 = vmul.f32 %v6164, %v515
      %v6217 = vmul.f32 %v6164, %v519
      %v6218 = vmul.f32 %v6168, %v515
      %v6219 = vmul.f32 %v6168, %v519
      %v6220 = vmul.f32 %v6172, %v515
      %v6221 = vmul.f32 %v6172, %v519
      %v6222 = vmul.f32 %v6176, %v515
      %v6223 = vmul.f32 %v6176, %v519
      %v6224 = vmul.f32 %v6180, %v515
      %v6225 = vmul.f32 %v6180, %v519
      %v6226 = vmul.f32 %v6184, %v515
      %v6227 = vmul.f32 %v6184, %v519
      %v6228 = vmul.f32 %v6188, %v515
      %v6229 = vmul.f32 %v6188, %v519
      %v6230 = vmul.f32 %v6192, %v515
      %v6231 = vmul.f32 %v6192, %v519
      %v6232 = vmul.f32 %v6196, %v515
      %v6233 = vmul.f32 %v6196, %v519
      %v6234 = vmul.f32 %v6200, %v515
      %v6235 = vmul.f32 %v6200, %v519
      %v6236 = vmul.f32 %v6204, %v515
      %v6237 = vmul.f32 %v6204, %v519
      %v6238 = vadd.f32 %v6110, %v6206
      %v6239 = vadd.f32 %v6111, %v6207
      %v6240 = vadd.f32 %v6112, %v6208
      %v6241 = vadd.f32 %v6113, %v6209
      %v6242 = vadd.f32 %v6114, %v6210
      %v6243 = vadd.f32 %v6115, %v6211
      %v6244 = vadd.f32 %v6116, %v6212
      %v6245 = vadd.f32 %v6117, %v6213
      %v6246 = vadd.f32 %v6118, %v6214
      %v6247 = vadd.f32 %v6119, %v6215
      %v6248 = vadd.f32 %v6120, %v6216
      %v6249 = vadd.f32 %v6121, %v6217
      %v6250 = vadd.f32 %v6122, %v6218
      %v6251 = vadd.f32 %v6123, %v6219
      %v6252 = vadd.f32 %v6124, %v6220
      %v6253 = vadd.f32 %v6125, %v6221
      %v6254 = vadd.f32 %v6126, %v6222
      %v6255 = vadd.f32 %v6127, %v6223
      %v6256 = vadd.f32 %v6128, %v6224
      %v6257 = vadd.f32 %v6129, %v6225
      %v6258 = vadd.f32 %v6130, %v6226
      %v6259 = vadd.f32 %v6131, %v6227
      %v6260 = vadd.f32 %v6132, %v6228
      %v6261 = vadd.f32 %v6133, %v6229
      %v6262 = vadd.f32 %v6134, %v6230
      %v6263 = vadd.f32 %v6135, %v6231
      %v6264 = vadd.f32 %v6136, %v6232
      %v6265 = vadd.f32 %v6137, %v6233
      %v6266 = vadd.f32 %v6138, %v6234
      %v6267 = vadd.f32 %v6139, %v6235
      %v6268 = vadd.f32 %v6140, %v6236
      %v6269 = vadd.f32 %v6141, %v6237
      %6270 = vset.pattern.permute.xlu0 3
      %6271 = vperm.xlu0 %6270, %v5886
      %v6272 = vpop.permute.xlu0 %6271
      %6274 = vset.pattern.permute.xlu0 3
      %6275 = vperm.xlu0 %6274, %v5887
      %v6276 = vpop.permute.xlu0 %6275
      %6278 = vset.pattern.permute.xlu0 3
      %6279 = vperm.xlu0 %6278, %v5888
      %v6280 = vpop.permute.xlu0 %6279
      %6282 = vset.pattern.permute.xlu0 3
      %6283 = vperm.xlu0 %6282, %v5889
      %v6284 = vpop.permute.xlu0 %6283
      %6286 = vset.pattern.permute.xlu0 3
      %6287 = vperm.xlu0 %6286, %v5890
      %v6288 = vpop.permute.xlu0 %6287
      %6290 = vset.pattern.permute.xlu0 3
      %6291 = vperm.xlu0 %6290, %v5891
      %v6292 = vpop.permute.xlu0 %6291
      %6294 = vset.pattern.permute.xlu0 3
      %6295 = vperm.xlu0 %6294, %v5892
      %v6296 = vpop.permute.xlu0 %6295
      %6298 = vset.pattern.permute.xlu0 3
      %6299 = vperm.xlu0 %6298, %v5893
      %v6300 = vpop.permute.xlu0 %6299
      %6302 = vset.pattern.permute.xlu0 3
      %6303 = vperm.xlu0 %6302, %v5894
      %v6304 = vpop.permute.xlu0 %6303
      %6306 = vset.pattern.permute.xlu0 3
      %6307 = vperm.xlu0 %6306, %v5895
      %v6308 = vpop.permute.xlu0 %6307
      %6310 = vset.pattern.permute.xlu0 3
      %6311 = vperm.xlu0 %6310, %v5896
      %v6312 = vpop.permute.xlu0 %6311
      %6314 = vset.pattern.permute.xlu0 3
      %6315 = vperm.xlu0 %6314, %v5897
      %v6316 = vpop.permute.xlu0 %6315
      %6318 = vset.pattern.permute.xlu0 3
      %6319 = vperm.xlu0 %6318, %v5898
      %v6320 = vpop.permute.xlu0 %6319
      %6322 = vset.pattern.permute.xlu0 3
      %6323 = vperm.xlu0 %6322, %v5899
      %v6324 = vpop.permute.xlu0 %6323
      %6326 = vset.pattern.permute.xlu0 3
      %6327 = vperm.xlu0 %6326, %v5900
      %v6328 = vpop.permute.xlu0 %6327
      %6330 = vset.pattern.permute.xlu0 3
      %6331 = vperm.xlu0 %6330, %v5901
      %v6332 = vpop.permute.xlu0 %6331
      %v6334 = vmul.f32 %v6272, %v651
      %v6335 = vmul.f32 %v6272, %v655
      %v6336 = vmul.f32 %v6276, %v651
      %v6337 = vmul.f32 %v6276, %v655
      %v6338 = vmul.f32 %v6280, %v651
      %v6339 = vmul.f32 %v6280, %v655
      %v6340 = vmul.f32 %v6284, %v651
      %v6341 = vmul.f32 %v6284, %v655
      %v6342 = vmul.f32 %v6288, %v651
      %v6343 = vmul.f32 %v6288, %v655
      %v6344 = vmul.f32 %v6292, %v651
      %v6345 = vmul.f32 %v6292, %v655
      %v6346 = vmul.f32 %v6296, %v651
      %v6347 = vmul.f32 %v6296, %v655
      %v6348 = vmul.f32 %v6300, %v651
      %v6349 = vmul.f32 %v6300, %v655
      %v6350 = vmul.f32 %v6304, %v651
      %v6351 = vmul.f32 %v6304, %v655
      %v6352 = vmul.f32 %v6308, %v651
      %v6353 = vmul.f32 %v6308, %v655
      %v6354 = vmul.f32 %v6312, %v651
      %v6355 = vmul.f32 %v6312, %v655
      %v6356 = vmul.f32 %v6316, %v651
      %v6357 = vmul.f32 %v6316, %v655
      %v6358 = vmul.f32 %v6320, %v651
      %v6359 = vmul.f32 %v6320, %v655
      %v6360 = vmul.f32 %v6324, %v651
      %v6361 = vmul.f32 %v6324, %v655
      %v6362 = vmul.f32 %v6328, %v651
      %v6363 = vmul.f32 %v6328, %v655
      %v6364 = vmul.f32 %v6332, %v651
      %v6365 = vmul.f32 %v6332, %v655
      %v6366 = vadd.f32 %v6238, %v6334
      %v6367 = vadd.f32 %v6239, %v6335
      %v6368 = vadd.f32 %v6240, %v6336
      %v6369 = vadd.f32 %v6241, %v6337
      %v6370 = vadd.f32 %v6242, %v6338
      %v6371 = vadd.f32 %v6243, %v6339
      %v6372 = vadd.f32 %v6244, %v6340
      %v6373 = vadd.f32 %v6245, %v6341
      %v6374 = vadd.f32 %v6246, %v6342
      %v6375 = vadd.f32 %v6247, %v6343
      %v6376 = vadd.f32 %v6248, %v6344
      %v6377 = vadd.f32 %v6249, %v6345
      %v6378 = vadd.f32 %v6250, %v6346
      %v6379 = vadd.f32 %v6251, %v6347
      %v6380 = vadd.f32 %v6252, %v6348
      %v6381 = vadd.f32 %v6253, %v6349
      %v6382 = vadd.f32 %v6254, %v6350
      %v6383 = vadd.f32 %v6255, %v6351
      %v6384 = vadd.f32 %v6256, %v6352
      %v6385 = vadd.f32 %v6257, %v6353
      %v6386 = vadd.f32 %v6258, %v6354
      %v6387 = vadd.f32 %v6259, %v6355
      %v6388 = vadd.f32 %v6260, %v6356
      %v6389 = vadd.f32 %v6261, %v6357
      %v6390 = vadd.f32 %v6262, %v6358
      %v6391 = vadd.f32 %v6263, %v6359
      %v6392 = vadd.f32 %v6264, %v6360
      %v6393 = vadd.f32 %v6265, %v6361
      %v6394 = vadd.f32 %v6266, %v6362
      %v6395 = vadd.f32 %v6267, %v6363
      %v6396 = vadd.f32 %v6268, %v6364
      %v6397 = vadd.f32 %v6269, %v6365
      %6398 = vset.pattern.permute.xlu0 4
      %6399 = vperm.xlu0 %6398, %v5886
      %v6400 = vpop.permute.xlu0 %6399
      %6402 = vset.pattern.permute.xlu0 4
      %6403 = vperm.xlu0 %6402, %v5887
      %v6404 = vpop.permute.xlu0 %6403
      %6406 = vset.pattern.permute.xlu0 4
      %6407 = vperm.xlu0 %6406, %v5888
      %v6408 = vpop.permute.xlu0 %6407
      %6410 = vset.pattern.permute.xlu0 4
      %6411 = vperm.xlu0 %6410, %v5889
      %v6412 = vpop.permute.xlu0 %6411
      %6414 = vset.pattern.permute.xlu0 4
      %6415 = vperm.xlu0 %6414, %v5890
      %v6416 = vpop.permute.xlu0 %6415
      %6418 = vset.pattern.permute.xlu0 4
      %6419 = vperm.xlu0 %6418, %v5891
      %v6420 = vpop.permute.xlu0 %6419
      %6422 = vset.pattern.permute.xlu0 4
      %6423 = vperm.xlu0 %6422, %v5892
      %v6424 = vpop.permute.xlu0 %6423
      %6426 = vset.pattern.permute.xlu0 4
      %6427 = vperm.xlu0 %6426, %v5893
      %v6428 = vpop.permute.xlu0 %6427
      %6430 = vset.pattern.permute.xlu0 4
      %6431 = vperm.xlu0 %6430, %v5894
      %v6432 = vpop.permute.xlu0 %6431
      %6434 = vset.pattern.permute.xlu0 4
      %6435 = vperm.xlu0 %6434, %v5895
      %v6436 = vpop.permute.xlu0 %6435
      %6438 = vset.pattern.permute.xlu0 4
      %6439 = vperm.xlu0 %6438, %v5896
      %v6440 = vpop.permute.xlu0 %6439
      %6442 = vset.pattern.permute.xlu0 4
      %6443 = vperm.xlu0 %6442, %v5897
      %v6444 = vpop.permute.xlu0 %6443
      %6446 = vset.pattern.permute.xlu0 4
      %6447 = vperm.xlu0 %6446, %v5898
      %v6448 = vpop.permute.xlu0 %6447
      %6450 = vset.pattern.permute.xlu0 4
      %6451 = vperm.xlu0 %6450, %v5899
      %v6452 = vpop.permute.xlu0 %6451
      %6454 = vset.pattern.permute.xlu0 4
      %6455 = vperm.xlu0 %6454, %v5900
      %v6456 = vpop.permute.xlu0 %6455
      %6458 = vset.pattern.permute.xlu0 4
      %6459 = vperm.xlu0 %6458, %v5901
      %v6460 = vpop.permute.xlu0 %6459
      %v6462 = vmul.f32 %v6400, %v787
      %v6463 = vmul.f32 %v6400, %v791
      %v6464 = vmul.f32 %v6404, %v787
      %v6465 = vmul.f32 %v6404, %v791
      %v6466 = vmul.f32 %v6408, %v787
      %v6467 = vmul.f32 %v6408, %v791
      %v6468 = vmul.f32 %v6412, %v787
      %v6469 = vmul.f32 %v6412, %v791
      %v6470 = vmul.f32 %v6416, %v787
      %v6471 = vmul.f32 %v6416, %v791
      %v6472 = vmul.f32 %v6420, %v787
      %v6473 = vmul.f32 %v6420, %v791
      %v6474 = vmul.f32 %v6424, %v787
      %v6475 = vmul.f32 %v6424, %v791
      %v6476 = vmul.f32 %v6428, %v787
      %v6477 = vmul.f32 %v6428, %v791
      %v6478 = vmul.f32 %v6432, %v787
      %v6479 = vmul.f32 %v6432, %v791
      %v6480 = vmul.f32 %v6436, %v787
      %v6481 = vmul.f32 %v6436, %v791
      %v6482 = vmul.f32 %v6440, %v787
      %v6483 = vmul.f32 %v6440, %v791
      %v6484 = vmul.f32 %v6444, %v787
      %v6485 = vmul.f32 %v6444, %v791
      %v6486 = vmul.f32 %v6448, %v787
      %v6487 = vmul.f32 %v6448, %v791
      %v6488 = vmul.f32 %v6452, %v787
      %v6489 = vmul.f32 %v6452, %v791
      %v6490 = vmul.f32 %v6456, %v787
      %v6491 = vmul.f32 %v6456, %v791
      %v6492 = vmul.f32 %v6460, %v787
      %v6493 = vmul.f32 %v6460, %v791
      %v6494 = vadd.f32 %v6366, %v6462
      %v6495 = vadd.f32 %v6367, %v6463
      %v6496 = vadd.f32 %v6368, %v6464
      %v6497 = vadd.f32 %v6369, %v6465
      %v6498 = vadd.f32 %v6370, %v6466
      %v6499 = vadd.f32 %v6371, %v6467
      %v6500 = vadd.f32 %v6372, %v6468
      %v6501 = vadd.f32 %v6373, %v6469
      %v6502 = vadd.f32 %v6374, %v6470
      %v6503 = vadd.f32 %v6375, %v6471
      %v6504 = vadd.f32 %v6376, %v6472
      %v6505 = vadd.f32 %v6377, %v6473
      %v6506 = vadd.f32 %v6378, %v6474
      %v6507 = vadd.f32 %v6379, %v6475
      %v6508 = vadd.f32 %v6380, %v6476
      %v6509 = vadd.f32 %v6381, %v6477
      %v6510 = vadd.f32 %v6382, %v6478
      %v6511 = vadd.f32 %v6383, %v6479
      %v6512 = vadd.f32 %v6384, %v6480
      %v6513 = vadd.f32 %v6385, %v6481
      %v6514 = vadd.f32 %v6386, %v6482
      %v6515 = vadd.f32 %v6387, %v6483
      %v6516 = vadd.f32 %v6388, %v6484
      %v6517 = vadd.f32 %v6389, %v6485
      %v6518 = vadd.f32 %v6390, %v6486
      %v6519 = vadd.f32 %v6391, %v6487
      %v6520 = vadd.f32 %v6392, %v6488
      %v6521 = vadd.f32 %v6393, %v6489
      %v6522 = vadd.f32 %v6394, %v6490
      %v6523 = vadd.f32 %v6395, %v6491
      %v6524 = vadd.f32 %v6396, %v6492
      %v6525 = vadd.f32 %v6397, %v6493
      %6526 = vset.pattern.permute.xlu0 5
      %6527 = vperm.xlu0 %6526, %v5886
      %v6528 = vpop.permute.xlu0 %6527
      %6530 = vset.pattern.permute.xlu0 5
      %6531 = vperm.xlu0 %6530, %v5887
      %v6532 = vpop.permute.xlu0 %6531
      %6534 = vset.pattern.permute.xlu0 5
      %6535 = vperm.xlu0 %6534, %v5888
      %v6536 = vpop.permute.xlu0 %6535
      %6538 = vset.pattern.permute.xlu0 5
      %6539 = vperm.xlu0 %6538, %v5889
      %v6540 = vpop.permute.xlu0 %6539
      %6542 = vset.pattern.permute.xlu0 5
      %6543 = vperm.xlu0 %6542, %v5890
      %v6544 = vpop.permute.xlu0 %6543
      %6546 = vset.pattern.permute.xlu0 5
      %6547 = vperm.xlu0 %6546, %v5891
      %v6548 = vpop.permute.xlu0 %6547
      %6550 = vset.pattern.permute.xlu0 5
      %6551 = vperm.xlu0 %6550, %v5892
      %v6552 = vpop.permute.xlu0 %6551
      %6554 = vset.pattern.permute.xlu0 5
      %6555 = vperm.xlu0 %6554, %v5893
      %v6556 = vpop.permute.xlu0 %6555
      %6558 = vset.pattern.permute.xlu0 5
      %6559 = vperm.xlu0 %6558, %v5894
      %v6560 = vpop.permute.xlu0 %6559
      %6562 = vset.pattern.permute.xlu0 5
      %6563 = vperm.xlu0 %6562, %v5895
      %v6564 = vpop.permute.xlu0 %6563
      %6566 = vset.pattern.permute.xlu0 5
      %6567 = vperm.xlu0 %6566, %v5896
      %v6568 = vpop.permute.xlu0 %6567
      %6570 = vset.pattern.permute.xlu0 5
      %6571 = vperm.xlu0 %6570, %v5897
      %v6572 = vpop.permute.xlu0 %6571
      %6574 = vset.pattern.permute.xlu0 5
      %6575 = vperm.xlu0 %6574, %v5898
      %v6576 = vpop.permute.xlu0 %6575
      %6578 = vset.pattern.permute.xlu0 5
      %6579 = vperm.xlu0 %6578, %v5899
      %v6580 = vpop.permute.xlu0 %6579
      %6582 = vset.pattern.permute.xlu0 5
      %6583 = vperm.xlu0 %6582, %v5900
      %v6584 = vpop.permute.xlu0 %6583
      %6586 = vset.pattern.permute.xlu0 5
      %6587 = vperm.xlu0 %6586, %v5901
      %v6588 = vpop.permute.xlu0 %6587
      %v6590 = vmul.f32 %v6528, %v923
      %v6591 = vmul.f32 %v6528, %v927
      %v6592 = vmul.f32 %v6532, %v923
      %v6593 = vmul.f32 %v6532, %v927
      %v6594 = vmul.f32 %v6536, %v923
      %v6595 = vmul.f32 %v6536, %v927
      %v6596 = vmul.f32 %v6540, %v923
      %v6597 = vmul.f32 %v6540, %v927
      %v6598 = vmul.f32 %v6544, %v923
      %v6599 = vmul.f32 %v6544, %v927
      %v6600 = vmul.f32 %v6548, %v923
      %v6601 = vmul.f32 %v6548, %v927
      %v6602 = vmul.f32 %v6552, %v923
      %v6603 = vmul.f32 %v6552, %v927
      %v6604 = vmul.f32 %v6556, %v923
      %v6605 = vmul.f32 %v6556, %v927
      %v6606 = vmul.f32 %v6560, %v923
      %v6607 = vmul.f32 %v6560, %v927
      %v6608 = vmul.f32 %v6564, %v923
      %v6609 = vmul.f32 %v6564, %v927
      %v6610 = vmul.f32 %v6568, %v923
      %v6611 = vmul.f32 %v6568, %v927
      %v6612 = vmul.f32 %v6572, %v923
      %v6613 = vmul.f32 %v6572, %v927
      %v6614 = vmul.f32 %v6576, %v923
      %v6615 = vmul.f32 %v6576, %v927
      %v6616 = vmul.f32 %v6580, %v923
      %v6617 = vmul.f32 %v6580, %v927
      %v6618 = vmul.f32 %v6584, %v923
      %v6619 = vmul.f32 %v6584, %v927
      %v6620 = vmul.f32 %v6588, %v923
      %v6621 = vmul.f32 %v6588, %v927
      %v6622 = vadd.f32 %v6494, %v6590
      %v6623 = vadd.f32 %v6495, %v6591
      %v6624 = vadd.f32 %v6496, %v6592
      %v6625 = vadd.f32 %v6497, %v6593
      %v6626 = vadd.f32 %v6498, %v6594
      %v6627 = vadd.f32 %v6499, %v6595
      %v6628 = vadd.f32 %v6500, %v6596
      %v6629 = vadd.f32 %v6501, %v6597
      %v6630 = vadd.f32 %v6502, %v6598
      %v6631 = vadd.f32 %v6503, %v6599
      %v6632 = vadd.f32 %v6504, %v6600
      %v6633 = vadd.f32 %v6505, %v6601
      %v6634 = vadd.f32 %v6506, %v6602
      %v6635 = vadd.f32 %v6507, %v6603
      %v6636 = vadd.f32 %v6508, %v6604
      %v6637 = vadd.f32 %v6509, %v6605
      %v6638 = vadd.f32 %v6510, %v6606
      %v6639 = vadd.f32 %v6511, %v6607
      %v6640 = vadd.f32 %v6512, %v6608
      %v6641 = vadd.f32 %v6513, %v6609
      %v6642 = vadd.f32 %v6514, %v6610
      %v6643 = vadd.f32 %v6515, %v6611
      %v6644 = vadd.f32 %v6516, %v6612
      %v6645 = vadd.f32 %v6517, %v6613
      %v6646 = vadd.f32 %v6518, %v6614
      %v6647 = vadd.f32 %v6519, %v6615
      %v6648 = vadd.f32 %v6520, %v6616
      %v6649 = vadd.f32 %v6521, %v6617
      %v6650 = vadd.f32 %v6522, %v6618
      %v6651 = vadd.f32 %v6523, %v6619
      %v6652 = vadd.f32 %v6524, %v6620
      %v6653 = vadd.f32 %v6525, %v6621
      %6654 = vset.pattern.permute.xlu0 6
      %6655 = vperm.xlu0 %6654, %v5886
      %v6656 = vpop.permute.xlu0 %6655
      %6658 = vset.pattern.permute.xlu0 6
      %6659 = vperm.xlu0 %6658, %v5887
      %v6660 = vpop.permute.xlu0 %6659
      %6662 = vset.pattern.permute.xlu0 6
      %6663 = vperm.xlu0 %6662, %v5888
      %v6664 = vpop.permute.xlu0 %6663
      %6666 = vset.pattern.permute.xlu0 6
      %6667 = vperm.xlu0 %6666, %v5889
      %v6668 = vpop.permute.xlu0 %6667
      %6670 = vset.pattern.permute.xlu0 6
      %6671 = vperm.xlu0 %6670, %v5890
      %v6672 = vpop.permute.xlu0 %6671
      %6674 = vset.pattern.permute.xlu0 6
      %6675 = vperm.xlu0 %6674, %v5891
      %v6676 = vpop.permute.xlu0 %6675
      %6678 = vset.pattern.permute.xlu0 6
      %6679 = vperm.xlu0 %6678, %v5892
      %v6680 = vpop.permute.xlu0 %6679
      %6682 = vset.pattern.permute.xlu0 6
      %6683 = vperm.xlu0 %6682, %v5893
      %v6684 = vpop.permute.xlu0 %6683
      %6686 = vset.pattern.permute.xlu0 6
      %6687 = vperm.xlu0 %6686, %v5894
      %v6688 = vpop.permute.xlu0 %6687
      %6690 = vset.pattern.permute.xlu0 6
      %6691 = vperm.xlu0 %6690, %v5895
      %v6692 = vpop.permute.xlu0 %6691
      %6694 = vset.pattern.permute.xlu0 6
      %6695 = vperm.xlu0 %6694, %v5896
      %v6696 = vpop.permute.xlu0 %6695
      %6698 = vset.pattern.permute.xlu0 6
      %6699 = vperm.xlu0 %6698, %v5897
      %v6700 = vpop.permute.xlu0 %6699
      %6702 = vset.pattern.permute.xlu0 6
      %6703 = vperm.xlu0 %6702, %v5898
      %v6704 = vpop.permute.xlu0 %6703
      %6706 = vset.pattern.permute.xlu0 6
      %6707 = vperm.xlu0 %6706, %v5899
      %v6708 = vpop.permute.xlu0 %6707
      %6710 = vset.pattern.permute.xlu0 6
      %6711 = vperm.xlu0 %6710, %v5900
      %v6712 = vpop.permute.xlu0 %6711
      %6714 = vset.pattern.permute.xlu0 6
      %6715 = vperm.xlu0 %6714, %v5901
      %v6716 = vpop.permute.xlu0 %6715
      %v6718 = vmul.f32 %v6656, %v1059
      %v6719 = vmul.f32 %v6656, %v1063
      %v6720 = vmul.f32 %v6660, %v1059
      %v6721 = vmul.f32 %v6660, %v1063
      %v6722 = vmul.f32 %v6664, %v1059
      %v6723 = vmul.f32 %v6664, %v1063
      %v6724 = vmul.f32 %v6668, %v1059
      %v6725 = vmul.f32 %v6668, %v1063
      %v6726 = vmul.f32 %v6672, %v1059
      %v6727 = vmul.f32 %v6672, %v1063
      %v6728 = vmul.f32 %v6676, %v1059
      %v6729 = vmul.f32 %v6676, %v1063
      %v6730 = vmul.f32 %v6680, %v1059
      %v6731 = vmul.f32 %v6680, %v1063
      %v6732 = vmul.f32 %v6684, %v1059
      %v6733 = vmul.f32 %v6684, %v1063
      %v6734 = vmul.f32 %v6688, %v1059
      %v6735 = vmul.f32 %v6688, %v1063
      %v6736 = vmul.f32 %v6692, %v1059
      %v6737 = vmul.f32 %v6692, %v1063
      %v6738 = vmul.f32 %v6696, %v1059
      %v6739 = vmul.f32 %v6696, %v1063
      %v6740 = vmul.f32 %v6700, %v1059
      %v6741 = vmul.f32 %v6700, %v1063
      %v6742 = vmul.f32 %v6704, %v1059
      %v6743 = vmul.f32 %v6704, %v1063
      %v6744 = vmul.f32 %v6708, %v1059
      %v6745 = vmul.f32 %v6708, %v1063
      %v6746 = vmul.f32 %v6712, %v1059
      %v6747 = vmul.f32 %v6712, %v1063
      %v6748 = vmul.f32 %v6716, %v1059
      %v6749 = vmul.f32 %v6716, %v1063
      %v6750 = vadd.f32 %v6622, %v6718
      %v6751 = vadd.f32 %v6623, %v6719
      %v6752 = vadd.f32 %v6624, %v6720
      %v6753 = vadd.f32 %v6625, %v6721
      %v6754 = vadd.f32 %v6626, %v6722
      %v6755 = vadd.f32 %v6627, %v6723
      %v6756 = vadd.f32 %v6628, %v6724
      %v6757 = vadd.f32 %v6629, %v6725
      %v6758 = vadd.f32 %v6630, %v6726
      %v6759 = vadd.f32 %v6631, %v6727
      %v6760 = vadd.f32 %v6632, %v6728
      %v6761 = vadd.f32 %v6633, %v6729
      %v6762 = vadd.f32 %v6634, %v6730
      %v6763 = vadd.f32 %v6635, %v6731
      %v6764 = vadd.f32 %v6636, %v6732
      %v6765 = vadd.f32 %v6637, %v6733
      %v6766 = vadd.f32 %v6638, %v6734
      %v6767 = vadd.f32 %v6639, %v6735
      %v6768 = vadd.f32 %v6640, %v6736
      %v6769 = vadd.f32 %v6641, %v6737
      %v6770 = vadd.f32 %v6642, %v6738
      %v6771 = vadd.f32 %v6643, %v6739
      %v6772 = vadd.f32 %v6644, %v6740
      %v6773 = vadd.f32 %v6645, %v6741
      %v6774 = vadd.f32 %v6646, %v6742
      %v6775 = vadd.f32 %v6647, %v6743
      %v6776 = vadd.f32 %v6648, %v6744
      %v6777 = vadd.f32 %v6649, %v6745
      %v6778 = vadd.f32 %v6650, %v6746
      %v6779 = vadd.f32 %v6651, %v6747
      %v6780 = vadd.f32 %v6652, %v6748
      %v6781 = vadd.f32 %v6653, %v6749
      %6782 = vset.pattern.permute.xlu0 7
      %6783 = vperm.xlu0 %6782, %v5886
      %v6784 = vpop.permute.xlu0 %6783
      %6786 = vset.pattern.permute.xlu0 7
      %6787 = vperm.xlu0 %6786, %v5887
      %v6788 = vpop.permute.xlu0 %6787
      %6790 = vset.pattern.permute.xlu0 7
      %6791 = vperm.xlu0 %6790, %v5888
      %v6792 = vpop.permute.xlu0 %6791
      %6794 = vset.pattern.permute.xlu0 7
      %6795 = vperm.xlu0 %6794, %v5889
      %v6796 = vpop.permute.xlu0 %6795
      %6798 = vset.pattern.permute.xlu0 7
      %6799 = vperm.xlu0 %6798, %v5890
      %v6800 = vpop.permute.xlu0 %6799
      %6802 = vset.pattern.permute.xlu0 7
      %6803 = vperm.xlu0 %6802, %v5891
      %v6804 = vpop.permute.xlu0 %6803
      %6806 = vset.pattern.permute.xlu0 7
      %6807 = vperm.xlu0 %6806, %v5892
      %v6808 = vpop.permute.xlu0 %6807
      %6810 = vset.pattern.permute.xlu0 7
      %6811 = vperm.xlu0 %6810, %v5893
      %v6812 = vpop.permute.xlu0 %6811
      %6814 = vset.pattern.permute.xlu0 7
      %6815 = vperm.xlu0 %6814, %v5894
      %v6816 = vpop.permute.xlu0 %6815
      %6818 = vset.pattern.permute.xlu0 7
      %6819 = vperm.xlu0 %6818, %v5895
      %v6820 = vpop.permute.xlu0 %6819
      %6822 = vset.pattern.permute.xlu0 7
      %6823 = vperm.xlu0 %6822, %v5896
      %v6824 = vpop.permute.xlu0 %6823
      %6826 = vset.pattern.permute.xlu0 7
      %6827 = vperm.xlu0 %6826, %v5897
      %v6828 = vpop.permute.xlu0 %6827
      %6830 = vset.pattern.permute.xlu0 7
      %6831 = vperm.xlu0 %6830, %v5898
      %v6832 = vpop.permute.xlu0 %6831
      %6834 = vset.pattern.permute.xlu0 7
      %6835 = vperm.xlu0 %6834, %v5899
      %v6836 = vpop.permute.xlu0 %6835
      %6838 = vset.pattern.permute.xlu0 7
      %6839 = vperm.xlu0 %6838, %v5900
      %v6840 = vpop.permute.xlu0 %6839
      %6842 = vset.pattern.permute.xlu0 7
      %6843 = vperm.xlu0 %6842, %v5901
      %v6844 = vpop.permute.xlu0 %6843
      %v6846 = vmul.f32 %v6784, %v1195
      %v6847 = vmul.f32 %v6784, %v1199
      %v6848 = vmul.f32 %v6788, %v1195
      %v6849 = vmul.f32 %v6788, %v1199
      %v6850 = vmul.f32 %v6792, %v1195
      %v6851 = vmul.f32 %v6792, %v1199
      %v6852 = vmul.f32 %v6796, %v1195
      %v6853 = vmul.f32 %v6796, %v1199
      %v6854 = vmul.f32 %v6800, %v1195
      %v6855 = vmul.f32 %v6800, %v1199
      %v6856 = vmul.f32 %v6804, %v1195
      %v6857 = vmul.f32 %v6804, %v1199
      %v6858 = vmul.f32 %v6808, %v1195
      %v6859 = vmul.f32 %v6808, %v1199
      %v6860 = vmul.f32 %v6812, %v1195
      %v6861 = vmul.f32 %v6812, %v1199
      %v6862 = vmul.f32 %v6816, %v1195
      %v6863 = vmul.f32 %v6816, %v1199
      %v6864 = vmul.f32 %v6820, %v1195
      %v6865 = vmul.f32 %v6820, %v1199
      %v6866 = vmul.f32 %v6824, %v1195
      %v6867 = vmul.f32 %v6824, %v1199
      %v6868 = vmul.f32 %v6828, %v1195
      %v6869 = vmul.f32 %v6828, %v1199
      %v6870 = vmul.f32 %v6832, %v1195
      %v6871 = vmul.f32 %v6832, %v1199
      %v6872 = vmul.f32 %v6836, %v1195
      %v6873 = vmul.f32 %v6836, %v1199
      %v6874 = vmul.f32 %v6840, %v1195
      %v6875 = vmul.f32 %v6840, %v1199
      %v6876 = vmul.f32 %v6844, %v1195
      %v6877 = vmul.f32 %v6844, %v1199
      %v6878 = vadd.f32 %v6750, %v6846
      %v6879 = vadd.f32 %v6751, %v6847
      %v6880 = vadd.f32 %v6752, %v6848
      %v6881 = vadd.f32 %v6753, %v6849
      %v6882 = vadd.f32 %v6754, %v6850
      %v6883 = vadd.f32 %v6755, %v6851
      %v6884 = vadd.f32 %v6756, %v6852
      %v6885 = vadd.f32 %v6757, %v6853
      %v6886 = vadd.f32 %v6758, %v6854
      %v6887 = vadd.f32 %v6759, %v6855
      %v6888 = vadd.f32 %v6760, %v6856
      %v6889 = vadd.f32 %v6761, %v6857
      %v6890 = vadd.f32 %v6762, %v6858
      %v6891 = vadd.f32 %v6763, %v6859
      %v6892 = vadd.f32 %v6764, %v6860
      %v6893 = vadd.f32 %v6765, %v6861
      %v6894 = vadd.f32 %v6766, %v6862
      %v6895 = vadd.f32 %v6767, %v6863
      %v6896 = vadd.f32 %v6768, %v6864
      %v6897 = vadd.f32 %v6769, %v6865
      %v6898 = vadd.f32 %v6770, %v6866
      %v6899 = vadd.f32 %v6771, %v6867
      %v6900 = vadd.f32 %v6772, %v6868
      %v6901 = vadd.f32 %v6773, %v6869
      %v6902 = vadd.f32 %v6774, %v6870
      %v6903 = vadd.f32 %v6775, %v6871
      %v6904 = vadd.f32 %v6776, %v6872
      %v6905 = vadd.f32 %v6777, %v6873
      %v6906 = vadd.f32 %v6778, %v6874
      %v6907 = vadd.f32 %v6779, %v6875
      %v6908 = vadd.f32 %v6780, %v6876
      %v6909 = vadd.f32 %v6781, %v6877
      %v6910 = vmax.f32 %v6878, 0.0
      %v6911 = vmax.f32 %v6879, 0.0
      %v6912 = vmax.f32 %v6880, 0.0
      %v6913 = vmax.f32 %v6881, 0.0
      %v6914 = vmax.f32 %v6882, 0.0
      %v6915 = vmax.f32 %v6883, 0.0
      %v6916 = vmax.f32 %v6884, 0.0
      %v6917 = vmax.f32 %v6885, 0.0
      %v6918 = vmax.f32 %v6886, 0.0
      %v6919 = vmax.f32 %v6887, 0.0
      %v6920 = vmax.f32 %v6888, 0.0
      %v6921 = vmax.f32 %v6889, 0.0
      %v6922 = vmax.f32 %v6890, 0.0
      %v6923 = vmax.f32 %v6891, 0.0
      %v6924 = vmax.f32 %v6892, 0.0
      %v6925 = vmax.f32 %v6893, 0.0
      %v6926 = vmax.f32 %v6894, 0.0
      %v6927 = vmax.f32 %v6895, 0.0
      %v6928 = vmax.f32 %v6896, 0.0
      %v6929 = vmax.f32 %v6897, 0.0
      %v6930 = vmax.f32 %v6898, 0.0
      %v6931 = vmax.f32 %v6899, 0.0
      %v6932 = vmax.f32 %v6900, 0.0
      %v6933 = vmax.f32 %v6901, 0.0
      %v6934 = vmax.f32 %v6902, 0.0
      %v6935 = vmax.f32 %v6903, 0.0
      %v6936 = vmax.f32 %v6904, 0.0
      %v6937 = vmax.f32 %v6905, 0.0
      %v6938 = vmax.f32 %v6906, 0.0
      %v6939 = vmax.f32 %v6907, 0.0
      %v6940 = vmax.f32 %v6908, 0.0
      %v6941 = vmax.f32 %v6909, 0.0
      %v6942 = vld [vmem:[%s2 + $0x28] sm:$0xff]
      %6943 = vmatprep.subr.mxu0 %v6911
      %6944 = vmatpush1.msra.mxu0 %v6910
      %6945 = vmatprep.subr.mxu0 %v6913
      %6946 = vmatpush1.msra.mxu0 %v6912
      %6947 = vmatprep.subr.mxu0 %v6915
      %6948 = vmatpush1.msra.mxu0 %v6914
      %6949 = vmatprep.subr.mxu0 %v6917
      %6950 = vmatpush1.msra.mxu0 %v6916
      %6951 = vmatprep.subr.mxu0 %v6919
      %6952 = vmatpush1.msra.mxu0 %v6918
      %6953 = vmatprep.subr.mxu0 %v6921
      %6954 = vmatpush1.msra.mxu0 %v6920
      %6955 = vmatprep.subr.mxu0 %v6923
      %6956 = vmatpush1.msra.mxu0 %v6922
      %6957 = vmatprep.subr.mxu0 %v6925
      %6958 = vmatpush1.msra.mxu0 %v6924
      %6959 = vmatprep.subr.mxu0 %v6927
      %6960 = vmatpush1.msra.mxu0 %v6926
      %6961 = vmatprep.subr.mxu0 %v6929
      %6962 = vmatpush1.msra.mxu0 %v6928
      %6963 = vmatprep.subr.mxu0 %v6931
      %6964 = vmatpush1.msra.mxu0 %v6930
      %6965 = vmatprep.subr.mxu0 %v6933
      %6966 = vmatpush1.msra.mxu0 %v6932
      %6967 = vmatprep.subr.mxu0 %v6935
      %6968 = vmatpush1.msra.mxu0 %v6934
      %6969 = vmatprep.subr.mxu0 %v6937
      %6970 = vmatpush1.msra.mxu0 %v6936
      %6971 = vmatprep.subr.mxu0 %v6939
      %6972 = vmatpush1.msra.mxu0 %v6938
      %6973 = vmatprep.subr.mxu0 %v6941
      %6974 = vmatpush1.msra.mxu0 %v6940
      %6975 = vmatprep.subr.mxu0 0.0
      %6976 = vmatpush1.msra.mxu0 0.0
      %6977 = vmatprep.subr.mxu0 0.0
      %6978 = vmatpush1.msra.mxu0 0.0
      %6979 = vmatprep.subr.mxu0 0.0
      %6980 = vmatpush1.msra.mxu0 0.0
      %6981 = vmatprep.subr.mxu0 0.0
      %6982 = vmatpush1.msra.mxu0 0.0
      %6983 = vmatprep.subr.mxu0 0.0
      %6984 = vmatpush1.msra.mxu0 0.0
      %6985 = vmatprep.subr.mxu0 0.0
      %6986 = vmatpush1.msra.mxu0 0.0
      %6987 = vmatprep.subr.mxu0 0.0
      %6988 = vmatpush1.msra.mxu0 0.0
      %6989 = vmatprep.subr.mxu0 0.0
      %6990 = vmatpush1.msra.mxu0 0.0
      %6991 = vmatprep.subr.mxu0 0.0
      %6992 = vmatpush1.msra.mxu0 0.0
      %6993 = vmatprep.subr.mxu0 0.0
      %6994 = vmatpush1.msra.mxu0 0.0
      %6995 = vmatprep.subr.mxu0 0.0
      %6996 = vmatpush1.msra.mxu0 0.0
      %6997 = vmatprep.subr.mxu0 0.0
      %6998 = vmatpush1.msra.mxu0 0.0
      %6999 = vmatprep.subr.mxu0 0.0
      %7000 = vmatpush1.msra.mxu0 0.0
      %7001 = vmatprep.subr.mxu0 0.0
      %7002 = vmatpush1.msra.mxu0 0.0
      %7003 = vmatprep.subr.mxu0 0.0
      %7004 = vmatpush1.msra.mxu0 0.0
      %7005 = vmatprep.subr.mxu0 0.0
      %7006 = vmatpush1.msra.mxu0 0.0
      %7007 = vmatprep.mubr.f32.mxu0 0.0
      %7008 = vmatmul.mubr.f32.gmra.mrb[0].mxu0 %v6942
      %v7009 = vpop.f32.mrb[0].mxu0
      %v7010 = vadd.f32 0.0, %v7009
      %v7011 = vpop.f32.mrb[0].mxu0
      %v7012 = vadd.f32 0.0, %v7011
      %7013 = vdwg.mxu0
      %v7014 = vadd.f32 %v5884, %v7010
      %v7015 = vadd.f32 %v5885, %v7012
      %v7016 = vld [vmem:[%s1 + $0x300] sm:$0xff]
      %v7017 = vld [vmem:[%s1 + $0x308] sm:$0xff]
      %v7018 = vld [vmem:[%s1 + $0x310] sm:$0xff]
      %v7019 = vld [vmem:[%s1 + $0x318] sm:$0xff]
      %v7020 = vld [vmem:[%s1 + $0x320] sm:$0xff]
      %v7021 = vld [vmem:[%s1 + $0x328] sm:$0xff]
      %v7022 = vld [vmem:[%s1 + $0x330] sm:$0xff]
      %v7023 = vld [vmem:[%s1 + $0x338] sm:$0xff]
      %v7024 = vld [vmem:[%s1 + $0x340] sm:$0xff]
      %v7025 = vld [vmem:[%s1 + $0x348] sm:$0xff]
      %v7026 = vld [vmem:[%s1 + $0x350] sm:$0xff]
      %v7027 = vld [vmem:[%s1 + $0x358] sm:$0xff]
      %v7028 = vld [vmem:[%s1 + $0x360] sm:$0xff]
      %v7029 = vld [vmem:[%s1 + $0x368] sm:$0xff]
      %v7030 = vld [vmem:[%s1 + $0x370] sm:$0xff]
      %v7031 = vld [vmem:[%s1 + $0x378] sm:$0xff]
      %7033 = vset.pattern.permute.xlu0 0
      %7034 = vperm.xlu0 %7033, %v7016
      %v7035 = vpop.permute.xlu0 %7034
      %7038 = vset.pattern.permute.xlu0 0
      %7039 = vperm.xlu0 %7038, %v7017
      %v7040 = vpop.permute.xlu0 %7039
      %7043 = vset.pattern.permute.xlu0 0
      %7044 = vperm.xlu0 %7043, %v7018
      %v7045 = vpop.permute.xlu0 %7044
      %7048 = vset.pattern.permute.xlu0 0
      %7049 = vperm.xlu0 %7048, %v7019
      %v7050 = vpop.permute.xlu0 %7049
      %7053 = vset.pattern.permute.xlu0 0
      %7054 = vperm.xlu0 %7053, %v7020
      %v7055 = vpop.permute.xlu0 %7054
      %7058 = vset.pattern.permute.xlu0 0
      %7059 = vperm.xlu0 %7058, %v7021
      %v7060 = vpop.permute.xlu0 %7059
      %7063 = vset.pattern.permute.xlu0 0
      %7064 = vperm.xlu0 %7063, %v7022
      %v7065 = vpop.permute.xlu0 %7064
      %7068 = vset.pattern.permute.xlu0 0
      %7069 = vperm.xlu0 %7068, %v7023
      %v7070 = vpop.permute.xlu0 %7069
      %7073 = vset.pattern.permute.xlu0 0
      %7074 = vperm.xlu0 %7073, %v7024
      %v7075 = vpop.permute.xlu0 %7074
      %7078 = vset.pattern.permute.xlu0 0
      %7079 = vperm.xlu0 %7078, %v7025
      %v7080 = vpop.permute.xlu0 %7079
      %7083 = vset.pattern.permute.xlu0 0
      %7084 = vperm.xlu0 %7083, %v7026
      %v7085 = vpop.permute.xlu0 %7084
      %7088 = vset.pattern.permute.xlu0 0
      %7089 = vperm.xlu0 %7088, %v7027
      %v7090 = vpop.permute.xlu0 %7089
      %7093 = vset.pattern.permute.xlu0 0
      %7094 = vperm.xlu0 %7093, %v7028
      %v7095 = vpop.permute.xlu0 %7094
      %7098 = vset.pattern.permute.xlu0 0
      %7099 = vperm.xlu0 %7098, %v7029
      %v7100 = vpop.permute.xlu0 %7099
      %7103 = vset.pattern.permute.xlu0 0
      %7104 = vperm.xlu0 %7103, %v7030
      %v7105 = vpop.permute.xlu0 %7104
      %7108 = vset.pattern.permute.xlu0 0
      %7109 = vperm.xlu0 %7108, %v7031
      %v7110 = vpop.permute.xlu0 %7109
      %v7112 = vmul.f32 %v7035, %v275
      %v7113 = vmul.f32 %v7035, %v279
      %v7114 = vmul.f32 %v7040, %v275
      %v7115 = vmul.f32 %v7040, %v279
      %v7116 = vmul.f32 %v7045, %v275
      %v7117 = vmul.f32 %v7045, %v279
      %v7118 = vmul.f32 %v7050, %v275
      %v7119 = vmul.f32 %v7050, %v279
      %v7120 = vmul.f32 %v7055, %v275
      %v7121 = vmul.f32 %v7055, %v279
      %v7122 = vmul.f32 %v7060, %v275
      %v7123 = vmul.f32 %v7060, %v279
      %v7124 = vmul.f32 %v7065, %v275
      %v7125 = vmul.f32 %v7065, %v279
      %v7126 = vmul.f32 %v7070, %v275
      %v7127 = vmul.f32 %v7070, %v279
      %v7128 = vmul.f32 %v7075, %v275
      %v7129 = vmul.f32 %v7075, %v279
      %v7130 = vmul.f32 %v7080, %v275
      %v7131 = vmul.f32 %v7080, %v279
      %v7132 = vmul.f32 %v7085, %v275
      %v7133 = vmul.f32 %v7085, %v279
      %v7134 = vmul.f32 %v7090, %v275
      %v7135 = vmul.f32 %v7090, %v279
      %v7136 = vmul.f32 %v7095, %v275
      %v7137 = vmul.f32 %v7095, %v279
      %v7138 = vmul.f32 %v7100, %v275
      %v7139 = vmul.f32 %v7100, %v279
      %v7140 = vmul.f32 %v7105, %v275
      %v7141 = vmul.f32 %v7105, %v279
      %v7142 = vmul.f32 %v7110, %v275
      %v7143 = vmul.f32 %v7110, %v279
      %7144 = vset.pattern.permute.xlu0 1
      %7145 = vperm.xlu0 %7144, %v7016
      %v7146 = vpop.permute.xlu0 %7145
      %7148 = vset.pattern.permute.xlu0 1
      %7149 = vperm.xlu0 %7148, %v7017
      %v7150 = vpop.permute.xlu0 %7149
      %7152 = vset.pattern.permute.xlu0 1
      %7153 = vperm.xlu0 %7152, %v7018
      %v7154 = vpop.permute.xlu0 %7153
      %7156 = vset.pattern.permute.xlu0 1
      %7157 = vperm.xlu0 %7156, %v7019
      %v7158 = vpop.permute.xlu0 %7157
      %7160 = vset.pattern.permute.xlu0 1
      %7161 = vperm.xlu0 %7160, %v7020
      %v7162 = vpop.permute.xlu0 %7161
      %7164 = vset.pattern.permute.xlu0 1
      %7165 = vperm.xlu0 %7164, %v7021
      %v7166 = vpop.permute.xlu0 %7165
      %7168 = vset.pattern.permute.xlu0 1
      %7169 = vperm.xlu0 %7168, %v7022
      %v7170 = vpop.permute.xlu0 %7169
      %7172 = vset.pattern.permute.xlu0 1
      %7173 = vperm.xlu0 %7172, %v7023
      %v7174 = vpop.permute.xlu0 %7173
      %7176 = vset.pattern.permute.xlu0 1
      %7177 = vperm.xlu0 %7176, %v7024
      %v7178 = vpop.permute.xlu0 %7177
      %7180 = vset.pattern.permute.xlu0 1
      %7181 = vperm.xlu0 %7180, %v7025
      %v7182 = vpop.permute.xlu0 %7181
      %7184 = vset.pattern.permute.xlu0 1
      %7185 = vperm.xlu0 %7184, %v7026
      %v7186 = vpop.permute.xlu0 %7185
      %7188 = vset.pattern.permute.xlu0 1
      %7189 = vperm.xlu0 %7188, %v7027
      %v7190 = vpop.permute.xlu0 %7189
      %7192 = vset.pattern.permute.xlu0 1
      %7193 = vperm.xlu0 %7192, %v7028
      %v7194 = vpop.permute.xlu0 %7193
      %7196 = vset.pattern.permute.xlu0 1
      %7197 = vperm.xlu0 %7196, %v7029
      %v7198 = vpop.permute.xlu0 %7197
      %7200 = vset.pattern.permute.xlu0 1
      %7201 = vperm.xlu0 %7200, %v7030
      %v7202 = vpop.permute.xlu0 %7201
      %7204 = vset.pattern.permute.xlu0 1
      %7205 = vperm.xlu0 %7204, %v7031
      %v7206 = vpop.permute.xlu0 %7205
      %v7208 = vmul.f32 %v7146, %v379
      %v7209 = vmul.f32 %v7146, %v383
      %v7210 = vmul.f32 %v7150, %v379
      %v7211 = vmul.f32 %v7150, %v383
      %v7212 = vmul.f32 %v7154, %v379
      %v7213 = vmul.f32 %v7154, %v383
      %v7214 = vmul.f32 %v7158, %v379
      %v7215 = vmul.f32 %v7158, %v383
      %v7216 = vmul.f32 %v7162, %v379
      %v7217 = vmul.f32 %v7162, %v383
      %v7218 = vmul.f32 %v7166, %v379
      %v7219 = vmul.f32 %v7166, %v383
      %v7220 = vmul.f32 %v7170, %v379
      %v7221 = vmul.f32 %v7170, %v383
      %v7222 = vmul.f32 %v7174, %v379
      %v7223 = vmul.f32 %v7174, %v383
      %v7224 = vmul.f32 %v7178, %v379
      %v7225 = vmul.f32 %v7178, %v383
      %v7226 = vmul.f32 %v7182, %v379
      %v7227 = vmul.f32 %v7182, %v383
      %v7228 = vmul.f32 %v7186, %v379
      %v7229 = vmul.f32 %v7186, %v383
      %v7230 = vmul.f32 %v7190, %v379
      %v7231 = vmul.f32 %v7190, %v383
      %v7232 = vmul.f32 %v7194, %v379
      %v7233 = vmul.f32 %v7194, %v383
      %v7234 = vmul.f32 %v7198, %v379
      %v7235 = vmul.f32 %v7198, %v383
      %v7236 = vmul.f32 %v7202, %v379
      %v7237 = vmul.f32 %v7202, %v383
      %v7238 = vmul.f32 %v7206, %v379
      %v7239 = vmul.f32 %v7206, %v383
      %v7240 = vadd.f32 %v7112, %v7208
      %v7241 = vadd.f32 %v7113, %v7209
      %v7242 = vadd.f32 %v7114, %v7210
      %v7243 = vadd.f32 %v7115, %v7211
      %v7244 = vadd.f32 %v7116, %v7212
      %v7245 = vadd.f32 %v7117, %v7213
      %v7246 = vadd.f32 %v7118, %v7214
      %v7247 = vadd.f32 %v7119, %v7215
      %v7248 = vadd.f32 %v7120, %v7216
      %v7249 = vadd.f32 %v7121, %v7217
      %v7250 = vadd.f32 %v7122, %v7218
      %v7251 = vadd.f32 %v7123, %v7219
      %v7252 = vadd.f32 %v7124, %v7220
      %v7253 = vadd.f32 %v7125, %v7221
      %v7254 = vadd.f32 %v7126, %v7222
      %v7255 = vadd.f32 %v7127, %v7223
      %v7256 = vadd.f32 %v7128, %v7224
      %v7257 = vadd.f32 %v7129, %v7225
      %v7258 = vadd.f32 %v7130, %v7226
      %v7259 = vadd.f32 %v7131, %v7227
      %v7260 = vadd.f32 %v7132, %v7228
      %v7261 = vadd.f32 %v7133, %v7229
      %v7262 = vadd.f32 %v7134, %v7230
      %v7263 = vadd.f32 %v7135, %v7231
      %v7264 = vadd.f32 %v7136, %v7232
      %v7265 = vadd.f32 %v7137, %v7233
      %v7266 = vadd.f32 %v7138, %v7234
      %v7267 = vadd.f32 %v7139, %v7235
      %v7268 = vadd.f32 %v7140, %v7236
      %v7269 = vadd.f32 %v7141, %v7237
      %v7270 = vadd.f32 %v7142, %v7238
      %v7271 = vadd.f32 %v7143, %v7239
      %7272 = vset.pattern.permute.xlu0 2
      %7273 = vperm.xlu0 %7272, %v7016
      %v7274 = vpop.permute.xlu0 %7273
      %7276 = vset.pattern.permute.xlu0 2
      %7277 = vperm.xlu0 %7276, %v7017
      %v7278 = vpop.permute.xlu0 %7277
      %7280 = vset.pattern.permute.xlu0 2
      %7281 = vperm.xlu0 %7280, %v7018
      %v7282 = vpop.permute.xlu0 %7281
      %7284 = vset.pattern.permute.xlu0 2
      %7285 = vperm.xlu0 %7284, %v7019
      %v7286 = vpop.permute.xlu0 %7285
      %7288 = vset.pattern.permute.xlu0 2
      %7289 = vperm.xlu0 %7288, %v7020
      %v7290 = vpop.permute.xlu0 %7289
      %7292 = vset.pattern.permute.xlu0 2
      %7293 = vperm.xlu0 %7292, %v7021
      %v7294 = vpop.permute.xlu0 %7293
      %7296 = vset.pattern.permute.xlu0 2
      %7297 = vperm.xlu0 %7296, %v7022
      %v7298 = vpop.permute.xlu0 %7297
      %7300 = vset.pattern.permute.xlu0 2
      %7301 = vperm.xlu0 %7300, %v7023
      %v7302 = vpop.permute.xlu0 %7301
      %7304 = vset.pattern.permute.xlu0 2
      %7305 = vperm.xlu0 %7304, %v7024
      %v7306 = vpop.permute.xlu0 %7305
      %7308 = vset.pattern.permute.xlu0 2
      %7309 = vperm.xlu0 %7308, %v7025
      %v7310 = vpop.permute.xlu0 %7309
      %7312 = vset.pattern.permute.xlu0 2
      %7313 = vperm.xlu0 %7312, %v7026
      %v7314 = vpop.permute.xlu0 %7313
      %7316 = vset.pattern.permute.xlu0 2
      %7317 = vperm.xlu0 %7316, %v7027
      %v7318 = vpop.permute.xlu0 %7317
      %7320 = vset.pattern.permute.xlu0 2
      %7321 = vperm.xlu0 %7320, %v7028
      %v7322 = vpop.permute.xlu0 %7321
      %7324 = vset.pattern.permute.xlu0 2
      %7325 = vperm.xlu0 %7324, %v7029
      %v7326 = vpop.permute.xlu0 %7325
      %7328 = vset.pattern.permute.xlu0 2
      %7329 = vperm.xlu0 %7328, %v7030
      %v7330 = vpop.permute.xlu0 %7329
      %7332 = vset.pattern.permute.xlu0 2
      %7333 = vperm.xlu0 %7332, %v7031
      %v7334 = vpop.permute.xlu0 %7333
      %v7336 = vmul.f32 %v7274, %v515
      %v7337 = vmul.f32 %v7274, %v519
      %v7338 = vmul.f32 %v7278, %v515
      %v7339 = vmul.f32 %v7278, %v519
      %v7340 = vmul.f32 %v7282, %v515
      %v7341 = vmul.f32 %v7282, %v519
      %v7342 = vmul.f32 %v7286, %v515
      %v7343 = vmul.f32 %v7286, %v519
      %v7344 = vmul.f32 %v7290, %v515
      %v7345 = vmul.f32 %v7290, %v519
      %v7346 = vmul.f32 %v7294, %v515
      %v7347 = vmul.f32 %v7294, %v519
      %v7348 = vmul.f32 %v7298, %v515
      %v7349 = vmul.f32 %v7298, %v519
      %v7350 = vmul.f32 %v7302, %v515
      %v7351 = vmul.f32 %v7302, %v519
      %v7352 = vmul.f32 %v7306, %v515
      %v7353 = vmul.f32 %v7306, %v519
      %v7354 = vmul.f32 %v7310, %v515
      %v7355 = vmul.f32 %v7310, %v519
      %v7356 = vmul.f32 %v7314, %v515
      %v7357 = vmul.f32 %v7314, %v519
      %v7358 = vmul.f32 %v7318, %v515
      %v7359 = vmul.f32 %v7318, %v519
      %v7360 = vmul.f32 %v7322, %v515
      %v7361 = vmul.f32 %v7322, %v519
      %v7362 = vmul.f32 %v7326, %v515
      %v7363 = vmul.f32 %v7326, %v519
      %v7364 = vmul.f32 %v7330, %v515
      %v7365 = vmul.f32 %v7330, %v519
      %v7366 = vmul.f32 %v7334, %v515
      %v7367 = vmul.f32 %v7334, %v519
      %v7368 = vadd.f32 %v7240, %v7336
      %v7369 = vadd.f32 %v7241, %v7337
      %v7370 = vadd.f32 %v7242, %v7338
      %v7371 = vadd.f32 %v7243, %v7339
      %v7372 = vadd.f32 %v7244, %v7340
      %v7373 = vadd.f32 %v7245, %v7341
      %v7374 = vadd.f32 %v7246, %v7342
      %v7375 = vadd.f32 %v7247, %v7343
      %v7376 = vadd.f32 %v7248, %v7344
      %v7377 = vadd.f32 %v7249, %v7345
      %v7378 = vadd.f32 %v7250, %v7346
      %v7379 = vadd.f32 %v7251, %v7347
      %v7380 = vadd.f32 %v7252, %v7348
      %v7381 = vadd.f32 %v7253, %v7349
      %v7382 = vadd.f32 %v7254, %v7350
      %v7383 = vadd.f32 %v7255, %v7351
      %v7384 = vadd.f32 %v7256, %v7352
      %v7385 = vadd.f32 %v7257, %v7353
      %v7386 = vadd.f32 %v7258, %v7354
      %v7387 = vadd.f32 %v7259, %v7355
      %v7388 = vadd.f32 %v7260, %v7356
      %v7389 = vadd.f32 %v7261, %v7357
      %v7390 = vadd.f32 %v7262, %v7358
      %v7391 = vadd.f32 %v7263, %v7359
      %v7392 = vadd.f32 %v7264, %v7360
      %v7393 = vadd.f32 %v7265, %v7361
      %v7394 = vadd.f32 %v7266, %v7362
      %v7395 = vadd.f32 %v7267, %v7363
      %v7396 = vadd.f32 %v7268, %v7364
      %v7397 = vadd.f32 %v7269, %v7365
      %v7398 = vadd.f32 %v7270, %v7366
      %v7399 = vadd.f32 %v7271, %v7367
      %7400 = vset.pattern.permute.xlu0 3
      %7401 = vperm.xlu0 %7400, %v7016
      %v7402 = vpop.permute.xlu0 %7401
      %7404 = vset.pattern.permute.xlu0 3
      %7405 = vperm.xlu0 %7404, %v7017
      %v7406 = vpop.permute.xlu0 %7405
      %7408 = vset.pattern.permute.xlu0 3
      %7409 = vperm.xlu0 %7408, %v7018
      %v7410 = vpop.permute.xlu0 %7409
      %7412 = vset.pattern.permute.xlu0 3
      %7413 = vperm.xlu0 %7412, %v7019
      %v7414 = vpop.permute.xlu0 %7413
      %7416 = vset.pattern.permute.xlu0 3
      %7417 = vperm.xlu0 %7416, %v7020
      %v7418 = vpop.permute.xlu0 %7417
      %7420 = vset.pattern.permute.xlu0 3
      %7421 = vperm.xlu0 %7420, %v7021
      %v7422 = vpop.permute.xlu0 %7421
      %7424 = vset.pattern.permute.xlu0 3
      %7425 = vperm.xlu0 %7424, %v7022
      %v7426 = vpop.permute.xlu0 %7425
      %7428 = vset.pattern.permute.xlu0 3
      %7429 = vperm.xlu0 %7428, %v7023
      %v7430 = vpop.permute.xlu0 %7429
      %7432 = vset.pattern.permute.xlu0 3
      %7433 = vperm.xlu0 %7432, %v7024
      %v7434 = vpop.permute.xlu0 %7433
      %7436 = vset.pattern.permute.xlu0 3
      %7437 = vperm.xlu0 %7436, %v7025
      %v7438 = vpop.permute.xlu0 %7437
      %7440 = vset.pattern.permute.xlu0 3
      %7441 = vperm.xlu0 %7440, %v7026
      %v7442 = vpop.permute.xlu0 %7441
      %7444 = vset.pattern.permute.xlu0 3
      %7445 = vperm.xlu0 %7444, %v7027
      %v7446 = vpop.permute.xlu0 %7445
      %7448 = vset.pattern.permute.xlu0 3
      %7449 = vperm.xlu0 %7448, %v7028
      %v7450 = vpop.permute.xlu0 %7449
      %7452 = vset.pattern.permute.xlu0 3
      %7453 = vperm.xlu0 %7452, %v7029
      %v7454 = vpop.permute.xlu0 %7453
      %7456 = vset.pattern.permute.xlu0 3
      %7457 = vperm.xlu0 %7456, %v7030
      %v7458 = vpop.permute.xlu0 %7457
      %7460 = vset.pattern.permute.xlu0 3
      %7461 = vperm.xlu0 %7460, %v7031
      %v7462 = vpop.permute.xlu0 %7461
      %v7464 = vmul.f32 %v7402, %v651
      %v7465 = vmul.f32 %v7402, %v655
      %v7466 = vmul.f32 %v7406, %v651
      %v7467 = vmul.f32 %v7406, %v655
      %v7468 = vmul.f32 %v7410, %v651
      %v7469 = vmul.f32 %v7410, %v655
      %v7470 = vmul.f32 %v7414, %v651
      %v7471 = vmul.f32 %v7414, %v655
      %v7472 = vmul.f32 %v7418, %v651
      %v7473 = vmul.f32 %v7418, %v655
      %v7474 = vmul.f32 %v7422, %v651
      %v7475 = vmul.f32 %v7422, %v655
      %v7476 = vmul.f32 %v7426, %v651
      %v7477 = vmul.f32 %v7426, %v655
      %v7478 = vmul.f32 %v7430, %v651
      %v7479 = vmul.f32 %v7430, %v655
      %v7480 = vmul.f32 %v7434, %v651
      %v7481 = vmul.f32 %v7434, %v655
      %v7482 = vmul.f32 %v7438, %v651
      %v7483 = vmul.f32 %v7438, %v655
      %v7484 = vmul.f32 %v7442, %v651
      %v7485 = vmul.f32 %v7442, %v655
      %v7486 = vmul.f32 %v7446, %v651
      %v7487 = vmul.f32 %v7446, %v655
      %v7488 = vmul.f32 %v7450, %v651
      %v7489 = vmul.f32 %v7450, %v655
      %v7490 = vmul.f32 %v7454, %v651
      %v7491 = vmul.f32 %v7454, %v655
      %v7492 = vmul.f32 %v7458, %v651
      %v7493 = vmul.f32 %v7458, %v655
      %v7494 = vmul.f32 %v7462, %v651
      %v7495 = vmul.f32 %v7462, %v655
      %v7496 = vadd.f32 %v7368, %v7464
      %v7497 = vadd.f32 %v7369, %v7465
      %v7498 = vadd.f32 %v7370, %v7466
      %v7499 = vadd.f32 %v7371, %v7467
      %v7500 = vadd.f32 %v7372, %v7468
      %v7501 = vadd.f32 %v7373, %v7469
      %v7502 = vadd.f32 %v7374, %v7470
      %v7503 = vadd.f32 %v7375, %v7471
      %v7504 = vadd.f32 %v7376, %v7472
      %v7505 = vadd.f32 %v7377, %v7473
      %v7506 = vadd.f32 %v7378, %v7474
      %v7507 = vadd.f32 %v7379, %v7475
      %v7508 = vadd.f32 %v7380, %v7476
      %v7509 = vadd.f32 %v7381, %v7477
      %v7510 = vadd.f32 %v7382, %v7478
      %v7511 = vadd.f32 %v7383, %v7479
      %v7512 = vadd.f32 %v7384, %v7480
      %v7513 = vadd.f32 %v7385, %v7481
      %v7514 = vadd.f32 %v7386, %v7482
      %v7515 = vadd.f32 %v7387, %v7483
      %v7516 = vadd.f32 %v7388, %v7484
      %v7517 = vadd.f32 %v7389, %v7485
      %v7518 = vadd.f32 %v7390, %v7486
      %v7519 = vadd.f32 %v7391, %v7487
      %v7520 = vadd.f32 %v7392, %v7488
      %v7521 = vadd.f32 %v7393, %v7489
      %v7522 = vadd.f32 %v7394, %v7490
      %v7523 = vadd.f32 %v7395, %v7491
      %v7524 = vadd.f32 %v7396, %v7492
      %v7525 = vadd.f32 %v7397, %v7493
      %v7526 = vadd.f32 %v7398, %v7494
      %v7527 = vadd.f32 %v7399, %v7495
      %7528 = vset.pattern.permute.xlu0 4
      %7529 = vperm.xlu0 %7528, %v7016
      %v7530 = vpop.permute.xlu0 %7529
      %7532 = vset.pattern.permute.xlu0 4
      %7533 = vperm.xlu0 %7532, %v7017
      %v7534 = vpop.permute.xlu0 %7533
      %7536 = vset.pattern.permute.xlu0 4
      %7537 = vperm.xlu0 %7536, %v7018
      %v7538 = vpop.permute.xlu0 %7537
      %7540 = vset.pattern.permute.xlu0 4
      %7541 = vperm.xlu0 %7540, %v7019
      %v7542 = vpop.permute.xlu0 %7541
      %7544 = vset.pattern.permute.xlu0 4
      %7545 = vperm.xlu0 %7544, %v7020
      %v7546 = vpop.permute.xlu0 %7545
      %7548 = vset.pattern.permute.xlu0 4
      %7549 = vperm.xlu0 %7548, %v7021
      %v7550 = vpop.permute.xlu0 %7549
      %7552 = vset.pattern.permute.xlu0 4
      %7553 = vperm.xlu0 %7552, %v7022
      %v7554 = vpop.permute.xlu0 %7553
      %7556 = vset.pattern.permute.xlu0 4
      %7557 = vperm.xlu0 %7556, %v7023
      %v7558 = vpop.permute.xlu0 %7557
      %7560 = vset.pattern.permute.xlu0 4
      %7561 = vperm.xlu0 %7560, %v7024
      %v7562 = vpop.permute.xlu0 %7561
      %7564 = vset.pattern.permute.xlu0 4
      %7565 = vperm.xlu0 %7564, %v7025
      %v7566 = vpop.permute.xlu0 %7565
      %7568 = vset.pattern.permute.xlu0 4
      %7569 = vperm.xlu0 %7568, %v7026
      %v7570 = vpop.permute.xlu0 %7569
      %7572 = vset.pattern.permute.xlu0 4
      %7573 = vperm.xlu0 %7572, %v7027
      %v7574 = vpop.permute.xlu0 %7573
      %7576 = vset.pattern.permute.xlu0 4
      %7577 = vperm.xlu0 %7576, %v7028
      %v7578 = vpop.permute.xlu0 %7577
      %7580 = vset.pattern.permute.xlu0 4
      %7581 = vperm.xlu0 %7580, %v7029
      %v7582 = vpop.permute.xlu0 %7581
      %7584 = vset.pattern.permute.xlu0 4
      %7585 = vperm.xlu0 %7584, %v7030
      %v7586 = vpop.permute.xlu0 %7585
      %7588 = vset.pattern.permute.xlu0 4
      %7589 = vperm.xlu0 %7588, %v7031
      %v7590 = vpop.permute.xlu0 %7589
      %v7592 = vmul.f32 %v7530, %v787
      %v7593 = vmul.f32 %v7530, %v791
      %v7594 = vmul.f32 %v7534, %v787
      %v7595 = vmul.f32 %v7534, %v791
      %v7596 = vmul.f32 %v7538, %v787
      %v7597 = vmul.f32 %v7538, %v791
      %v7598 = vmul.f32 %v7542, %v787
      %v7599 = vmul.f32 %v7542, %v791
      %v7600 = vmul.f32 %v7546, %v787
      %v7601 = vmul.f32 %v7546, %v791
      %v7602 = vmul.f32 %v7550, %v787
      %v7603 = vmul.f32 %v7550, %v791
      %v7604 = vmul.f32 %v7554, %v787
      %v7605 = vmul.f32 %v7554, %v791
      %v7606 = vmul.f32 %v7558, %v787
      %v7607 = vmul.f32 %v7558, %v791
      %v7608 = vmul.f32 %v7562, %v787
      %v7609 = vmul.f32 %v7562, %v791
      %v7610 = vmul.f32 %v7566, %v787
      %v7611 = vmul.f32 %v7566, %v791
      %v7612 = vmul.f32 %v7570, %v787
      %v7613 = vmul.f32 %v7570, %v791
      %v7614 = vmul.f32 %v7574, %v787
      %v7615 = vmul.f32 %v7574, %v791
      %v7616 = vmul.f32 %v7578, %v787
      %v7617 = vmul.f32 %v7578, %v791
      %v7618 = vmul.f32 %v7582, %v787
      %v7619 = vmul.f32 %v7582, %v791
      %v7620 = vmul.f32 %v7586, %v787
      %v7621 = vmul.f32 %v7586, %v791
      %v7622 = vmul.f32 %v7590, %v787
      %v7623 = vmul.f32 %v7590, %v791
      %v7624 = vadd.f32 %v7496, %v7592
      %v7625 = vadd.f32 %v7497, %v7593
      %v7626 = vadd.f32 %v7498, %v7594
      %v7627 = vadd.f32 %v7499, %v7595
      %v7628 = vadd.f32 %v7500, %v7596
      %v7629 = vadd.f32 %v7501, %v7597
      %v7630 = vadd.f32 %v7502, %v7598
      %v7631 = vadd.f32 %v7503, %v7599
      %v7632 = vadd.f32 %v7504, %v7600
      %v7633 = vadd.f32 %v7505, %v7601
      %v7634 = vadd.f32 %v7506, %v7602
      %v7635 = vadd.f32 %v7507, %v7603
      %v7636 = vadd.f32 %v7508, %v7604
      %v7637 = vadd.f32 %v7509, %v7605
      %v7638 = vadd.f32 %v7510, %v7606
      %v7639 = vadd.f32 %v7511, %v7607
      %v7640 = vadd.f32 %v7512, %v7608
      %v7641 = vadd.f32 %v7513, %v7609
      %v7642 = vadd.f32 %v7514, %v7610
      %v7643 = vadd.f32 %v7515, %v7611
      %v7644 = vadd.f32 %v7516, %v7612
      %v7645 = vadd.f32 %v7517, %v7613
      %v7646 = vadd.f32 %v7518, %v7614
      %v7647 = vadd.f32 %v7519, %v7615
      %v7648 = vadd.f32 %v7520, %v7616
      %v7649 = vadd.f32 %v7521, %v7617
      %v7650 = vadd.f32 %v7522, %v7618
      %v7651 = vadd.f32 %v7523, %v7619
      %v7652 = vadd.f32 %v7524, %v7620
      %v7653 = vadd.f32 %v7525, %v7621
      %v7654 = vadd.f32 %v7526, %v7622
      %v7655 = vadd.f32 %v7527, %v7623
      %7656 = vset.pattern.permute.xlu0 5
      %7657 = vperm.xlu0 %7656, %v7016
      %v7658 = vpop.permute.xlu0 %7657
      %7660 = vset.pattern.permute.xlu0 5
      %7661 = vperm.xlu0 %7660, %v7017
      %v7662 = vpop.permute.xlu0 %7661
      %7664 = vset.pattern.permute.xlu0 5
      %7665 = vperm.xlu0 %7664, %v7018
      %v7666 = vpop.permute.xlu0 %7665
      %7668 = vset.pattern.permute.xlu0 5
      %7669 = vperm.xlu0 %7668, %v7019
      %v7670 = vpop.permute.xlu0 %7669
      %7672 = vset.pattern.permute.xlu0 5
      %7673 = vperm.xlu0 %7672, %v7020
      %v7674 = vpop.permute.xlu0 %7673
      %7676 = vset.pattern.permute.xlu0 5
      %7677 = vperm.xlu0 %7676, %v7021
      %v7678 = vpop.permute.xlu0 %7677
      %7680 = vset.pattern.permute.xlu0 5
      %7681 = vperm.xlu0 %7680, %v7022
      %v7682 = vpop.permute.xlu0 %7681
      %7684 = vset.pattern.permute.xlu0 5
      %7685 = vperm.xlu0 %7684, %v7023
      %v7686 = vpop.permute.xlu0 %7685
      %7688 = vset.pattern.permute.xlu0 5
      %7689 = vperm.xlu0 %7688, %v7024
      %v7690 = vpop.permute.xlu0 %7689
      %7692 = vset.pattern.permute.xlu0 5
      %7693 = vperm.xlu0 %7692, %v7025
      %v7694 = vpop.permute.xlu0 %7693
      %7696 = vset.pattern.permute.xlu0 5
      %7697 = vperm.xlu0 %7696, %v7026
      %v7698 = vpop.permute.xlu0 %7697
      %7700 = vset.pattern.permute.xlu0 5
      %7701 = vperm.xlu0 %7700, %v7027
      %v7702 = vpop.permute.xlu0 %7701
      %7704 = vset.pattern.permute.xlu0 5
      %7705 = vperm.xlu0 %7704, %v7028
      %v7706 = vpop.permute.xlu0 %7705
      %7708 = vset.pattern.permute.xlu0 5
      %7709 = vperm.xlu0 %7708, %v7029
      %v7710 = vpop.permute.xlu0 %7709
      %7712 = vset.pattern.permute.xlu0 5
      %7713 = vperm.xlu0 %7712, %v7030
      %v7714 = vpop.permute.xlu0 %7713
      %7716 = vset.pattern.permute.xlu0 5
      %7717 = vperm.xlu0 %7716, %v7031
      %v7718 = vpop.permute.xlu0 %7717
      %v7720 = vmul.f32 %v7658, %v923
      %v7721 = vmul.f32 %v7658, %v927
      %v7722 = vmul.f32 %v7662, %v923
      %v7723 = vmul.f32 %v7662, %v927
      %v7724 = vmul.f32 %v7666, %v923
      %v7725 = vmul.f32 %v7666, %v927
      %v7726 = vmul.f32 %v7670, %v923
      %v7727 = vmul.f32 %v7670, %v927
      %v7728 = vmul.f32 %v7674, %v923
      %v7729 = vmul.f32 %v7674, %v927
      %v7730 = vmul.f32 %v7678, %v923
      %v7731 = vmul.f32 %v7678, %v927
      %v7732 = vmul.f32 %v7682, %v923
      %v7733 = vmul.f32 %v7682, %v927
      %v7734 = vmul.f32 %v7686, %v923
      %v7735 = vmul.f32 %v7686, %v927
      %v7736 = vmul.f32 %v7690, %v923
      %v7737 = vmul.f32 %v7690, %v927
      %v7738 = vmul.f32 %v7694, %v923
      %v7739 = vmul.f32 %v7694, %v927
      %v7740 = vmul.f32 %v7698, %v923
      %v7741 = vmul.f32 %v7698, %v927
      %v7742 = vmul.f32 %v7702, %v923
      %v7743 = vmul.f32 %v7702, %v927
      %v7744 = vmul.f32 %v7706, %v923
      %v7745 = vmul.f32 %v7706, %v927
      %v7746 = vmul.f32 %v7710, %v923
      %v7747 = vmul.f32 %v7710, %v927
      %v7748 = vmul.f32 %v7714, %v923
      %v7749 = vmul.f32 %v7714, %v927
      %v7750 = vmul.f32 %v7718, %v923
      %v7751 = vmul.f32 %v7718, %v927
      %v7752 = vadd.f32 %v7624, %v7720
      %v7753 = vadd.f32 %v7625, %v7721
      %v7754 = vadd.f32 %v7626, %v7722
      %v7755 = vadd.f32 %v7627, %v7723
      %v7756 = vadd.f32 %v7628, %v7724
      %v7757 = vadd.f32 %v7629, %v7725
      %v7758 = vadd.f32 %v7630, %v7726
      %v7759 = vadd.f32 %v7631, %v7727
      %v7760 = vadd.f32 %v7632, %v7728
      %v7761 = vadd.f32 %v7633, %v7729
      %v7762 = vadd.f32 %v7634, %v7730
      %v7763 = vadd.f32 %v7635, %v7731
      %v7764 = vadd.f32 %v7636, %v7732
      %v7765 = vadd.f32 %v7637, %v7733
      %v7766 = vadd.f32 %v7638, %v7734
      %v7767 = vadd.f32 %v7639, %v7735
      %v7768 = vadd.f32 %v7640, %v7736
      %v7769 = vadd.f32 %v7641, %v7737
      %v7770 = vadd.f32 %v7642, %v7738
      %v7771 = vadd.f32 %v7643, %v7739
      %v7772 = vadd.f32 %v7644, %v7740
      %v7773 = vadd.f32 %v7645, %v7741
      %v7774 = vadd.f32 %v7646, %v7742
      %v7775 = vadd.f32 %v7647, %v7743
      %v7776 = vadd.f32 %v7648, %v7744
      %v7777 = vadd.f32 %v7649, %v7745
      %v7778 = vadd.f32 %v7650, %v7746
      %v7779 = vadd.f32 %v7651, %v7747
      %v7780 = vadd.f32 %v7652, %v7748
      %v7781 = vadd.f32 %v7653, %v7749
      %v7782 = vadd.f32 %v7654, %v7750
      %v7783 = vadd.f32 %v7655, %v7751
      %7784 = vset.pattern.permute.xlu0 6
      %7785 = vperm.xlu0 %7784, %v7016
      %v7786 = vpop.permute.xlu0 %7785
      %7788 = vset.pattern.permute.xlu0 6
      %7789 = vperm.xlu0 %7788, %v7017
      %v7790 = vpop.permute.xlu0 %7789
      %7792 = vset.pattern.permute.xlu0 6
      %7793 = vperm.xlu0 %7792, %v7018
      %v7794 = vpop.permute.xlu0 %7793
      %7796 = vset.pattern.permute.xlu0 6
      %7797 = vperm.xlu0 %7796, %v7019
      %v7798 = vpop.permute.xlu0 %7797
      %7800 = vset.pattern.permute.xlu0 6
      %7801 = vperm.xlu0 %7800, %v7020
      %v7802 = vpop.permute.xlu0 %7801
      %7804 = vset.pattern.permute.xlu0 6
      %7805 = vperm.xlu0 %7804, %v7021
      %v7806 = vpop.permute.xlu0 %7805
      %7808 = vset.pattern.permute.xlu0 6
      %7809 = vperm.xlu0 %7808, %v7022
      %v7810 = vpop.permute.xlu0 %7809
      %7812 = vset.pattern.permute.xlu0 6
      %7813 = vperm.xlu0 %7812, %v7023
      %v7814 = vpop.permute.xlu0 %7813
      %7816 = vset.pattern.permute.xlu0 6
      %7817 = vperm.xlu0 %7816, %v7024
      %v7818 = vpop.permute.xlu0 %7817
      %7820 = vset.pattern.permute.xlu0 6
      %7821 = vperm.xlu0 %7820, %v7025
      %v7822 = vpop.permute.xlu0 %7821
      %7824 = vset.pattern.permute.xlu0 6
      %7825 = vperm.xlu0 %7824, %v7026
      %v7826 = vpop.permute.xlu0 %7825
      %7828 = vset.pattern.permute.xlu0 6
      %7829 = vperm.xlu0 %7828, %v7027
      %v7830 = vpop.permute.xlu0 %7829
      %7832 = vset.pattern.permute.xlu0 6
      %7833 = vperm.xlu0 %7832, %v7028
      %v7834 = vpop.permute.xlu0 %7833
      %7836 = vset.pattern.permute.xlu0 6
      %7837 = vperm.xlu0 %7836, %v7029
      %v7838 = vpop.permute.xlu0 %7837
      %7840 = vset.pattern.permute.xlu0 6
      %7841 = vperm.xlu0 %7840, %v7030
      %v7842 = vpop.permute.xlu0 %7841
      %7844 = vset.pattern.permute.xlu0 6
      %7845 = vperm.xlu0 %7844, %v7031
      %v7846 = vpop.permute.xlu0 %7845
      %v7848 = vmul.f32 %v7786, %v1059
      %v7849 = vmul.f32 %v7786, %v1063
      %v7850 = vmul.f32 %v7790, %v1059
      %v7851 = vmul.f32 %v7790, %v1063
      %v7852 = vmul.f32 %v7794, %v1059
      %v7853 = vmul.f32 %v7794, %v1063
      %v7854 = vmul.f32 %v7798, %v1059
      %v7855 = vmul.f32 %v7798, %v1063
      %v7856 = vmul.f32 %v7802, %v1059
      %v7857 = vmul.f32 %v7802, %v1063
      %v7858 = vmul.f32 %v7806, %v1059
      %v7859 = vmul.f32 %v7806, %v1063
      %v7860 = vmul.f32 %v7810, %v1059
      %v7861 = vmul.f32 %v7810, %v1063
      %v7862 = vmul.f32 %v7814, %v1059
      %v7863 = vmul.f32 %v7814, %v1063
      %v7864 = vmul.f32 %v7818, %v1059
      %v7865 = vmul.f32 %v7818, %v1063
      %v7866 = vmul.f32 %v7822, %v1059
      %v7867 = vmul.f32 %v7822, %v1063
      %v7868 = vmul.f32 %v7826, %v1059
      %v7869 = vmul.f32 %v7826, %v1063
      %v7870 = vmul.f32 %v7830, %v1059
      %v7871 = vmul.f32 %v7830, %v1063
      %v7872 = vmul.f32 %v7834, %v1059
      %v7873 = vmul.f32 %v7834, %v1063
      %v7874 = vmul.f32 %v7838, %v1059
      %v7875 = vmul.f32 %v7838, %v1063
      %v7876 = vmul.f32 %v7842, %v1059
      %v7877 = vmul.f32 %v7842, %v1063
      %v7878 = vmul.f32 %v7846, %v1059
      %v7879 = vmul.f32 %v7846, %v1063
      %v7880 = vadd.f32 %v7752, %v7848
      %v7881 = vadd.f32 %v7753, %v7849
      %v7882 = vadd.f32 %v7754, %v7850
      %v7883 = vadd.f32 %v7755, %v7851
      %v7884 = vadd.f32 %v7756, %v7852
      %v7885 = vadd.f32 %v7757, %v7853
      %v7886 = vadd.f32 %v7758, %v7854
      %v7887 = vadd.f32 %v7759, %v7855
      %v7888 = vadd.f32 %v7760, %v7856
      %v7889 = vadd.f32 %v7761, %v7857
      %v7890 = vadd.f32 %v7762, %v7858
      %v7891 = vadd.f32 %v7763, %v7859
      %v7892 = vadd.f32 %v7764, %v7860
      %v7893 = vadd.f32 %v7765, %v7861
      %v7894 = vadd.f32 %v7766, %v7862
      %v7895 = vadd.f32 %v7767, %v7863
      %v7896 = vadd.f32 %v7768, %v7864
      %v7897 = vadd.f32 %v7769, %v7865
      %v7898 = vadd.f32 %v7770, %v7866
      %v7899 = vadd.f32 %v7771, %v7867
      %v7900 = vadd.f32 %v7772, %v7868
      %v7901 = vadd.f32 %v7773, %v7869
      %v7902 = vadd.f32 %v7774, %v7870
      %v7903 = vadd.f32 %v7775, %v7871
      %v7904 = vadd.f32 %v7776, %v7872
      %v7905 = vadd.f32 %v7777, %v7873
      %v7906 = vadd.f32 %v7778, %v7874
      %v7907 = vadd.f32 %v7779, %v7875
      %v7908 = vadd.f32 %v7780, %v7876
      %v7909 = vadd.f32 %v7781, %v7877
      %v7910 = vadd.f32 %v7782, %v7878
      %v7911 = vadd.f32 %v7783, %v7879
      %7912 = vset.pattern.permute.xlu0 7
      %7913 = vperm.xlu0 %7912, %v7016
      %v7914 = vpop.permute.xlu0 %7913
      %7916 = vset.pattern.permute.xlu0 7
      %7917 = vperm.xlu0 %7916, %v7017
      %v7918 = vpop.permute.xlu0 %7917
      %7920 = vset.pattern.permute.xlu0 7
      %7921 = vperm.xlu0 %7920, %v7018
      %v7922 = vpop.permute.xlu0 %7921
      %7924 = vset.pattern.permute.xlu0 7
      %7925 = vperm.xlu0 %7924, %v7019
      %v7926 = vpop.permute.xlu0 %7925
      %7928 = vset.pattern.permute.xlu0 7
      %7929 = vperm.xlu0 %7928, %v7020
      %v7930 = vpop.permute.xlu0 %7929
      %7932 = vset.pattern.permute.xlu0 7
      %7933 = vperm.xlu0 %7932, %v7021
      %v7934 = vpop.permute.xlu0 %7933
      %7936 = vset.pattern.permute.xlu0 7
      %7937 = vperm.xlu0 %7936, %v7022
      %v7938 = vpop.permute.xlu0 %7937
      %7940 = vset.pattern.permute.xlu0 7
      %7941 = vperm.xlu0 %7940, %v7023
      %v7942 = vpop.permute.xlu0 %7941
      %7944 = vset.pattern.permute.xlu0 7
      %7945 = vperm.xlu0 %7944, %v7024
      %v7946 = vpop.permute.xlu0 %7945
      %7948 = vset.pattern.permute.xlu0 7
      %7949 = vperm.xlu0 %7948, %v7025
      %v7950 = vpop.permute.xlu0 %7949
      %7952 = vset.pattern.permute.xlu0 7
      %7953 = vperm.xlu0 %7952, %v7026
      %v7954 = vpop.permute.xlu0 %7953
      %7956 = vset.pattern.permute.xlu0 7
      %7957 = vperm.xlu0 %7956, %v7027
      %v7958 = vpop.permute.xlu0 %7957
      %7960 = vset.pattern.permute.xlu0 7
      %7961 = vperm.xlu0 %7960, %v7028
      %v7962 = vpop.permute.xlu0 %7961
      %7964 = vset.pattern.permute.xlu0 7
      %7965 = vperm.xlu0 %7964, %v7029
      %v7966 = vpop.permute.xlu0 %7965
      %7968 = vset.pattern.permute.xlu0 7
      %7969 = vperm.xlu0 %7968, %v7030
      %v7970 = vpop.permute.xlu0 %7969
      %7972 = vset.pattern.permute.xlu0 7
      %7973 = vperm.xlu0 %7972, %v7031
      %v7974 = vpop.permute.xlu0 %7973
      %v7976 = vmul.f32 %v7914, %v1195
      %v7977 = vmul.f32 %v7914, %v1199
      %v7978 = vmul.f32 %v7918, %v1195
      %v7979 = vmul.f32 %v7918, %v1199
      %v7980 = vmul.f32 %v7922, %v1195
      %v7981 = vmul.f32 %v7922, %v1199
      %v7982 = vmul.f32 %v7926, %v1195
      %v7983 = vmul.f32 %v7926, %v1199
      %v7984 = vmul.f32 %v7930, %v1195
      %v7985 = vmul.f32 %v7930, %v1199
      %v7986 = vmul.f32 %v7934, %v1195
      %v7987 = vmul.f32 %v7934, %v1199
      %v7988 = vmul.f32 %v7938, %v1195
      %v7989 = vmul.f32 %v7938, %v1199
      %v7990 = vmul.f32 %v7942, %v1195
      %v7991 = vmul.f32 %v7942, %v1199
      %v7992 = vmul.f32 %v7946, %v1195
      %v7993 = vmul.f32 %v7946, %v1199
      %v7994 = vmul.f32 %v7950, %v1195
      %v7995 = vmul.f32 %v7950, %v1199
      %v7996 = vmul.f32 %v7954, %v1195
      %v7997 = vmul.f32 %v7954, %v1199
      %v7998 = vmul.f32 %v7958, %v1195
      %v7999 = vmul.f32 %v7958, %v1199
      %v8000 = vmul.f32 %v7962, %v1195
      %v8001 = vmul.f32 %v7962, %v1199
      %v8002 = vmul.f32 %v7966, %v1195
      %v8003 = vmul.f32 %v7966, %v1199
      %v8004 = vmul.f32 %v7970, %v1195
      %v8005 = vmul.f32 %v7970, %v1199
      %v8006 = vmul.f32 %v7974, %v1195
      %v8007 = vmul.f32 %v7974, %v1199
      %v8008 = vadd.f32 %v7880, %v7976
      %v8009 = vadd.f32 %v7881, %v7977
      %v8010 = vadd.f32 %v7882, %v7978
      %v8011 = vadd.f32 %v7883, %v7979
      %v8012 = vadd.f32 %v7884, %v7980
      %v8013 = vadd.f32 %v7885, %v7981
      %v8014 = vadd.f32 %v7886, %v7982
      %v8015 = vadd.f32 %v7887, %v7983
      %v8016 = vadd.f32 %v7888, %v7984
      %v8017 = vadd.f32 %v7889, %v7985
      %v8018 = vadd.f32 %v7890, %v7986
      %v8019 = vadd.f32 %v7891, %v7987
      %v8020 = vadd.f32 %v7892, %v7988
      %v8021 = vadd.f32 %v7893, %v7989
      %v8022 = vadd.f32 %v7894, %v7990
      %v8023 = vadd.f32 %v7895, %v7991
      %v8024 = vadd.f32 %v7896, %v7992
      %v8025 = vadd.f32 %v7897, %v7993
      %v8026 = vadd.f32 %v7898, %v7994
      %v8027 = vadd.f32 %v7899, %v7995
      %v8028 = vadd.f32 %v7900, %v7996
      %v8029 = vadd.f32 %v7901, %v7997
      %v8030 = vadd.f32 %v7902, %v7998
      %v8031 = vadd.f32 %v7903, %v7999
      %v8032 = vadd.f32 %v7904, %v8000
      %v8033 = vadd.f32 %v7905, %v8001
      %v8034 = vadd.f32 %v7906, %v8002
      %v8035 = vadd.f32 %v7907, %v8003
      %v8036 = vadd.f32 %v7908, %v8004
      %v8037 = vadd.f32 %v7909, %v8005
      %v8038 = vadd.f32 %v7910, %v8006
      %v8039 = vadd.f32 %v7911, %v8007
      %v8040 = vmax.f32 %v8008, 0.0
      %v8041 = vmax.f32 %v8009, 0.0
      %v8042 = vmax.f32 %v8010, 0.0
      %v8043 = vmax.f32 %v8011, 0.0
      %v8044 = vmax.f32 %v8012, 0.0
      %v8045 = vmax.f32 %v8013, 0.0
      %v8046 = vmax.f32 %v8014, 0.0
      %v8047 = vmax.f32 %v8015, 0.0
      %v8048 = vmax.f32 %v8016, 0.0
      %v8049 = vmax.f32 %v8017, 0.0
      %v8050 = vmax.f32 %v8018, 0.0
      %v8051 = vmax.f32 %v8019, 0.0
      %v8052 = vmax.f32 %v8020, 0.0
      %v8053 = vmax.f32 %v8021, 0.0
      %v8054 = vmax.f32 %v8022, 0.0
      %v8055 = vmax.f32 %v8023, 0.0
      %v8056 = vmax.f32 %v8024, 0.0
      %v8057 = vmax.f32 %v8025, 0.0
      %v8058 = vmax.f32 %v8026, 0.0
      %v8059 = vmax.f32 %v8027, 0.0
      %v8060 = vmax.f32 %v8028, 0.0
      %v8061 = vmax.f32 %v8029, 0.0
      %v8062 = vmax.f32 %v8030, 0.0
      %v8063 = vmax.f32 %v8031, 0.0
      %v8064 = vmax.f32 %v8032, 0.0
      %v8065 = vmax.f32 %v8033, 0.0
      %v8066 = vmax.f32 %v8034, 0.0
      %v8067 = vmax.f32 %v8035, 0.0
      %v8068 = vmax.f32 %v8036, 0.0
      %v8069 = vmax.f32 %v8037, 0.0
      %v8070 = vmax.f32 %v8038, 0.0
      %v8071 = vmax.f32 %v8039, 0.0
      %v8072 = vld [vmem:[%s2 + $0x30] sm:$0xff]
      %8073 = vmatprep.subr.mxu0 %v8041
      %8074 = vmatpush1.msra.mxu0 %v8040
      %8075 = vmatprep.subr.mxu0 %v8043
      %8076 = vmatpush1.msra.mxu0 %v8042
      %8077 = vmatprep.subr.mxu0 %v8045
      %8078 = vmatpush1.msra.mxu0 %v8044
      %8079 = vmatprep.subr.mxu0 %v8047
      %8080 = vmatpush1.msra.mxu0 %v8046
      %8081 = vmatprep.subr.mxu0 %v8049
      %8082 = vmatpush1.msra.mxu0 %v8048
      %8083 = vmatprep.subr.mxu0 %v8051
      %8084 = vmatpush1.msra.mxu0 %v8050
      %8085 = vmatprep.subr.mxu0 %v8053
      %8086 = vmatpush1.msra.mxu0 %v8052
      %8087 = vmatprep.subr.mxu0 %v8055
      %8088 = vmatpush1.msra.mxu0 %v8054
      %8089 = vmatprep.subr.mxu0 %v8057
      %8090 = vmatpush1.msra.mxu0 %v8056
      %8091 = vmatprep.subr.mxu0 %v8059
      %8092 = vmatpush1.msra.mxu0 %v8058
      %8093 = vmatprep.subr.mxu0 %v8061
      %8094 = vmatpush1.msra.mxu0 %v8060
      %8095 = vmatprep.subr.mxu0 %v8063
      %8096 = vmatpush1.msra.mxu0 %v8062
      %8097 = vmatprep.subr.mxu0 %v8065
      %8098 = vmatpush1.msra.mxu0 %v8064
      %8099 = vmatprep.subr.mxu0 %v8067
      %8100 = vmatpush1.msra.mxu0 %v8066
      %8101 = vmatprep.subr.mxu0 %v8069
      %8102 = vmatpush1.msra.mxu0 %v8068
      %8103 = vmatprep.subr.mxu0 %v8071
      %8104 = vmatpush1.msra.mxu0 %v8070
      %8105 = vmatprep.subr.mxu0 0.0
      %8106 = vmatpush1.msra.mxu0 0.0
      %8107 = vmatprep.subr.mxu0 0.0
      %8108 = vmatpush1.msra.mxu0 0.0
      %8109 = vmatprep.subr.mxu0 0.0
      %8110 = vmatpush1.msra.mxu0 0.0
      %8111 = vmatprep.subr.mxu0 0.0
      %8112 = vmatpush1.msra.mxu0 0.0
      %8113 = vmatprep.subr.mxu0 0.0
      %8114 = vmatpush1.msra.mxu0 0.0
      %8115 = vmatprep.subr.mxu0 0.0
      %8116 = vmatpush1.msra.mxu0 0.0
      %8117 = vmatprep.subr.mxu0 0.0
      %8118 = vmatpush1.msra.mxu0 0.0
      %8119 = vmatprep.subr.mxu0 0.0
      %8120 = vmatpush1.msra.mxu0 0.0
      %8121 = vmatprep.subr.mxu0 0.0
      %8122 = vmatpush1.msra.mxu0 0.0
      %8123 = vmatprep.subr.mxu0 0.0
      %8124 = vmatpush1.msra.mxu0 0.0
      %8125 = vmatprep.subr.mxu0 0.0
      %8126 = vmatpush1.msra.mxu0 0.0
      %8127 = vmatprep.subr.mxu0 0.0
      %8128 = vmatpush1.msra.mxu0 0.0
      %8129 = vmatprep.subr.mxu0 0.0
      %8130 = vmatpush1.msra.mxu0 0.0
      %8131 = vmatprep.subr.mxu0 0.0
      %8132 = vmatpush1.msra.mxu0 0.0
      %8133 = vmatprep.subr.mxu0 0.0
      %8134 = vmatpush1.msra.mxu0 0.0
      %8135 = vmatprep.subr.mxu0 0.0
      %8136 = vmatpush1.msra.mxu0 0.0
      %8137 = vmatprep.mubr.f32.mxu0 0.0
      %8138 = vmatmul.mubr.f32.gmra.mrb[0].mxu0 %v8072
      %v8139 = vpop.f32.mrb[0].mxu0
      %v8140 = vadd.f32 0.0, %v8139
      %v8141 = vpop.f32.mrb[0].mxu0
      %v8142 = vadd.f32 0.0, %v8141
      %8143 = vdwg.mxu0
      %v8144 = vadd.f32 %v7014, %v8140
      %v8145 = vadd.f32 %v7015, %v8142
      %v8146 = vld [vmem:[%s1 + $0x380] sm:$0xff]
      %v8147 = vld [vmem:[%s1 + $0x388] sm:$0xff]
      %v8148 = vld [vmem:[%s1 + $0x390] sm:$0xff]
      %v8149 = vld [vmem:[%s1 + $0x398] sm:$0xff]
      %v8150 = vld [vmem:[%s1 + $0x3a0] sm:$0xff]
      %v8151 = vld [vmem:[%s1 + $0x3a8] sm:$0xff]
      %v8152 = vld [vmem:[%s1 + $0x3b0] sm:$0xff]
      %v8153 = vld [vmem:[%s1 + $0x3b8] sm:$0xff]
      %v8154 = vld [vmem:[%s1 + $0x3c0] sm:$0xff]
      %v8155 = vld [vmem:[%s1 + $0x3c8] sm:$0xff]
      %v8156 = vld [vmem:[%s1 + $0x3d0] sm:$0xff]
      %v8157 = vld [vmem:[%s1 + $0x3d8] sm:$0xff]
      %v8158 = vld [vmem:[%s1 + $0x3e0] sm:$0xff]
      %v8159 = vld [vmem:[%s1 + $0x3e8] sm:$0xff]
      %v8160 = vld [vmem:[%s1 + $0x3f0] sm:$0xff]
      %v8161 = vld [vmem:[%s1 + $0x3f8] sm:$0xff]
      %8163 = vset.pattern.permute.xlu0 0
      %8164 = vperm.xlu0 %8163, %v8146
      %v8165 = vpop.permute.xlu0 %8164
      %8168 = vset.pattern.permute.xlu0 0
      %8169 = vperm.xlu0 %8168, %v8147
      %v8170 = vpop.permute.xlu0 %8169
      %8173 = vset.pattern.permute.xlu0 0
      %8174 = vperm.xlu0 %8173, %v8148
      %v8175 = vpop.permute.xlu0 %8174
      %8178 = vset.pattern.permute.xlu0 0
      %8179 = vperm.xlu0 %8178, %v8149
      %v8180 = vpop.permute.xlu0 %8179
      %8183 = vset.pattern.permute.xlu0 0
      %8184 = vperm.xlu0 %8183, %v8150
      %v8185 = vpop.permute.xlu0 %8184
      %8188 = vset.pattern.permute.xlu0 0
      %8189 = vperm.xlu0 %8188, %v8151
      %v8190 = vpop.permute.xlu0 %8189
      %8193 = vset.pattern.permute.xlu0 0
      %8194 = vperm.xlu0 %8193, %v8152
      %v8195 = vpop.permute.xlu0 %8194
      %8198 = vset.pattern.permute.xlu0 0
      %8199 = vperm.xlu0 %8198, %v8153
      %v8200 = vpop.permute.xlu0 %8199
      %8203 = vset.pattern.permute.xlu0 0
      %8204 = vperm.xlu0 %8203, %v8154
      %v8205 = vpop.permute.xlu0 %8204
      %8208 = vset.pattern.permute.xlu0 0
      %8209 = vperm.xlu0 %8208, %v8155
      %v8210 = vpop.permute.xlu0 %8209
      %8213 = vset.pattern.permute.xlu0 0
      %8214 = vperm.xlu0 %8213, %v8156
      %v8215 = vpop.permute.xlu0 %8214
      %8218 = vset.pattern.permute.xlu0 0
      %8219 = vperm.xlu0 %8218, %v8157
      %v8220 = vpop.permute.xlu0 %8219
      %8223 = vset.pattern.permute.xlu0 0
      %8224 = vperm.xlu0 %8223, %v8158
      %v8225 = vpop.permute.xlu0 %8224
      %8228 = vset.pattern.permute.xlu0 0
      %8229 = vperm.xlu0 %8228, %v8159
      %v8230 = vpop.permute.xlu0 %8229
      %8233 = vset.pattern.permute.xlu0 0
      %8234 = vperm.xlu0 %8233, %v8160
      %v8235 = vpop.permute.xlu0 %8234
      %8238 = vset.pattern.permute.xlu0 0
      %8239 = vperm.xlu0 %8238, %v8161
      %v8240 = vpop.permute.xlu0 %8239
      %v8242 = vmul.f32 %v8165, %v275
      %v8243 = vmul.f32 %v8165, %v279
      %v8244 = vmul.f32 %v8170, %v275
      %v8245 = vmul.f32 %v8170, %v279
      %v8246 = vmul.f32 %v8175, %v275
      %v8247 = vmul.f32 %v8175, %v279
      %v8248 = vmul.f32 %v8180, %v275
      %v8249 = vmul.f32 %v8180, %v279
      %v8250 = vmul.f32 %v8185, %v275
      %v8251 = vmul.f32 %v8185, %v279
      %v8252 = vmul.f32 %v8190, %v275
      %v8253 = vmul.f32 %v8190, %v279
      %v8254 = vmul.f32 %v8195, %v275
      %v8255 = vmul.f32 %v8195, %v279
      %v8256 = vmul.f32 %v8200, %v275
      %v8257 = vmul.f32 %v8200, %v279
      %v8258 = vmul.f32 %v8205, %v275
      %v8259 = vmul.f32 %v8205, %v279
      %v8260 = vmul.f32 %v8210, %v275
      %v8261 = vmul.f32 %v8210, %v279
      %v8262 = vmul.f32 %v8215, %v275
      %v8263 = vmul.f32 %v8215, %v279
      %v8264 = vmul.f32 %v8220, %v275
      %v8265 = vmul.f32 %v8220, %v279
      %v8266 = vmul.f32 %v8225, %v275
      %v8267 = vmul.f32 %v8225, %v279
      %v8268 = vmul.f32 %v8230, %v275
      %v8269 = vmul.f32 %v8230, %v279
      %v8270 = vmul.f32 %v8235, %v275
      %v8271 = vmul.f32 %v8235, %v279
      %v8272 = vmul.f32 %v8240, %v275
      %v8273 = vmul.f32 %v8240, %v279
      %8274 = vset.pattern.permute.xlu0 1
      %8275 = vperm.xlu0 %8274, %v8146
      %v8276 = vpop.permute.xlu0 %8275
      %8278 = vset.pattern.permute.xlu0 1
      %8279 = vperm.xlu0 %8278, %v8147
      %v8280 = vpop.permute.xlu0 %8279
      %8282 = vset.pattern.permute.xlu0 1
      %8283 = vperm.xlu0 %8282, %v8148
      %v8284 = vpop.permute.xlu0 %8283
      %8286 = vset.pattern.permute.xlu0 1
      %8287 = vperm.xlu0 %8286, %v8149
      %v8288 = vpop.permute.xlu0 %8287
      %8290 = vset.pattern.permute.xlu0 1
      %8291 = vperm.xlu0 %8290, %v8150
      %v8292 = vpop.permute.xlu0 %8291
      %8294 = vset.pattern.permute.xlu0 1
      %8295 = vperm.xlu0 %8294, %v8151
      %v8296 = vpop.permute.xlu0 %8295
      %8298 = vset.pattern.permute.xlu0 1
      %8299 = vperm.xlu0 %8298, %v8152
      %v8300 = vpop.permute.xlu0 %8299
      %8302 = vset.pattern.permute.xlu0 1
      %8303 = vperm.xlu0 %8302, %v8153
      %v8304 = vpop.permute.xlu0 %8303
      %8306 = vset.pattern.permute.xlu0 1
      %8307 = vperm.xlu0 %8306, %v8154
      %v8308 = vpop.permute.xlu0 %8307
      %8310 = vset.pattern.permute.xlu0 1
      %8311 = vperm.xlu0 %8310, %v8155
      %v8312 = vpop.permute.xlu0 %8311
      %8314 = vset.pattern.permute.xlu0 1
      %8315 = vperm.xlu0 %8314, %v8156
      %v8316 = vpop.permute.xlu0 %8315
      %8318 = vset.pattern.permute.xlu0 1
      %8319 = vperm.xlu0 %8318, %v8157
      %v8320 = vpop.permute.xlu0 %8319
      %8322 = vset.pattern.permute.xlu0 1
      %8323 = vperm.xlu0 %8322, %v8158
      %v8324 = vpop.permute.xlu0 %8323
      %8326 = vset.pattern.permute.xlu0 1
      %8327 = vperm.xlu0 %8326, %v8159
      %v8328 = vpop.permute.xlu0 %8327
      %8330 = vset.pattern.permute.xlu0 1
      %8331 = vperm.xlu0 %8330, %v8160
      %v8332 = vpop.permute.xlu0 %8331
      %8334 = vset.pattern.permute.xlu0 1
      %8335 = vperm.xlu0 %8334, %v8161
      %v8336 = vpop.permute.xlu0 %8335
      %v8338 = vmul.f32 %v8276, %v379
      %v8339 = vmul.f32 %v8276, %v383
      %v8340 = vmul.f32 %v8280, %v379
      %v8341 = vmul.f32 %v8280, %v383
      %v8342 = vmul.f32 %v8284, %v379
      %v8343 = vmul.f32 %v8284, %v383
      %v8344 = vmul.f32 %v8288, %v379
      %v8345 = vmul.f32 %v8288, %v383
      %v8346 = vmul.f32 %v8292, %v379
      %v8347 = vmul.f32 %v8292, %v383
      %v8348 = vmul.f32 %v8296, %v379
      %v8349 = vmul.f32 %v8296, %v383
      %v8350 = vmul.f32 %v8300, %v379
      %v8351 = vmul.f32 %v8300, %v383
      %v8352 = vmul.f32 %v8304, %v379
      %v8353 = vmul.f32 %v8304, %v383
      %v8354 = vmul.f32 %v8308, %v379
      %v8355 = vmul.f32 %v8308, %v383
      %v8356 = vmul.f32 %v8312, %v379
      %v8357 = vmul.f32 %v8312, %v383
      %v8358 = vmul.f32 %v8316, %v379
      %v8359 = vmul.f32 %v8316, %v383
      %v8360 = vmul.f32 %v8320, %v379
      %v8361 = vmul.f32 %v8320, %v383
      %v8362 = vmul.f32 %v8324, %v379
      %v8363 = vmul.f32 %v8324, %v383
      %v8364 = vmul.f32 %v8328, %v379
      %v8365 = vmul.f32 %v8328, %v383
      %v8366 = vmul.f32 %v8332, %v379
      %v8367 = vmul.f32 %v8332, %v383
      %v8368 = vmul.f32 %v8336, %v379
      %v8369 = vmul.f32 %v8336, %v383
      %v8370 = vadd.f32 %v8242, %v8338
      %v8371 = vadd.f32 %v8243, %v8339
      %v8372 = vadd.f32 %v8244, %v8340
      %v8373 = vadd.f32 %v8245, %v8341
      %v8374 = vadd.f32 %v8246, %v8342
      %v8375 = vadd.f32 %v8247, %v8343
      %v8376 = vadd.f32 %v8248, %v8344
      %v8377 = vadd.f32 %v8249, %v8345
      %v8378 = vadd.f32 %v8250, %v8346
      %v8379 = vadd.f32 %v8251, %v8347
      %v8380 = vadd.f32 %v8252, %v8348
      %v8381 = vadd.f32 %v8253, %v8349
      %v8382 = vadd.f32 %v8254, %v8350
      %v8383 = vadd.f32 %v8255, %v8351
      %v8384 = vadd.f32 %v8256, %v8352
      %v8385 = vadd.f32 %v8257, %v8353
      %v8386 = vadd.f32 %v8258, %v8354
      %v8387 = vadd.f32 %v8259, %v8355
      %v8388 = vadd.f32 %v8260, %v8356
      %v8389 = vadd.f32 %v8261, %v8357
      %v8390 = vadd.f32 %v8262, %v8358
      %v8391 = vadd.f32 %v8263, %v8359
      %v8392 = vadd.f32 %v8264, %v8360
      %v8393 = vadd.f32 %v8265, %v8361
      %v8394 = vadd.f32 %v8266, %v8362
      %v8395 = vadd.f32 %v8267, %v8363
      %v8396 = vadd.f32 %v8268, %v8364
      %v8397 = vadd.f32 %v8269, %v8365
      %v8398 = vadd.f32 %v8270, %v8366
      %v8399 = vadd.f32 %v8271, %v8367
      %v8400 = vadd.f32 %v8272, %v8368
      %v8401 = vadd.f32 %v8273, %v8369
      %8402 = vset.pattern.permute.xlu0 2
      %8403 = vperm.xlu0 %8402, %v8146
      %v8404 = vpop.permute.xlu0 %8403
      %8406 = vset.pattern.permute.xlu0 2
      %8407 = vperm.xlu0 %8406, %v8147
      %v8408 = vpop.permute.xlu0 %8407
      %8410 = vset.pattern.permute.xlu0 2
      %8411 = vperm.xlu0 %8410, %v8148
      %v8412 = vpop.permute.xlu0 %8411
      %8414 = vset.pattern.permute.xlu0 2
      %8415 = vperm.xlu0 %8414, %v8149
      %v8416 = vpop.permute.xlu0 %8415
      %8418 = vset.pattern.permute.xlu0 2
      %8419 = vperm.xlu0 %8418, %v8150
      %v8420 = vpop.permute.xlu0 %8419
      %8422 = vset.pattern.permute.xlu0 2
      %8423 = vperm.xlu0 %8422, %v8151
      %v8424 = vpop.permute.xlu0 %8423
      %8426 = vset.pattern.permute.xlu0 2
      %8427 = vperm.xlu0 %8426, %v8152
      %v8428 = vpop.permute.xlu0 %8427
      %8430 = vset.pattern.permute.xlu0 2
      %8431 = vperm.xlu0 %8430, %v8153
      %v8432 = vpop.permute.xlu0 %8431
      %8434 = vset.pattern.permute.xlu0 2
      %8435 = vperm.xlu0 %8434, %v8154
      %v8436 = vpop.permute.xlu0 %8435
      %8438 = vset.pattern.permute.xlu0 2
      %8439 = vperm.xlu0 %8438, %v8155
      %v8440 = vpop.permute.xlu0 %8439
      %8442 = vset.pattern.permute.xlu0 2
      %8443 = vperm.xlu0 %8442, %v8156
      %v8444 = vpop.permute.xlu0 %8443
      %8446 = vset.pattern.permute.xlu0 2
      %8447 = vperm.xlu0 %8446, %v8157
      %v8448 = vpop.permute.xlu0 %8447
      %8450 = vset.pattern.permute.xlu0 2
      %8451 = vperm.xlu0 %8450, %v8158
      %v8452 = vpop.permute.xlu0 %8451
      %8454 = vset.pattern.permute.xlu0 2
      %8455 = vperm.xlu0 %8454, %v8159
      %v8456 = vpop.permute.xlu0 %8455
      %8458 = vset.pattern.permute.xlu0 2
      %8459 = vperm.xlu0 %8458, %v8160
      %v8460 = vpop.permute.xlu0 %8459
      %8462 = vset.pattern.permute.xlu0 2
      %8463 = vperm.xlu0 %8462, %v8161
      %v8464 = vpop.permute.xlu0 %8463
      %v8466 = vmul.f32 %v8404, %v515
      %v8467 = vmul.f32 %v8404, %v519
      %v8468 = vmul.f32 %v8408, %v515
      %v8469 = vmul.f32 %v8408, %v519
      %v8470 = vmul.f32 %v8412, %v515
      %v8471 = vmul.f32 %v8412, %v519
      %v8472 = vmul.f32 %v8416, %v515
      %v8473 = vmul.f32 %v8416, %v519
      %v8474 = vmul.f32 %v8420, %v515
      %v8475 = vmul.f32 %v8420, %v519
      %v8476 = vmul.f32 %v8424, %v515
      %v8477 = vmul.f32 %v8424, %v519
      %v8478 = vmul.f32 %v8428, %v515
      %v8479 = vmul.f32 %v8428, %v519
      %v8480 = vmul.f32 %v8432, %v515
      %v8481 = vmul.f32 %v8432, %v519
      %v8482 = vmul.f32 %v8436, %v515
      %v8483 = vmul.f32 %v8436, %v519
      %v8484 = vmul.f32 %v8440, %v515
      %v8485 = vmul.f32 %v8440, %v519
      %v8486 = vmul.f32 %v8444, %v515
      %v8487 = vmul.f32 %v8444, %v519
      %v8488 = vmul.f32 %v8448, %v515
      %v8489 = vmul.f32 %v8448, %v519
      %v8490 = vmul.f32 %v8452, %v515
      %v8491 = vmul.f32 %v8452, %v519
      %v8492 = vmul.f32 %v8456, %v515
      %v8493 = vmul.f32 %v8456, %v519
      %v8494 = vmul.f32 %v8460, %v515
      %v8495 = vmul.f32 %v8460, %v519
      %v8496 = vmul.f32 %v8464, %v515
      %v8497 = vmul.f32 %v8464, %v519
      %v8498 = vadd.f32 %v8370, %v8466
      %v8499 = vadd.f32 %v8371, %v8467
      %v8500 = vadd.f32 %v8372, %v8468
      %v8501 = vadd.f32 %v8373, %v8469
      %v8502 = vadd.f32 %v8374, %v8470
      %v8503 = vadd.f32 %v8375, %v8471
      %v8504 = vadd.f32 %v8376, %v8472
      %v8505 = vadd.f32 %v8377, %v8473
      %v8506 = vadd.f32 %v8378, %v8474
      %v8507 = vadd.f32 %v8379, %v8475
      %v8508 = vadd.f32 %v8380, %v8476
      %v8509 = vadd.f32 %v8381, %v8477
      %v8510 = vadd.f32 %v8382, %v8478
      %v8511 = vadd.f32 %v8383, %v8479
      %v8512 = vadd.f32 %v8384, %v8480
      %v8513 = vadd.f32 %v8385, %v8481
      %v8514 = vadd.f32 %v8386, %v8482
      %v8515 = vadd.f32 %v8387, %v8483
      %v8516 = vadd.f32 %v8388, %v8484
      %v8517 = vadd.f32 %v8389, %v8485
      %v8518 = vadd.f32 %v8390, %v8486
      %v8519 = vadd.f32 %v8391, %v8487
      %v8520 = vadd.f32 %v8392, %v8488
      %v8521 = vadd.f32 %v8393, %v8489
      %v8522 = vadd.f32 %v8394, %v8490
      %v8523 = vadd.f32 %v8395, %v8491
      %v8524 = vadd.f32 %v8396, %v8492
      %v8525 = vadd.f32 %v8397, %v8493
      %v8526 = vadd.f32 %v8398, %v8494
      %v8527 = vadd.f32 %v8399, %v8495
      %v8528 = vadd.f32 %v8400, %v8496
      %v8529 = vadd.f32 %v8401, %v8497
      %8530 = vset.pattern.permute.xlu0 3
      %8531 = vperm.xlu0 %8530, %v8146
      %v8532 = vpop.permute.xlu0 %8531
      %8534 = vset.pattern.permute.xlu0 3
      %8535 = vperm.xlu0 %8534, %v8147
      %v8536 = vpop.permute.xlu0 %8535
      %8538 = vset.pattern.permute.xlu0 3
      %8539 = vperm.xlu0 %8538, %v8148
      %v8540 = vpop.permute.xlu0 %8539
      %8542 = vset.pattern.permute.xlu0 3
      %8543 = vperm.xlu0 %8542, %v8149
      %v8544 = vpop.permute.xlu0 %8543
      %8546 = vset.pattern.permute.xlu0 3
      %8547 = vperm.xlu0 %8546, %v8150
      %v8548 = vpop.permute.xlu0 %8547
      %8550 = vset.pattern.permute.xlu0 3
      %8551 = vperm.xlu0 %8550, %v8151
      %v8552 = vpop.permute.xlu0 %8551
      %8554 = vset.pattern.permute.xlu0 3
      %8555 = vperm.xlu0 %8554, %v8152
      %v8556 = vpop.permute.xlu0 %8555
      %8558 = vset.pattern.permute.xlu0 3
      %8559 = vperm.xlu0 %8558, %v8153
      %v8560 = vpop.permute.xlu0 %8559
      %8562 = vset.pattern.permute.xlu0 3
      %8563 = vperm.xlu0 %8562, %v8154
      %v8564 = vpop.permute.xlu0 %8563
      %8566 = vset.pattern.permute.xlu0 3
      %8567 = vperm.xlu0 %8566, %v8155
      %v8568 = vpop.permute.xlu0 %8567
      %8570 = vset.pattern.permute.xlu0 3
      %8571 = vperm.xlu0 %8570, %v8156
      %v8572 = vpop.permute.xlu0 %8571
      %8574 = vset.pattern.permute.xlu0 3
      %8575 = vperm.xlu0 %8574, %v8157
      %v8576 = vpop.permute.xlu0 %8575
      %8578 = vset.pattern.permute.xlu0 3
      %8579 = vperm.xlu0 %8578, %v8158
      %v8580 = vpop.permute.xlu0 %8579
      %8582 = vset.pattern.permute.xlu0 3
      %8583 = vperm.xlu0 %8582, %v8159
      %v8584 = vpop.permute.xlu0 %8583
      %8586 = vset.pattern.permute.xlu0 3
      %8587 = vperm.xlu0 %8586, %v8160
      %v8588 = vpop.permute.xlu0 %8587
      %8590 = vset.pattern.permute.xlu0 3
      %8591 = vperm.xlu0 %8590, %v8161
      %v8592 = vpop.permute.xlu0 %8591
      %v8594 = vmul.f32 %v8532, %v651
      %v8595 = vmul.f32 %v8532, %v655
      %v8596 = vmul.f32 %v8536, %v651
      %v8597 = vmul.f32 %v8536, %v655
      %v8598 = vmul.f32 %v8540, %v651
      %v8599 = vmul.f32 %v8540, %v655
      %v8600 = vmul.f32 %v8544, %v651
      %v8601 = vmul.f32 %v8544, %v655
      %v8602 = vmul.f32 %v8548, %v651
      %v8603 = vmul.f32 %v8548, %v655
      %v8604 = vmul.f32 %v8552, %v651
      %v8605 = vmul.f32 %v8552, %v655
      %v8606 = vmul.f32 %v8556, %v651
      %v8607 = vmul.f32 %v8556, %v655
      %v8608 = vmul.f32 %v8560, %v651
      %v8609 = vmul.f32 %v8560, %v655
      %v8610 = vmul.f32 %v8564, %v651
      %v8611 = vmul.f32 %v8564, %v655
      %v8612 = vmul.f32 %v8568, %v651
      %v8613 = vmul.f32 %v8568, %v655
      %v8614 = vmul.f32 %v8572, %v651
      %v8615 = vmul.f32 %v8572, %v655
      %v8616 = vmul.f32 %v8576, %v651
      %v8617 = vmul.f32 %v8576, %v655
      %v8618 = vmul.f32 %v8580, %v651
      %v8619 = vmul.f32 %v8580, %v655
      %v8620 = vmul.f32 %v8584, %v651
      %v8621 = vmul.f32 %v8584, %v655
      %v8622 = vmul.f32 %v8588, %v651
      %v8623 = vmul.f32 %v8588, %v655
      %v8624 = vmul.f32 %v8592, %v651
      %v8625 = vmul.f32 %v8592, %v655
      %v8626 = vadd.f32 %v8498, %v8594
      %v8627 = vadd.f32 %v8499, %v8595
      %v8628 = vadd.f32 %v8500, %v8596
      %v8629 = vadd.f32 %v8501, %v8597
      %v8630 = vadd.f32 %v8502, %v8598
      %v8631 = vadd.f32 %v8503, %v8599
      %v8632 = vadd.f32 %v8504, %v8600
      %v8633 = vadd.f32 %v8505, %v8601
      %v8634 = vadd.f32 %v8506, %v8602
      %v8635 = vadd.f32 %v8507, %v8603
      %v8636 = vadd.f32 %v8508, %v8604
      %v8637 = vadd.f32 %v8509, %v8605
      %v8638 = vadd.f32 %v8510, %v8606
      %v8639 = vadd.f32 %v8511, %v8607
      %v8640 = vadd.f32 %v8512, %v8608
      %v8641 = vadd.f32 %v8513, %v8609
      %v8642 = vadd.f32 %v8514, %v8610
      %v8643 = vadd.f32 %v8515, %v8611
      %v8644 = vadd.f32 %v8516, %v8612
      %v8645 = vadd.f32 %v8517, %v8613
      %v8646 = vadd.f32 %v8518, %v8614
      %v8647 = vadd.f32 %v8519, %v8615
      %v8648 = vadd.f32 %v8520, %v8616
      %v8649 = vadd.f32 %v8521, %v8617
      %v8650 = vadd.f32 %v8522, %v8618
      %v8651 = vadd.f32 %v8523, %v8619
      %v8652 = vadd.f32 %v8524, %v8620
      %v8653 = vadd.f32 %v8525, %v8621
      %v8654 = vadd.f32 %v8526, %v8622
      %v8655 = vadd.f32 %v8527, %v8623
      %v8656 = vadd.f32 %v8528, %v8624
      %v8657 = vadd.f32 %v8529, %v8625
      %8658 = vset.pattern.permute.xlu0 4
      %8659 = vperm.xlu0 %8658, %v8146
      %v8660 = vpop.permute.xlu0 %8659
      %8662 = vset.pattern.permute.xlu0 4
      %8663 = vperm.xlu0 %8662, %v8147
      %v8664 = vpop.permute.xlu0 %8663
      %8666 = vset.pattern.permute.xlu0 4
      %8667 = vperm.xlu0 %8666, %v8148
      %v8668 = vpop.permute.xlu0 %8667
      %8670 = vset.pattern.permute.xlu0 4
      %8671 = vperm.xlu0 %8670, %v8149
      %v8672 = vpop.permute.xlu0 %8671
      %8674 = vset.pattern.permute.xlu0 4
      %8675 = vperm.xlu0 %8674, %v8150
      %v8676 = vpop.permute.xlu0 %8675
      %8678 = vset.pattern.permute.xlu0 4
      %8679 = vperm.xlu0 %8678, %v8151
      %v8680 = vpop.permute.xlu0 %8679
      %8682 = vset.pattern.permute.xlu0 4
      %8683 = vperm.xlu0 %8682, %v8152
      %v8684 = vpop.permute.xlu0 %8683
      %8686 = vset.pattern.permute.xlu0 4
      %8687 = vperm.xlu0 %8686, %v8153
      %v8688 = vpop.permute.xlu0 %8687
      %8690 = vset.pattern.permute.xlu0 4
      %8691 = vperm.xlu0 %8690, %v8154
      %v8692 = vpop.permute.xlu0 %8691
      %8694 = vset.pattern.permute.xlu0 4
      %8695 = vperm.xlu0 %8694, %v8155
      %v8696 = vpop.permute.xlu0 %8695
      %8698 = vset.pattern.permute.xlu0 4
      %8699 = vperm.xlu0 %8698, %v8156
      %v8700 = vpop.permute.xlu0 %8699
      %8702 = vset.pattern.permute.xlu0 4
      %8703 = vperm.xlu0 %8702, %v8157
      %v8704 = vpop.permute.xlu0 %8703
      %8706 = vset.pattern.permute.xlu0 4
      %8707 = vperm.xlu0 %8706, %v8158
      %v8708 = vpop.permute.xlu0 %8707
      %8710 = vset.pattern.permute.xlu0 4
      %8711 = vperm.xlu0 %8710, %v8159
      %v8712 = vpop.permute.xlu0 %8711
      %8714 = vset.pattern.permute.xlu0 4
      %8715 = vperm.xlu0 %8714, %v8160
      %v8716 = vpop.permute.xlu0 %8715
      %8718 = vset.pattern.permute.xlu0 4
      %8719 = vperm.xlu0 %8718, %v8161
      %v8720 = vpop.permute.xlu0 %8719
      %v8722 = vmul.f32 %v8660, %v787
      %v8723 = vmul.f32 %v8660, %v791
      %v8724 = vmul.f32 %v8664, %v787
      %v8725 = vmul.f32 %v8664, %v791
      %v8726 = vmul.f32 %v8668, %v787
      %v8727 = vmul.f32 %v8668, %v791
      %v8728 = vmul.f32 %v8672, %v787
      %v8729 = vmul.f32 %v8672, %v791
      %v8730 = vmul.f32 %v8676, %v787
      %v8731 = vmul.f32 %v8676, %v791
      %v8732 = vmul.f32 %v8680, %v787
      %v8733 = vmul.f32 %v8680, %v791
      %v8734 = vmul.f32 %v8684, %v787
      %v8735 = vmul.f32 %v8684, %v791
      %v8736 = vmul.f32 %v8688, %v787
      %v8737 = vmul.f32 %v8688, %v791
      %v8738 = vmul.f32 %v8692, %v787
      %v8739 = vmul.f32 %v8692, %v791
      %v8740 = vmul.f32 %v8696, %v787
      %v8741 = vmul.f32 %v8696, %v791
      %v8742 = vmul.f32 %v8700, %v787
      %v8743 = vmul.f32 %v8700, %v791
      %v8744 = vmul.f32 %v8704, %v787
      %v8745 = vmul.f32 %v8704, %v791
      %v8746 = vmul.f32 %v8708, %v787
      %v8747 = vmul.f32 %v8708, %v791
      %v8748 = vmul.f32 %v8712, %v787
      %v8749 = vmul.f32 %v8712, %v791
      %v8750 = vmul.f32 %v8716, %v787
      %v8751 = vmul.f32 %v8716, %v791
      %v8752 = vmul.f32 %v8720, %v787
      %v8753 = vmul.f32 %v8720, %v791
      %v8754 = vadd.f32 %v8626, %v8722
      %v8755 = vadd.f32 %v8627, %v8723
      %v8756 = vadd.f32 %v8628, %v8724
      %v8757 = vadd.f32 %v8629, %v8725
      %v8758 = vadd.f32 %v8630, %v8726
      %v8759 = vadd.f32 %v8631, %v8727
      %v8760 = vadd.f32 %v8632, %v8728
      %v8761 = vadd.f32 %v8633, %v8729
      %v8762 = vadd.f32 %v8634, %v8730
      %v8763 = vadd.f32 %v8635, %v8731
      %v8764 = vadd.f32 %v8636, %v8732
      %v8765 = vadd.f32 %v8637, %v8733
      %v8766 = vadd.f32 %v8638, %v8734
      %v8767 = vadd.f32 %v8639, %v8735
      %v8768 = vadd.f32 %v8640, %v8736
      %v8769 = vadd.f32 %v8641, %v8737
      %v8770 = vadd.f32 %v8642, %v8738
      %v8771 = vadd.f32 %v8643, %v8739
      %v8772 = vadd.f32 %v8644, %v8740
      %v8773 = vadd.f32 %v8645, %v8741
      %v8774 = vadd.f32 %v8646, %v8742
      %v8775 = vadd.f32 %v8647, %v8743
      %v8776 = vadd.f32 %v8648, %v8744
      %v8777 = vadd.f32 %v8649, %v8745
      %v8778 = vadd.f32 %v8650, %v8746
      %v8779 = vadd.f32 %v8651, %v8747
      %v8780 = vadd.f32 %v8652, %v8748
      %v8781 = vadd.f32 %v8653, %v8749
      %v8782 = vadd.f32 %v8654, %v8750
      %v8783 = vadd.f32 %v8655, %v8751
      %v8784 = vadd.f32 %v8656, %v8752
      %v8785 = vadd.f32 %v8657, %v8753
      %8786 = vset.pattern.permute.xlu0 5
      %8787 = vperm.xlu0 %8786, %v8146
      %v8788 = vpop.permute.xlu0 %8787
      %8790 = vset.pattern.permute.xlu0 5
      %8791 = vperm.xlu0 %8790, %v8147
      %v8792 = vpop.permute.xlu0 %8791
      %8794 = vset.pattern.permute.xlu0 5
      %8795 = vperm.xlu0 %8794, %v8148
      %v8796 = vpop.permute.xlu0 %8795
      %8798 = vset.pattern.permute.xlu0 5
      %8799 = vperm.xlu0 %8798, %v8149
      %v8800 = vpop.permute.xlu0 %8799
      %8802 = vset.pattern.permute.xlu0 5
      %8803 = vperm.xlu0 %8802, %v8150
      %v8804 = vpop.permute.xlu0 %8803
      %8806 = vset.pattern.permute.xlu0 5
      %8807 = vperm.xlu0 %8806, %v8151
      %v8808 = vpop.permute.xlu0 %8807
      %8810 = vset.pattern.permute.xlu0 5
      %8811 = vperm.xlu0 %8810, %v8152
      %v8812 = vpop.permute.xlu0 %8811
      %8814 = vset.pattern.permute.xlu0 5
      %8815 = vperm.xlu0 %8814, %v8153
      %v8816 = vpop.permute.xlu0 %8815
      %8818 = vset.pattern.permute.xlu0 5
      %8819 = vperm.xlu0 %8818, %v8154
      %v8820 = vpop.permute.xlu0 %8819
      %8822 = vset.pattern.permute.xlu0 5
      %8823 = vperm.xlu0 %8822, %v8155
      %v8824 = vpop.permute.xlu0 %8823
      %8826 = vset.pattern.permute.xlu0 5
      %8827 = vperm.xlu0 %8826, %v8156
      %v8828 = vpop.permute.xlu0 %8827
      %8830 = vset.pattern.permute.xlu0 5
      %8831 = vperm.xlu0 %8830, %v8157
      %v8832 = vpop.permute.xlu0 %8831
      %8834 = vset.pattern.permute.xlu0 5
      %8835 = vperm.xlu0 %8834, %v8158
      %v8836 = vpop.permute.xlu0 %8835
      %8838 = vset.pattern.permute.xlu0 5
      %8839 = vperm.xlu0 %8838, %v8159
      %v8840 = vpop.permute.xlu0 %8839
      %8842 = vset.pattern.permute.xlu0 5
      %8843 = vperm.xlu0 %8842, %v8160
      %v8844 = vpop.permute.xlu0 %8843
      %8846 = vset.pattern.permute.xlu0 5
      %8847 = vperm.xlu0 %8846, %v8161
      %v8848 = vpop.permute.xlu0 %8847
      %v8850 = vmul.f32 %v8788, %v923
      %v8851 = vmul.f32 %v8788, %v927
      %v8852 = vmul.f32 %v8792, %v923
      %v8853 = vmul.f32 %v8792, %v927
      %v8854 = vmul.f32 %v8796, %v923
      %v8855 = vmul.f32 %v8796, %v927
      %v8856 = vmul.f32 %v8800, %v923
      %v8857 = vmul.f32 %v8800, %v927
      %v8858 = vmul.f32 %v8804, %v923
      %v8859 = vmul.f32 %v8804, %v927
      %v8860 = vmul.f32 %v8808, %v923
      %v8861 = vmul.f32 %v8808, %v927
      %v8862 = vmul.f32 %v8812, %v923
      %v8863 = vmul.f32 %v8812, %v927
      %v8864 = vmul.f32 %v8816, %v923
      %v8865 = vmul.f32 %v8816, %v927
      %v8866 = vmul.f32 %v8820, %v923
      %v8867 = vmul.f32 %v8820, %v927
      %v8868 = vmul.f32 %v8824, %v923
      %v8869 = vmul.f32 %v8824, %v927
      %v8870 = vmul.f32 %v8828, %v923
      %v8871 = vmul.f32 %v8828, %v927
      %v8872 = vmul.f32 %v8832, %v923
      %v8873 = vmul.f32 %v8832, %v927
      %v8874 = vmul.f32 %v8836, %v923
      %v8875 = vmul.f32 %v8836, %v927
      %v8876 = vmul.f32 %v8840, %v923
      %v8877 = vmul.f32 %v8840, %v927
      %v8878 = vmul.f32 %v8844, %v923
      %v8879 = vmul.f32 %v8844, %v927
      %v8880 = vmul.f32 %v8848, %v923
      %v8881 = vmul.f32 %v8848, %v927
      %v8882 = vadd.f32 %v8754, %v8850
      %v8883 = vadd.f32 %v8755, %v8851
      %v8884 = vadd.f32 %v8756, %v8852
      %v8885 = vadd.f32 %v8757, %v8853
      %v8886 = vadd.f32 %v8758, %v8854
      %v8887 = vadd.f32 %v8759, %v8855
      %v8888 = vadd.f32 %v8760, %v8856
      %v8889 = vadd.f32 %v8761, %v8857
      %v8890 = vadd.f32 %v8762, %v8858
      %v8891 = vadd.f32 %v8763, %v8859
      %v8892 = vadd.f32 %v8764, %v8860
      %v8893 = vadd.f32 %v8765, %v8861
      %v8894 = vadd.f32 %v8766, %v8862
      %v8895 = vadd.f32 %v8767, %v8863
      %v8896 = vadd.f32 %v8768, %v8864
      %v8897 = vadd.f32 %v8769, %v8865
      %v8898 = vadd.f32 %v8770, %v8866
      %v8899 = vadd.f32 %v8771, %v8867
      %v8900 = vadd.f32 %v8772, %v8868
      %v8901 = vadd.f32 %v8773, %v8869
      %v8902 = vadd.f32 %v8774, %v8870
      %v8903 = vadd.f32 %v8775, %v8871
      %v8904 = vadd.f32 %v8776, %v8872
      %v8905 = vadd.f32 %v8777, %v8873
      %v8906 = vadd.f32 %v8778, %v8874
      %v8907 = vadd.f32 %v8779, %v8875
      %v8908 = vadd.f32 %v8780, %v8876
      %v8909 = vadd.f32 %v8781, %v8877
      %v8910 = vadd.f32 %v8782, %v8878
      %v8911 = vadd.f32 %v8783, %v8879
      %v8912 = vadd.f32 %v8784, %v8880
      %v8913 = vadd.f32 %v8785, %v8881
      %8914 = vset.pattern.permute.xlu0 6
      %8915 = vperm.xlu0 %8914, %v8146
      %v8916 = vpop.permute.xlu0 %8915
      %8918 = vset.pattern.permute.xlu0 6
      %8919 = vperm.xlu0 %8918, %v8147
      %v8920 = vpop.permute.xlu0 %8919
      %8922 = vset.pattern.permute.xlu0 6
      %8923 = vperm.xlu0 %8922, %v8148
      %v8924 = vpop.permute.xlu0 %8923
      %8926 = vset.pattern.permute.xlu0 6
      %8927 = vperm.xlu0 %8926, %v8149
      %v8928 = vpop.permute.xlu0 %8927
      %8930 = vset.pattern.permute.xlu0 6
      %8931 = vperm.xlu0 %8930, %v8150
      %v8932 = vpop.permute.xlu0 %8931
      %8934 = vset.pattern.permute.xlu0 6
      %8935 = vperm.xlu0 %8934, %v8151
      %v8936 = vpop.permute.xlu0 %8935
      %8938 = vset.pattern.permute.xlu0 6
      %8939 = vperm.xlu0 %8938, %v8152
      %v8940 = vpop.permute.xlu0 %8939
      %8942 = vset.pattern.permute.xlu0 6
      %8943 = vperm.xlu0 %8942, %v8153
      %v8944 = vpop.permute.xlu0 %8943
      %8946 = vset.pattern.permute.xlu0 6
      %8947 = vperm.xlu0 %8946, %v8154
      %v8948 = vpop.permute.xlu0 %8947
      %8950 = vset.pattern.permute.xlu0 6
      %8951 = vperm.xlu0 %8950, %v8155
      %v8952 = vpop.permute.xlu0 %8951
      %8954 = vset.pattern.permute.xlu0 6
      %8955 = vperm.xlu0 %8954, %v8156
      %v8956 = vpop.permute.xlu0 %8955
      %8958 = vset.pattern.permute.xlu0 6
      %8959 = vperm.xlu0 %8958, %v8157
      %v8960 = vpop.permute.xlu0 %8959
      %8962 = vset.pattern.permute.xlu0 6
      %8963 = vperm.xlu0 %8962, %v8158
      %v8964 = vpop.permute.xlu0 %8963
      %8966 = vset.pattern.permute.xlu0 6
      %8967 = vperm.xlu0 %8966, %v8159
      %v8968 = vpop.permute.xlu0 %8967
      %8970 = vset.pattern.permute.xlu0 6
      %8971 = vperm.xlu0 %8970, %v8160
      %v8972 = vpop.permute.xlu0 %8971
      %8974 = vset.pattern.permute.xlu0 6
      %8975 = vperm.xlu0 %8974, %v8161
      %v8976 = vpop.permute.xlu0 %8975
      %v8978 = vmul.f32 %v8916, %v1059
      %v8979 = vmul.f32 %v8916, %v1063
      %v8980 = vmul.f32 %v8920, %v1059
      %v8981 = vmul.f32 %v8920, %v1063
      %v8982 = vmul.f32 %v8924, %v1059
      %v8983 = vmul.f32 %v8924, %v1063
      %v8984 = vmul.f32 %v8928, %v1059
      %v8985 = vmul.f32 %v8928, %v1063
      %v8986 = vmul.f32 %v8932, %v1059
      %v8987 = vmul.f32 %v8932, %v1063
      %v8988 = vmul.f32 %v8936, %v1059
      %v8989 = vmul.f32 %v8936, %v1063
      %v8990 = vmul.f32 %v8940, %v1059
      %v8991 = vmul.f32 %v8940, %v1063
      %v8992 = vmul.f32 %v8944, %v1059
      %v8993 = vmul.f32 %v8944, %v1063
      %v8994 = vmul.f32 %v8948, %v1059
      %v8995 = vmul.f32 %v8948, %v1063
      %v8996 = vmul.f32 %v8952, %v1059
      %v8997 = vmul.f32 %v8952, %v1063
      %v8998 = vmul.f32 %v8956, %v1059
      %v8999 = vmul.f32 %v8956, %v1063
      %v9000 = vmul.f32 %v8960, %v1059
      %v9001 = vmul.f32 %v8960, %v1063
      %v9002 = vmul.f32 %v8964, %v1059
      %v9003 = vmul.f32 %v8964, %v1063
      %v9004 = vmul.f32 %v8968, %v1059
      %v9005 = vmul.f32 %v8968, %v1063
      %v9006 = vmul.f32 %v8972, %v1059
      %v9007 = vmul.f32 %v8972, %v1063
      %v9008 = vmul.f32 %v8976, %v1059
      %v9009 = vmul.f32 %v8976, %v1063
      %v9010 = vadd.f32 %v8882, %v8978
      %v9011 = vadd.f32 %v8883, %v8979
      %v9012 = vadd.f32 %v8884, %v8980
      %v9013 = vadd.f32 %v8885, %v8981
      %v9014 = vadd.f32 %v8886, %v8982
      %v9015 = vadd.f32 %v8887, %v8983
      %v9016 = vadd.f32 %v8888, %v8984
      %v9017 = vadd.f32 %v8889, %v8985
      %v9018 = vadd.f32 %v8890, %v8986
      %v9019 = vadd.f32 %v8891, %v8987
      %v9020 = vadd.f32 %v8892, %v8988
      %v9021 = vadd.f32 %v8893, %v8989
      %v9022 = vadd.f32 %v8894, %v8990
      %v9023 = vadd.f32 %v8895, %v8991
      %v9024 = vadd.f32 %v8896, %v8992
      %v9025 = vadd.f32 %v8897, %v8993
      %v9026 = vadd.f32 %v8898, %v8994
      %v9027 = vadd.f32 %v8899, %v8995
      %v9028 = vadd.f32 %v8900, %v8996
      %v9029 = vadd.f32 %v8901, %v8997
      %v9030 = vadd.f32 %v8902, %v8998
      %v9031 = vadd.f32 %v8903, %v8999
      %v9032 = vadd.f32 %v8904, %v9000
      %v9033 = vadd.f32 %v8905, %v9001
      %v9034 = vadd.f32 %v8906, %v9002
      %v9035 = vadd.f32 %v8907, %v9003
      %v9036 = vadd.f32 %v8908, %v9004
      %v9037 = vadd.f32 %v8909, %v9005
      %v9038 = vadd.f32 %v8910, %v9006
      %v9039 = vadd.f32 %v8911, %v9007
      %v9040 = vadd.f32 %v8912, %v9008
      %v9041 = vadd.f32 %v8913, %v9009
      %9042 = vset.pattern.permute.xlu0 7
      %9043 = vperm.xlu0 %9042, %v8146
      %v9044 = vpop.permute.xlu0 %9043
      %9046 = vset.pattern.permute.xlu0 7
      %9047 = vperm.xlu0 %9046, %v8147
      %v9048 = vpop.permute.xlu0 %9047
      %9050 = vset.pattern.permute.xlu0 7
      %9051 = vperm.xlu0 %9050, %v8148
      %v9052 = vpop.permute.xlu0 %9051
      %9054 = vset.pattern.permute.xlu0 7
      %9055 = vperm.xlu0 %9054, %v8149
      %v9056 = vpop.permute.xlu0 %9055
      %9058 = vset.pattern.permute.xlu0 7
      %9059 = vperm.xlu0 %9058, %v8150
      %v9060 = vpop.permute.xlu0 %9059
      %9062 = vset.pattern.permute.xlu0 7
      %9063 = vperm.xlu0 %9062, %v8151
      %v9064 = vpop.permute.xlu0 %9063
      %9066 = vset.pattern.permute.xlu0 7
      %9067 = vperm.xlu0 %9066, %v8152
      %v9068 = vpop.permute.xlu0 %9067
      %9070 = vset.pattern.permute.xlu0 7
      %9071 = vperm.xlu0 %9070, %v8153
      %v9072 = vpop.permute.xlu0 %9071
      %9074 = vset.pattern.permute.xlu0 7
      %9075 = vperm.xlu0 %9074, %v8154
      %v9076 = vpop.permute.xlu0 %9075
      %9078 = vset.pattern.permute.xlu0 7
      %9079 = vperm.xlu0 %9078, %v8155
      %v9080 = vpop.permute.xlu0 %9079
      %9082 = vset.pattern.permute.xlu0 7
      %9083 = vperm.xlu0 %9082, %v8156
      %v9084 = vpop.permute.xlu0 %9083
      %9086 = vset.pattern.permute.xlu0 7
      %9087 = vperm.xlu0 %9086, %v8157
      %v9088 = vpop.permute.xlu0 %9087
      %9090 = vset.pattern.permute.xlu0 7
      %9091 = vperm.xlu0 %9090, %v8158
      %v9092 = vpop.permute.xlu0 %9091
      %9094 = vset.pattern.permute.xlu0 7
      %9095 = vperm.xlu0 %9094, %v8159
      %v9096 = vpop.permute.xlu0 %9095
      %9098 = vset.pattern.permute.xlu0 7
      %9099 = vperm.xlu0 %9098, %v8160
      %v9100 = vpop.permute.xlu0 %9099
      %9102 = vset.pattern.permute.xlu0 7
      %9103 = vperm.xlu0 %9102, %v8161
      %v9104 = vpop.permute.xlu0 %9103
      %v9106 = vmul.f32 %v9044, %v1195
      %v9107 = vmul.f32 %v9044, %v1199
      %v9108 = vmul.f32 %v9048, %v1195
      %v9109 = vmul.f32 %v9048, %v1199
      %v9110 = vmul.f32 %v9052, %v1195
      %v9111 = vmul.f32 %v9052, %v1199
      %v9112 = vmul.f32 %v9056, %v1195
      %v9113 = vmul.f32 %v9056, %v1199
      %v9114 = vmul.f32 %v9060, %v1195
      %v9115 = vmul.f32 %v9060, %v1199
      %v9116 = vmul.f32 %v9064, %v1195
      %v9117 = vmul.f32 %v9064, %v1199
      %v9118 = vmul.f32 %v9068, %v1195
      %v9119 = vmul.f32 %v9068, %v1199
      %v9120 = vmul.f32 %v9072, %v1195
      %v9121 = vmul.f32 %v9072, %v1199
      %v9122 = vmul.f32 %v9076, %v1195
      %v9123 = vmul.f32 %v9076, %v1199
      %v9124 = vmul.f32 %v9080, %v1195
      %v9125 = vmul.f32 %v9080, %v1199
      %v9126 = vmul.f32 %v9084, %v1195
      %v9127 = vmul.f32 %v9084, %v1199
      %v9128 = vmul.f32 %v9088, %v1195
      %v9129 = vmul.f32 %v9088, %v1199
      %v9130 = vmul.f32 %v9092, %v1195
      %v9131 = vmul.f32 %v9092, %v1199
      %v9132 = vmul.f32 %v9096, %v1195
      %v9133 = vmul.f32 %v9096, %v1199
      %v9134 = vmul.f32 %v9100, %v1195
      %v9135 = vmul.f32 %v9100, %v1199
      %v9136 = vmul.f32 %v9104, %v1195
      %v9137 = vmul.f32 %v9104, %v1199
      %v9138 = vadd.f32 %v9010, %v9106
      %v9139 = vadd.f32 %v9011, %v9107
      %v9140 = vadd.f32 %v9012, %v9108
      %v9141 = vadd.f32 %v9013, %v9109
      %v9142 = vadd.f32 %v9014, %v9110
      %v9143 = vadd.f32 %v9015, %v9111
      %v9144 = vadd.f32 %v9016, %v9112
      %v9145 = vadd.f32 %v9017, %v9113
      %v9146 = vadd.f32 %v9018, %v9114
      %v9147 = vadd.f32 %v9019, %v9115
      %v9148 = vadd.f32 %v9020, %v9116
      %v9149 = vadd.f32 %v9021, %v9117
      %v9150 = vadd.f32 %v9022, %v9118
      %v9151 = vadd.f32 %v9023, %v9119
      %v9152 = vadd.f32 %v9024, %v9120
      %v9153 = vadd.f32 %v9025, %v9121
      %v9154 = vadd.f32 %v9026, %v9122
      %v9155 = vadd.f32 %v9027, %v9123
      %v9156 = vadd.f32 %v9028, %v9124
      %v9157 = vadd.f32 %v9029, %v9125
      %v9158 = vadd.f32 %v9030, %v9126
      %v9159 = vadd.f32 %v9031, %v9127
      %v9160 = vadd.f32 %v9032, %v9128
      %v9161 = vadd.f32 %v9033, %v9129
      %v9162 = vadd.f32 %v9034, %v9130
      %v9163 = vadd.f32 %v9035, %v9131
      %v9164 = vadd.f32 %v9036, %v9132
      %v9165 = vadd.f32 %v9037, %v9133
      %v9166 = vadd.f32 %v9038, %v9134
      %v9167 = vadd.f32 %v9039, %v9135
      %v9168 = vadd.f32 %v9040, %v9136
      %v9169 = vadd.f32 %v9041, %v9137
      %v9170 = vmax.f32 %v9138, 0.0
      %v9171 = vmax.f32 %v9139, 0.0
      %v9172 = vmax.f32 %v9140, 0.0
      %v9173 = vmax.f32 %v9141, 0.0
      %v9174 = vmax.f32 %v9142, 0.0
      %v9175 = vmax.f32 %v9143, 0.0
      %v9176 = vmax.f32 %v9144, 0.0
      %v9177 = vmax.f32 %v9145, 0.0
      %v9178 = vmax.f32 %v9146, 0.0
      %v9179 = vmax.f32 %v9147, 0.0
      %v9180 = vmax.f32 %v9148, 0.0
      %v9181 = vmax.f32 %v9149, 0.0
      %v9182 = vmax.f32 %v9150, 0.0
      %v9183 = vmax.f32 %v9151, 0.0
      %v9184 = vmax.f32 %v9152, 0.0
      %v9185 = vmax.f32 %v9153, 0.0
      %v9186 = vmax.f32 %v9154, 0.0
      %v9187 = vmax.f32 %v9155, 0.0
      %v9188 = vmax.f32 %v9156, 0.0
      %v9189 = vmax.f32 %v9157, 0.0
      %v9190 = vmax.f32 %v9158, 0.0
      %v9191 = vmax.f32 %v9159, 0.0
      %v9192 = vmax.f32 %v9160, 0.0
      %v9193 = vmax.f32 %v9161, 0.0
      %v9194 = vmax.f32 %v9162, 0.0
      %v9195 = vmax.f32 %v9163, 0.0
      %v9196 = vmax.f32 %v9164, 0.0
      %v9197 = vmax.f32 %v9165, 0.0
      %v9198 = vmax.f32 %v9166, 0.0
      %v9199 = vmax.f32 %v9167, 0.0
      %v9200 = vmax.f32 %v9168, 0.0
      %v9201 = vmax.f32 %v9169, 0.0
      %v9202 = vld [vmem:[%s2 + $0x38] sm:$0xff]
      %9203 = vmatprep.subr.mxu0 %v9171
      %9204 = vmatpush1.msra.mxu0 %v9170
      %9205 = vmatprep.subr.mxu0 %v9173
      %9206 = vmatpush1.msra.mxu0 %v9172
      %9207 = vmatprep.subr.mxu0 %v9175
      %9208 = vmatpush1.msra.mxu0 %v9174
      %9209 = vmatprep.subr.mxu0 %v9177
      %9210 = vmatpush1.msra.mxu0 %v9176
      %9211 = vmatprep.subr.mxu0 %v9179
      %9212 = vmatpush1.msra.mxu0 %v9178
      %9213 = vmatprep.subr.mxu0 %v9181
      %9214 = vmatpush1.msra.mxu0 %v9180
      %9215 = vmatprep.subr.mxu0 %v9183
      %9216 = vmatpush1.msra.mxu0 %v9182
      %9217 = vmatprep.subr.mxu0 %v9185
      %9218 = vmatpush1.msra.mxu0 %v9184
      %9219 = vmatprep.subr.mxu0 %v9187
      %9220 = vmatpush1.msra.mxu0 %v9186
      %9221 = vmatprep.subr.mxu0 %v9189
      %9222 = vmatpush1.msra.mxu0 %v9188
      %9223 = vmatprep.subr.mxu0 %v9191
      %9224 = vmatpush1.msra.mxu0 %v9190
      %9225 = vmatprep.subr.mxu0 %v9193
      %9226 = vmatpush1.msra.mxu0 %v9192
      %9227 = vmatprep.subr.mxu0 %v9195
      %9228 = vmatpush1.msra.mxu0 %v9194
      %9229 = vmatprep.subr.mxu0 %v9197
      %9230 = vmatpush1.msra.mxu0 %v9196
      %9231 = vmatprep.subr.mxu0 %v9199
      %9232 = vmatpush1.msra.mxu0 %v9198
      %9233 = vmatprep.subr.mxu0 %v9201
      %9234 = vmatpush1.msra.mxu0 %v9200
      %9235 = vmatprep.subr.mxu0 0.0
      %9236 = vmatpush1.msra.mxu0 0.0
      %9237 = vmatprep.subr.mxu0 0.0
      %9238 = vmatpush1.msra.mxu0 0.0
      %9239 = vmatprep.subr.mxu0 0.0
      %9240 = vmatpush1.msra.mxu0 0.0
      %9241 = vmatprep.subr.mxu0 0.0
      %9242 = vmatpush1.msra.mxu0 0.0
      %9243 = vmatprep.subr.mxu0 0.0
      %9244 = vmatpush1.msra.mxu0 0.0
      %9245 = vmatprep.subr.mxu0 0.0
      %9246 = vmatpush1.msra.mxu0 0.0
      %9247 = vmatprep.subr.mxu0 0.0
      %9248 = vmatpush1.msra.mxu0 0.0
      %9249 = vmatprep.subr.mxu0 0.0
      %9250 = vmatpush1.msra.mxu0 0.0
      %9251 = vmatprep.subr.mxu0 0.0
      %9252 = vmatpush1.msra.mxu0 0.0
      %9253 = vmatprep.subr.mxu0 0.0
      %9254 = vmatpush1.msra.mxu0 0.0
      %9255 = vmatprep.subr.mxu0 0.0
      %9256 = vmatpush1.msra.mxu0 0.0
      %9257 = vmatprep.subr.mxu0 0.0
      %9258 = vmatpush1.msra.mxu0 0.0
      %9259 = vmatprep.subr.mxu0 0.0
      %9260 = vmatpush1.msra.mxu0 0.0
      %9261 = vmatprep.subr.mxu0 0.0
      %9262 = vmatpush1.msra.mxu0 0.0
      %9263 = vmatprep.subr.mxu0 0.0
      %9264 = vmatpush1.msra.mxu0 0.0
      %9265 = vmatprep.subr.mxu0 0.0
      %9266 = vmatpush1.msra.mxu0 0.0
      %9267 = vmatprep.mubr.f32.mxu0 0.0
      %9268 = vmatmul.mubr.f32.gmra.mrb[0].mxu0 %v9202
      %v9269 = vpop.f32.mrb[0].mxu0
      %v9270 = vadd.f32 0.0, %v9269
      %v9271 = vpop.f32.mrb[0].mxu0
      %v9272 = vadd.f32 0.0, %v9271
      %9273 = vdwg.mxu0
      %v9274 = vadd.f32 %v8144, %v9270
      %v9275 = vadd.f32 %v8145, %v9272
      %9276 = vst [vmem:[%s172] sm:$0xff] %v9274
      %9277 = vst [vmem:[%s172 + $0x8] sm:$0xff] %v9275
      %s9278 = smul.u32 2, %s14
      %p9279 = scmp.lt.s32.totalorder %s9278, 3
      %s9280 = scalar_select %p9279, %s9278, 3
      %s9281 = smul.addr %s9280, 8
      %s9282 = scalar_lea.vmem %s3, %s9281
      // Predicated region
      $region33: #{cell_net_forward.1} parent=31 // pred_check
        %p9283 = pneg %p100
      $region34: #{cell_net_forward.1} parent=31 // pred_check_branch
        %9285 = sbr.rel (%p9283) target = $region36
      $region35: #{cell_net_forward.1} parent=31 // pred_region
        %s9286 = smul.u32 2, %s14
      $region36: #{cell_net_forward.1} parent=31 // pred_fallthru
        _
    $region32: #{cell_net_forward.1} parent=5 // pred_fallthru
      _
    %p9287 = scmp.le.s32.totalorder 2, %s9
    // Predicated region
    $region37: #{cell_net_forward.1} parent=5 // pred_check
      %p9288 = pneg %p9287
    $region38: #{cell_net_forward.1} parent=5 // pred_check_branch
      %9290 = sbr.rel (%p9288) target = $region40
    $region39: #{cell_net_forward.1} parent=5 // pred_region
      %s9291 = ssub.s32 %s9, 2
      // Predicated region
      $region41: #{cell_net_forward.1} parent=39 // pred_check
        %p9292 = pneg %p106
      $region42: #{cell_net_forward.1} parent=39 // pred_check_branch
        %9294 = sbr.rel (%p9292) target = $region44
      $region43: #{cell_net_forward.1} parent=39 // pred_region
        %s9295 = smul.u32 2, %s15
        %p9296 = scmp.lt.s32.totalorder %s9295, 3
        %s9297 = scalar_select %p9296, %s9295, 3
        %s9298 = smul.addr %s9297, 8
        %s9299 = scalar_lea.vmem %s3, %s9298
      $region44: #{cell_net_forward.1} parent=39 // pred_fallthru
        _
    $region40: #{cell_net_forward.1} parent=5 // pred_fallthru
      _
  $region6: #{cell_net_forward.1} parent=0 // loop_footer
    %s13 = sadd.s32 1, %s9
  $region7: #{cell_net_forward.1} parent=0 // loop_footer_branch
    %8 = sbr.rel target = $region3
  $region8: #{cell_net_forward.1} parent=0 // loop_exit
    _

</llo_original>
